<compile_context>
chip_gen: v7x
topology: tpu7x:2x2x1
jax: 0.10.0
libtpu: 0.0.40
codegen_flags: <defaults>
</compile_context>

<pallas_src>
import jax
import jax.numpy as jnp
from jax.experimental import pallas as pl
from jax.experimental.pallas import tpu as pltpu

# ----------------------------------------------------------------------------
# Scaled-down but structurally identical config
# (module: img=256, patch=16, in_chans=1, embed=256, depth=4, heads=4, mlp=2.0)
# ----------------------------------------------------------------------------
IMG = 32
PATCH = 16
IN_CHANS = 1
EMBED = 256
DEPTH = 4
HEADS = 4
MLP_RATIO = 2.0
NUM_CLASSES = 2

HEAD_DIM = EMBED // HEADS
MLP_HIDDEN = int(EMBED * MLP_RATIO)
NUM_PATCHES = (IMG // PATCH) ** 2
SEQ = NUM_PATCHES + 1                       # cls + patches
SEQ_PAD = ((SEQ + 7) // 8) * 8              # pad rows to a sublane multiple of 8
PATCH_DIM = IN_CHANS * PATCH * PATCH
LN_EPS = 1e-5                               # nn.LayerNorm default eps
ATTN_SCALE = HEAD_DIM ** -0.5
NEG_INF = -1e30


# ----------------------------------------------------------------------------
# In-kernel math helpers (pure f32 elementwise; safe on every TPU generation)
# ----------------------------------------------------------------------------
def _layernorm(x, g, b):
    mean = jnp.mean(x, axis=-1, keepdims=True)
    var = jnp.mean((x - mean) ** 2, axis=-1, keepdims=True)
    return (x - mean) * jax.lax.rsqrt(var + LN_EPS) * g + b


def _erf(x):
    # Abramowitz & Stegun 7.1.26 rational approximation (|err| < 1.5e-7), built
    # only from exp / mul / where so it lowers on every TPU generation.
    # TODO(synk): switch to lax.erf once Mosaic guarantees an erf lowering rule.
    a1, a2, a3, a4, a5 = (0.254829592, -0.284496736, 1.421413741,
                          -1.453152027, 1.061405429)
    p = 0.3275911
    ax = jnp.abs(x)
    t = 1.0 / (1.0 + p * ax)
    poly = ((((a5 * t + a4) * t + a3) * t + a2) * t + a1) * t
    e = 1.0 - poly * jnp.exp(-ax * ax)
    return jnp.where(x >= 0, e, -e)


def _gelu_exact(x):
    # exact (erf-based) GELU == nn.GELU default
    return 0.5 * x * (1.0 + _erf(x * 0.7071067811865476))


# ----------------------------------------------------------------------------
# Fused encoder kernel: one grid step = TB images, all DEPTH layers in-kernel.
# Weights are VMEM-resident (constant index_map, full [DEPTH, ...] blocks).
# ----------------------------------------------------------------------------
def _encoder_kernel(tok_ref, add_ref, pw_ref,
                    qkvw_ref, projw_ref, fc1w_ref, fc2w_ref,
                    qkvb_ref, fc1b_ref, lnp_ref, nf_ref,
                    o_ref):
    bf16 = jnp.bfloat16
    TB, S, _ = tok_ref.shape                 # (TB, SEQ_PAD, PATCH_DIM)
    D = EMBED
    M = TB * S                               # flattened rows for dense matmuls

    # ---- fused patch-embed + pos-embed + cls token --------------------------
    # tokens row 0 is a zero "cls slot", pad rows are zero; add_ref carries
    # (cls_token + pos[0]) / (patch_bias + pos[i]) / 0 per row, so a single
    # matmul + broadcast add reproduces timm PatchEmbed + pos-embed + cls.
    tok = tok_ref[...].reshape(M, PATCH_DIM)
    emb = jnp.dot(tok.astype(bf16), pw_ref[...],
                  preferred_element_type=jnp.float32)          # [M, D] f32
    x = (emb.reshape(TB, S, D) + add_ref[...]).reshape(M, D)   # broadcast TB

    # mask padded key rows (rows >= SEQ) out of every softmax
    kidx = jax.lax.broadcasted_iota(jnp.int32, (1, 1, S), 2)
    kbias = jnp.where(kidx < SEQ, jnp.float32(0.0), jnp.float32(NEG_INF))

    # ---- transformer blocks (static unroll; weights indexed statically) -----
    for d in range(DEPTH):
        ln = lnp_ref[d]                      # [6, D]: n1_g,n1_b,n2_g,n2_b,proj_b,fc2_b

        # attention: LN -> qkv -> per-head batched softmax(QK^T)V -> one proj
        h = _layernorm(x, ln[0:1, :], ln[1:2, :])
        qkv = jnp.dot(h.astype(bf16), qkvw_ref[d],
                      preferred_element_type=jnp.float32) + qkvb_ref[d]
        qkv = qkv.astype(bf16).reshape(TB, S, 3 * D)           # single cast

        heads_out = []
        for hd in range(HEADS):              # heads are lane slices of qkv
            lo = hd * HEAD_DIM
            q = qkv[:, :, lo:lo + HEAD_DIM]
            k = qkv[:, :, D + lo:D + lo + HEAD_DIM]
            v = qkv[:, :, 2 * D + lo:2 * D + lo + HEAD_DIM]
            s = jnp.einsum('bqd,bkd->bqk', q, k,
                           preferred_element_type=jnp.float32) * ATTN_SCALE
            s = s + kbias
            m = jnp.max(s, axis=-1, keepdims=True)
            e = jnp.exp(s - m)
            p = e * pl.reciprocal(jnp.sum(e, axis=-1, keepdims=True), approx=True)
            heads_out.append(
                jnp.einsum('bqk,bkd->bqd', p.astype(bf16), v,
                           preferred_element_type=jnp.float32))
        attn = jnp.concatenate(heads_out, axis=-1).reshape(M, D)   # concat==head cat
        attn = jnp.dot(attn.astype(bf16), projw_ref[d],            # one 256-deep proj
                       preferred_element_type=jnp.float32) + ln[4:5, :]
        x = x + attn                                                # residual

        # MLP: LN -> fc1 -> exact GELU -> fc2 (+ residual)
        h = _layernorm(x, ln[2:3, :], ln[3:4, :])
        h = jnp.dot(h.astype(bf16), fc1w_ref[d],
                    preferred_element_type=jnp.float32) + fc1b_ref[d]
        h = _gelu_exact(h)
        h = jnp.dot(h.astype(bf16), fc2w_ref[d],
                    preferred_element_type=jnp.float32) + ln[5:6, :]
        x = x + h

    # ---- final LayerNorm on the cls row only, lane-dense (256) store --------
    cls = x.reshape(TB, S, D)[:, 0:1, :]                       # [TB, 1, D]
    o_ref[...] = _layernorm(cls, nf_ref[0:1, :], nf_ref[1:2, :])


# ----------------------------------------------------------------------------
# Batch tile: keep grid extent >= 2 (v7x has 2 TensorCores) while making
# M = TB*SEQ_PAD as large as VMEM allows at production scale.
# ----------------------------------------------------------------------------
def _pick_batch_tile(batch):
    for tb in (16, 8, 4, 2):
        if batch % tb == 0 and batch // tb >= 2:
            return tb
    return 1


# ----------------------------------------------------------------------------
# Model wrapper (MAE-ViT encoder, mask_ratio = 0) + head B
# ----------------------------------------------------------------------------
def dro_forward(params, features, labels=None):
    """Reproduces DRO.forward(features) with labels=None -> (None, logits)."""
    B, C, H, W = features.shape
    gh, gw = H // PATCH, W // PATCH
    bf16 = jnp.bfloat16

    # patchify (== Conv2d(in_chans, embed, k=patch, s=patch) + flatten + transpose)
    patches = features.reshape(B, C, gh, PATCH, gw, PATCH)
    patches = patches.transpose(0, 2, 4, 1, 3, 5).reshape(B, NUM_PATCHES, PATCH_DIM)

    # token matrix padded to SEQ_PAD rows: [cls slot (zeros) | patches | zero pad]
    tok_parts = [jnp.zeros((B, 1, PATCH_DIM), jnp.float32), patches]
    add_parts = [params['cls_token'] + params['pos_embed'][:, :1, :],
                 params['pos_embed'][:, 1:, :] + params['patch_b'].reshape(1, 1, EMBED)]
    if SEQ_PAD > SEQ:
        tok_parts.append(jnp.zeros((B, SEQ_PAD - SEQ, PATCH_DIM), jnp.float32))
        add_parts.append(jnp.zeros((1, SEQ_PAD - SEQ, EMBED), jnp.float32))
    tokens = jnp.concatenate(tok_parts, axis=1)        # [B, SEQ_PAD, PATCH_DIM]
    add0 = jnp.concatenate(add_parts, axis=1)          # [1, SEQ_PAD, EMBED]

    # NOTE: random_masking with mask_ratio=0 keeps every token; its shuffle is a
    # permutation of non-cls tokens to which the cls output is invariant -> omitted.

    blocks = params['blocks']
    stack = lambda name: jnp.stack([blk[name] for blk in blocks])
    qkv_w = stack('qkv_w').astype(bf16)                # [DEPTH, D, 3D]   (resident)
    proj_w = stack('proj_w').astype(bf16)              # [DEPTH, D, D]
    fc1_w = stack('fc1_w').astype(bf16)                # [DEPTH, D, H]
    fc2_w = stack('fc2_w').astype(bf16)                # [DEPTH, H, D]
    qkv_b = stack('qkv_b')[:, None, :]                 # [DEPTH, 1, 3D]
    fc1_b = stack('fc1_b')[:, None, :]                 # [DEPTH, 1, H]
    # pack the EMBED-wide per-layer vectors into one array (fewer tiny DMAs)
    ln_pack = jnp.stack([jnp.stack([blk['n1_g'], blk['n1_b'],
                                    blk['n2_g'], blk['n2_b'],
                                    blk['proj_b'], blk['fc2_b']])
                         for blk in blocks])           # [DEPTH, 6, D]
    nf = jnp.stack([params['norm_g'], params['norm_b']])   # [2, D]
    patch_w = params['patch_w'].astype(bf16)

    TB = _pick_batch_tile(B)
    assert B % TB == 0
    resident = lambda b: (0, 0, 0)                     # constant index -> VMEM-resident

    cls_out = pl.pallas_call(
        _encoder_kernel,
        out_shape=jax.ShapeDtypeStruct((B, 1, EMBED), jnp.float32),
        grid=(B // TB,),
        in_specs=[
            pl.BlockSpec((TB, SEQ_PAD, PATCH_DIM), lambda b: (b, 0, 0)),   # tokens
            pl.BlockSpec((1, SEQ_PAD, EMBED), resident),                   # add0
            pl.BlockSpec((PATCH_DIM, EMBED), lambda b: (0, 0)),            # patch_w
            pl.BlockSpec((DEPTH, EMBED, 3 * EMBED), resident),             # qkv_w
            pl.BlockSpec((DEPTH, EMBED, EMBED), resident),                 # proj_w
            pl.BlockSpec((DEPTH, EMBED, MLP_HIDDEN), resident),            # fc1_w
            pl.BlockSpec((DEPTH, MLP_HIDDEN, EMBED), resident),            # fc2_w
            pl.BlockSpec((DEPTH, 1, 3 * EMBED), resident),                 # qkv_b
            pl.BlockSpec((DEPTH, 1, MLP_HIDDEN), resident),                # fc1_b
            pl.BlockSpec((DEPTH, 6, EMBED), resident),                     # ln/proj_b/fc2_b
            pl.BlockSpec((2, EMBED), lambda b: (0, 0)),                    # final norm
        ],
        out_specs=pl.BlockSpec((TB, 1, EMBED), lambda b: (b, 0, 0)),       # cls rows only
        compiler_params=pltpu.CompilerParams(
            dimension_semantics=("parallel",),
            # 48 MiB is safe on v7x (64 MiB VMEM/TC); raise toward ~100 MiB on
            # v5e/v6e (128 MiB) when growing TB at production SEQ=257 scale.
            vmem_limit_bytes=48 * 1024 * 1024,
        ),
    )(tokens, add0, patch_w, qkv_w, proj_w, fc1_w, fc2_w,
      qkv_b, fc1_b, ln_pack, nf)

    cls_output = cls_out[:, 0, :]                                  # emb[:, 0, :]
    # head B (256 -> 2): lane-degenerate output, left to plain XLA per perf review
    output = cls_output @ params['B_w'] + params['B_b']

    # TODO(synk): labels branch (CrossEntropyLoss + DRO spectral penalty via
    # torch.linalg.svd of W_minus_half @ W.T) has no Pallas equivalent; loss=None.
    loss = None
    return loss, output


# ----------------------------------------------------------------------------
# Deterministic parameter initialization (shapes from the module's __init__)
# ----------------------------------------------------------------------------
def init_params(key):
    keys = iter(jax.random.split(key, 16 * DEPTH + 16))

    def nrm(shape, scale=0.02):
        return (scale * jax.random.normal(next(keys), shape)).astype(jnp.float32)

    blocks = []
    for _ in range(DEPTH):
        blocks.append({
            'n1_g': jnp.ones((EMBED,), jnp.float32),
            'n1_b': jnp.zeros((EMBED,), jnp.float32),
            'qkv_w': nrm((EMBED, 3 * EMBED)),
            'qkv_b': jnp.zeros((3 * EMBED,), jnp.float32),
            'proj_w': nrm((EMBED, EMBED)),
            'proj_b': jnp.zeros((EMBED,), jnp.float32),
            'n2_g': jnp.ones((EMBED,), jnp.float32),
            'n2_b': jnp.zeros((EMBED,), jnp.float32),
            'fc1_w': nrm((EMBED, MLP_HIDDEN)),
            'fc1_b': jnp.zeros((MLP_HIDDEN,), jnp.float32),
            'fc2_w': nrm((MLP_HIDDEN, EMBED)),
            'fc2_b': jnp.zeros((EMBED,), jnp.float32),
        })

    return {
        'patch_w': nrm((PATCH_DIM, EMBED)),            # Conv2d weight, flattened
        'patch_b': jnp.zeros((EMBED,), jnp.float32),
        'pos_embed': nrm((1, SEQ, EMBED)),
        'cls_token': nrm((1, 1, EMBED)),
        'blocks': blocks,
        'norm_g': jnp.ones((EMBED,), jnp.float32),
        'norm_b': jnp.zeros((EMBED,), jnp.float32),
        'B_w': nrm((EMBED, NUM_CLASSES)),              # nn.Linear(256, 2)
        'B_b': jnp.zeros((NUM_CLASSES,), jnp.float32),
    }


if __name__ == "__main__":
    key = jax.random.PRNGKey(0)
    k_param, k_feat = jax.random.split(key)
    params = init_params(k_param)
    # layout: NCHW, like the PyTorch module (batch=2, channels=1, 32x32 image)
    features = jax.random.normal(k_feat, (2, IN_CHANS, IMG, IMG), dtype=jnp.float32)

    loss, logits = jax.jit(dro_forward)(params, features)
    logits = jax.block_until_ready(logits)
    assert logits.shape == (2, NUM_CLASSES)
    assert bool(jnp.all(jnp.isfinite(logits)))
    assert loss is None
    print("KERNEL_OK")
</pallas_src>

<mosaic_0001>
module attributes {stable_mosaic.version = 11 : i64} {
  func.func @_encoder_kernel(%arg0: i32, %arg1: memref<1x8x256xf32, #tpu.memory_space<vmem>>, %arg2: memref<1x8x256xf32, #tpu.memory_space<vmem>>, %arg3: memref<256x256xbf16, #tpu.memory_space<vmem>>, %arg4: memref<4x256x768xbf16, #tpu.memory_space<vmem>>, %arg5: memref<4x256x256xbf16, #tpu.memory_space<vmem>>, %arg6: memref<4x256x512xbf16, #tpu.memory_space<vmem>>, %arg7: memref<4x512x256xbf16, #tpu.memory_space<vmem>>, %arg8: memref<4x1x768xf32, #tpu.memory_space<vmem>>, %arg9: memref<4x1x512xf32, #tpu.memory_space<vmem>>, %arg10: memref<4x6x256xf32, #tpu.memory_space<vmem>>, %arg11: memref<2x256xf32, #tpu.memory_space<vmem>>, %arg12: memref<1x1x256xf32, #tpu.memory_space<vmem>>) attributes {dimension_semantics = [#tpu.dimension_semantics<parallel>], iteration_bounds = array<i64: 2>, scalar_prefetch = 0 : i64, scratch_operands = 0 : i64, tpu.core_type = #tpu.core_type<tc>, window_params = [{transform_indices = @transform_0, window_bounds = array<i64: 1, 8, 256>}, {pipeline_mode = #tpu.pipeline_mode<synchronous>, transform_indices = @transform_1, window_bounds = array<i64: 1, 8, 256>}, {pipeline_mode = #tpu.pipeline_mode<synchronous>, transform_indices = @transform_2, window_bounds = array<i64: 256, 256>}, {pipeline_mode = #tpu.pipeline_mode<synchronous>, transform_indices = @transform_3, window_bounds = array<i64: 4, 256, 768>}, {pipeline_mode = #tpu.pipeline_mode<synchronous>, transform_indices = @transform_4, window_bounds = array<i64: 4, 256, 256>}, {pipeline_mode = #tpu.pipeline_mode<synchronous>, transform_indices = @transform_5, window_bounds = array<i64: 4, 256, 512>}, {pipeline_mode = #tpu.pipeline_mode<synchronous>, transform_indices = @transform_6, window_bounds = array<i64: 4, 512, 256>}, {pipeline_mode = #tpu.pipeline_mode<synchronous>, transform_indices = @transform_7, window_bounds = array<i64: 4, 1, 768>}, {pipeline_mode = #tpu.pipeline_mode<synchronous>, transform_indices = @transform_8, window_bounds = array<i64: 4, 1, 512>}, {pipeline_mode = #tpu.pipeline_mode<synchronous>, transform_indices = @transform_9, window_bounds = array<i64: 4, 6, 256>}, {pipeline_mode = #tpu.pipeline_mode<synchronous>, transform_indices = @transform_10, window_bounds = array<i64: 2, 256>}, {transform_indices = @transform_11, window_bounds = array<i64: 1, 1, 256>}]} {
    %c0 = arith.constant 0 : index
    %c0_0 = arith.constant 0 : index
    %c0_1 = arith.constant 0 : index
    %0 = vector.load %arg1[%c0, %c0_0, %c0_1] : memref<1x8x256xf32, #tpu.memory_space<vmem>>, vector<1x8x256xf32>
    %1 = vector.shape_cast %0 : vector<1x8x256xf32> to vector<8x256xf32>
    %2 = arith.truncf %1 : vector<8x256xf32> to vector<8x256xbf16>
    %c0_2 = arith.constant 0 : index
    %c0_3 = arith.constant 0 : index
    %3 = vector.load %arg3[%c0_2, %c0_3] : memref<256x256xbf16, #tpu.memory_space<vmem>>, vector<256x256xbf16>
    %cst = arith.constant dense<0.000000e+00> : vector<8x256xf32>
    %4 = tpu.matmul %2, %3, %cst {dimension_numbers = #tpu.dot_dimension_numbers<[1], [0], [0], [1], [0, 0, 1, 1], [], []>} : vector<8x256xbf16>, vector<256x256xbf16>, vector<8x256xf32> -> vector<8x256xf32>
    %5 = vector.shape_cast %4 : vector<8x256xf32> to vector<1x8x256xf32>
    %c0_4 = arith.constant 0 : index
    %c0_5 = arith.constant 0 : index
    %c0_6 = arith.constant 0 : index
    %6 = vector.load %arg2[%c0_4, %c0_5, %c0_6] : memref<1x8x256xf32, #tpu.memory_space<vmem>>, vector<1x8x256xf32>
    %7 = arith.addf %5, %6 : vector<1x8x256xf32>
    %8 = vector.shape_cast %7 : vector<1x8x256xf32> to vector<8x256xf32>
    %9 = tpu.iota {dimensions = array<i32: 2>} : vector<1x1x8xi32>
    %c5_i32 = arith.constant 5 : i32
    %10 = vector.broadcast %c5_i32 : i32 to vector<1x1x8xi32>
    %11 = arith.cmpi slt, %9, %10 : vector<1x1x8xi32>
    %cst_7 = arith.constant 0.000000e+00 : f32
    %cst_8 = arith.constant -1.000000e+30 : f32
    %12 = vector.broadcast %cst_7 : f32 to vector<1x1x8xf32>
    %13 = vector.broadcast %cst_8 : f32 to vector<1x1x8xf32>
    %14 = arith.select %11, %12, %13 : vector<1x1x8xi1>, vector<1x1x8xf32>
    %c0_9 = arith.constant 0 : index
    %c0_10 = arith.constant 0 : index
    %c0_11 = arith.constant 0 : index
    %15 = vector.load %arg10[%c0_9, %c0_10, %c0_11] : memref<4x6x256xf32, #tpu.memory_space<vmem>>, vector<1x6x256xf32>
    %16 = vector.shape_cast %15 : vector<1x6x256xf32> to vector<6x256xf32>
    %17 = vector.extract_strided_slice %16 {offsets = [0, 0], sizes = [1, 256], strides = [1, 1]} : vector<6x256xf32> to vector<1x256xf32>
    %18 = vector.extract_strided_slice %16 {offsets = [1, 0], sizes = [1, 256], strides = [1, 1]} : vector<6x256xf32> to vector<1x256xf32>
    %cst_12 = arith.constant dense<0.000000e+00> : vector<8xf32>
    %19 = vector.multi_reduction <add>, %8, %cst_12 [1] : vector<8x256xf32> to vector<8xf32>
    %20 = vector.shape_cast %19 : vector<8xf32> to vector<8x1xf32>
    %cst_13 = arith.constant 2.560000e+02 : f32
    %21 = vector.broadcast %cst_13 : f32 to vector<8x1xf32>
    %22 = arith.divf %20, %21 : vector<8x1xf32>
    %23 = vector.broadcast %22 : vector<8x1xf32> to vector<8x256xf32>
    %24 = arith.subf %8, %23 : vector<8x256xf32>
    %25 = arith.mulf %24, %24 : vector<8x256xf32>
    %cst_14 = arith.constant dense<0.000000e+00> : vector<8xf32>
    %26 = vector.multi_reduction <add>, %25, %cst_14 [1] : vector<8x256xf32> to vector<8xf32>
    %27 = vector.shape_cast %26 : vector<8xf32> to vector<8x1xf32>
    %cst_15 = arith.constant 2.560000e+02 : f32
    %28 = vector.broadcast %cst_15 : f32 to vector<8x1xf32>
    %29 = arith.divf %27, %28 : vector<8x1xf32>
    %30 = vector.broadcast %22 : vector<8x1xf32> to vector<8x256xf32>
    %31 = arith.subf %8, %30 : vector<8x256xf32>
    %cst_16 = arith.constant 9.99999974E-6 : f32
    %32 = vector.broadcast %cst_16 : f32 to vector<8x1xf32>
    %33 = arith.addf %29, %32 : vector<8x1xf32>
    %34 = math.rsqrt %33 : vector<8x1xf32>
    %35 = vector.broadcast %34 : vector<8x1xf32> to vector<8x256xf32>
    %36 = arith.mulf %31, %35 : vector<8x256xf32>
    %37 = vector.broadcast %17 : vector<1x256xf32> to vector<8x256xf32>
    %38 = arith.mulf %36, %37 : vector<8x256xf32>
    %39 = vector.broadcast %18 : vector<1x256xf32> to vector<8x256xf32>
    %40 = arith.addf %38, %39 : vector<8x256xf32>
    %41 = arith.truncf %40 : vector<8x256xf32> to vector<8x256xbf16>
    %c0_17 = arith.constant 0 : index
    %c0_18 = arith.constant 0 : index
    %c0_19 = arith.constant 0 : index
    %42 = vector.load %arg4[%c0_17, %c0_18, %c0_19] : memref<4x256x768xbf16, #tpu.memory_space<vmem>>, vector<1x256x768xbf16>
    %43 = vector.shape_cast %42 : vector<1x256x768xbf16> to vector<256x768xbf16>
    %cst_20 = arith.constant dense<0.000000e+00> : vector<8x768xf32>
    %44 = tpu.matmul %41, %43, %cst_20 {dimension_numbers = #tpu.dot_dimension_numbers<[1], [0], [0], [1], [0, 0, 1, 1], [], []>} : vector<8x256xbf16>, vector<256x768xbf16>, vector<8x768xf32> -> vector<8x768xf32>
    %c0_21 = arith.constant 0 : index
    %c0_22 = arith.constant 0 : index
    %c0_23 = arith.constant 0 : index
    %45 = vector.load %arg8[%c0_21, %c0_22, %c0_23] : memref<4x1x768xf32, #tpu.memory_space<vmem>>, vector<1x1x768xf32>
    %46 = vector.shape_cast %45 : vector<1x1x768xf32> to vector<1x768xf32>
    %47 = vector.broadcast %46 : vector<1x768xf32> to vector<8x768xf32>
    %48 = arith.addf %44, %47 : vector<8x768xf32>
    %49 = arith.truncf %48 : vector<8x768xf32> to vector<8x768xbf16>
    %50 = vector.shape_cast %49 : vector<8x768xbf16> to vector<1x8x768xbf16>
    %51 = vector.extract_strided_slice %50 {offsets = [0, 0, 0], sizes = [1, 8, 64], strides = [1, 1, 1]} : vector<1x8x768xbf16> to vector<1x8x64xbf16>
    %52 = vector.extract_strided_slice %50 {offsets = [0, 0, 256], sizes = [1, 8, 64], strides = [1, 1, 1]} : vector<1x8x768xbf16> to vector<1x8x64xbf16>
    %53 = vector.extract_strided_slice %50 {offsets = [0, 0, 512], sizes = [1, 8, 64], strides = [1, 1, 1]} : vector<1x8x768xbf16> to vector<1x8x64xbf16>
    "tpu.trace_start"() <{level = 10 : i32, message = "bqd,bkd->bqk"}> : () -> ()
    %cst_24 = arith.constant dense<0.000000e+00> : vector<1x8x8xf32>
    %54 = tpu.matmul %51, %52, %cst_24 {dimension_numbers = #tpu.dot_dimension_numbers<[2], [2], [1], [1], [0, 0, 0, 1, 1, 1], [0], [0]>} : vector<1x8x64xbf16>, vector<1x8x64xbf16>, vector<1x8x8xf32> -> vector<1x8x8xf32>
    "tpu.trace_stop"() : () -> ()
    %cst_25 = arith.constant 1.250000e-01 : f32
    %55 = vector.broadcast %cst_25 : f32 to vector<1x8x8xf32>
    %56 = arith.mulf %54, %55 : vector<1x8x8xf32>
    %57 = vector.broadcast %14 : vector<1x1x8xf32> to vector<1x8x8xf32>
    %58 = arith.addf %56, %57 : vector<1x8x8xf32>
    %cst_26 = arith.constant dense<0xFF800000> : vector<1x8xf32>
    %59 = vector.multi_reduction <maximumf>, %58, %cst_26 [2] : vector<1x8x8xf32> to vector<1x8xf32>
    %60 = vector.shape_cast %59 : vector<1x8xf32> to vector<1x8x1xf32>
    %61 = vector.broadcast %60 : vector<1x8x1xf32> to vector<1x8x8xf32>
    %62 = arith.subf %58, %61 : vector<1x8x8xf32>
    %63 = math.exp %62 : vector<1x8x8xf32>
    %cst_27 = arith.constant dense<0.000000e+00> : vector<1x8xf32>
    %64 = vector.multi_reduction <add>, %63, %cst_27 [2] : vector<1x8x8xf32> to vector<1x8xf32>
    %65 = vector.shape_cast %64 : vector<1x8xf32> to vector<1x8x1xf32>
    %66 = tpu.reciprocal %65 {approx = true} : vector<1x8x1xf32> -> vector<1x8x1xf32>
    %67 = vector.broadcast %66 : vector<1x8x1xf32> to vector<1x8x8xf32>
    %68 = arith.mulf %63, %67 : vector<1x8x8xf32>
    %69 = arith.truncf %68 : vector<1x8x8xf32> to vector<1x8x8xbf16>
    "tpu.trace_start"() <{level = 10 : i32, message = "bqk,bkd->bqd"}> : () -> ()
    %cst_28 = arith.constant dense<0.000000e+00> : vector<1x8x64xf32>
    %70 = tpu.matmul %69, %53, %cst_28 {dimension_numbers = #tpu.dot_dimension_numbers<[2], [1], [1], [2], [0, 0, 0, 1, 1, 2], [0], [0]>} : vector<1x8x8xbf16>, vector<1x8x64xbf16>, vector<1x8x64xf32> -> vector<1x8x64xf32>
    "tpu.trace_stop"() : () -> ()
    %71 = vector.extract_strided_slice %50 {offsets = [0, 0, 64], sizes = [1, 8, 64], strides = [1, 1, 1]} : vector<1x8x768xbf16> to vector<1x8x64xbf16>
    %72 = vector.extract_strided_slice %50 {offsets = [0, 0, 320], sizes = [1, 8, 64], strides = [1, 1, 1]} : vector<1x8x768xbf16> to vector<1x8x64xbf16>
    %73 = vector.extract_strided_slice %50 {offsets = [0, 0, 576], sizes = [1, 8, 64], strides = [1, 1, 1]} : vector<1x8x768xbf16> to vector<1x8x64xbf16>
    "tpu.trace_start"() <{level = 10 : i32, message = "bqd,bkd->bqk"}> : () -> ()
    %cst_29 = arith.constant dense<0.000000e+00> : vector<1x8x8xf32>
    %74 = tpu.matmul %71, %72, %cst_29 {dimension_numbers = #tpu.dot_dimension_numbers<[2], [2], [1], [1], [0, 0, 0, 1, 1, 1], [0], [0]>} : vector<1x8x64xbf16>, vector<1x8x64xbf16>, vector<1x8x8xf32> -> vector<1x8x8xf32>
    "tpu.trace_stop"() : () -> ()
    %cst_30 = arith.constant 1.250000e-01 : f32
    %75 = vector.broadcast %cst_30 : f32 to vector<1x8x8xf32>
    %76 = arith.mulf %74, %75 : vector<1x8x8xf32>
    %77 = vector.broadcast %14 : vector<1x1x8xf32> to vector<1x8x8xf32>
    %78 = arith.addf %76, %77 : vector<1x8x8xf32>
    %cst_31 = arith.constant dense<0xFF800000> : vector<1x8xf32>
    %79 = vector.multi_reduction <maximumf>, %78, %cst_31 [2] : vector<1x8x8xf32> to vector<1x8xf32>
    %80 = vector.shape_cast %79 : vector<1x8xf32> to vector<1x8x1xf32>
    %81 = vector.broadcast %80 : vector<1x8x1xf32> to vector<1x8x8xf32>
    %82 = arith.subf %78, %81 : vector<1x8x8xf32>
    %83 = math.exp %82 : vector<1x8x8xf32>
    %cst_32 = arith.constant dense<0.000000e+00> : vector<1x8xf32>
    %84 = vector.multi_reduction <add>, %83, %cst_32 [2] : vector<1x8x8xf32> to vector<1x8xf32>
    %85 = vector.shape_cast %84 : vector<1x8xf32> to vector<1x8x1xf32>
    %86 = tpu.reciprocal %85 {approx = true} : vector<1x8x1xf32> -> vector<1x8x1xf32>
    %87 = vector.broadcast %86 : vector<1x8x1xf32> to vector<1x8x8xf32>
    %88 = arith.mulf %83, %87 : vector<1x8x8xf32>
    %89 = arith.truncf %88 : vector<1x8x8xf32> to vector<1x8x8xbf16>
    "tpu.trace_start"() <{level = 10 : i32, message = "bqk,bkd->bqd"}> : () -> ()
    %cst_33 = arith.constant dense<0.000000e+00> : vector<1x8x64xf32>
    %90 = tpu.matmul %89, %73, %cst_33 {dimension_numbers = #tpu.dot_dimension_numbers<[2], [1], [1], [2], [0, 0, 0, 1, 1, 2], [0], [0]>} : vector<1x8x8xbf16>, vector<1x8x64xbf16>, vector<1x8x64xf32> -> vector<1x8x64xf32>
    "tpu.trace_stop"() : () -> ()
    %91 = vector.extract_strided_slice %50 {offsets = [0, 0, 128], sizes = [1, 8, 64], strides = [1, 1, 1]} : vector<1x8x768xbf16> to vector<1x8x64xbf16>
    %92 = vector.extract_strided_slice %50 {offsets = [0, 0, 384], sizes = [1, 8, 64], strides = [1, 1, 1]} : vector<1x8x768xbf16> to vector<1x8x64xbf16>
    %93 = vector.extract_strided_slice %50 {offsets = [0, 0, 640], sizes = [1, 8, 64], strides = [1, 1, 1]} : vector<1x8x768xbf16> to vector<1x8x64xbf16>
    "tpu.trace_start"() <{level = 10 : i32, message = "bqd,bkd->bqk"}> : () -> ()
    %cst_34 = arith.constant dense<0.000000e+00> : vector<1x8x8xf32>
    %94 = tpu.matmul %91, %92, %cst_34 {dimension_numbers = #tpu.dot_dimension_numbers<[2], [2], [1], [1], [0, 0, 0, 1, 1, 1], [0], [0]>} : vector<1x8x64xbf16>, vector<1x8x64xbf16>, vector<1x8x8xf32> -> vector<1x8x8xf32>
    "tpu.trace_stop"() : () -> ()
    %cst_35 = arith.constant 1.250000e-01 : f32
    %95 = vector.broadcast %cst_35 : f32 to vector<1x8x8xf32>
    %96 = arith.mulf %94, %95 : vector<1x8x8xf32>
    %97 = vector.broadcast %14 : vector<1x1x8xf32> to vector<1x8x8xf32>
    %98 = arith.addf %96, %97 : vector<1x8x8xf32>
    %cst_36 = arith.constant dense<0xFF800000> : vector<1x8xf32>
    %99 = vector.multi_reduction <maximumf>, %98, %cst_36 [2] : vector<1x8x8xf32> to vector<1x8xf32>
    %100 = vector.shape_cast %99 : vector<1x8xf32> to vector<1x8x1xf32>
    %101 = vector.broadcast %100 : vector<1x8x1xf32> to vector<1x8x8xf32>
    %102 = arith.subf %98, %101 : vector<1x8x8xf32>
    %103 = math.exp %102 : vector<1x8x8xf32>
    %cst_37 = arith.constant dense<0.000000e+00> : vector<1x8xf32>
    %104 = vector.multi_reduction <add>, %103, %cst_37 [2] : vector<1x8x8xf32> to vector<1x8xf32>
    %105 = vector.shape_cast %104 : vector<1x8xf32> to vector<1x8x1xf32>
    %106 = tpu.reciprocal %105 {approx = true} : vector<1x8x1xf32> -> vector<1x8x1xf32>
    %107 = vector.broadcast %106 : vector<1x8x1xf32> to vector<1x8x8xf32>
    %108 = arith.mulf %103, %107 : vector<1x8x8xf32>
    %109 = arith.truncf %108 : vector<1x8x8xf32> to vector<1x8x8xbf16>
    "tpu.trace_start"() <{level = 10 : i32, message = "bqk,bkd->bqd"}> : () -> ()
    %cst_38 = arith.constant dense<0.000000e+00> : vector<1x8x64xf32>
    %110 = tpu.matmul %109, %93, %cst_38 {dimension_numbers = #tpu.dot_dimension_numbers<[2], [1], [1], [2], [0, 0, 0, 1, 1, 2], [0], [0]>} : vector<1x8x8xbf16>, vector<1x8x64xbf16>, vector<1x8x64xf32> -> vector<1x8x64xf32>
    "tpu.trace_stop"() : () -> ()
    %111 = vector.extract_strided_slice %50 {offsets = [0, 0, 192], sizes = [1, 8, 64], strides = [1, 1, 1]} : vector<1x8x768xbf16> to vector<1x8x64xbf16>
    %112 = vector.extract_strided_slice %50 {offsets = [0, 0, 448], sizes = [1, 8, 64], strides = [1, 1, 1]} : vector<1x8x768xbf16> to vector<1x8x64xbf16>
    %113 = vector.extract_strided_slice %50 {offsets = [0, 0, 704], sizes = [1, 8, 64], strides = [1, 1, 1]} : vector<1x8x768xbf16> to vector<1x8x64xbf16>
    "tpu.trace_start"() <{level = 10 : i32, message = "bqd,bkd->bqk"}> : () -> ()
    %cst_39 = arith.constant dense<0.000000e+00> : vector<1x8x8xf32>
    %114 = tpu.matmul %111, %112, %cst_39 {dimension_numbers = #tpu.dot_dimension_numbers<[2], [2], [1], [1], [0, 0, 0, 1, 1, 1], [0], [0]>} : vector<1x8x64xbf16>, vector<1x8x64xbf16>, vector<1x8x8xf32> -> vector<1x8x8xf32>
    "tpu.trace_stop"() : () -> ()
    %cst_40 = arith.constant 1.250000e-01 : f32
    %115 = vector.broadcast %cst_40 : f32 to vector<1x8x8xf32>
    %116 = arith.mulf %114, %115 : vector<1x8x8xf32>
    %117 = vector.broadcast %14 : vector<1x1x8xf32> to vector<1x8x8xf32>
    %118 = arith.addf %116, %117 : vector<1x8x8xf32>
    %cst_41 = arith.constant dense<0xFF800000> : vector<1x8xf32>
    %119 = vector.multi_reduction <maximumf>, %118, %cst_41 [2] : vector<1x8x8xf32> to vector<1x8xf32>
    %120 = vector.shape_cast %119 : vector<1x8xf32> to vector<1x8x1xf32>
    %121 = vector.broadcast %120 : vector<1x8x1xf32> to vector<1x8x8xf32>
    %122 = arith.subf %118, %121 : vector<1x8x8xf32>
    %123 = math.exp %122 : vector<1x8x8xf32>
    %cst_42 = arith.constant dense<0.000000e+00> : vector<1x8xf32>
    %124 = vector.multi_reduction <add>, %123, %cst_42 [2] : vector<1x8x8xf32> to vector<1x8xf32>
    %125 = vector.shape_cast %124 : vector<1x8xf32> to vector<1x8x1xf32>
    %126 = tpu.reciprocal %125 {approx = true} : vector<1x8x1xf32> -> vector<1x8x1xf32>
    %127 = vector.broadcast %126 : vector<1x8x1xf32> to vector<1x8x8xf32>
    %128 = arith.mulf %123, %127 : vector<1x8x8xf32>
    %129 = arith.truncf %128 : vector<1x8x8xf32> to vector<1x8x8xbf16>
    "tpu.trace_start"() <{level = 10 : i32, message = "bqk,bkd->bqd"}> : () -> ()
    %cst_43 = arith.constant dense<0.000000e+00> : vector<1x8x64xf32>
    %130 = tpu.matmul %129, %113, %cst_43 {dimension_numbers = #tpu.dot_dimension_numbers<[2], [1], [1], [2], [0, 0, 0, 1, 1, 2], [0], [0]>} : vector<1x8x8xbf16>, vector<1x8x64xbf16>, vector<1x8x64xf32> -> vector<1x8x64xf32>
    "tpu.trace_stop"() : () -> ()
    %131 = tpu.concatenate %70, %90, %110, %130 in 2 : vector<1x8x64xf32>, vector<1x8x64xf32>, vector<1x8x64xf32>, vector<1x8x64xf32> -> vector<1x8x256xf32>
    %132 = vector.shape_cast %131 : vector<1x8x256xf32> to vector<8x256xf32>
    %133 = arith.truncf %132 : vector<8x256xf32> to vector<8x256xbf16>
    %c0_44 = arith.constant 0 : index
    %c0_45 = arith.constant 0 : index
    %c0_46 = arith.constant 0 : index
    %134 = vector.load %arg5[%c0_44, %c0_45, %c0_46] : memref<4x256x256xbf16, #tpu.memory_space<vmem>>, vector<1x256x256xbf16>
    %135 = vector.shape_cast %134 : vector<1x256x256xbf16> to vector<256x256xbf16>
    %cst_47 = arith.constant dense<0.000000e+00> : vector<8x256xf32>
    %136 = tpu.matmul %133, %135, %cst_47 {dimension_numbers = #tpu.dot_dimension_numbers<[1], [0], [0], [1], [0, 0, 1, 1], [], []>} : vector<8x256xbf16>, vector<256x256xbf16>, vector<8x256xf32> -> vector<8x256xf32>
    %137 = vector.extract_strided_slice %16 {offsets = [4, 0], sizes = [1, 256], strides = [1, 1]} : vector<6x256xf32> to vector<1x256xf32>
    %138 = vector.broadcast %137 : vector<1x256xf32> to vector<8x256xf32>
    %139 = arith.addf %136, %138 : vector<8x256xf32>
    %140 = arith.addf %8, %139 : vector<8x256xf32>
    %141 = vector.extract_strided_slice %16 {offsets = [2, 0], sizes = [1, 256], strides = [1, 1]} : vector<6x256xf32> to vector<1x256xf32>
    %142 = vector.extract_strided_slice %16 {offsets = [3, 0], sizes = [1, 256], strides = [1, 1]} : vector<6x256xf32> to vector<1x256xf32>
    %cst_48 = arith.constant dense<0.000000e+00> : vector<8xf32>
    %143 = vector.multi_reduction <add>, %140, %cst_48 [1] : vector<8x256xf32> to vector<8xf32>
    %144 = vector.shape_cast %143 : vector<8xf32> to vector<8x1xf32>
    %cst_49 = arith.constant 2.560000e+02 : f32
    %145 = vector.broadcast %cst_49 : f32 to vector<8x1xf32>
    %146 = arith.divf %144, %145 : vector<8x1xf32>
    %147 = vector.broadcast %146 : vector<8x1xf32> to vector<8x256xf32>
    %148 = arith.subf %140, %147 : vector<8x256xf32>
    %149 = arith.mulf %148, %148 : vector<8x256xf32>
    %cst_50 = arith.constant dense<0.000000e+00> : vector<8xf32>
    %150 = vector.multi_reduction <add>, %149, %cst_50 [1] : vector<8x256xf32> to vector<8xf32>
    %151 = vector.shape_cast %150 : vector<8xf32> to vector<8x1xf32>
    %cst_51 = arith.constant 2.560000e+02 : f32
    %152 = vector.broadcast %cst_51 : f32 to vector<8x1xf32>
    %153 = arith.divf %151, %152 : vector<8x1xf32>
    %154 = vector.broadcast %146 : vector<8x1xf32> to vector<8x256xf32>
    %155 = arith.subf %140, %154 : vector<8x256xf32>
    %cst_52 = arith.constant 9.99999974E-6 : f32
    %156 = vector.broadcast %cst_52 : f32 to vector<8x1xf32>
    %157 = arith.addf %153, %156 : vector<8x1xf32>
    %158 = math.rsqrt %157 : vector<8x1xf32>
    %159 = vector.broadcast %158 : vector<8x1xf32> to vector<8x256xf32>
    %160 = arith.mulf %155, %159 : vector<8x256xf32>
    %161 = vector.broadcast %141 : vector<1x256xf32> to vector<8x256xf32>
    %162 = arith.mulf %160, %161 : vector<8x256xf32>
    %163 = vector.broadcast %142 : vector<1x256xf32> to vector<8x256xf32>
    %164 = arith.addf %162, %163 : vector<8x256xf32>
    %165 = arith.truncf %164 : vector<8x256xf32> to vector<8x256xbf16>
    %c0_53 = arith.constant 0 : index
    %c0_54 = arith.constant 0 : index
    %c0_55 = arith.constant 0 : index
    %166 = vector.load %arg6[%c0_53, %c0_54, %c0_55] : memref<4x256x512xbf16, #tpu.memory_space<vmem>>, vector<1x256x512xbf16>
    %167 = vector.shape_cast %166 : vector<1x256x512xbf16> to vector<256x512xbf16>
    %cst_56 = arith.constant dense<0.000000e+00> : vector<8x512xf32>
    %168 = tpu.matmul %165, %167, %cst_56 {dimension_numbers = #tpu.dot_dimension_numbers<[1], [0], [0], [1], [0, 0, 1, 1], [], []>} : vector<8x256xbf16>, vector<256x512xbf16>, vector<8x512xf32> -> vector<8x512xf32>
    %c0_57 = arith.constant 0 : index
    %c0_58 = arith.constant 0 : index
    %c0_59 = arith.constant 0 : index
    %169 = vector.load %arg9[%c0_57, %c0_58, %c0_59] : memref<4x1x512xf32, #tpu.memory_space<vmem>>, vector<1x1x512xf32>
    %170 = vector.shape_cast %169 : vector<1x1x512xf32> to vector<1x512xf32>
    %171 = vector.broadcast %170 : vector<1x512xf32> to vector<8x512xf32>
    %172 = arith.addf %168, %171 : vector<8x512xf32>
    %cst_60 = arith.constant 5.000000e-01 : f32
    %173 = vector.broadcast %cst_60 : f32 to vector<8x512xf32>
    %174 = arith.mulf %173, %172 : vector<8x512xf32>
    %cst_61 = arith.constant 0.707106769 : f32
    %175 = vector.broadcast %cst_61 : f32 to vector<8x512xf32>
    %176 = arith.mulf %172, %175 : vector<8x512xf32>
    %177 = math.absf %176 : vector<8x512xf32>
    %cst_62 = arith.constant 0.327591091 : f32
    %178 = vector.broadcast %cst_62 : f32 to vector<8x512xf32>
    %179 = arith.mulf %178, %177 : vector<8x512xf32>
    %cst_63 = arith.constant 1.000000e+00 : f32
    %180 = vector.broadcast %cst_63 : f32 to vector<8x512xf32>
    %181 = arith.addf %180, %179 : vector<8x512xf32>
    %cst_64 = arith.constant 1.000000e+00 : f32
    %182 = vector.broadcast %cst_64 : f32 to vector<8x512xf32>
    %183 = arith.divf %182, %181 : vector<8x512xf32>
    %cst_65 = arith.constant 1.06140542 : f32
    %184 = vector.broadcast %cst_65 : f32 to vector<8x512xf32>
    %185 = arith.mulf %184, %183 : vector<8x512xf32>
    %cst_66 = arith.constant -1.45315206 : f32
    %186 = vector.broadcast %cst_66 : f32 to vector<8x512xf32>
    %187 = arith.addf %185, %186 : vector<8x512xf32>
    %188 = arith.mulf %187, %183 : vector<8x512xf32>
    %cst_67 = arith.constant 1.42141378 : f32
    %189 = vector.broadcast %cst_67 : f32 to vector<8x512xf32>
    %190 = arith.addf %188, %189 : vector<8x512xf32>
    %191 = arith.mulf %190, %183 : vector<8x512xf32>
    %cst_68 = arith.constant -0.284496725 : f32
    %192 = vector.broadcast %cst_68 : f32 to vector<8x512xf32>
    %193 = arith.addf %191, %192 : vector<8x512xf32>
    %194 = arith.mulf %193, %183 : vector<8x512xf32>
    %cst_69 = arith.constant 0.254829586 : f32
    %195 = vector.broadcast %cst_69 : f32 to vector<8x512xf32>
    %196 = arith.addf %194, %195 : vector<8x512xf32>
    %197 = arith.mulf %196, %183 : vector<8x512xf32>
    %cst_70 = arith.constant 0.000000e+00 : f32
    %198 = vector.broadcast %cst_70 : f32 to vector<8x512xf32>
    %199 = arith.subf %198, %177 : vector<8x512xf32>
    %200 = arith.mulf %199, %177 : vector<8x512xf32>
    %201 = math.exp %200 : vector<8x512xf32>
    %202 = arith.mulf %197, %201 : vector<8x512xf32>
    %cst_71 = arith.constant 1.000000e+00 : f32
    %203 = vector.broadcast %cst_71 : f32 to vector<8x512xf32>
    %204 = arith.subf %203, %202 : vector<8x512xf32>
    %cst_72 = arith.constant 0.000000e+00 : f32
    %205 = vector.broadcast %cst_72 : f32 to vector<8x512xf32>
    %206 = arith.cmpf oge, %176, %205 : vector<8x512xf32>
    %cst_73 = arith.constant 0.000000e+00 : f32
    %207 = vector.broadcast %cst_73 : f32 to vector<8x512xf32>
    %208 = arith.subf %207, %204 : vector<8x512xf32>
    %209 = arith.select %206, %204, %208 : vector<8x512xi1>, vector<8x512xf32>
    %cst_74 = arith.constant 1.000000e+00 : f32
    %210 = vector.broadcast %cst_74 : f32 to vector<8x512xf32>
    %211 = arith.addf %210, %209 : vector<8x512xf32>
    %212 = arith.mulf %174, %211 : vector<8x512xf32>
    %213 = arith.truncf %212 : vector<8x512xf32> to vector<8x512xbf16>
    %c0_75 = arith.constant 0 : index
    %c0_76 = arith.constant 0 : index
    %c0_77 = arith.constant 0 : index
    %214 = vector.load %arg7[%c0_75, %c0_76, %c0_77] : memref<4x512x256xbf16, #tpu.memory_space<vmem>>, vector<1x512x256xbf16>
    %215 = vector.shape_cast %214 : vector<1x512x256xbf16> to vector<512x256xbf16>
    %cst_78 = arith.constant dense<0.000000e+00> : vector<8x256xf32>
    %216 = tpu.matmul %213, %215, %cst_78 {dimension_numbers = #tpu.dot_dimension_numbers<[1], [0], [0], [1], [0, 0, 1, 1], [], []>} : vector<8x512xbf16>, vector<512x256xbf16>, vector<8x256xf32> -> vector<8x256xf32>
    %217 = vector.extract_strided_slice %16 {offsets = [5, 0], sizes = [1, 256], strides = [1, 1]} : vector<6x256xf32> to vector<1x256xf32>
    %218 = vector.broadcast %217 : vector<1x256xf32> to vector<8x256xf32>
    %219 = arith.addf %216, %218 : vector<8x256xf32>
    %220 = arith.addf %140, %219 : vector<8x256xf32>
    %c1 = arith.constant 1 : index
    %c0_79 = arith.constant 0 : index
    %c0_80 = arith.constant 0 : index
    %221 = vector.load %arg10[%c1, %c0_79, %c0_80] : memref<4x6x256xf32, #tpu.memory_space<vmem>>, vector<1x6x256xf32>
    %222 = vector.shape_cast %221 : vector<1x6x256xf32> to vector<6x256xf32>
    %223 = vector.extract_strided_slice %222 {offsets = [0, 0], sizes = [1, 256], strides = [1, 1]} : vector<6x256xf32> to vector<1x256xf32>
    %224 = vector.extract_strided_slice %222 {offsets = [1, 0], sizes = [1, 256], strides = [1, 1]} : vector<6x256xf32> to vector<1x256xf32>
    %cst_81 = arith.constant dense<0.000000e+00> : vector<8xf32>
    %225 = vector.multi_reduction <add>, %220, %cst_81 [1] : vector<8x256xf32> to vector<8xf32>
    %226 = vector.shape_cast %225 : vector<8xf32> to vector<8x1xf32>
    %cst_82 = arith.constant 2.560000e+02 : f32
    %227 = vector.broadcast %cst_82 : f32 to vector<8x1xf32>
    %228 = arith.divf %226, %227 : vector<8x1xf32>
    %229 = vector.broadcast %228 : vector<8x1xf32> to vector<8x256xf32>
    %230 = arith.subf %220, %229 : vector<8x256xf32>
    %231 = arith.mulf %230, %230 : vector<8x256xf32>
    %cst_83 = arith.constant dense<0.000000e+00> : vector<8xf32>
    %232 = vector.multi_reduction <add>, %231, %cst_83 [1] : vector<8x256xf32> to vector<8xf32>
    %233 = vector.shape_cast %232 : vector<8xf32> to vector<8x1xf32>
    %cst_84 = arith.constant 2.560000e+02 : f32
    %234 = vector.broadcast %cst_84 : f32 to vector<8x1xf32>
    %235 = arith.divf %233, %234 : vector<8x1xf32>
    %236 = vector.broadcast %228 : vector<8x1xf32> to vector<8x256xf32>
    %237 = arith.subf %220, %236 : vector<8x256xf32>
    %cst_85 = arith.constant 9.99999974E-6 : f32
    %238 = vector.broadcast %cst_85 : f32 to vector<8x1xf32>
    %239 = arith.addf %235, %238 : vector<8x1xf32>
    %240 = math.rsqrt %239 : vector<8x1xf32>
    %241 = vector.broadcast %240 : vector<8x1xf32> to vector<8x256xf32>
    %242 = arith.mulf %237, %241 : vector<8x256xf32>
    %243 = vector.broadcast %223 : vector<1x256xf32> to vector<8x256xf32>
    %244 = arith.mulf %242, %243 : vector<8x256xf32>
    %245 = vector.broadcast %224 : vector<1x256xf32> to vector<8x256xf32>
    %246 = arith.addf %244, %245 : vector<8x256xf32>
    %247 = arith.truncf %246 : vector<8x256xf32> to vector<8x256xbf16>
    %c1_86 = arith.constant 1 : index
    %c0_87 = arith.constant 0 : index
    %c0_88 = arith.constant 0 : index
    %248 = vector.load %arg4[%c1_86, %c0_87, %c0_88] : memref<4x256x768xbf16, #tpu.memory_space<vmem>>, vector<1x256x768xbf16>
    %249 = vector.shape_cast %248 : vector<1x256x768xbf16> to vector<256x768xbf16>
    %cst_89 = arith.constant dense<0.000000e+00> : vector<8x768xf32>
    %250 = tpu.matmul %247, %249, %cst_89 {dimension_numbers = #tpu.dot_dimension_numbers<[1], [0], [0], [1], [0, 0, 1, 1], [], []>} : vector<8x256xbf16>, vector<256x768xbf16>, vector<8x768xf32> -> vector<8x768xf32>
    %c1_90 = arith.constant 1 : index
    %c0_91 = arith.constant 0 : index
    %c0_92 = arith.constant 0 : index
    %251 = vector.load %arg8[%c1_90, %c0_91, %c0_92] : memref<4x1x768xf32, #tpu.memory_space<vmem>>, vector<1x1x768xf32>
    %252 = vector.shape_cast %251 : vector<1x1x768xf32> to vector<1x768xf32>
    %253 = vector.broadcast %252 : vector<1x768xf32> to vector<8x768xf32>
    %254 = arith.addf %250, %253 : vector<8x768xf32>
    %255 = arith.truncf %254 : vector<8x768xf32> to vector<8x768xbf16>
    %256 = vector.shape_cast %255 : vector<8x768xbf16> to vector<1x8x768xbf16>
    %257 = vector.extract_strided_slice %256 {offsets = [0, 0, 0], sizes = [1, 8, 64], strides = [1, 1, 1]} : vector<1x8x768xbf16> to vector<1x8x64xbf16>
    %258 = vector.extract_strided_slice %256 {offsets = [0, 0, 256], sizes = [1, 8, 64], strides = [1, 1, 1]} : vector<1x8x768xbf16> to vector<1x8x64xbf16>
    %259 = vector.extract_strided_slice %256 {offsets = [0, 0, 512], sizes = [1, 8, 64], strides = [1, 1, 1]} : vector<1x8x768xbf16> to vector<1x8x64xbf16>
    "tpu.trace_start"() <{level = 10 : i32, message = "bqd,bkd->bqk"}> : () -> ()
    %cst_93 = arith.constant dense<0.000000e+00> : vector<1x8x8xf32>
    %260 = tpu.matmul %257, %258, %cst_93 {dimension_numbers = #tpu.dot_dimension_numbers<[2], [2], [1], [1], [0, 0, 0, 1, 1, 1], [0], [0]>} : vector<1x8x64xbf16>, vector<1x8x64xbf16>, vector<1x8x8xf32> -> vector<1x8x8xf32>
    "tpu.trace_stop"() : () -> ()
    %cst_94 = arith.constant 1.250000e-01 : f32
    %261 = vector.broadcast %cst_94 : f32 to vector<1x8x8xf32>
    %262 = arith.mulf %260, %261 : vector<1x8x8xf32>
    %263 = vector.broadcast %14 : vector<1x1x8xf32> to vector<1x8x8xf32>
    %264 = arith.addf %262, %263 : vector<1x8x8xf32>
    %cst_95 = arith.constant dense<0xFF800000> : vector<1x8xf32>
    %265 = vector.multi_reduction <maximumf>, %264, %cst_95 [2] : vector<1x8x8xf32> to vector<1x8xf32>
    %266 = vector.shape_cast %265 : vector<1x8xf32> to vector<1x8x1xf32>
    %267 = vector.broadcast %266 : vector<1x8x1xf32> to vector<1x8x8xf32>
    %268 = arith.subf %264, %267 : vector<1x8x8xf32>
    %269 = math.exp %268 : vector<1x8x8xf32>
    %cst_96 = arith.constant dense<0.000000e+00> : vector<1x8xf32>
    %270 = vector.multi_reduction <add>, %269, %cst_96 [2] : vector<1x8x8xf32> to vector<1x8xf32>
    %271 = vector.shape_cast %270 : vector<1x8xf32> to vector<1x8x1xf32>
    %272 = tpu.reciprocal %271 {approx = true} : vector<1x8x1xf32> -> vector<1x8x1xf32>
    %273 = vector.broadcast %272 : vector<1x8x1xf32> to vector<1x8x8xf32>
    %274 = arith.mulf %269, %273 : vector<1x8x8xf32>
    %275 = arith.truncf %274 : vector<1x8x8xf32> to vector<1x8x8xbf16>
    "tpu.trace_start"() <{level = 10 : i32, message = "bqk,bkd->bqd"}> : () -> ()
    %cst_97 = arith.constant dense<0.000000e+00> : vector<1x8x64xf32>
    %276 = tpu.matmul %275, %259, %cst_97 {dimension_numbers = #tpu.dot_dimension_numbers<[2], [1], [1], [2], [0, 0, 0, 1, 1, 2], [0], [0]>} : vector<1x8x8xbf16>, vector<1x8x64xbf16>, vector<1x8x64xf32> -> vector<1x8x64xf32>
    "tpu.trace_stop"() : () -> ()
    %277 = vector.extract_strided_slice %256 {offsets = [0, 0, 64], sizes = [1, 8, 64], strides = [1, 1, 1]} : vector<1x8x768xbf16> to vector<1x8x64xbf16>
    %278 = vector.extract_strided_slice %256 {offsets = [0, 0, 320], sizes = [1, 8, 64], strides = [1, 1, 1]} : vector<1x8x768xbf16> to vector<1x8x64xbf16>
    %279 = vector.extract_strided_slice %256 {offsets = [0, 0, 576], sizes = [1, 8, 64], strides = [1, 1, 1]} : vector<1x8x768xbf16> to vector<1x8x64xbf16>
    "tpu.trace_start"() <{level = 10 : i32, message = "bqd,bkd->bqk"}> : () -> ()
    %cst_98 = arith.constant dense<0.000000e+00> : vector<1x8x8xf32>
    %280 = tpu.matmul %277, %278, %cst_98 {dimension_numbers = #tpu.dot_dimension_numbers<[2], [2], [1], [1], [0, 0, 0, 1, 1, 1], [0], [0]>} : vector<1x8x64xbf16>, vector<1x8x64xbf16>, vector<1x8x8xf32> -> vector<1x8x8xf32>
    "tpu.trace_stop"() : () -> ()
    %cst_99 = arith.constant 1.250000e-01 : f32
    %281 = vector.broadcast %cst_99 : f32 to vector<1x8x8xf32>
    %282 = arith.mulf %280, %281 : vector<1x8x8xf32>
    %283 = vector.broadcast %14 : vector<1x1x8xf32> to vector<1x8x8xf32>
    %284 = arith.addf %282, %283 : vector<1x8x8xf32>
    %cst_100 = arith.constant dense<0xFF800000> : vector<1x8xf32>
    %285 = vector.multi_reduction <maximumf>, %284, %cst_100 [2] : vector<1x8x8xf32> to vector<1x8xf32>
    %286 = vector.shape_cast %285 : vector<1x8xf32> to vector<1x8x1xf32>
    %287 = vector.broadcast %286 : vector<1x8x1xf32> to vector<1x8x8xf32>
    %288 = arith.subf %284, %287 : vector<1x8x8xf32>
    %289 = math.exp %288 : vector<1x8x8xf32>
    %cst_101 = arith.constant dense<0.000000e+00> : vector<1x8xf32>
    %290 = vector.multi_reduction <add>, %289, %cst_101 [2] : vector<1x8x8xf32> to vector<1x8xf32>
    %291 = vector.shape_cast %290 : vector<1x8xf32> to vector<1x8x1xf32>
    %292 = tpu.reciprocal %291 {approx = true} : vector<1x8x1xf32> -> vector<1x8x1xf32>
    %293 = vector.broadcast %292 : vector<1x8x1xf32> to vector<1x8x8xf32>
    %294 = arith.mulf %289, %293 : vector<1x8x8xf32>
    %295 = arith.truncf %294 : vector<1x8x8xf32> to vector<1x8x8xbf16>
    "tpu.trace_start"() <{level = 10 : i32, message = "bqk,bkd->bqd"}> : () -> ()
    %cst_102 = arith.constant dense<0.000000e+00> : vector<1x8x64xf32>
    %296 = tpu.matmul %295, %279, %cst_102 {dimension_numbers = #tpu.dot_dimension_numbers<[2], [1], [1], [2], [0, 0, 0, 1, 1, 2], [0], [0]>} : vector<1x8x8xbf16>, vector<1x8x64xbf16>, vector<1x8x64xf32> -> vector<1x8x64xf32>
    "tpu.trace_stop"() : () -> ()
    %297 = vector.extract_strided_slice %256 {offsets = [0, 0, 128], sizes = [1, 8, 64], strides = [1, 1, 1]} : vector<1x8x768xbf16> to vector<1x8x64xbf16>
    %298 = vector.extract_strided_slice %256 {offsets = [0, 0, 384], sizes = [1, 8, 64], strides = [1, 1, 1]} : vector<1x8x768xbf16> to vector<1x8x64xbf16>
    %299 = vector.extract_strided_slice %256 {offsets = [0, 0, 640], sizes = [1, 8, 64], strides = [1, 1, 1]} : vector<1x8x768xbf16> to vector<1x8x64xbf16>
    "tpu.trace_start"() <{level = 10 : i32, message = "bqd,bkd->bqk"}> : () -> ()
    %cst_103 = arith.constant dense<0.000000e+00> : vector<1x8x8xf32>
    %300 = tpu.matmul %297, %298, %cst_103 {dimension_numbers = #tpu.dot_dimension_numbers<[2], [2], [1], [1], [0, 0, 0, 1, 1, 1], [0], [0]>} : vector<1x8x64xbf16>, vector<1x8x64xbf16>, vector<1x8x8xf32> -> vector<1x8x8xf32>
    "tpu.trace_stop"() : () -> ()
    %cst_104 = arith.constant 1.250000e-01 : f32
    %301 = vector.broadcast %cst_104 : f32 to vector<1x8x8xf32>
    %302 = arith.mulf %300, %301 : vector<1x8x8xf32>
    %303 = vector.broadcast %14 : vector<1x1x8xf32> to vector<1x8x8xf32>
    %304 = arith.addf %302, %303 : vector<1x8x8xf32>
    %cst_105 = arith.constant dense<0xFF800000> : vector<1x8xf32>
    %305 = vector.multi_reduction <maximumf>, %304, %cst_105 [2] : vector<1x8x8xf32> to vector<1x8xf32>
    %306 = vector.shape_cast %305 : vector<1x8xf32> to vector<1x8x1xf32>
    %307 = vector.broadcast %306 : vector<1x8x1xf32> to vector<1x8x8xf32>
    %308 = arith.subf %304, %307 : vector<1x8x8xf32>
    %309 = math.exp %308 : vector<1x8x8xf32>
    %cst_106 = arith.constant dense<0.000000e+00> : vector<1x8xf32>
    %310 = vector.multi_reduction <add>, %309, %cst_106 [2] : vector<1x8x8xf32> to vector<1x8xf32>
    %311 = vector.shape_cast %310 : vector<1x8xf32> to vector<1x8x1xf32>
    %312 = tpu.reciprocal %311 {approx = true} : vector<1x8x1xf32> -> vector<1x8x1xf32>
    %313 = vector.broadcast %312 : vector<1x8x1xf32> to vector<1x8x8xf32>
    %314 = arith.mulf %309, %313 : vector<1x8x8xf32>
    %315 = arith.truncf %314 : vector<1x8x8xf32> to vector<1x8x8xbf16>
    "tpu.trace_start"() <{level = 10 : i32, message = "bqk,bkd->bqd"}> : () -> ()
    %cst_107 = arith.constant dense<0.000000e+00> : vector<1x8x64xf32>
    %316 = tpu.matmul %315, %299, %cst_107 {dimension_numbers = #tpu.dot_dimension_numbers<[2], [1], [1], [2], [0, 0, 0, 1, 1, 2], [0], [0]>} : vector<1x8x8xbf16>, vector<1x8x64xbf16>, vector<1x8x64xf32> -> vector<1x8x64xf32>
    "tpu.trace_stop"() : () -> ()
    %317 = vector.extract_strided_slice %256 {offsets = [0, 0, 192], sizes = [1, 8, 64], strides = [1, 1, 1]} : vector<1x8x768xbf16> to vector<1x8x64xbf16>
    %318 = vector.extract_strided_slice %256 {offsets = [0, 0, 448], sizes = [1, 8, 64], strides = [1, 1, 1]} : vector<1x8x768xbf16> to vector<1x8x64xbf16>
    %319 = vector.extract_strided_slice %256 {offsets = [0, 0, 704], sizes = [1, 8, 64], strides = [1, 1, 1]} : vector<1x8x768xbf16> to vector<1x8x64xbf16>
    "tpu.trace_start"() <{level = 10 : i32, message = "bqd,bkd->bqk"}> : () -> ()
    %cst_108 = arith.constant dense<0.000000e+00> : vector<1x8x8xf32>
    %320 = tpu.matmul %317, %318, %cst_108 {dimension_numbers = #tpu.dot_dimension_numbers<[2], [2], [1], [1], [0, 0, 0, 1, 1, 1], [0], [0]>} : vector<1x8x64xbf16>, vector<1x8x64xbf16>, vector<1x8x8xf32> -> vector<1x8x8xf32>
    "tpu.trace_stop"() : () -> ()
    %cst_109 = arith.constant 1.250000e-01 : f32
    %321 = vector.broadcast %cst_109 : f32 to vector<1x8x8xf32>
    %322 = arith.mulf %320, %321 : vector<1x8x8xf32>
    %323 = vector.broadcast %14 : vector<1x1x8xf32> to vector<1x8x8xf32>
    %324 = arith.addf %322, %323 : vector<1x8x8xf32>
    %cst_110 = arith.constant dense<0xFF800000> : vector<1x8xf32>
    %325 = vector.multi_reduction <maximumf>, %324, %cst_110 [2] : vector<1x8x8xf32> to vector<1x8xf32>
    %326 = vector.shape_cast %325 : vector<1x8xf32> to vector<1x8x1xf32>
    %327 = vector.broadcast %326 : vector<1x8x1xf32> to vector<1x8x8xf32>
    %328 = arith.subf %324, %327 : vector<1x8x8xf32>
    %329 = math.exp %328 : vector<1x8x8xf32>
    %cst_111 = arith.constant dense<0.000000e+00> : vector<1x8xf32>
    %330 = vector.multi_reduction <add>, %329, %cst_111 [2] : vector<1x8x8xf32> to vector<1x8xf32>
    %331 = vector.shape_cast %330 : vector<1x8xf32> to vector<1x8x1xf32>
    %332 = tpu.reciprocal %331 {approx = true} : vector<1x8x1xf32> -> vector<1x8x1xf32>
    %333 = vector.broadcast %332 : vector<1x8x1xf32> to vector<1x8x8xf32>
    %334 = arith.mulf %329, %333 : vector<1x8x8xf32>
    %335 = arith.truncf %334 : vector<1x8x8xf32> to vector<1x8x8xbf16>
    "tpu.trace_start"() <{level = 10 : i32, message = "bqk,bkd->bqd"}> : () -> ()
    %cst_112 = arith.constant dense<0.000000e+00> : vector<1x8x64xf32>
    %336 = tpu.matmul %335, %319, %cst_112 {dimension_numbers = #tpu.dot_dimension_numbers<[2], [1], [1], [2], [0, 0, 0, 1, 1, 2], [0], [0]>} : vector<1x8x8xbf16>, vector<1x8x64xbf16>, vector<1x8x64xf32> -> vector<1x8x64xf32>
    "tpu.trace_stop"() : () -> ()
    %337 = tpu.concatenate %276, %296, %316, %336 in 2 : vector<1x8x64xf32>, vector<1x8x64xf32>, vector<1x8x64xf32>, vector<1x8x64xf32> -> vector<1x8x256xf32>
    %338 = vector.shape_cast %337 : vector<1x8x256xf32> to vector<8x256xf32>
    %339 = arith.truncf %338 : vector<8x256xf32> to vector<8x256xbf16>
    %c1_113 = arith.constant 1 : index
    %c0_114 = arith.constant 0 : index
    %c0_115 = arith.constant 0 : index
    %340 = vector.load %arg5[%c1_113, %c0_114, %c0_115] : memref<4x256x256xbf16, #tpu.memory_space<vmem>>, vector<1x256x256xbf16>
    %341 = vector.shape_cast %340 : vector<1x256x256xbf16> to vector<256x256xbf16>
    %cst_116 = arith.constant dense<0.000000e+00> : vector<8x256xf32>
    %342 = tpu.matmul %339, %341, %cst_116 {dimension_numbers = #tpu.dot_dimension_numbers<[1], [0], [0], [1], [0, 0, 1, 1], [], []>} : vector<8x256xbf16>, vector<256x256xbf16>, vector<8x256xf32> -> vector<8x256xf32>
    %343 = vector.extract_strided_slice %222 {offsets = [4, 0], sizes = [1, 256], strides = [1, 1]} : vector<6x256xf32> to vector<1x256xf32>
    %344 = vector.broadcast %343 : vector<1x256xf32> to vector<8x256xf32>
    %345 = arith.addf %342, %344 : vector<8x256xf32>
    %346 = arith.addf %220, %345 : vector<8x256xf32>
    %347 = vector.extract_strided_slice %222 {offsets = [2, 0], sizes = [1, 256], strides = [1, 1]} : vector<6x256xf32> to vector<1x256xf32>
    %348 = vector.extract_strided_slice %222 {offsets = [3, 0], sizes = [1, 256], strides = [1, 1]} : vector<6x256xf32> to vector<1x256xf32>
    %cst_117 = arith.constant dense<0.000000e+00> : vector<8xf32>
    %349 = vector.multi_reduction <add>, %346, %cst_117 [1] : vector<8x256xf32> to vector<8xf32>
    %350 = vector.shape_cast %349 : vector<8xf32> to vector<8x1xf32>
    %cst_118 = arith.constant 2.560000e+02 : f32
    %351 = vector.broadcast %cst_118 : f32 to vector<8x1xf32>
    %352 = arith.divf %350, %351 : vector<8x1xf32>
    %353 = vector.broadcast %352 : vector<8x1xf32> to vector<8x256xf32>
    %354 = arith.subf %346, %353 : vector<8x256xf32>
    %355 = arith.mulf %354, %354 : vector<8x256xf32>
    %cst_119 = arith.constant dense<0.000000e+00> : vector<8xf32>
    %356 = vector.multi_reduction <add>, %355, %cst_119 [1] : vector<8x256xf32> to vector<8xf32>
    %357 = vector.shape_cast %356 : vector<8xf32> to vector<8x1xf32>
    %cst_120 = arith.constant 2.560000e+02 : f32
    %358 = vector.broadcast %cst_120 : f32 to vector<8x1xf32>
    %359 = arith.divf %357, %358 : vector<8x1xf32>
    %360 = vector.broadcast %352 : vector<8x1xf32> to vector<8x256xf32>
    %361 = arith.subf %346, %360 : vector<8x256xf32>
    %cst_121 = arith.constant 9.99999974E-6 : f32
    %362 = vector.broadcast %cst_121 : f32 to vector<8x1xf32>
    %363 = arith.addf %359, %362 : vector<8x1xf32>
    %364 = math.rsqrt %363 : vector<8x1xf32>
    %365 = vector.broadcast %364 : vector<8x1xf32> to vector<8x256xf32>
    %366 = arith.mulf %361, %365 : vector<8x256xf32>
    %367 = vector.broadcast %347 : vector<1x256xf32> to vector<8x256xf32>
    %368 = arith.mulf %366, %367 : vector<8x256xf32>
    %369 = vector.broadcast %348 : vector<1x256xf32> to vector<8x256xf32>
    %370 = arith.addf %368, %369 : vector<8x256xf32>
    %371 = arith.truncf %370 : vector<8x256xf32> to vector<8x256xbf16>
    %c1_122 = arith.constant 1 : index
    %c0_123 = arith.constant 0 : index
    %c0_124 = arith.constant 0 : index
    %372 = vector.load %arg6[%c1_122, %c0_123, %c0_124] : memref<4x256x512xbf16, #tpu.memory_space<vmem>>, vector<1x256x512xbf16>
    %373 = vector.shape_cast %372 : vector<1x256x512xbf16> to vector<256x512xbf16>
    %cst_125 = arith.constant dense<0.000000e+00> : vector<8x512xf32>
    %374 = tpu.matmul %371, %373, %cst_125 {dimension_numbers = #tpu.dot_dimension_numbers<[1], [0], [0], [1], [0, 0, 1, 1], [], []>} : vector<8x256xbf16>, vector<256x512xbf16>, vector<8x512xf32> -> vector<8x512xf32>
    %c1_126 = arith.constant 1 : index
    %c0_127 = arith.constant 0 : index
    %c0_128 = arith.constant 0 : index
    %375 = vector.load %arg9[%c1_126, %c0_127, %c0_128] : memref<4x1x512xf32, #tpu.memory_space<vmem>>, vector<1x1x512xf32>
    %376 = vector.shape_cast %375 : vector<1x1x512xf32> to vector<1x512xf32>
    %377 = vector.broadcast %376 : vector<1x512xf32> to vector<8x512xf32>
    %378 = arith.addf %374, %377 : vector<8x512xf32>
    %cst_129 = arith.constant 5.000000e-01 : f32
    %379 = vector.broadcast %cst_129 : f32 to vector<8x512xf32>
    %380 = arith.mulf %379, %378 : vector<8x512xf32>
    %cst_130 = arith.constant 0.707106769 : f32
    %381 = vector.broadcast %cst_130 : f32 to vector<8x512xf32>
    %382 = arith.mulf %378, %381 : vector<8x512xf32>
    %383 = math.absf %382 : vector<8x512xf32>
    %cst_131 = arith.constant 0.327591091 : f32
    %384 = vector.broadcast %cst_131 : f32 to vector<8x512xf32>
    %385 = arith.mulf %384, %383 : vector<8x512xf32>
    %cst_132 = arith.constant 1.000000e+00 : f32
    %386 = vector.broadcast %cst_132 : f32 to vector<8x512xf32>
    %387 = arith.addf %386, %385 : vector<8x512xf32>
    %cst_133 = arith.constant 1.000000e+00 : f32
    %388 = vector.broadcast %cst_133 : f32 to vector<8x512xf32>
    %389 = arith.divf %388, %387 : vector<8x512xf32>
    %cst_134 = arith.constant 1.06140542 : f32
    %390 = vector.broadcast %cst_134 : f32 to vector<8x512xf32>
    %391 = arith.mulf %390, %389 : vector<8x512xf32>
    %cst_135 = arith.constant -1.45315206 : f32
    %392 = vector.broadcast %cst_135 : f32 to vector<8x512xf32>
    %393 = arith.addf %391, %392 : vector<8x512xf32>
    %394 = arith.mulf %393, %389 : vector<8x512xf32>
    %cst_136 = arith.constant 1.42141378 : f32
    %395 = vector.broadcast %cst_136 : f32 to vector<8x512xf32>
    %396 = arith.addf %394, %395 : vector<8x512xf32>
    %397 = arith.mulf %396, %389 : vector<8x512xf32>
    %cst_137 = arith.constant -0.284496725 : f32
    %398 = vector.broadcast %cst_137 : f32 to vector<8x512xf32>
    %399 = arith.addf %397, %398 : vector<8x512xf32>
    %400 = arith.mulf %399, %389 : vector<8x512xf32>
    %cst_138 = arith.constant 0.254829586 : f32
    %401 = vector.broadcast %cst_138 : f32 to vector<8x512xf32>
    %402 = arith.addf %400, %401 : vector<8x512xf32>
    %403 = arith.mulf %402, %389 : vector<8x512xf32>
    %cst_139 = arith.constant 0.000000e+00 : f32
    %404 = vector.broadcast %cst_139 : f32 to vector<8x512xf32>
    %405 = arith.subf %404, %383 : vector<8x512xf32>
    %406 = arith.mulf %405, %383 : vector<8x512xf32>
    %407 = math.exp %406 : vector<8x512xf32>
    %408 = arith.mulf %403, %407 : vector<8x512xf32>
    %cst_140 = arith.constant 1.000000e+00 : f32
    %409 = vector.broadcast %cst_140 : f32 to vector<8x512xf32>
    %410 = arith.subf %409, %408 : vector<8x512xf32>
    %cst_141 = arith.constant 0.000000e+00 : f32
    %411 = vector.broadcast %cst_141 : f32 to vector<8x512xf32>
    %412 = arith.cmpf oge, %382, %411 : vector<8x512xf32>
    %cst_142 = arith.constant 0.000000e+00 : f32
    %413 = vector.broadcast %cst_142 : f32 to vector<8x512xf32>
    %414 = arith.subf %413, %410 : vector<8x512xf32>
    %415 = arith.select %412, %410, %414 : vector<8x512xi1>, vector<8x512xf32>
    %cst_143 = arith.constant 1.000000e+00 : f32
    %416 = vector.broadcast %cst_143 : f32 to vector<8x512xf32>
    %417 = arith.addf %416, %415 : vector<8x512xf32>
    %418 = arith.mulf %380, %417 : vector<8x512xf32>
    %419 = arith.truncf %418 : vector<8x512xf32> to vector<8x512xbf16>
    %c1_144 = arith.constant 1 : index
    %c0_145 = arith.constant 0 : index
    %c0_146 = arith.constant 0 : index
    %420 = vector.load %arg7[%c1_144, %c0_145, %c0_146] : memref<4x512x256xbf16, #tpu.memory_space<vmem>>, vector<1x512x256xbf16>
    %421 = vector.shape_cast %420 : vector<1x512x256xbf16> to vector<512x256xbf16>
    %cst_147 = arith.constant dense<0.000000e+00> : vector<8x256xf32>
    %422 = tpu.matmul %419, %421, %cst_147 {dimension_numbers = #tpu.dot_dimension_numbers<[1], [0], [0], [1], [0, 0, 1, 1], [], []>} : vector<8x512xbf16>, vector<512x256xbf16>, vector<8x256xf32> -> vector<8x256xf32>
    %423 = vector.extract_strided_slice %222 {offsets = [5, 0], sizes = [1, 256], strides = [1, 1]} : vector<6x256xf32> to vector<1x256xf32>
    %424 = vector.broadcast %423 : vector<1x256xf32> to vector<8x256xf32>
    %425 = arith.addf %422, %424 : vector<8x256xf32>
    %426 = arith.addf %346, %425 : vector<8x256xf32>
    %c2 = arith.constant 2 : index
    %c0_148 = arith.constant 0 : index
    %c0_149 = arith.constant 0 : index
    %427 = vector.load %arg10[%c2, %c0_148, %c0_149] : memref<4x6x256xf32, #tpu.memory_space<vmem>>, vector<1x6x256xf32>
    %428 = vector.shape_cast %427 : vector<1x6x256xf32> to vector<6x256xf32>
    %429 = vector.extract_strided_slice %428 {offsets = [0, 0], sizes = [1, 256], strides = [1, 1]} : vector<6x256xf32> to vector<1x256xf32>
    %430 = vector.extract_strided_slice %428 {offsets = [1, 0], sizes = [1, 256], strides = [1, 1]} : vector<6x256xf32> to vector<1x256xf32>
    %cst_150 = arith.constant dense<0.000000e+00> : vector<8xf32>
    %431 = vector.multi_reduction <add>, %426, %cst_150 [1] : vector<8x256xf32> to vector<8xf32>
    %432 = vector.shape_cast %431 : vector<8xf32> to vector<8x1xf32>
    %cst_151 = arith.constant 2.560000e+02 : f32
    %433 = vector.broadcast %cst_151 : f32 to vector<8x1xf32>
    %434 = arith.divf %432, %433 : vector<8x1xf32>
    %435 = vector.broadcast %434 : vector<8x1xf32> to vector<8x256xf32>
    %436 = arith.subf %426, %435 : vector<8x256xf32>
    %437 = arith.mulf %436, %436 : vector<8x256xf32>
    %cst_152 = arith.constant dense<0.000000e+00> : vector<8xf32>
    %438 = vector.multi_reduction <add>, %437, %cst_152 [1] : vector<8x256xf32> to vector<8xf32>
    %439 = vector.shape_cast %438 : vector<8xf32> to vector<8x1xf32>
    %cst_153 = arith.constant 2.560000e+02 : f32
    %440 = vector.broadcast %cst_153 : f32 to vector<8x1xf32>
    %441 = arith.divf %439, %440 : vector<8x1xf32>
    %442 = vector.broadcast %434 : vector<8x1xf32> to vector<8x256xf32>
    %443 = arith.subf %426, %442 : vector<8x256xf32>
    %cst_154 = arith.constant 9.99999974E-6 : f32
    %444 = vector.broadcast %cst_154 : f32 to vector<8x1xf32>
    %445 = arith.addf %441, %444 : vector<8x1xf32>
    %446 = math.rsqrt %445 : vector<8x1xf32>
    %447 = vector.broadcast %446 : vector<8x1xf32> to vector<8x256xf32>
    %448 = arith.mulf %443, %447 : vector<8x256xf32>
    %449 = vector.broadcast %429 : vector<1x256xf32> to vector<8x256xf32>
    %450 = arith.mulf %448, %449 : vector<8x256xf32>
    %451 = vector.broadcast %430 : vector<1x256xf32> to vector<8x256xf32>
    %452 = arith.addf %450, %451 : vector<8x256xf32>
    %453 = arith.truncf %452 : vector<8x256xf32> to vector<8x256xbf16>
    %c2_155 = arith.constant 2 : index
    %c0_156 = arith.constant 0 : index
    %c0_157 = arith.constant 0 : index
    %454 = vector.load %arg4[%c2_155, %c0_156, %c0_157] : memref<4x256x768xbf16, #tpu.memory_space<vmem>>, vector<1x256x768xbf16>
    %455 = vector.shape_cast %454 : vector<1x256x768xbf16> to vector<256x768xbf16>
    %cst_158 = arith.constant dense<0.000000e+00> : vector<8x768xf32>
    %456 = tpu.matmul %453, %455, %cst_158 {dimension_numbers = #tpu.dot_dimension_numbers<[1], [0], [0], [1], [0, 0, 1, 1], [], []>} : vector<8x256xbf16>, vector<256x768xbf16>, vector<8x768xf32> -> vector<8x768xf32>
    %c2_159 = arith.constant 2 : index
    %c0_160 = arith.constant 0 : index
    %c0_161 = arith.constant 0 : index
    %457 = vector.load %arg8[%c2_159, %c0_160, %c0_161] : memref<4x1x768xf32, #tpu.memory_space<vmem>>, vector<1x1x768xf32>
    %458 = vector.shape_cast %457 : vector<1x1x768xf32> to vector<1x768xf32>
    %459 = vector.broadcast %458 : vector<1x768xf32> to vector<8x768xf32>
    %460 = arith.addf %456, %459 : vector<8x768xf32>
    %461 = arith.truncf %460 : vector<8x768xf32> to vector<8x768xbf16>
    %462 = vector.shape_cast %461 : vector<8x768xbf16> to vector<1x8x768xbf16>
    %463 = vector.extract_strided_slice %462 {offsets = [0, 0, 0], sizes = [1, 8, 64], strides = [1, 1, 1]} : vector<1x8x768xbf16> to vector<1x8x64xbf16>
    %464 = vector.extract_strided_slice %462 {offsets = [0, 0, 256], sizes = [1, 8, 64], strides = [1, 1, 1]} : vector<1x8x768xbf16> to vector<1x8x64xbf16>
    %465 = vector.extract_strided_slice %462 {offsets = [0, 0, 512], sizes = [1, 8, 64], strides = [1, 1, 1]} : vector<1x8x768xbf16> to vector<1x8x64xbf16>
    "tpu.trace_start"() <{level = 10 : i32, message = "bqd,bkd->bqk"}> : () -> ()
    %cst_162 = arith.constant dense<0.000000e+00> : vector<1x8x8xf32>
    %466 = tpu.matmul %463, %464, %cst_162 {dimension_numbers = #tpu.dot_dimension_numbers<[2], [2], [1], [1], [0, 0, 0, 1, 1, 1], [0], [0]>} : vector<1x8x64xbf16>, vector<1x8x64xbf16>, vector<1x8x8xf32> -> vector<1x8x8xf32>
    "tpu.trace_stop"() : () -> ()
    %cst_163 = arith.constant 1.250000e-01 : f32
    %467 = vector.broadcast %cst_163 : f32 to vector<1x8x8xf32>
    %468 = arith.mulf %466, %467 : vector<1x8x8xf32>
    %469 = vector.broadcast %14 : vector<1x1x8xf32> to vector<1x8x8xf32>
    %470 = arith.addf %468, %469 : vector<1x8x8xf32>
    %cst_164 = arith.constant dense<0xFF800000> : vector<1x8xf32>
    %471 = vector.multi_reduction <maximumf>, %470, %cst_164 [2] : vector<1x8x8xf32> to vector<1x8xf32>
    %472 = vector.shape_cast %471 : vector<1x8xf32> to vector<1x8x1xf32>
    %473 = vector.broadcast %472 : vector<1x8x1xf32> to vector<1x8x8xf32>
    %474 = arith.subf %470, %473 : vector<1x8x8xf32>
    %475 = math.exp %474 : vector<1x8x8xf32>
    %cst_165 = arith.constant dense<0.000000e+00> : vector<1x8xf32>
    %476 = vector.multi_reduction <add>, %475, %cst_165 [2] : vector<1x8x8xf32> to vector<1x8xf32>
    %477 = vector.shape_cast %476 : vector<1x8xf32> to vector<1x8x1xf32>
    %478 = tpu.reciprocal %477 {approx = true} : vector<1x8x1xf32> -> vector<1x8x1xf32>
    %479 = vector.broadcast %478 : vector<1x8x1xf32> to vector<1x8x8xf32>
    %480 = arith.mulf %475, %479 : vector<1x8x8xf32>
    %481 = arith.truncf %480 : vector<1x8x8xf32> to vector<1x8x8xbf16>
    "tpu.trace_start"() <{level = 10 : i32, message = "bqk,bkd->bqd"}> : () -> ()
    %cst_166 = arith.constant dense<0.000000e+00> : vector<1x8x64xf32>
    %482 = tpu.matmul %481, %465, %cst_166 {dimension_numbers = #tpu.dot_dimension_numbers<[2], [1], [1], [2], [0, 0, 0, 1, 1, 2], [0], [0]>} : vector<1x8x8xbf16>, vector<1x8x64xbf16>, vector<1x8x64xf32> -> vector<1x8x64xf32>
    "tpu.trace_stop"() : () -> ()
    %483 = vector.extract_strided_slice %462 {offsets = [0, 0, 64], sizes = [1, 8, 64], strides = [1, 1, 1]} : vector<1x8x768xbf16> to vector<1x8x64xbf16>
    %484 = vector.extract_strided_slice %462 {offsets = [0, 0, 320], sizes = [1, 8, 64], strides = [1, 1, 1]} : vector<1x8x768xbf16> to vector<1x8x64xbf16>
    %485 = vector.extract_strided_slice %462 {offsets = [0, 0, 576], sizes = [1, 8, 64], strides = [1, 1, 1]} : vector<1x8x768xbf16> to vector<1x8x64xbf16>
    "tpu.trace_start"() <{level = 10 : i32, message = "bqd,bkd->bqk"}> : () -> ()
    %cst_167 = arith.constant dense<0.000000e+00> : vector<1x8x8xf32>
    %486 = tpu.matmul %483, %484, %cst_167 {dimension_numbers = #tpu.dot_dimension_numbers<[2], [2], [1], [1], [0, 0, 0, 1, 1, 1], [0], [0]>} : vector<1x8x64xbf16>, vector<1x8x64xbf16>, vector<1x8x8xf32> -> vector<1x8x8xf32>
    "tpu.trace_stop"() : () -> ()
    %cst_168 = arith.constant 1.250000e-01 : f32
    %487 = vector.broadcast %cst_168 : f32 to vector<1x8x8xf32>
    %488 = arith.mulf %486, %487 : vector<1x8x8xf32>
    %489 = vector.broadcast %14 : vector<1x1x8xf32> to vector<1x8x8xf32>
    %490 = arith.addf %488, %489 : vector<1x8x8xf32>
    %cst_169 = arith.constant dense<0xFF800000> : vector<1x8xf32>
    %491 = vector.multi_reduction <maximumf>, %490, %cst_169 [2] : vector<1x8x8xf32> to vector<1x8xf32>
    %492 = vector.shape_cast %491 : vector<1x8xf32> to vector<1x8x1xf32>
    %493 = vector.broadcast %492 : vector<1x8x1xf32> to vector<1x8x8xf32>
    %494 = arith.subf %490, %493 : vector<1x8x8xf32>
    %495 = math.exp %494 : vector<1x8x8xf32>
    %cst_170 = arith.constant dense<0.000000e+00> : vector<1x8xf32>
    %496 = vector.multi_reduction <add>, %495, %cst_170 [2] : vector<1x8x8xf32> to vector<1x8xf32>
    %497 = vector.shape_cast %496 : vector<1x8xf32> to vector<1x8x1xf32>
    %498 = tpu.reciprocal %497 {approx = true} : vector<1x8x1xf32> -> vector<1x8x1xf32>
    %499 = vector.broadcast %498 : vector<1x8x1xf32> to vector<1x8x8xf32>
    %500 = arith.mulf %495, %499 : vector<1x8x8xf32>
    %501 = arith.truncf %500 : vector<1x8x8xf32> to vector<1x8x8xbf16>
    "tpu.trace_start"() <{level = 10 : i32, message = "bqk,bkd->bqd"}> : () -> ()
    %cst_171 = arith.constant dense<0.000000e+00> : vector<1x8x64xf32>
    %502 = tpu.matmul %501, %485, %cst_171 {dimension_numbers = #tpu.dot_dimension_numbers<[2], [1], [1], [2], [0, 0, 0, 1, 1, 2], [0], [0]>} : vector<1x8x8xbf16>, vector<1x8x64xbf16>, vector<1x8x64xf32> -> vector<1x8x64xf32>
    "tpu.trace_stop"() : () -> ()
    %503 = vector.extract_strided_slice %462 {offsets = [0, 0, 128], sizes = [1, 8, 64], strides = [1, 1, 1]} : vector<1x8x768xbf16> to vector<1x8x64xbf16>
    %504 = vector.extract_strided_slice %462 {offsets = [0, 0, 384], sizes = [1, 8, 64], strides = [1, 1, 1]} : vector<1x8x768xbf16> to vector<1x8x64xbf16>
    %505 = vector.extract_strided_slice %462 {offsets = [0, 0, 640], sizes = [1, 8, 64], strides = [1, 1, 1]} : vector<1x8x768xbf16> to vector<1x8x64xbf16>
    "tpu.trace_start"() <{level = 10 : i32, message = "bqd,bkd->bqk"}> : () -> ()
    %cst_172 = arith.constant dense<0.000000e+00> : vector<1x8x8xf32>
    %506 = tpu.matmul %503, %504, %cst_172 {dimension_numbers = #tpu.dot_dimension_numbers<[2], [2], [1], [1], [0, 0, 0, 1, 1, 1], [0], [0]>} : vector<1x8x64xbf16>, vector<1x8x64xbf16>, vector<1x8x8xf32> -> vector<1x8x8xf32>
    "tpu.trace_stop"() : () -> ()
    %cst_173 = arith.constant 1.250000e-01 : f32
    %507 = vector.broadcast %cst_173 : f32 to vector<1x8x8xf32>
    %508 = arith.mulf %506, %507 : vector<1x8x8xf32>
    %509 = vector.broadcast %14 : vector<1x1x8xf32> to vector<1x8x8xf32>
    %510 = arith.addf %508, %509 : vector<1x8x8xf32>
    %cst_174 = arith.constant dense<0xFF800000> : vector<1x8xf32>
    %511 = vector.multi_reduction <maximumf>, %510, %cst_174 [2] : vector<1x8x8xf32> to vector<1x8xf32>
    %512 = vector.shape_cast %511 : vector<1x8xf32> to vector<1x8x1xf32>
    %513 = vector.broadcast %512 : vector<1x8x1xf32> to vector<1x8x8xf32>
    %514 = arith.subf %510, %513 : vector<1x8x8xf32>
    %515 = math.exp %514 : vector<1x8x8xf32>
    %cst_175 = arith.constant dense<0.000000e+00> : vector<1x8xf32>
    %516 = vector.multi_reduction <add>, %515, %cst_175 [2] : vector<1x8x8xf32> to vector<1x8xf32>
    %517 = vector.shape_cast %516 : vector<1x8xf32> to vector<1x8x1xf32>
    %518 = tpu.reciprocal %517 {approx = true} : vector<1x8x1xf32> -> vector<1x8x1xf32>
    %519 = vector.broadcast %518 : vector<1x8x1xf32> to vector<1x8x8xf32>
    %520 = arith.mulf %515, %519 : vector<1x8x8xf32>
    %521 = arith.truncf %520 : vector<1x8x8xf32> to vector<1x8x8xbf16>
    "tpu.trace_start"() <{level = 10 : i32, message = "bqk,bkd->bqd"}> : () -> ()
    %cst_176 = arith.constant dense<0.000000e+00> : vector<1x8x64xf32>
    %522 = tpu.matmul %521, %505, %cst_176 {dimension_numbers = #tpu.dot_dimension_numbers<[2], [1], [1], [2], [0, 0, 0, 1, 1, 2], [0], [0]>} : vector<1x8x8xbf16>, vector<1x8x64xbf16>, vector<1x8x64xf32> -> vector<1x8x64xf32>
    "tpu.trace_stop"() : () -> ()
    %523 = vector.extract_strided_slice %462 {offsets = [0, 0, 192], sizes = [1, 8, 64], strides = [1, 1, 1]} : vector<1x8x768xbf16> to vector<1x8x64xbf16>
    %524 = vector.extract_strided_slice %462 {offsets = [0, 0, 448], sizes = [1, 8, 64], strides = [1, 1, 1]} : vector<1x8x768xbf16> to vector<1x8x64xbf16>
    %525 = vector.extract_strided_slice %462 {offsets = [0, 0, 704], sizes = [1, 8, 64], strides = [1, 1, 1]} : vector<1x8x768xbf16> to vector<1x8x64xbf16>
    "tpu.trace_start"() <{level = 10 : i32, message = "bqd,bkd->bqk"}> : () -> ()
    %cst_177 = arith.constant dense<0.000000e+00> : vector<1x8x8xf32>
    %526 = tpu.matmul %523, %524, %cst_177 {dimension_numbers = #tpu.dot_dimension_numbers<[2], [2], [1], [1], [0, 0, 0, 1, 1, 1], [0], [0]>} : vector<1x8x64xbf16>, vector<1x8x64xbf16>, vector<1x8x8xf32> -> vector<1x8x8xf32>
    "tpu.trace_stop"() : () -> ()
    %cst_178 = arith.constant 1.250000e-01 : f32
    %527 = vector.broadcast %cst_178 : f32 to vector<1x8x8xf32>
    %528 = arith.mulf %526, %527 : vector<1x8x8xf32>
    %529 = vector.broadcast %14 : vector<1x1x8xf32> to vector<1x8x8xf32>
    %530 = arith.addf %528, %529 : vector<1x8x8xf32>
    %cst_179 = arith.constant dense<0xFF800000> : vector<1x8xf32>
    %531 = vector.multi_reduction <maximumf>, %530, %cst_179 [2] : vector<1x8x8xf32> to vector<1x8xf32>
    %532 = vector.shape_cast %531 : vector<1x8xf32> to vector<1x8x1xf32>
    %533 = vector.broadcast %532 : vector<1x8x1xf32> to vector<1x8x8xf32>
    %534 = arith.subf %530, %533 : vector<1x8x8xf32>
    %535 = math.exp %534 : vector<1x8x8xf32>
    %cst_180 = arith.constant dense<0.000000e+00> : vector<1x8xf32>
    %536 = vector.multi_reduction <add>, %535, %cst_180 [2] : vector<1x8x8xf32> to vector<1x8xf32>
    %537 = vector.shape_cast %536 : vector<1x8xf32> to vector<1x8x1xf32>
    %538 = tpu.reciprocal %537 {approx = true} : vector<1x8x1xf32> -> vector<1x8x1xf32>
    %539 = vector.broadcast %538 : vector<1x8x1xf32> to vector<1x8x8xf32>
    %540 = arith.mulf %535, %539 : vector<1x8x8xf32>
    %541 = arith.truncf %540 : vector<1x8x8xf32> to vector<1x8x8xbf16>
    "tpu.trace_start"() <{level = 10 : i32, message = "bqk,bkd->bqd"}> : () -> ()
    %cst_181 = arith.constant dense<0.000000e+00> : vector<1x8x64xf32>
    %542 = tpu.matmul %541, %525, %cst_181 {dimension_numbers = #tpu.dot_dimension_numbers<[2], [1], [1], [2], [0, 0, 0, 1, 1, 2], [0], [0]>} : vector<1x8x8xbf16>, vector<1x8x64xbf16>, vector<1x8x64xf32> -> vector<1x8x64xf32>
    "tpu.trace_stop"() : () -> ()
    %543 = tpu.concatenate %482, %502, %522, %542 in 2 : vector<1x8x64xf32>, vector<1x8x64xf32>, vector<1x8x64xf32>, vector<1x8x64xf32> -> vector<1x8x256xf32>
    %544 = vector.shape_cast %543 : vector<1x8x256xf32> to vector<8x256xf32>
    %545 = arith.truncf %544 : vector<8x256xf32> to vector<8x256xbf16>
    %c2_182 = arith.constant 2 : index
    %c0_183 = arith.constant 0 : index
    %c0_184 = arith.constant 0 : index
    %546 = vector.load %arg5[%c2_182, %c0_183, %c0_184] : memref<4x256x256xbf16, #tpu.memory_space<vmem>>, vector<1x256x256xbf16>
    %547 = vector.shape_cast %546 : vector<1x256x256xbf16> to vector<256x256xbf16>
    %cst_185 = arith.constant dense<0.000000e+00> : vector<8x256xf32>
    %548 = tpu.matmul %545, %547, %cst_185 {dimension_numbers = #tpu.dot_dimension_numbers<[1], [0], [0], [1], [0, 0, 1, 1], [], []>} : vector<8x256xbf16>, vector<256x256xbf16>, vector<8x256xf32> -> vector<8x256xf32>
    %549 = vector.extract_strided_slice %428 {offsets = [4, 0], sizes = [1, 256], strides = [1, 1]} : vector<6x256xf32> to vector<1x256xf32>
    %550 = vector.broadcast %549 : vector<1x256xf32> to vector<8x256xf32>
    %551 = arith.addf %548, %550 : vector<8x256xf32>
    %552 = arith.addf %426, %551 : vector<8x256xf32>
    %553 = vector.extract_strided_slice %428 {offsets = [2, 0], sizes = [1, 256], strides = [1, 1]} : vector<6x256xf32> to vector<1x256xf32>
    %554 = vector.extract_strided_slice %428 {offsets = [3, 0], sizes = [1, 256], strides = [1, 1]} : vector<6x256xf32> to vector<1x256xf32>
    %cst_186 = arith.constant dense<0.000000e+00> : vector<8xf32>
    %555 = vector.multi_reduction <add>, %552, %cst_186 [1] : vector<8x256xf32> to vector<8xf32>
    %556 = vector.shape_cast %555 : vector<8xf32> to vector<8x1xf32>
    %cst_187 = arith.constant 2.560000e+02 : f32
    %557 = vector.broadcast %cst_187 : f32 to vector<8x1xf32>
    %558 = arith.divf %556, %557 : vector<8x1xf32>
    %559 = vector.broadcast %558 : vector<8x1xf32> to vector<8x256xf32>
    %560 = arith.subf %552, %559 : vector<8x256xf32>
    %561 = arith.mulf %560, %560 : vector<8x256xf32>
    %cst_188 = arith.constant dense<0.000000e+00> : vector<8xf32>
    %562 = vector.multi_reduction <add>, %561, %cst_188 [1] : vector<8x256xf32> to vector<8xf32>
    %563 = vector.shape_cast %562 : vector<8xf32> to vector<8x1xf32>
    %cst_189 = arith.constant 2.560000e+02 : f32
    %564 = vector.broadcast %cst_189 : f32 to vector<8x1xf32>
    %565 = arith.divf %563, %564 : vector<8x1xf32>
    %566 = vector.broadcast %558 : vector<8x1xf32> to vector<8x256xf32>
    %567 = arith.subf %552, %566 : vector<8x256xf32>
    %cst_190 = arith.constant 9.99999974E-6 : f32
    %568 = vector.broadcast %cst_190 : f32 to vector<8x1xf32>
    %569 = arith.addf %565, %568 : vector<8x1xf32>
    %570 = math.rsqrt %569 : vector<8x1xf32>
    %571 = vector.broadcast %570 : vector<8x1xf32> to vector<8x256xf32>
    %572 = arith.mulf %567, %571 : vector<8x256xf32>
    %573 = vector.broadcast %553 : vector<1x256xf32> to vector<8x256xf32>
    %574 = arith.mulf %572, %573 : vector<8x256xf32>
    %575 = vector.broadcast %554 : vector<1x256xf32> to vector<8x256xf32>
    %576 = arith.addf %574, %575 : vector<8x256xf32>
    %577 = arith.truncf %576 : vector<8x256xf32> to vector<8x256xbf16>
    %c2_191 = arith.constant 2 : index
    %c0_192 = arith.constant 0 : index
    %c0_193 = arith.constant 0 : index
    %578 = vector.load %arg6[%c2_191, %c0_192, %c0_193] : memref<4x256x512xbf16, #tpu.memory_space<vmem>>, vector<1x256x512xbf16>
    %579 = vector.shape_cast %578 : vector<1x256x512xbf16> to vector<256x512xbf16>
    %cst_194 = arith.constant dense<0.000000e+00> : vector<8x512xf32>
    %580 = tpu.matmul %577, %579, %cst_194 {dimension_numbers = #tpu.dot_dimension_numbers<[1], [0], [0], [1], [0, 0, 1, 1], [], []>} : vector<8x256xbf16>, vector<256x512xbf16>, vector<8x512xf32> -> vector<8x512xf32>
    %c2_195 = arith.constant 2 : index
    %c0_196 = arith.constant 0 : index
    %c0_197 = arith.constant 0 : index
    %581 = vector.load %arg9[%c2_195, %c0_196, %c0_197] : memref<4x1x512xf32, #tpu.memory_space<vmem>>, vector<1x1x512xf32>
    %582 = vector.shape_cast %581 : vector<1x1x512xf32> to vector<1x512xf32>
    %583 = vector.broadcast %582 : vector<1x512xf32> to vector<8x512xf32>
    %584 = arith.addf %580, %583 : vector<8x512xf32>
    %cst_198 = arith.constant 5.000000e-01 : f32
    %585 = vector.broadcast %cst_198 : f32 to vector<8x512xf32>
    %586 = arith.mulf %585, %584 : vector<8x512xf32>
    %cst_199 = arith.constant 0.707106769 : f32
    %587 = vector.broadcast %cst_199 : f32 to vector<8x512xf32>
    %588 = arith.mulf %584, %587 : vector<8x512xf32>
    %589 = math.absf %588 : vector<8x512xf32>
    %cst_200 = arith.constant 0.327591091 : f32
    %590 = vector.broadcast %cst_200 : f32 to vector<8x512xf32>
    %591 = arith.mulf %590, %589 : vector<8x512xf32>
    %cst_201 = arith.constant 1.000000e+00 : f32
    %592 = vector.broadcast %cst_201 : f32 to vector<8x512xf32>
    %593 = arith.addf %592, %591 : vector<8x512xf32>
    %cst_202 = arith.constant 1.000000e+00 : f32
    %594 = vector.broadcast %cst_202 : f32 to vector<8x512xf32>
    %595 = arith.divf %594, %593 : vector<8x512xf32>
    %cst_203 = arith.constant 1.06140542 : f32
    %596 = vector.broadcast %cst_203 : f32 to vector<8x512xf32>
    %597 = arith.mulf %596, %595 : vector<8x512xf32>
    %cst_204 = arith.constant -1.45315206 : f32
    %598 = vector.broadcast %cst_204 : f32 to vector<8x512xf32>
    %599 = arith.addf %597, %598 : vector<8x512xf32>
    %600 = arith.mulf %599, %595 : vector<8x512xf32>
    %cst_205 = arith.constant 1.42141378 : f32
    %601 = vector.broadcast %cst_205 : f32 to vector<8x512xf32>
    %602 = arith.addf %600, %601 : vector<8x512xf32>
    %603 = arith.mulf %602, %595 : vector<8x512xf32>
    %cst_206 = arith.constant -0.284496725 : f32
    %604 = vector.broadcast %cst_206 : f32 to vector<8x512xf32>
    %605 = arith.addf %603, %604 : vector<8x512xf32>
    %606 = arith.mulf %605, %595 : vector<8x512xf32>
    %cst_207 = arith.constant 0.254829586 : f32
    %607 = vector.broadcast %cst_207 : f32 to vector<8x512xf32>
    %608 = arith.addf %606, %607 : vector<8x512xf32>
    %609 = arith.mulf %608, %595 : vector<8x512xf32>
    %cst_208 = arith.constant 0.000000e+00 : f32
    %610 = vector.broadcast %cst_208 : f32 to vector<8x512xf32>
    %611 = arith.subf %610, %589 : vector<8x512xf32>
    %612 = arith.mulf %611, %589 : vector<8x512xf32>
    %613 = math.exp %612 : vector<8x512xf32>
    %614 = arith.mulf %609, %613 : vector<8x512xf32>
    %cst_209 = arith.constant 1.000000e+00 : f32
    %615 = vector.broadcast %cst_209 : f32 to vector<8x512xf32>
    %616 = arith.subf %615, %614 : vector<8x512xf32>
    %cst_210 = arith.constant 0.000000e+00 : f32
    %617 = vector.broadcast %cst_210 : f32 to vector<8x512xf32>
    %618 = arith.cmpf oge, %588, %617 : vector<8x512xf32>
    %cst_211 = arith.constant 0.000000e+00 : f32
    %619 = vector.broadcast %cst_211 : f32 to vector<8x512xf32>
    %620 = arith.subf %619, %616 : vector<8x512xf32>
    %621 = arith.select %618, %616, %620 : vector<8x512xi1>, vector<8x512xf32>
    %cst_212 = arith.constant 1.000000e+00 : f32
    %622 = vector.broadcast %cst_212 : f32 to vector<8x512xf32>
    %623 = arith.addf %622, %621 : vector<8x512xf32>
    %624 = arith.mulf %586, %623 : vector<8x512xf32>
    %625 = arith.truncf %624 : vector<8x512xf32> to vector<8x512xbf16>
    %c2_213 = arith.constant 2 : index
    %c0_214 = arith.constant 0 : index
    %c0_215 = arith.constant 0 : index
    %626 = vector.load %arg7[%c2_213, %c0_214, %c0_215] : memref<4x512x256xbf16, #tpu.memory_space<vmem>>, vector<1x512x256xbf16>
    %627 = vector.shape_cast %626 : vector<1x512x256xbf16> to vector<512x256xbf16>
    %cst_216 = arith.constant dense<0.000000e+00> : vector<8x256xf32>
    %628 = tpu.matmul %625, %627, %cst_216 {dimension_numbers = #tpu.dot_dimension_numbers<[1], [0], [0], [1], [0, 0, 1, 1], [], []>} : vector<8x512xbf16>, vector<512x256xbf16>, vector<8x256xf32> -> vector<8x256xf32>
    %629 = vector.extract_strided_slice %428 {offsets = [5, 0], sizes = [1, 256], strides = [1, 1]} : vector<6x256xf32> to vector<1x256xf32>
    %630 = vector.broadcast %629 : vector<1x256xf32> to vector<8x256xf32>
    %631 = arith.addf %628, %630 : vector<8x256xf32>
    %632 = arith.addf %552, %631 : vector<8x256xf32>
    %c3 = arith.constant 3 : index
    %c0_217 = arith.constant 0 : index
    %c0_218 = arith.constant 0 : index
    %633 = vector.load %arg10[%c3, %c0_217, %c0_218] : memref<4x6x256xf32, #tpu.memory_space<vmem>>, vector<1x6x256xf32>
    %634 = vector.shape_cast %633 : vector<1x6x256xf32> to vector<6x256xf32>
    %635 = vector.extract_strided_slice %634 {offsets = [0, 0], sizes = [1, 256], strides = [1, 1]} : vector<6x256xf32> to vector<1x256xf32>
    %636 = vector.extract_strided_slice %634 {offsets = [1, 0], sizes = [1, 256], strides = [1, 1]} : vector<6x256xf32> to vector<1x256xf32>
    %cst_219 = arith.constant dense<0.000000e+00> : vector<8xf32>
    %637 = vector.multi_reduction <add>, %632, %cst_219 [1] : vector<8x256xf32> to vector<8xf32>
    %638 = vector.shape_cast %637 : vector<8xf32> to vector<8x1xf32>
    %cst_220 = arith.constant 2.560000e+02 : f32
    %639 = vector.broadcast %cst_220 : f32 to vector<8x1xf32>
    %640 = arith.divf %638, %639 : vector<8x1xf32>
    %641 = vector.broadcast %640 : vector<8x1xf32> to vector<8x256xf32>
    %642 = arith.subf %632, %641 : vector<8x256xf32>
    %643 = arith.mulf %642, %642 : vector<8x256xf32>
    %cst_221 = arith.constant dense<0.000000e+00> : vector<8xf32>
    %644 = vector.multi_reduction <add>, %643, %cst_221 [1] : vector<8x256xf32> to vector<8xf32>
    %645 = vector.shape_cast %644 : vector<8xf32> to vector<8x1xf32>
    %cst_222 = arith.constant 2.560000e+02 : f32
    %646 = vector.broadcast %cst_222 : f32 to vector<8x1xf32>
    %647 = arith.divf %645, %646 : vector<8x1xf32>
    %648 = vector.broadcast %640 : vector<8x1xf32> to vector<8x256xf32>
    %649 = arith.subf %632, %648 : vector<8x256xf32>
    %cst_223 = arith.constant 9.99999974E-6 : f32
    %650 = vector.broadcast %cst_223 : f32 to vector<8x1xf32>
    %651 = arith.addf %647, %650 : vector<8x1xf32>
    %652 = math.rsqrt %651 : vector<8x1xf32>
    %653 = vector.broadcast %652 : vector<8x1xf32> to vector<8x256xf32>
    %654 = arith.mulf %649, %653 : vector<8x256xf32>
    %655 = vector.broadcast %635 : vector<1x256xf32> to vector<8x256xf32>
    %656 = arith.mulf %654, %655 : vector<8x256xf32>
    %657 = vector.broadcast %636 : vector<1x256xf32> to vector<8x256xf32>
    %658 = arith.addf %656, %657 : vector<8x256xf32>
    %659 = arith.truncf %658 : vector<8x256xf32> to vector<8x256xbf16>
    %c3_224 = arith.constant 3 : index
    %c0_225 = arith.constant 0 : index
    %c0_226 = arith.constant 0 : index
    %660 = vector.load %arg4[%c3_224, %c0_225, %c0_226] : memref<4x256x768xbf16, #tpu.memory_space<vmem>>, vector<1x256x768xbf16>
    %661 = vector.shape_cast %660 : vector<1x256x768xbf16> to vector<256x768xbf16>
    %cst_227 = arith.constant dense<0.000000e+00> : vector<8x768xf32>
    %662 = tpu.matmul %659, %661, %cst_227 {dimension_numbers = #tpu.dot_dimension_numbers<[1], [0], [0], [1], [0, 0, 1, 1], [], []>} : vector<8x256xbf16>, vector<256x768xbf16>, vector<8x768xf32> -> vector<8x768xf32>
    %c3_228 = arith.constant 3 : index
    %c0_229 = arith.constant 0 : index
    %c0_230 = arith.constant 0 : index
    %663 = vector.load %arg8[%c3_228, %c0_229, %c0_230] : memref<4x1x768xf32, #tpu.memory_space<vmem>>, vector<1x1x768xf32>
    %664 = vector.shape_cast %663 : vector<1x1x768xf32> to vector<1x768xf32>
    %665 = vector.broadcast %664 : vector<1x768xf32> to vector<8x768xf32>
    %666 = arith.addf %662, %665 : vector<8x768xf32>
    %667 = arith.truncf %666 : vector<8x768xf32> to vector<8x768xbf16>
    %668 = vector.shape_cast %667 : vector<8x768xbf16> to vector<1x8x768xbf16>
    %669 = vector.extract_strided_slice %668 {offsets = [0, 0, 0], sizes = [1, 8, 64], strides = [1, 1, 1]} : vector<1x8x768xbf16> to vector<1x8x64xbf16>
    %670 = vector.extract_strided_slice %668 {offsets = [0, 0, 256], sizes = [1, 8, 64], strides = [1, 1, 1]} : vector<1x8x768xbf16> to vector<1x8x64xbf16>
    %671 = vector.extract_strided_slice %668 {offsets = [0, 0, 512], sizes = [1, 8, 64], strides = [1, 1, 1]} : vector<1x8x768xbf16> to vector<1x8x64xbf16>
    "tpu.trace_start"() <{level = 10 : i32, message = "bqd,bkd->bqk"}> : () -> ()
    %cst_231 = arith.constant dense<0.000000e+00> : vector<1x8x8xf32>
    %672 = tpu.matmul %669, %670, %cst_231 {dimension_numbers = #tpu.dot_dimension_numbers<[2], [2], [1], [1], [0, 0, 0, 1, 1, 1], [0], [0]>} : vector<1x8x64xbf16>, vector<1x8x64xbf16>, vector<1x8x8xf32> -> vector<1x8x8xf32>
    "tpu.trace_stop"() : () -> ()
    %cst_232 = arith.constant 1.250000e-01 : f32
    %673 = vector.broadcast %cst_232 : f32 to vector<1x8x8xf32>
    %674 = arith.mulf %672, %673 : vector<1x8x8xf32>
    %675 = vector.broadcast %14 : vector<1x1x8xf32> to vector<1x8x8xf32>
    %676 = arith.addf %674, %675 : vector<1x8x8xf32>
    %cst_233 = arith.constant dense<0xFF800000> : vector<1x8xf32>
    %677 = vector.multi_reduction <maximumf>, %676, %cst_233 [2] : vector<1x8x8xf32> to vector<1x8xf32>
    %678 = vector.shape_cast %677 : vector<1x8xf32> to vector<1x8x1xf32>
    %679 = vector.broadcast %678 : vector<1x8x1xf32> to vector<1x8x8xf32>
    %680 = arith.subf %676, %679 : vector<1x8x8xf32>
    %681 = math.exp %680 : vector<1x8x8xf32>
    %cst_234 = arith.constant dense<0.000000e+00> : vector<1x8xf32>
    %682 = vector.multi_reduction <add>, %681, %cst_234 [2] : vector<1x8x8xf32> to vector<1x8xf32>
    %683 = vector.shape_cast %682 : vector<1x8xf32> to vector<1x8x1xf32>
    %684 = tpu.reciprocal %683 {approx = true} : vector<1x8x1xf32> -> vector<1x8x1xf32>
    %685 = vector.broadcast %684 : vector<1x8x1xf32> to vector<1x8x8xf32>
    %686 = arith.mulf %681, %685 : vector<1x8x8xf32>
    %687 = arith.truncf %686 : vector<1x8x8xf32> to vector<1x8x8xbf16>
    "tpu.trace_start"() <{level = 10 : i32, message = "bqk,bkd->bqd"}> : () -> ()
    %cst_235 = arith.constant dense<0.000000e+00> : vector<1x8x64xf32>
    %688 = tpu.matmul %687, %671, %cst_235 {dimension_numbers = #tpu.dot_dimension_numbers<[2], [1], [1], [2], [0, 0, 0, 1, 1, 2], [0], [0]>} : vector<1x8x8xbf16>, vector<1x8x64xbf16>, vector<1x8x64xf32> -> vector<1x8x64xf32>
    "tpu.trace_stop"() : () -> ()
    %689 = vector.extract_strided_slice %668 {offsets = [0, 0, 64], sizes = [1, 8, 64], strides = [1, 1, 1]} : vector<1x8x768xbf16> to vector<1x8x64xbf16>
    %690 = vector.extract_strided_slice %668 {offsets = [0, 0, 320], sizes = [1, 8, 64], strides = [1, 1, 1]} : vector<1x8x768xbf16> to vector<1x8x64xbf16>
    %691 = vector.extract_strided_slice %668 {offsets = [0, 0, 576], sizes = [1, 8, 64], strides = [1, 1, 1]} : vector<1x8x768xbf16> to vector<1x8x64xbf16>
    "tpu.trace_start"() <{level = 10 : i32, message = "bqd,bkd->bqk"}> : () -> ()
    %cst_236 = arith.constant dense<0.000000e+00> : vector<1x8x8xf32>
    %692 = tpu.matmul %689, %690, %cst_236 {dimension_numbers = #tpu.dot_dimension_numbers<[2], [2], [1], [1], [0, 0, 0, 1, 1, 1], [0], [0]>} : vector<1x8x64xbf16>, vector<1x8x64xbf16>, vector<1x8x8xf32> -> vector<1x8x8xf32>
    "tpu.trace_stop"() : () -> ()
    %cst_237 = arith.constant 1.250000e-01 : f32
    %693 = vector.broadcast %cst_237 : f32 to vector<1x8x8xf32>
    %694 = arith.mulf %692, %693 : vector<1x8x8xf32>
    %695 = vector.broadcast %14 : vector<1x1x8xf32> to vector<1x8x8xf32>
    %696 = arith.addf %694, %695 : vector<1x8x8xf32>
    %cst_238 = arith.constant dense<0xFF800000> : vector<1x8xf32>
    %697 = vector.multi_reduction <maximumf>, %696, %cst_238 [2] : vector<1x8x8xf32> to vector<1x8xf32>
    %698 = vector.shape_cast %697 : vector<1x8xf32> to vector<1x8x1xf32>
    %699 = vector.broadcast %698 : vector<1x8x1xf32> to vector<1x8x8xf32>
    %700 = arith.subf %696, %699 : vector<1x8x8xf32>
    %701 = math.exp %700 : vector<1x8x8xf32>
    %cst_239 = arith.constant dense<0.000000e+00> : vector<1x8xf32>
    %702 = vector.multi_reduction <add>, %701, %cst_239 [2] : vector<1x8x8xf32> to vector<1x8xf32>
    %703 = vector.shape_cast %702 : vector<1x8xf32> to vector<1x8x1xf32>
    %704 = tpu.reciprocal %703 {approx = true} : vector<1x8x1xf32> -> vector<1x8x1xf32>
    %705 = vector.broadcast %704 : vector<1x8x1xf32> to vector<1x8x8xf32>
    %706 = arith.mulf %701, %705 : vector<1x8x8xf32>
    %707 = arith.truncf %706 : vector<1x8x8xf32> to vector<1x8x8xbf16>
    "tpu.trace_start"() <{level = 10 : i32, message = "bqk,bkd->bqd"}> : () -> ()
    %cst_240 = arith.constant dense<0.000000e+00> : vector<1x8x64xf32>
    %708 = tpu.matmul %707, %691, %cst_240 {dimension_numbers = #tpu.dot_dimension_numbers<[2], [1], [1], [2], [0, 0, 0, 1, 1, 2], [0], [0]>} : vector<1x8x8xbf16>, vector<1x8x64xbf16>, vector<1x8x64xf32> -> vector<1x8x64xf32>
    "tpu.trace_stop"() : () -> ()
    %709 = vector.extract_strided_slice %668 {offsets = [0, 0, 128], sizes = [1, 8, 64], strides = [1, 1, 1]} : vector<1x8x768xbf16> to vector<1x8x64xbf16>
    %710 = vector.extract_strided_slice %668 {offsets = [0, 0, 384], sizes = [1, 8, 64], strides = [1, 1, 1]} : vector<1x8x768xbf16> to vector<1x8x64xbf16>
    %711 = vector.extract_strided_slice %668 {offsets = [0, 0, 640], sizes = [1, 8, 64], strides = [1, 1, 1]} : vector<1x8x768xbf16> to vector<1x8x64xbf16>
    "tpu.trace_start"() <{level = 10 : i32, message = "bqd,bkd->bqk"}> : () -> ()
    %cst_241 = arith.constant dense<0.000000e+00> : vector<1x8x8xf32>
    %712 = tpu.matmul %709, %710, %cst_241 {dimension_numbers = #tpu.dot_dimension_numbers<[2], [2], [1], [1], [0, 0, 0, 1, 1, 1], [0], [0]>} : vector<1x8x64xbf16>, vector<1x8x64xbf16>, vector<1x8x8xf32> -> vector<1x8x8xf32>
    "tpu.trace_stop"() : () -> ()
    %cst_242 = arith.constant 1.250000e-01 : f32
    %713 = vector.broadcast %cst_242 : f32 to vector<1x8x8xf32>
    %714 = arith.mulf %712, %713 : vector<1x8x8xf32>
    %715 = vector.broadcast %14 : vector<1x1x8xf32> to vector<1x8x8xf32>
    %716 = arith.addf %714, %715 : vector<1x8x8xf32>
    %cst_243 = arith.constant dense<0xFF800000> : vector<1x8xf32>
    %717 = vector.multi_reduction <maximumf>, %716, %cst_243 [2] : vector<1x8x8xf32> to vector<1x8xf32>
    %718 = vector.shape_cast %717 : vector<1x8xf32> to vector<1x8x1xf32>
    %719 = vector.broadcast %718 : vector<1x8x1xf32> to vector<1x8x8xf32>
    %720 = arith.subf %716, %719 : vector<1x8x8xf32>
    %721 = math.exp %720 : vector<1x8x8xf32>
    %cst_244 = arith.constant dense<0.000000e+00> : vector<1x8xf32>
    %722 = vector.multi_reduction <add>, %721, %cst_244 [2] : vector<1x8x8xf32> to vector<1x8xf32>
    %723 = vector.shape_cast %722 : vector<1x8xf32> to vector<1x8x1xf32>
    %724 = tpu.reciprocal %723 {approx = true} : vector<1x8x1xf32> -> vector<1x8x1xf32>
    %725 = vector.broadcast %724 : vector<1x8x1xf32> to vector<1x8x8xf32>
    %726 = arith.mulf %721, %725 : vector<1x8x8xf32>
    %727 = arith.truncf %726 : vector<1x8x8xf32> to vector<1x8x8xbf16>
    "tpu.trace_start"() <{level = 10 : i32, message = "bqk,bkd->bqd"}> : () -> ()
    %cst_245 = arith.constant dense<0.000000e+00> : vector<1x8x64xf32>
    %728 = tpu.matmul %727, %711, %cst_245 {dimension_numbers = #tpu.dot_dimension_numbers<[2], [1], [1], [2], [0, 0, 0, 1, 1, 2], [0], [0]>} : vector<1x8x8xbf16>, vector<1x8x64xbf16>, vector<1x8x64xf32> -> vector<1x8x64xf32>
    "tpu.trace_stop"() : () -> ()
    %729 = vector.extract_strided_slice %668 {offsets = [0, 0, 192], sizes = [1, 8, 64], strides = [1, 1, 1]} : vector<1x8x768xbf16> to vector<1x8x64xbf16>
    %730 = vector.extract_strided_slice %668 {offsets = [0, 0, 448], sizes = [1, 8, 64], strides = [1, 1, 1]} : vector<1x8x768xbf16> to vector<1x8x64xbf16>
    %731 = vector.extract_strided_slice %668 {offsets = [0, 0, 704], sizes = [1, 8, 64], strides = [1, 1, 1]} : vector<1x8x768xbf16> to vector<1x8x64xbf16>
    "tpu.trace_start"() <{level = 10 : i32, message = "bqd,bkd->bqk"}> : () -> ()
    %cst_246 = arith.constant dense<0.000000e+00> : vector<1x8x8xf32>
    %732 = tpu.matmul %729, %730, %cst_246 {dimension_numbers = #tpu.dot_dimension_numbers<[2], [2], [1], [1], [0, 0, 0, 1, 1, 1], [0], [0]>} : vector<1x8x64xbf16>, vector<1x8x64xbf16>, vector<1x8x8xf32> -> vector<1x8x8xf32>
    "tpu.trace_stop"() : () -> ()
    %cst_247 = arith.constant 1.250000e-01 : f32
    %733 = vector.broadcast %cst_247 : f32 to vector<1x8x8xf32>
    %734 = arith.mulf %732, %733 : vector<1x8x8xf32>
    %735 = vector.broadcast %14 : vector<1x1x8xf32> to vector<1x8x8xf32>
    %736 = arith.addf %734, %735 : vector<1x8x8xf32>
    %cst_248 = arith.constant dense<0xFF800000> : vector<1x8xf32>
    %737 = vector.multi_reduction <maximumf>, %736, %cst_248 [2] : vector<1x8x8xf32> to vector<1x8xf32>
    %738 = vector.shape_cast %737 : vector<1x8xf32> to vector<1x8x1xf32>
    %739 = vector.broadcast %738 : vector<1x8x1xf32> to vector<1x8x8xf32>
    %740 = arith.subf %736, %739 : vector<1x8x8xf32>
    %741 = math.exp %740 : vector<1x8x8xf32>
    %cst_249 = arith.constant dense<0.000000e+00> : vector<1x8xf32>
    %742 = vector.multi_reduction <add>, %741, %cst_249 [2] : vector<1x8x8xf32> to vector<1x8xf32>
    %743 = vector.shape_cast %742 : vector<1x8xf32> to vector<1x8x1xf32>
    %744 = tpu.reciprocal %743 {approx = true} : vector<1x8x1xf32> -> vector<1x8x1xf32>
    %745 = vector.broadcast %744 : vector<1x8x1xf32> to vector<1x8x8xf32>
    %746 = arith.mulf %741, %745 : vector<1x8x8xf32>
    %747 = arith.truncf %746 : vector<1x8x8xf32> to vector<1x8x8xbf16>
    "tpu.trace_start"() <{level = 10 : i32, message = "bqk,bkd->bqd"}> : () -> ()
    %cst_250 = arith.constant dense<0.000000e+00> : vector<1x8x64xf32>
    %748 = tpu.matmul %747, %731, %cst_250 {dimension_numbers = #tpu.dot_dimension_numbers<[2], [1], [1], [2], [0, 0, 0, 1, 1, 2], [0], [0]>} : vector<1x8x8xbf16>, vector<1x8x64xbf16>, vector<1x8x64xf32> -> vector<1x8x64xf32>
    "tpu.trace_stop"() : () -> ()
    %749 = tpu.concatenate %688, %708, %728, %748 in 2 : vector<1x8x64xf32>, vector<1x8x64xf32>, vector<1x8x64xf32>, vector<1x8x64xf32> -> vector<1x8x256xf32>
    %750 = vector.shape_cast %749 : vector<1x8x256xf32> to vector<8x256xf32>
    %751 = arith.truncf %750 : vector<8x256xf32> to vector<8x256xbf16>
    %c3_251 = arith.constant 3 : index
    %c0_252 = arith.constant 0 : index
    %c0_253 = arith.constant 0 : index
    %752 = vector.load %arg5[%c3_251, %c0_252, %c0_253] : memref<4x256x256xbf16, #tpu.memory_space<vmem>>, vector<1x256x256xbf16>
    %753 = vector.shape_cast %752 : vector<1x256x256xbf16> to vector<256x256xbf16>
    %cst_254 = arith.constant dense<0.000000e+00> : vector<8x256xf32>
    %754 = tpu.matmul %751, %753, %cst_254 {dimension_numbers = #tpu.dot_dimension_numbers<[1], [0], [0], [1], [0, 0, 1, 1], [], []>} : vector<8x256xbf16>, vector<256x256xbf16>, vector<8x256xf32> -> vector<8x256xf32>
    %755 = vector.extract_strided_slice %634 {offsets = [4, 0], sizes = [1, 256], strides = [1, 1]} : vector<6x256xf32> to vector<1x256xf32>
    %756 = vector.broadcast %755 : vector<1x256xf32> to vector<8x256xf32>
    %757 = arith.addf %754, %756 : vector<8x256xf32>
    %758 = arith.addf %632, %757 : vector<8x256xf32>
    %759 = vector.extract_strided_slice %634 {offsets = [2, 0], sizes = [1, 256], strides = [1, 1]} : vector<6x256xf32> to vector<1x256xf32>
    %760 = vector.extract_strided_slice %634 {offsets = [3, 0], sizes = [1, 256], strides = [1, 1]} : vector<6x256xf32> to vector<1x256xf32>
    %cst_255 = arith.constant dense<0.000000e+00> : vector<8xf32>
    %761 = vector.multi_reduction <add>, %758, %cst_255 [1] : vector<8x256xf32> to vector<8xf32>
    %762 = vector.shape_cast %761 : vector<8xf32> to vector<8x1xf32>
    %cst_256 = arith.constant 2.560000e+02 : f32
    %763 = vector.broadcast %cst_256 : f32 to vector<8x1xf32>
    %764 = arith.divf %762, %763 : vector<8x1xf32>
    %765 = vector.broadcast %764 : vector<8x1xf32> to vector<8x256xf32>
    %766 = arith.subf %758, %765 : vector<8x256xf32>
    %767 = arith.mulf %766, %766 : vector<8x256xf32>
    %cst_257 = arith.constant dense<0.000000e+00> : vector<8xf32>
    %768 = vector.multi_reduction <add>, %767, %cst_257 [1] : vector<8x256xf32> to vector<8xf32>
    %769 = vector.shape_cast %768 : vector<8xf32> to vector<8x1xf32>
    %cst_258 = arith.constant 2.560000e+02 : f32
    %770 = vector.broadcast %cst_258 : f32 to vector<8x1xf32>
    %771 = arith.divf %769, %770 : vector<8x1xf32>
    %772 = vector.broadcast %764 : vector<8x1xf32> to vector<8x256xf32>
    %773 = arith.subf %758, %772 : vector<8x256xf32>
    %cst_259 = arith.constant 9.99999974E-6 : f32
    %774 = vector.broadcast %cst_259 : f32 to vector<8x1xf32>
    %775 = arith.addf %771, %774 : vector<8x1xf32>
    %776 = math.rsqrt %775 : vector<8x1xf32>
    %777 = vector.broadcast %776 : vector<8x1xf32> to vector<8x256xf32>
    %778 = arith.mulf %773, %777 : vector<8x256xf32>
    %779 = vector.broadcast %759 : vector<1x256xf32> to vector<8x256xf32>
    %780 = arith.mulf %778, %779 : vector<8x256xf32>
    %781 = vector.broadcast %760 : vector<1x256xf32> to vector<8x256xf32>
    %782 = arith.addf %780, %781 : vector<8x256xf32>
    %783 = arith.truncf %782 : vector<8x256xf32> to vector<8x256xbf16>
    %c3_260 = arith.constant 3 : index
    %c0_261 = arith.constant 0 : index
    %c0_262 = arith.constant 0 : index
    %784 = vector.load %arg6[%c3_260, %c0_261, %c0_262] : memref<4x256x512xbf16, #tpu.memory_space<vmem>>, vector<1x256x512xbf16>
    %785 = vector.shape_cast %784 : vector<1x256x512xbf16> to vector<256x512xbf16>
    %cst_263 = arith.constant dense<0.000000e+00> : vector<8x512xf32>
    %786 = tpu.matmul %783, %785, %cst_263 {dimension_numbers = #tpu.dot_dimension_numbers<[1], [0], [0], [1], [0, 0, 1, 1], [], []>} : vector<8x256xbf16>, vector<256x512xbf16>, vector<8x512xf32> -> vector<8x512xf32>
    %c3_264 = arith.constant 3 : index
    %c0_265 = arith.constant 0 : index
    %c0_266 = arith.constant 0 : index
    %787 = vector.load %arg9[%c3_264, %c0_265, %c0_266] : memref<4x1x512xf32, #tpu.memory_space<vmem>>, vector<1x1x512xf32>
    %788 = vector.shape_cast %787 : vector<1x1x512xf32> to vector<1x512xf32>
    %789 = vector.broadcast %788 : vector<1x512xf32> to vector<8x512xf32>
    %790 = arith.addf %786, %789 : vector<8x512xf32>
    %cst_267 = arith.constant 5.000000e-01 : f32
    %791 = vector.broadcast %cst_267 : f32 to vector<8x512xf32>
    %792 = arith.mulf %791, %790 : vector<8x512xf32>
    %cst_268 = arith.constant 0.707106769 : f32
    %793 = vector.broadcast %cst_268 : f32 to vector<8x512xf32>
    %794 = arith.mulf %790, %793 : vector<8x512xf32>
    %795 = math.absf %794 : vector<8x512xf32>
    %cst_269 = arith.constant 0.327591091 : f32
    %796 = vector.broadcast %cst_269 : f32 to vector<8x512xf32>
    %797 = arith.mulf %796, %795 : vector<8x512xf32>
    %cst_270 = arith.constant 1.000000e+00 : f32
    %798 = vector.broadcast %cst_270 : f32 to vector<8x512xf32>
    %799 = arith.addf %798, %797 : vector<8x512xf32>
    %cst_271 = arith.constant 1.000000e+00 : f32
    %800 = vector.broadcast %cst_271 : f32 to vector<8x512xf32>
    %801 = arith.divf %800, %799 : vector<8x512xf32>
    %cst_272 = arith.constant 1.06140542 : f32
    %802 = vector.broadcast %cst_272 : f32 to vector<8x512xf32>
    %803 = arith.mulf %802, %801 : vector<8x512xf32>
    %cst_273 = arith.constant -1.45315206 : f32
    %804 = vector.broadcast %cst_273 : f32 to vector<8x512xf32>
    %805 = arith.addf %803, %804 : vector<8x512xf32>
    %806 = arith.mulf %805, %801 : vector<8x512xf32>
    %cst_274 = arith.constant 1.42141378 : f32
    %807 = vector.broadcast %cst_274 : f32 to vector<8x512xf32>
    %808 = arith.addf %806, %807 : vector<8x512xf32>
    %809 = arith.mulf %808, %801 : vector<8x512xf32>
    %cst_275 = arith.constant -0.284496725 : f32
    %810 = vector.broadcast %cst_275 : f32 to vector<8x512xf32>
    %811 = arith.addf %809, %810 : vector<8x512xf32>
    %812 = arith.mulf %811, %801 : vector<8x512xf32>
    %cst_276 = arith.constant 0.254829586 : f32
    %813 = vector.broadcast %cst_276 : f32 to vector<8x512xf32>
    %814 = arith.addf %812, %813 : vector<8x512xf32>
    %815 = arith.mulf %814, %801 : vector<8x512xf32>
    %cst_277 = arith.constant 0.000000e+00 : f32
    %816 = vector.broadcast %cst_277 : f32 to vector<8x512xf32>
    %817 = arith.subf %816, %795 : vector<8x512xf32>
    %818 = arith.mulf %817, %795 : vector<8x512xf32>
    %819 = math.exp %818 : vector<8x512xf32>
    %820 = arith.mulf %815, %819 : vector<8x512xf32>
    %cst_278 = arith.constant 1.000000e+00 : f32
    %821 = vector.broadcast %cst_278 : f32 to vector<8x512xf32>
    %822 = arith.subf %821, %820 : vector<8x512xf32>
    %cst_279 = arith.constant 0.000000e+00 : f32
    %823 = vector.broadcast %cst_279 : f32 to vector<8x512xf32>
    %824 = arith.cmpf oge, %794, %823 : vector<8x512xf32>
    %cst_280 = arith.constant 0.000000e+00 : f32
    %825 = vector.broadcast %cst_280 : f32 to vector<8x512xf32>
    %826 = arith.subf %825, %822 : vector<8x512xf32>
    %827 = arith.select %824, %822, %826 : vector<8x512xi1>, vector<8x512xf32>
    %cst_281 = arith.constant 1.000000e+00 : f32
    %828 = vector.broadcast %cst_281 : f32 to vector<8x512xf32>
    %829 = arith.addf %828, %827 : vector<8x512xf32>
    %830 = arith.mulf %792, %829 : vector<8x512xf32>
    %831 = arith.truncf %830 : vector<8x512xf32> to vector<8x512xbf16>
    %c3_282 = arith.constant 3 : index
    %c0_283 = arith.constant 0 : index
    %c0_284 = arith.constant 0 : index
    %832 = vector.load %arg7[%c3_282, %c0_283, %c0_284] : memref<4x512x256xbf16, #tpu.memory_space<vmem>>, vector<1x512x256xbf16>
    %833 = vector.shape_cast %832 : vector<1x512x256xbf16> to vector<512x256xbf16>
    %cst_285 = arith.constant dense<0.000000e+00> : vector<8x256xf32>
    %834 = tpu.matmul %831, %833, %cst_285 {dimension_numbers = #tpu.dot_dimension_numbers<[1], [0], [0], [1], [0, 0, 1, 1], [], []>} : vector<8x512xbf16>, vector<512x256xbf16>, vector<8x256xf32> -> vector<8x256xf32>
    %835 = vector.extract_strided_slice %634 {offsets = [5, 0], sizes = [1, 256], strides = [1, 1]} : vector<6x256xf32> to vector<1x256xf32>
    %836 = vector.broadcast %835 : vector<1x256xf32> to vector<8x256xf32>
    %837 = arith.addf %834, %836 : vector<8x256xf32>
    %838 = arith.addf %758, %837 : vector<8x256xf32>
    %839 = vector.shape_cast %838 : vector<8x256xf32> to vector<1x8x256xf32>
    %840 = vector.extract_strided_slice %839 {offsets = [0, 0, 0], sizes = [1, 1, 256], strides = [1, 1, 1]} : vector<1x8x256xf32> to vector<1x1x256xf32>
    %c0_286 = arith.constant 0 : index
    %c0_287 = arith.constant 0 : index
    %841 = vector.load %arg11[%c0_286, %c0_287] : memref<2x256xf32, #tpu.memory_space<vmem>>, vector<1x256xf32>
    %c1_288 = arith.constant 1 : index
    %c0_289 = arith.constant 0 : index
    %842 = vector.load %arg11[%c1_288, %c0_289] : memref<2x256xf32, #tpu.memory_space<vmem>>, vector<1x256xf32>
    %cst_290 = arith.constant dense<0.000000e+00> : vector<1x1xf32>
    %843 = vector.multi_reduction <add>, %840, %cst_290 [2] : vector<1x1x256xf32> to vector<1x1xf32>
    %844 = vector.shape_cast %843 : vector<1x1xf32> to vector<1x1x1xf32>
    %cst_291 = arith.constant 2.560000e+02 : f32
    %845 = vector.broadcast %cst_291 : f32 to vector<1x1x1xf32>
    %846 = arith.divf %844, %845 : vector<1x1x1xf32>
    %847 = vector.broadcast %846 : vector<1x1x1xf32> to vector<1x1x256xf32>
    %848 = arith.subf %840, %847 : vector<1x1x256xf32>
    %849 = arith.mulf %848, %848 : vector<1x1x256xf32>
    %cst_292 = arith.constant dense<0.000000e+00> : vector<1x1xf32>
    %850 = vector.multi_reduction <add>, %849, %cst_292 [2] : vector<1x1x256xf32> to vector<1x1xf32>
    %851 = vector.shape_cast %850 : vector<1x1xf32> to vector<1x1x1xf32>
    %cst_293 = arith.constant 2.560000e+02 : f32
    %852 = vector.broadcast %cst_293 : f32 to vector<1x1x1xf32>
    %853 = arith.divf %851, %852 : vector<1x1x1xf32>
    %854 = vector.broadcast %846 : vector<1x1x1xf32> to vector<1x1x256xf32>
    %855 = arith.subf %840, %854 : vector<1x1x256xf32>
    %cst_294 = arith.constant 9.99999974E-6 : f32
    %856 = vector.broadcast %cst_294 : f32 to vector<1x1x1xf32>
    %857 = arith.addf %853, %856 : vector<1x1x1xf32>
    %858 = math.rsqrt %857 : vector<1x1x1xf32>
    %859 = vector.broadcast %858 : vector<1x1x1xf32> to vector<1x1x256xf32>
    %860 = arith.mulf %855, %859 : vector<1x1x256xf32>
    %861 = vector.shape_cast %841 : vector<1x256xf32> to vector<1x1x256xf32>
    %862 = arith.mulf %860, %861 : vector<1x1x256xf32>
    %863 = vector.shape_cast %842 : vector<1x256xf32> to vector<1x1x256xf32>
    %864 = arith.addf %862, %863 : vector<1x1x256xf32>
    %c0_295 = arith.constant 0 : index
    %c0_296 = arith.constant 0 : index
    %c0_297 = arith.constant 0 : index
    %865 = vector.load %arg12[%c0_295, %c0_296, %c0_297] : memref<1x1x256xf32, #tpu.memory_space<vmem>>, vector<1x1x256xf32>
    tpu.vector_store %arg12[%c0_295, %c0_296, %c0_297], %864 {strides = array<i32>} : memref<1x1x256xf32, #tpu.memory_space<vmem>>, vector<1x1x256xf32>,
    return
  }
  func.func @transform_0(%arg0: i32) -> (i32, i32, i32) {
    %c0_i32 = arith.constant 0 : i32
    %c0_i32_0 = arith.constant 0 : i32
    %c0_i32_1 = arith.constant 0 : i32
    return %arg0, %c0_i32, %c0_i32_0 : i32, i32, i32
  }
  func.func @transform_1(%arg0: i32) -> (i32, i32, i32) {
    %c0_i32 = arith.constant 0 : i32
    %c0_i32_0 = arith.constant 0 : i32
    %c0_i32_1 = arith.constant 0 : i32
    %c0_i32_2 = arith.constant 0 : i32
    return %c0_i32, %c0_i32_0, %c0_i32_1 : i32, i32, i32
  }
  func.func @transform_2(%arg0: i32) -> (i32, i32) {
    %c0_i32 = arith.constant 0 : i32
    %c0_i32_0 = arith.constant 0 : i32
    %c0_i32_1 = arith.constant 0 : i32
    return %c0_i32, %c0_i32_0 : i32, i32
  }
  func.func @transform_3(%arg0: i32) -> (i32, i32, i32) {
    %c0_i32 = arith.constant 0 : i32
    %c0_i32_0 = arith.constant 0 : i32
    %c0_i32_1 = arith.constant 0 : i32
    %c0_i32_2 = arith.constant 0 : i32
    return %c0_i32, %c0_i32_0, %c0_i32_1 : i32, i32, i32
  }
  func.func @transform_4(%arg0: i32) -> (i32, i32, i32) {
    %c0_i32 = arith.constant 0 : i32
    %c0_i32_0 = arith.constant 0 : i32
    %c0_i32_1 = arith.constant 0 : i32
    %c0_i32_2 = arith.constant 0 : i32
    return %c0_i32, %c0_i32_0, %c0_i32_1 : i32, i32, i32
  }
  func.func @transform_5(%arg0: i32) -> (i32, i32, i32) {
    %c0_i32 = arith.constant 0 : i32
    %c0_i32_0 = arith.constant 0 : i32
    %c0_i32_1 = arith.constant 0 : i32
    %c0_i32_2 = arith.constant 0 : i32
    return %c0_i32, %c0_i32_0, %c0_i32_1 : i32, i32, i32
  }
  func.func @transform_6(%arg0: i32) -> (i32, i32, i32) {
    %c0_i32 = arith.constant 0 : i32
    %c0_i32_0 = arith.constant 0 : i32
    %c0_i32_1 = arith.constant 0 : i32
    %c0_i32_2 = arith.constant 0 : i32
    return %c0_i32, %c0_i32_0, %c0_i32_1 : i32, i32, i32
  }
  func.func @transform_7(%arg0: i32) -> (i32, i32, i32) {
    %c0_i32 = arith.constant 0 : i32
    %c0_i32_0 = arith.constant 0 : i32
    %c0_i32_1 = arith.constant 0 : i32
    %c0_i32_2 = arith.constant 0 : i32
    return %c0_i32, %c0_i32_0, %c0_i32_1 : i32, i32, i32
  }
  func.func @transform_8(%arg0: i32) -> (i32, i32, i32) {
    %c0_i32 = arith.constant 0 : i32
    %c0_i32_0 = arith.constant 0 : i32
    %c0_i32_1 = arith.constant 0 : i32
    %c0_i32_2 = arith.constant 0 : i32
    return %c0_i32, %c0_i32_0, %c0_i32_1 : i32, i32, i32
  }
  func.func @transform_9(%arg0: i32) -> (i32, i32, i32) {
    %c0_i32 = arith.constant 0 : i32
    %c0_i32_0 = arith.constant 0 : i32
    %c0_i32_1 = arith.constant 0 : i32
    %c0_i32_2 = arith.constant 0 : i32
    return %c0_i32, %c0_i32_0, %c0_i32_1 : i32, i32, i32
  }
  func.func @transform_10(%arg0: i32) -> (i32, i32) {
    %c0_i32 = arith.constant 0 : i32
    %c0_i32_0 = arith.constant 0 : i32
    %c0_i32_1 = arith.constant 0 : i32
    return %c0_i32, %c0_i32_0 : i32, i32
  }
  func.func @transform_11(%arg0: i32) -> (i32, i32, i32) {
    %c0_i32 = arith.constant 0 : i32
    %c0_i32_0 = arith.constant 0 : i32
    %c0_i32_1 = arith.constant 0 : i32
    return %arg0, %c0_i32, %c0_i32_0 : i32, i32, i32
  }
}

</mosaic_0001>

<llo_original>
// kernel: dro_forward.1
$region0: #{dro_forward.1}
  #allocation0 [shape = 'u32[]', space=smem, size = 0x4, offset = 0x4, fixed_abs, tag = 'smem constant byte address 0x4 - core index']
  #allocation1 [shape = 'u32[144,128]{1,0:T(1,128)}', space=vmem, size = 0x12000, scoped, tag = 'internal scratch']
  %s0 = inlined_call_operand.vmem [shape: f32[2,8,256], index: 0, kind: input, shape index: {}]
  %s1 = inlined_call_operand.vmem [shape: f32[1,8,256], index: 1, kind: input, shape index: {}]
  %s2 = inlined_call_operand.vmem [shape: bf16[256,256], index: 2, kind: input, shape index: {}]
  %s3 = inlined_call_operand.vmem [shape: bf16[4,256,768], index: 3, kind: input, shape index: {}]
  %s4 = inlined_call_operand.vmem [shape: bf16[4,256,256], index: 4, kind: input, shape index: {}]
  %s5 = inlined_call_operand.vmem [shape: bf16[4,256,512], index: 5, kind: input, shape index: {}]
  %s6 = inlined_call_operand.vmem [shape: bf16[4,512,256], index: 6, kind: input, shape index: {}]
  %s7 = inlined_call_operand.vmem [shape: f32[4,1,768], index: 7, kind: input, shape index: {}]
  %s8 = inlined_call_operand.vmem [shape: f32[4,1,512], index: 8, kind: input, shape index: {}]
  %s9 = inlined_call_operand.vmem [shape: f32[4,6,256], index: 9, kind: input, shape index: {}]
  %s10 = inlined_call_operand.vmem [shape: f32[2,256], index: 10, kind: input, shape index: {}]
  %s11 = inlined_call_operand.vmem [shape: f32[2,1,256], index: 11, kind: output, shape index: {}]
  %s12 = sld [smem:[#allocation0]]
  $region77: #{dro_forward.1} parent=0
    _
  %s14 = ssub.s32 1, %s12
  %s15 = scalar_select 0, %s14, %s12
  loop: start=0, step=1, limit=4
  $region2: #{dro_forward.1} parent=0 // loop_pre_header
    _
  $region3: #{dro_forward.1} parent=0 // loop_header
    %s17 = sphi 0, %s21
    %p18 = scmp.ge.s32.totalorder %s17, 4
    %s27 = sphi 0, %s29
    %s30 = sphi 0, %s27
    %s31 = sphi 0, %s30
    %s47 = sphi 0, %s31
    %s51 = sphi 0, %s51
    %s53 = sphi 0, %s51
    %s54 = sphi 0, %s53
    %s68 = sphi 0, %s54
    %s72 = sphi 0, %s72
    %s74 = sphi 0, %s72
    %s75 = sphi 0, %s74
    %s89 = sphi 0, %s75
    %s93 = sphi 0, %s93
    %s95 = sphi 0, %s93
    %s96 = sphi 0, %s95
    %s110 = sphi 0, %s96
    %s114 = sphi 0, %s114
    %s116 = sphi 0, %s114
    %s117 = sphi 0, %s116
    %s131 = sphi 0, %s117
    %s135 = sphi 0, %s135
    %s137 = sphi 0, %s135
    %s138 = sphi 0, %s137
    %s152 = sphi 0, %s138
    %s156 = sphi 0, %s156
    %s158 = sphi 0, %s156
    %s159 = sphi 0, %s158
    %s173 = sphi 0, %s159
    %s177 = sphi 0, %s177
    %s179 = sphi 0, %s177
    %s180 = sphi 0, %s179
    %s194 = sphi 0, %s180
    %s198 = sphi 0, %s198
    %s200 = sphi 0, %s198
    %s201 = sphi 0, %s200
    %s215 = sphi 0, %s201
    %s219 = sphi 0, %s219
    %s221 = sphi 0, %s219
    %s222 = sphi 0, %s221
    %s236 = sphi 0, %s222
    %s240 = sphi 0, %s240
    %s242 = sphi 0, %s240
    %s243 = sphi 0, %s242
    %s257 = sphi 0, %s243
    %s263 = sphi 0, %s265
    %s266 = sphi 0, %s263
    %s267 = sphi 0, %s266
    %s283 = sphi 0, %s267
  $region4: #{dro_forward.1} parent=0 // loop_header_branch
    %20 = sbr.rel (%p18) target = $region8
  $region5: #{dro_forward.1} parent=0 // loop_body
    %s22 = ssub.s32 %s17, 1
    %s23 = ssub.s32 %s17, 2
    %s24 = sadd.s32 %s17, 1
    %s25 = ssub.s32 %s17, %s24
    %p26 = scmp.eq.s32.totalorder %s25, 0
    %s28 = sadd.s32 %s27, 1
    %s29 = scalar_select %p26, %s27, %s28
    %p32 = pneg %p26
    %p33 = scmp.eq.s32.totalorder %s17, 1
    %p34 = por %p32, %p33
    %p35 = scmp.ne.s32.totalorder %s27, %s30
    %p36 = scmp.eq.s32.totalorder %s17, 0
    %p37 = por %p35, %p36
    %p38 = scmp.ne.s32.totalorder %s27, %s30
    %p39 = scmp.eq.s32.totalorder %s22, 1
    %p40 = por %p38, %p39
    %p41 = scmp.ne.s32.totalorder %s30, %s31
    %p42 = scmp.eq.s32.totalorder %s22, 0
    %p43 = por %p41, %p42
    %p44 = scmp.ne.s32.totalorder %s30, %s31
    %p45 = scmp.eq.s32.totalorder %s23, 1
    %p46 = por %p44, %p45
    %p48 = scmp.ne.s32.totalorder %s31, %s47
    %p49 = scmp.eq.s32.totalorder %s23, 0
    %p50 = por %p48, %p49
    %s52 = sadd.s32 %s51, 1
    %p55 = scmp.eq.s32.totalorder %s17, 1
    %p56 = scmp.ne.s32.totalorder %s51, %s53
    %p57 = scmp.eq.s32.totalorder %s17, 0
    %p58 = por %p56, %p57
    %p59 = scmp.ne.s32.totalorder %s51, %s53
    %p60 = scmp.eq.s32.totalorder %s22, 1
    %p61 = por %p59, %p60
    %p62 = scmp.ne.s32.totalorder %s53, %s54
    %p63 = scmp.eq.s32.totalorder %s22, 0
    %p64 = por %p62, %p63
    %p65 = scmp.ne.s32.totalorder %s53, %s54
    %p66 = scmp.eq.s32.totalorder %s23, 1
    %p67 = por %p65, %p66
    %p69 = scmp.ne.s32.totalorder %s54, %s68
    %p70 = scmp.eq.s32.totalorder %s23, 0
    %p71 = por %p69, %p70
    %s73 = sadd.s32 %s72, 1
    %p76 = scmp.eq.s32.totalorder %s17, 1
    %p77 = scmp.ne.s32.totalorder %s72, %s74
    %p78 = scmp.eq.s32.totalorder %s17, 0
    %p79 = por %p77, %p78
    %p80 = scmp.ne.s32.totalorder %s72, %s74
    %p81 = scmp.eq.s32.totalorder %s22, 1
    %p82 = por %p80, %p81
    %p83 = scmp.ne.s32.totalorder %s74, %s75
    %p84 = scmp.eq.s32.totalorder %s22, 0
    %p85 = por %p83, %p84
    %p86 = scmp.ne.s32.totalorder %s74, %s75
    %p87 = scmp.eq.s32.totalorder %s23, 1
    %p88 = por %p86, %p87
    %p90 = scmp.ne.s32.totalorder %s75, %s89
    %p91 = scmp.eq.s32.totalorder %s23, 0
    %p92 = por %p90, %p91
    %s94 = sadd.s32 %s93, 1
    %p97 = scmp.eq.s32.totalorder %s17, 1
    %p98 = scmp.ne.s32.totalorder %s93, %s95
    %p99 = scmp.eq.s32.totalorder %s17, 0
    %p100 = por %p98, %p99
    %p101 = scmp.ne.s32.totalorder %s93, %s95
    %p102 = scmp.eq.s32.totalorder %s22, 1
    %p103 = por %p101, %p102
    %p104 = scmp.ne.s32.totalorder %s95, %s96
    %p105 = scmp.eq.s32.totalorder %s22, 0
    %p106 = por %p104, %p105
    %p107 = scmp.ne.s32.totalorder %s95, %s96
    %p108 = scmp.eq.s32.totalorder %s23, 1
    %p109 = por %p107, %p108
    %p111 = scmp.ne.s32.totalorder %s96, %s110
    %p112 = scmp.eq.s32.totalorder %s23, 0
    %p113 = por %p111, %p112
    %s115 = sadd.s32 %s114, 1
    %p118 = scmp.eq.s32.totalorder %s17, 1
    %p119 = scmp.ne.s32.totalorder %s114, %s116
    %p120 = scmp.eq.s32.totalorder %s17, 0
    %p121 = por %p119, %p120
    %p122 = scmp.ne.s32.totalorder %s114, %s116
    %p123 = scmp.eq.s32.totalorder %s22, 1
    %p124 = por %p122, %p123
    %p125 = scmp.ne.s32.totalorder %s116, %s117
    %p126 = scmp.eq.s32.totalorder %s22, 0
    %p127 = por %p125, %p126
    %p128 = scmp.ne.s32.totalorder %s116, %s117
    %p129 = scmp.eq.s32.totalorder %s23, 1
    %p130 = por %p128, %p129
    %p132 = scmp.ne.s32.totalorder %s117, %s131
    %p133 = scmp.eq.s32.totalorder %s23, 0
    %p134 = por %p132, %p133
    %s136 = sadd.s32 %s135, 1
    %p139 = scmp.eq.s32.totalorder %s17, 1
    %p140 = scmp.ne.s32.totalorder %s135, %s137
    %p141 = scmp.eq.s32.totalorder %s17, 0
    %p142 = por %p140, %p141
    %p143 = scmp.ne.s32.totalorder %s135, %s137
    %p144 = scmp.eq.s32.totalorder %s22, 1
    %p145 = por %p143, %p144
    %p146 = scmp.ne.s32.totalorder %s137, %s138
    %p147 = scmp.eq.s32.totalorder %s22, 0
    %p148 = por %p146, %p147
    %p149 = scmp.ne.s32.totalorder %s137, %s138
    %p150 = scmp.eq.s32.totalorder %s23, 1
    %p151 = por %p149, %p150
    %p153 = scmp.ne.s32.totalorder %s138, %s152
    %p154 = scmp.eq.s32.totalorder %s23, 0
    %p155 = por %p153, %p154
    %s157 = sadd.s32 %s156, 1
    %p160 = scmp.eq.s32.totalorder %s17, 1
    %p161 = scmp.ne.s32.totalorder %s156, %s158
    %p162 = scmp.eq.s32.totalorder %s17, 0
    %p163 = por %p161, %p162
    %p164 = scmp.ne.s32.totalorder %s156, %s158
    %p165 = scmp.eq.s32.totalorder %s22, 1
    %p166 = por %p164, %p165
    %p167 = scmp.ne.s32.totalorder %s158, %s159
    %p168 = scmp.eq.s32.totalorder %s22, 0
    %p169 = por %p167, %p168
    %p170 = scmp.ne.s32.totalorder %s158, %s159
    %p171 = scmp.eq.s32.totalorder %s23, 1
    %p172 = por %p170, %p171
    %p174 = scmp.ne.s32.totalorder %s159, %s173
    %p175 = scmp.eq.s32.totalorder %s23, 0
    %p176 = por %p174, %p175
    %s178 = sadd.s32 %s177, 1
    %p181 = scmp.eq.s32.totalorder %s17, 1
    %p182 = scmp.ne.s32.totalorder %s177, %s179
    %p183 = scmp.eq.s32.totalorder %s17, 0
    %p184 = por %p182, %p183
    %p185 = scmp.ne.s32.totalorder %s177, %s179
    %p186 = scmp.eq.s32.totalorder %s22, 1
    %p187 = por %p185, %p186
    %p188 = scmp.ne.s32.totalorder %s179, %s180
    %p189 = scmp.eq.s32.totalorder %s22, 0
    %p190 = por %p188, %p189
    %p191 = scmp.ne.s32.totalorder %s179, %s180
    %p192 = scmp.eq.s32.totalorder %s23, 1
    %p193 = por %p191, %p192
    %p195 = scmp.ne.s32.totalorder %s180, %s194
    %p196 = scmp.eq.s32.totalorder %s23, 0
    %p197 = por %p195, %p196
    %s199 = sadd.s32 %s198, 1
    %p202 = scmp.eq.s32.totalorder %s17, 1
    %p203 = scmp.ne.s32.totalorder %s198, %s200
    %p204 = scmp.eq.s32.totalorder %s17, 0
    %p205 = por %p203, %p204
    %p206 = scmp.ne.s32.totalorder %s198, %s200
    %p207 = scmp.eq.s32.totalorder %s22, 1
    %p208 = por %p206, %p207
    %p209 = scmp.ne.s32.totalorder %s200, %s201
    %p210 = scmp.eq.s32.totalorder %s22, 0
    %p211 = por %p209, %p210
    %p212 = scmp.ne.s32.totalorder %s200, %s201
    %p213 = scmp.eq.s32.totalorder %s23, 1
    %p214 = por %p212, %p213
    %p216 = scmp.ne.s32.totalorder %s201, %s215
    %p217 = scmp.eq.s32.totalorder %s23, 0
    %p218 = por %p216, %p217
    %s220 = sadd.s32 %s219, 1
    %p223 = scmp.eq.s32.totalorder %s17, 1
    %p224 = scmp.ne.s32.totalorder %s219, %s221
    %p225 = scmp.eq.s32.totalorder %s17, 0
    %p226 = por %p224, %p225
    %p227 = scmp.ne.s32.totalorder %s219, %s221
    %p228 = scmp.eq.s32.totalorder %s22, 1
    %p229 = por %p227, %p228
    %p230 = scmp.ne.s32.totalorder %s221, %s222
    %p231 = scmp.eq.s32.totalorder %s22, 0
    %p232 = por %p230, %p231
    %p233 = scmp.ne.s32.totalorder %s221, %s222
    %p234 = scmp.eq.s32.totalorder %s23, 1
    %p235 = por %p233, %p234
    %p237 = scmp.ne.s32.totalorder %s222, %s236
    %p238 = scmp.eq.s32.totalorder %s23, 0
    %p239 = por %p237, %p238
    %s241 = sadd.s32 %s240, 1
    %p244 = scmp.eq.s32.totalorder %s17, 1
    %p245 = scmp.ne.s32.totalorder %s240, %s242
    %p246 = scmp.eq.s32.totalorder %s17, 0
    %p247 = por %p245, %p246
    %p248 = scmp.ne.s32.totalorder %s240, %s242
    %p249 = scmp.eq.s32.totalorder %s22, 1
    %p250 = por %p248, %p249
    %p251 = scmp.ne.s32.totalorder %s242, %s243
    %p252 = scmp.eq.s32.totalorder %s22, 0
    %p253 = por %p251, %p252
    %p254 = scmp.ne.s32.totalorder %s242, %s243
    %p255 = scmp.eq.s32.totalorder %s23, 1
    %p256 = por %p254, %p255
    %p258 = scmp.ne.s32.totalorder %s243, %s257
    %p259 = scmp.eq.s32.totalorder %s23, 0
    %p260 = por %p258, %p259
    %s261 = ssub.s32 %s17, %s24
    %p262 = scmp.eq.s32.totalorder %s261, 0
    %s264 = sadd.s32 %s263, 1
    %s265 = scalar_select %p262, %s263, %s264
    %p268 = pneg %p262
    %p269 = scmp.eq.s32.totalorder %s17, 1
    %p270 = por %p268, %p269
    %p271 = scmp.ne.s32.totalorder %s263, %s266
    %p272 = scmp.eq.s32.totalorder %s17, 0
    %p273 = por %p271, %p272
    %p274 = scmp.ne.s32.totalorder %s263, %s266
    %p275 = scmp.eq.s32.totalorder %s22, 1
    %p276 = por %p274, %p275
    %p277 = scmp.ne.s32.totalorder %s266, %s267
    %p278 = scmp.eq.s32.totalorder %s22, 0
    %p279 = por %p277, %p278
    %p280 = scmp.ne.s32.totalorder %s266, %s267
    %p281 = scmp.eq.s32.totalorder %s23, 1
    %p282 = por %p280, %p281
    %p284 = scmp.ne.s32.totalorder %s267, %s283
    %p285 = scmp.eq.s32.totalorder %s23, 0
    %p286 = por %p284, %p285
    %p287 = scmp.le.s32.totalorder 1, %s17
    %p288 = scmp.lt.s32.totalorder %s17, 3
    %p289 = pnand %p287, %p288
    %p290 = pneg %p289
    // Predicated region
    $region9: #{dro_forward.1} parent=5 // pred_check
      _
    $region10: #{dro_forward.1} parent=5 // pred_check_branch
      %292 = sbr.rel (%p289) target = $region12
    $region11: #{dro_forward.1} parent=5 // pred_region
      %s293 = ssub.s32 %s17, 1
      // Predicated region
      $region13: #{dro_forward.1} parent=11 // pred_check
        %p294 = pneg %p64
      $region14: #{dro_forward.1} parent=11 // pred_check_branch
        %296 = sbr.rel (%p294) target = $region16
      $region15: #{dro_forward.1} parent=11 // pred_region
        _
      $region16: #{dro_forward.1} parent=11 // pred_fallthru
        _
      // Predicated region
      $region17: #{dro_forward.1} parent=11 // pred_check
        %p297 = pneg %p85
      $region18: #{dro_forward.1} parent=11 // pred_check_branch
        %299 = sbr.rel (%p297) target = $region20
      $region19: #{dro_forward.1} parent=11 // pred_region
        _
      $region20: #{dro_forward.1} parent=11 // pred_fallthru
        _
      // Predicated region
      $region21: #{dro_forward.1} parent=11 // pred_check
        %p300 = pneg %p106
      $region22: #{dro_forward.1} parent=11 // pred_check_branch
        %302 = sbr.rel (%p300) target = $region24
      $region23: #{dro_forward.1} parent=11 // pred_region
        _
      $region24: #{dro_forward.1} parent=11 // pred_fallthru
        _
      // Predicated region
      $region25: #{dro_forward.1} parent=11 // pred_check
        %p303 = pneg %p127
      $region26: #{dro_forward.1} parent=11 // pred_check_branch
        %305 = sbr.rel (%p303) target = $region28
      $region27: #{dro_forward.1} parent=11 // pred_region
        _
      $region28: #{dro_forward.1} parent=11 // pred_fallthru
        _
      // Predicated region
      $region29: #{dro_forward.1} parent=11 // pred_check
        %p306 = pneg %p148
      $region30: #{dro_forward.1} parent=11 // pred_check_branch
        %308 = sbr.rel (%p306) target = $region32
      $region31: #{dro_forward.1} parent=11 // pred_region
        _
      $region32: #{dro_forward.1} parent=11 // pred_fallthru
        _
      // Predicated region
      $region33: #{dro_forward.1} parent=11 // pred_check
        %p309 = pneg %p169
      $region34: #{dro_forward.1} parent=11 // pred_check_branch
        %311 = sbr.rel (%p309) target = $region36
      $region35: #{dro_forward.1} parent=11 // pred_region
        _
      $region36: #{dro_forward.1} parent=11 // pred_fallthru
        _
      // Predicated region
      $region37: #{dro_forward.1} parent=11 // pred_check
        %p312 = pneg %p190
      $region38: #{dro_forward.1} parent=11 // pred_check_branch
        %314 = sbr.rel (%p312) target = $region40
      $region39: #{dro_forward.1} parent=11 // pred_region
        _
      $region40: #{dro_forward.1} parent=11 // pred_fallthru
        _
      // Predicated region
      $region41: #{dro_forward.1} parent=11 // pred_check
        %p315 = pneg %p211
      $region42: #{dro_forward.1} parent=11 // pred_check_branch
        %317 = sbr.rel (%p315) target = $region44
      $region43: #{dro_forward.1} parent=11 // pred_region
        _
      $region44: #{dro_forward.1} parent=11 // pred_fallthru
        _
      // Predicated region
      $region45: #{dro_forward.1} parent=11 // pred_check
        %p318 = pneg %p232
      $region46: #{dro_forward.1} parent=11 // pred_check_branch
        %320 = sbr.rel (%p318) target = $region48
      $region47: #{dro_forward.1} parent=11 // pred_region
        _
      $region48: #{dro_forward.1} parent=11 // pred_fallthru
        _
      // Predicated region
      $region49: #{dro_forward.1} parent=11 // pred_check
        %p321 = pneg %p253
      $region50: #{dro_forward.1} parent=11 // pred_check_branch
        %323 = sbr.rel (%p321) target = $region52
      $region51: #{dro_forward.1} parent=11 // pred_region
        _
      $region52: #{dro_forward.1} parent=11 // pred_fallthru
        _
    $region12: #{dro_forward.1} parent=5 // pred_fallthru
      _
    %p324 = scmp.lt.s32.totalorder %s17, 2
    // Predicated region
    $region53: #{dro_forward.1} parent=5 // pred_check
      %p325 = pneg %p324
    $region54: #{dro_forward.1} parent=5 // pred_check_branch
      %327 = sbr.rel (%p325) target = $region56
    $region55: #{dro_forward.1} parent=5 // pred_region
      // Predicated region
      $region57: #{dro_forward.1} parent=55 // pred_check
        %p328 = pneg %p37
      $region58: #{dro_forward.1} parent=55 // pred_check_branch
        %330 = sbr.rel (%p328) target = $region60
      $region59: #{dro_forward.1} parent=55 // pred_region
        %p331 = scmp.lt.s32.totalorder %s17, 1
        %s332 = scalar_select %p331, %s17, 1
        %s333 = smul.addr %s332, 2
        %s334 = smul.addr %s333, 8
        %s335 = scalar_lea.vmem %s0, %s334
      $region60: #{dro_forward.1} parent=55 // pred_fallthru
        _
    $region56: #{dro_forward.1} parent=5 // pred_fallthru
      _
    %p336 = scmp.le.s32.totalorder 1, %s17
    %p337 = scmp.lt.s32.totalorder %s17, 3
    %p338 = pnand %p336, %p337
    %p339 = pneg %p338
    // Predicated region
    $region61: #{dro_forward.1} parent=5 // pred_check
      _
    $region62: #{dro_forward.1} parent=5 // pred_check_branch
      %341 = sbr.rel (%p338) target = $region64
    $region63: #{dro_forward.1} parent=5 // pred_region
      %s342 = ssub.s32 %s17, 1
      %p343 = scmp.lt.s32.totalorder %s22, 1
      %s344 = scalar_select %p343, %s22, 1
      %s345 = smul.addr %s344, 2
      %s346 = smul.addr %s345, 8
      %s347 = scalar_lea.vmem %s0, %s346
      %p348 = pneg %p43
      %p349 = pneg %p40
      %p350 = pneg %p64
      %p351 = pneg %p61
      %p352 = pneg %p85
      %p353 = pneg %p82
      %p354 = pneg %p106
      %p355 = pneg %p103
      %p356 = pneg %p127
      %p357 = pneg %p124
      %p358 = pneg %p148
      %p359 = pneg %p145
      %p360 = pneg %p169
      %p361 = pneg %p166
      %p362 = pneg %p190
      %p363 = pneg %p187
      %p364 = pneg %p211
      %p365 = pneg %p208
      %p366 = pneg %p232
      %p367 = pneg %p229
      %p368 = pneg %p253
      %p369 = pneg %p250
      %p370 = pneg %p279
      %p371 = pneg %p276
      %p372 = scmp.lt.s32.totalorder %s22, 1
      %s373 = scalar_select %p372, %s22, 1
      %s374 = smul.addr %s373, 2
      %s375 = scalar_lea.vmem %s11, %s374
      %p376 = scmp.lt.s32.totalorder %s22, 1
      %s377 = scalar_select %p376, %s22, 1
      %s378 = smul.addr %s377, 2
      %s379 = smul.addr %s378, 8
      %s380 = scalar_lea.vmem %s0, %s379
      %p381 = scmp.lt.s32.totalorder %s22, 1
      %s382 = scalar_select %p381, %s22, 1
      %s383 = smul.addr %s382, 2
      %s384 = scalar_lea.vmem %s11, %s383
      %v386 = vld [vmem:[%s380] sm:$0xff]
      %v387 = vld [vmem:[%s380 + $0x8] sm:$0xff]
      %v388 = vpack.c.bf16 %v386, %v386
      %v389 = vpack.c.bf16 %v387, %v387
      %v390 = vld [vmem:[%s2] sm:$0xff]
      %v391 = vld [vmem:[%s2 + $0x8] sm:$0xff]
      %v392 = vld [vmem:[%s2 + $0x10] sm:$0xff]
      %v393 = vld [vmem:[%s2 + $0x18] sm:$0xff]
      %v394 = vld [vmem:[%s2 + $0x20] sm:$0xff]
      %v395 = vld [vmem:[%s2 + $0x28] sm:$0xff]
      %v396 = vld [vmem:[%s2 + $0x30] sm:$0xff]
      %v397 = vld [vmem:[%s2 + $0x38] sm:$0xff]
      %v398 = vld [vmem:[%s2 + $0x40] sm:$0xff]
      %v399 = vld [vmem:[%s2 + $0x48] sm:$0xff]
      %v400 = vld [vmem:[%s2 + $0x50] sm:$0xff]
      %v401 = vld [vmem:[%s2 + $0x58] sm:$0xff]
      %v402 = vld [vmem:[%s2 + $0x60] sm:$0xff]
      %v403 = vld [vmem:[%s2 + $0x68] sm:$0xff]
      %v404 = vld [vmem:[%s2 + $0x70] sm:$0xff]
      %v405 = vld [vmem:[%s2 + $0x78] sm:$0xff]
      %v406 = vld [vmem:[%s2 + $0x80] sm:$0xff]
      %v407 = vld [vmem:[%s2 + $0x88] sm:$0xff]
      %v408 = vld [vmem:[%s2 + $0x90] sm:$0xff]
      %v409 = vld [vmem:[%s2 + $0x98] sm:$0xff]
      %v410 = vld [vmem:[%s2 + $0xa0] sm:$0xff]
      %v411 = vld [vmem:[%s2 + $0xa8] sm:$0xff]
      %v412 = vld [vmem:[%s2 + $0xb0] sm:$0xff]
      %v413 = vld [vmem:[%s2 + $0xb8] sm:$0xff]
      %v414 = vld [vmem:[%s2 + $0xc0] sm:$0xff]
      %v415 = vld [vmem:[%s2 + $0xc8] sm:$0xff]
      %v416 = vld [vmem:[%s2 + $0xd0] sm:$0xff]
      %v417 = vld [vmem:[%s2 + $0xd8] sm:$0xff]
      %v418 = vld [vmem:[%s2 + $0xe0] sm:$0xff]
      %v419 = vld [vmem:[%s2 + $0xe8] sm:$0xff]
      %v420 = vld [vmem:[%s2 + $0xf0] sm:$0xff]
      %v421 = vld [vmem:[%s2 + $0xf8] sm:$0xff]
      %v454 = vunpack.c.l.b16 %v390
      %v455 = vunpack.c.h.b16 %v390
      %v456 = vunpack.c.l.b16 %v391
      %v457 = vunpack.c.h.b16 %v391
      %v458 = vunpack.c.l.b16 %v392
      %v459 = vunpack.c.h.b16 %v392
      %v460 = vunpack.c.l.b16 %v393
      %v461 = vunpack.c.h.b16 %v393
      %v462 = vunpack.c.l.b16 %v394
      %v463 = vunpack.c.h.b16 %v394
      %v464 = vunpack.c.l.b16 %v395
      %v465 = vunpack.c.h.b16 %v395
      %v466 = vunpack.c.l.b16 %v396
      %v467 = vunpack.c.h.b16 %v396
      %v468 = vunpack.c.l.b16 %v397
      %v469 = vunpack.c.h.b16 %v397
      %v470 = vunpack.c.l.b16 %v398
      %v471 = vunpack.c.h.b16 %v398
      %v472 = vunpack.c.l.b16 %v399
      %v473 = vunpack.c.h.b16 %v399
      %v474 = vunpack.c.l.b16 %v400
      %v475 = vunpack.c.h.b16 %v400
      %v476 = vunpack.c.l.b16 %v401
      %v477 = vunpack.c.h.b16 %v401
      %v478 = vunpack.c.l.b16 %v402
      %v479 = vunpack.c.h.b16 %v402
      %v480 = vunpack.c.l.b16 %v403
      %v481 = vunpack.c.h.b16 %v403
      %v482 = vunpack.c.l.b16 %v404
      %v483 = vunpack.c.h.b16 %v404
      %v484 = vunpack.c.l.b16 %v405
      %v485 = vunpack.c.h.b16 %v405
      %v486 = vunpack.c.l.b16 %v406
      %v487 = vunpack.c.h.b16 %v406
      %v488 = vunpack.c.l.b16 %v407
      %v489 = vunpack.c.h.b16 %v407
      %v490 = vunpack.c.l.b16 %v408
      %v491 = vunpack.c.h.b16 %v408
      %v492 = vunpack.c.l.b16 %v409
      %v493 = vunpack.c.h.b16 %v409
      %v494 = vunpack.c.l.b16 %v410
      %v495 = vunpack.c.h.b16 %v410
      %v496 = vunpack.c.l.b16 %v411
      %v497 = vunpack.c.h.b16 %v411
      %v498 = vunpack.c.l.b16 %v412
      %v499 = vunpack.c.h.b16 %v412
      %v500 = vunpack.c.l.b16 %v413
      %v501 = vunpack.c.h.b16 %v413
      %v502 = vunpack.c.l.b16 %v414
      %v503 = vunpack.c.h.b16 %v414
      %v504 = vunpack.c.l.b16 %v415
      %v505 = vunpack.c.h.b16 %v415
      %v506 = vunpack.c.l.b16 %v416
      %v507 = vunpack.c.h.b16 %v416
      %v508 = vunpack.c.l.b16 %v417
      %v509 = vunpack.c.h.b16 %v417
      %v510 = vunpack.c.l.b16 %v418
      %v511 = vunpack.c.h.b16 %v418
      %v512 = vunpack.c.l.b16 %v419
      %v513 = vunpack.c.h.b16 %v419
      %v514 = vunpack.c.l.b16 %v420
      %v515 = vunpack.c.h.b16 %v420
      %v516 = vunpack.c.l.b16 %v421
      %v517 = vunpack.c.h.b16 %v421
      %v518 = vpack.c.b16 %v456, %v454
      %v519 = vpack.c.b16 %v457, %v455
      %v520 = vpack.c.b16 %v460, %v458
      %v521 = vpack.c.b16 %v461, %v459
      %v522 = vpack.c.b16 %v464, %v462
      %v523 = vpack.c.b16 %v465, %v463
      %v524 = vpack.c.b16 %v468, %v466
      %v525 = vpack.c.b16 %v469, %v467
      %v526 = vpack.c.b16 %v472, %v470
      %v527 = vpack.c.b16 %v473, %v471
      %v528 = vpack.c.b16 %v476, %v474
      %v529 = vpack.c.b16 %v477, %v475
      %v530 = vpack.c.b16 %v480, %v478
      %v531 = vpack.c.b16 %v481, %v479
      %v532 = vpack.c.b16 %v484, %v482
      %v533 = vpack.c.b16 %v485, %v483
      %v534 = vpack.c.b16 %v488, %v486
      %v535 = vpack.c.b16 %v489, %v487
      %v536 = vpack.c.b16 %v492, %v490
      %v537 = vpack.c.b16 %v493, %v491
      %v538 = vpack.c.b16 %v496, %v494
      %v539 = vpack.c.b16 %v497, %v495
      %v540 = vpack.c.b16 %v500, %v498
      %v541 = vpack.c.b16 %v501, %v499
      %v542 = vpack.c.b16 %v504, %v502
      %v543 = vpack.c.b16 %v505, %v503
      %v544 = vpack.c.b16 %v508, %v506
      %v545 = vpack.c.b16 %v509, %v507
      %v546 = vpack.c.b16 %v512, %v510
      %v547 = vpack.c.b16 %v513, %v511
      %v548 = vpack.c.b16 %v516, %v514
      %v549 = vpack.c.b16 %v517, %v515
      %582 = vmatprep.subr.bf16.mxu0 %v519
      %583 = vmatpush1.bf16.msra.mxu0 %v518
      %584 = vmatprep.subr.bf16.mxu0 %v521
      %585 = vmatpush1.bf16.msra.mxu0 %v520
      %586 = vmatprep.subr.bf16.mxu0 %v523
      %587 = vmatpush1.bf16.msra.mxu0 %v522
      %588 = vmatprep.subr.bf16.mxu0 %v525
      %589 = vmatpush1.bf16.msra.mxu0 %v524
      %590 = vmatprep.subr.bf16.mxu0 %v527
      %591 = vmatpush1.bf16.msra.mxu0 %v526
      %592 = vmatprep.subr.bf16.mxu0 %v529
      %593 = vmatpush1.bf16.msra.mxu0 %v528
      %594 = vmatprep.subr.bf16.mxu0 %v531
      %595 = vmatpush1.bf16.msra.mxu0 %v530
      %596 = vmatprep.subr.bf16.mxu0 %v533
      %597 = vmatpush1.bf16.msra.mxu0 %v532
      %598 = vmatprep.subr.bf16.mxu0 %v535
      %599 = vmatpush1.bf16.msra.mxu0 %v534
      %600 = vmatprep.subr.bf16.mxu0 %v537
      %601 = vmatpush1.bf16.msra.mxu0 %v536
      %602 = vmatprep.subr.bf16.mxu0 %v539
      %603 = vmatpush1.bf16.msra.mxu0 %v538
      %604 = vmatprep.subr.bf16.mxu0 %v541
      %605 = vmatpush1.bf16.msra.mxu0 %v540
      %606 = vmatprep.subr.bf16.mxu0 %v543
      %607 = vmatpush1.bf16.msra.mxu0 %v542
      %608 = vmatprep.subr.bf16.mxu0 %v545
      %609 = vmatpush1.bf16.msra.mxu0 %v544
      %610 = vmatprep.subr.bf16.mxu0 %v547
      %611 = vmatpush1.bf16.msra.mxu0 %v546
      %612 = vmatprep.subr.bf16.mxu0 %v549
      %613 = vmatpush1.bf16.msra.mxu0 %v548
      %614 = vmatprep.mubr.bf16.mxu0 %v389
      %615 = vmatmul.mubr.bf16.gmra.mrb[0].mxu0 %v388
      %v616 = vpop.f32.mrb[0].mxu0
      %v617 = vadd.f32 0.0, %v616
      %v618 = vpop.f32.mrb[0].mxu0
      %v619 = vadd.f32 0.0, %v618
      %v620 = vpop.f32.mrb[0].mxu0
      %v621 = vpop.f32.mrb[0].mxu0
      %622 = vdwg.mxu0
      %v623 = vld [vmem:[%s1] sm:$0xff]
      %v624 = vld [vmem:[%s1 + $0x8] sm:$0xff]
      %v625 = vadd.f32 %v617, %v623
      %v626 = vadd.f32 %v619, %v624
      %v627 = vlaneseq
      %v628 = vand.u32 %v627, 127
      %vm629 = vcmp.lt.s32.totalorder %v628, 5
      %v630 = vsel %vm629, 0.0, -1e+30
      %v631 = vld [vmem:[%s9] sm:$0x3f]
      %v632 = vld [vmem:[%s9 + $0x8] sm:$0x3f]
      %v633 = vadd.f32 %v625, %v626
      %634 = vadd.xlane.f32.xlu0 %v633
      %v635 = vpop.xlane.xlu0 %634
      %v636 = vrcp.pop 256.0
      %v637 = vmul.f32 %v635, %v636
      %v638 = vsub.f32 %v625, %v637
      %v639 = vsub.f32 %v626, %v637
      %v640 = vmul.f32 %v638, %v638
      %v641 = vmul.f32 %v639, %v639
      %v642 = vadd.f32 %v640, %v641
      %643 = vadd.xlane.f32.xlu0 %v642
      %v644 = vpop.xlane.xlu0 %643
      %v645 = vmul.f32 %v644, %v636
      %v646 = vadd.f32 %v645, 1e-05
      %v647 = vrsqrt.pop %v646
      %v648 = vmul.f32 %v638, %v647
      %v649 = vmul.f32 %v639, %v647
      %v650 = vlaneseq
      %v651 = vshrl.u32 %v650, 7
      %v652 = vsub.s32 0, %v651
      %v653 = vrot.slane %v631, %v652
      %v654 = vlaneseq
      %v655 = vshrl.u32 %v654, 7
      %v656 = vsub.s32 0, %v655
      %v657 = vrot.slane %v632, %v656
      %v658 = vmul.f32 %v648, %v653
      %v659 = vmul.f32 %v649, %v657
      %v660 = vlaneseq
      %v661 = vshrl.u32 %v660, 7
      %v662 = vsub.s32 1, %v661
      %v663 = vrot.slane %v631, %v662
      %v664 = vlaneseq
      %v665 = vshrl.u32 %v664, 7
      %v666 = vsub.s32 1, %v665
      %v667 = vrot.slane %v632, %v666
      %v668 = vadd.f32 %v658, %v663
      %v669 = vadd.f32 %v659, %v667
      %v670 = vpack.c.bf16 %v668, %v668
      %v671 = vpack.c.bf16 %v669, %v669
      %v672 = vld [vmem:[%s3] sm:$0xff]
      %v673 = vld [vmem:[%s3 + $0x8] sm:$0xff]
      %v674 = vld [vmem:[%s3 + $0x10] sm:$0xff]
      %v675 = vld [vmem:[%s3 + $0x18] sm:$0xff]
      %v676 = vld [vmem:[%s3 + $0x20] sm:$0xff]
      %v677 = vld [vmem:[%s3 + $0x28] sm:$0xff]
      %v678 = vld [vmem:[%s3 + $0x30] sm:$0xff]
      %v679 = vld [vmem:[%s3 + $0x38] sm:$0xff]
      %v680 = vld [vmem:[%s3 + $0x40] sm:$0xff]
      %v681 = vld [vmem:[%s3 + $0x48] sm:$0xff]
      %v682 = vld [vmem:[%s3 + $0x50] sm:$0xff]
      %v683 = vld [vmem:[%s3 + $0x58] sm:$0xff]
      %v684 = vld [vmem:[%s3 + $0x60] sm:$0xff]
      %v685 = vld [vmem:[%s3 + $0x68] sm:$0xff]
      %v686 = vld [vmem:[%s3 + $0x70] sm:$0xff]
      %v687 = vld [vmem:[%s3 + $0x78] sm:$0xff]
      %v688 = vld [vmem:[%s3 + $0x80] sm:$0xff]
      %v689 = vld [vmem:[%s3 + $0x88] sm:$0xff]
      %v690 = vld [vmem:[%s3 + $0x90] sm:$0xff]
      %v691 = vld [vmem:[%s3 + $0x98] sm:$0xff]
      %v692 = vld [vmem:[%s3 + $0xa0] sm:$0xff]
      %v693 = vld [vmem:[%s3 + $0xa8] sm:$0xff]
      %v694 = vld [vmem:[%s3 + $0xb0] sm:$0xff]
      %v695 = vld [vmem:[%s3 + $0xb8] sm:$0xff]
      %v696 = vld [vmem:[%s3 + $0xc0] sm:$0xff]
      %v697 = vld [vmem:[%s3 + $0xc8] sm:$0xff]
      %v698 = vld [vmem:[%s3 + $0xd0] sm:$0xff]
      %v699 = vld [vmem:[%s3 + $0xd8] sm:$0xff]
      %v700 = vld [vmem:[%s3 + $0xe0] sm:$0xff]
      %v701 = vld [vmem:[%s3 + $0xe8] sm:$0xff]
      %v702 = vld [vmem:[%s3 + $0xf0] sm:$0xff]
      %v703 = vld [vmem:[%s3 + $0xf8] sm:$0xff]
      %v704 = vld [vmem:[%s3 + $0x100] sm:$0xff]
      %v705 = vld [vmem:[%s3 + $0x108] sm:$0xff]
      %v706 = vld [vmem:[%s3 + $0x110] sm:$0xff]
      %v707 = vld [vmem:[%s3 + $0x118] sm:$0xff]
      %v708 = vld [vmem:[%s3 + $0x120] sm:$0xff]
      %v709 = vld [vmem:[%s3 + $0x128] sm:$0xff]
      %v710 = vld [vmem:[%s3 + $0x130] sm:$0xff]
      %v711 = vld [vmem:[%s3 + $0x138] sm:$0xff]
      %v712 = vld [vmem:[%s3 + $0x140] sm:$0xff]
      %v713 = vld [vmem:[%s3 + $0x148] sm:$0xff]
      %v714 = vld [vmem:[%s3 + $0x150] sm:$0xff]
      %v715 = vld [vmem:[%s3 + $0x158] sm:$0xff]
      %v716 = vld [vmem:[%s3 + $0x160] sm:$0xff]
      %v717 = vld [vmem:[%s3 + $0x168] sm:$0xff]
      %v718 = vld [vmem:[%s3 + $0x170] sm:$0xff]
      %v719 = vld [vmem:[%s3 + $0x178] sm:$0xff]
      %v720 = vld [vmem:[%s3 + $0x180] sm:$0xff]
      %v721 = vld [vmem:[%s3 + $0x188] sm:$0xff]
      %v722 = vld [vmem:[%s3 + $0x190] sm:$0xff]
      %v723 = vld [vmem:[%s3 + $0x198] sm:$0xff]
      %v724 = vld [vmem:[%s3 + $0x1a0] sm:$0xff]
      %v725 = vld [vmem:[%s3 + $0x1a8] sm:$0xff]
      %v726 = vld [vmem:[%s3 + $0x1b0] sm:$0xff]
      %v727 = vld [vmem:[%s3 + $0x1b8] sm:$0xff]
      %v728 = vld [vmem:[%s3 + $0x1c0] sm:$0xff]
      %v729 = vld [vmem:[%s3 + $0x1c8] sm:$0xff]
      %v730 = vld [vmem:[%s3 + $0x1d0] sm:$0xff]
      %v731 = vld [vmem:[%s3 + $0x1d8] sm:$0xff]
      %v732 = vld [vmem:[%s3 + $0x1e0] sm:$0xff]
      %v733 = vld [vmem:[%s3 + $0x1e8] sm:$0xff]
      %v734 = vld [vmem:[%s3 + $0x1f0] sm:$0xff]
      %v735 = vld [vmem:[%s3 + $0x1f8] sm:$0xff]
      %v736 = vld [vmem:[%s3 + $0x200] sm:$0xff]
      %v737 = vld [vmem:[%s3 + $0x208] sm:$0xff]
      %v738 = vld [vmem:[%s3 + $0x210] sm:$0xff]
      %v739 = vld [vmem:[%s3 + $0x218] sm:$0xff]
      %v740 = vld [vmem:[%s3 + $0x220] sm:$0xff]
      %v741 = vld [vmem:[%s3 + $0x228] sm:$0xff]
      %v742 = vld [vmem:[%s3 + $0x230] sm:$0xff]
      %v743 = vld [vmem:[%s3 + $0x238] sm:$0xff]
      %v744 = vld [vmem:[%s3 + $0x240] sm:$0xff]
      %v745 = vld [vmem:[%s3 + $0x248] sm:$0xff]
      %v746 = vld [vmem:[%s3 + $0x250] sm:$0xff]
      %v747 = vld [vmem:[%s3 + $0x258] sm:$0xff]
      %v748 = vld [vmem:[%s3 + $0x260] sm:$0xff]
      %v749 = vld [vmem:[%s3 + $0x268] sm:$0xff]
      %v750 = vld [vmem:[%s3 + $0x270] sm:$0xff]
      %v751 = vld [vmem:[%s3 + $0x278] sm:$0xff]
      %v752 = vld [vmem:[%s3 + $0x280] sm:$0xff]
      %v753 = vld [vmem:[%s3 + $0x288] sm:$0xff]
      %v754 = vld [vmem:[%s3 + $0x290] sm:$0xff]
      %v755 = vld [vmem:[%s3 + $0x298] sm:$0xff]
      %v756 = vld [vmem:[%s3 + $0x2a0] sm:$0xff]
      %v757 = vld [vmem:[%s3 + $0x2a8] sm:$0xff]
      %v758 = vld [vmem:[%s3 + $0x2b0] sm:$0xff]
      %v759 = vld [vmem:[%s3 + $0x2b8] sm:$0xff]
      %v760 = vld [vmem:[%s3 + $0x2c0] sm:$0xff]
      %v761 = vld [vmem:[%s3 + $0x2c8] sm:$0xff]
      %v762 = vld [vmem:[%s3 + $0x2d0] sm:$0xff]
      %v763 = vld [vmem:[%s3 + $0x2d8] sm:$0xff]
      %v764 = vld [vmem:[%s3 + $0x2e0] sm:$0xff]
      %v765 = vld [vmem:[%s3 + $0x2e8] sm:$0xff]
      %v766 = vld [vmem:[%s3 + $0x2f0] sm:$0xff]
      %v767 = vld [vmem:[%s3 + $0x2f8] sm:$0xff]
      %v768 = vld [vmem:[%s7] sm:$0x3f]
      %v770 = vlaneseq
      %v771 = vshrl.u32 %v770, 7
      %v772 = vsub.s32 0, %v771
      %v773 = vrot.slane %v768, %v772
      %v774 = vlaneseq
      %v775 = vshrl.u32 %v774, 7
      %v776 = vsub.s32 1, %v775
      %v777 = vrot.slane %v768, %v776
      %v778 = vlaneseq
      %v779 = vshrl.u32 %v778, 7
      %v780 = vsub.s32 2, %v779
      %v781 = vrot.slane %v768, %v780
      %v782 = vlaneseq
      %v783 = vshrl.u32 %v782, 7
      %v784 = vsub.s32 3, %v783
      %v785 = vrot.slane %v768, %v784
      %v786 = vlaneseq
      %v787 = vshrl.u32 %v786, 7
      %v788 = vsub.s32 4, %v787
      %v789 = vrot.slane %v768, %v788
      %v790 = vlaneseq
      %v791 = vshrl.u32 %v790, 7
      %v792 = vsub.s32 5, %v791
      %v793 = vrot.slane %v768, %v792
      %v896 = vunpack.c.l.b16 %v672
      %v897 = vunpack.c.h.b16 %v672
      %v898 = vunpack.c.l.b16 %v673
      %v899 = vunpack.c.h.b16 %v673
      %v900 = vunpack.c.l.b16 %v674
      %v901 = vunpack.c.h.b16 %v674
      %v902 = vunpack.c.l.b16 %v675
      %v903 = vunpack.c.h.b16 %v675
      %v904 = vunpack.c.l.b16 %v676
      %v905 = vunpack.c.h.b16 %v676
      %v906 = vunpack.c.l.b16 %v677
      %v907 = vunpack.c.h.b16 %v677
      %v908 = vunpack.c.l.b16 %v678
      %v909 = vunpack.c.h.b16 %v678
      %v910 = vunpack.c.l.b16 %v679
      %v911 = vunpack.c.h.b16 %v679
      %v912 = vunpack.c.l.b16 %v680
      %v913 = vunpack.c.h.b16 %v680
      %v914 = vunpack.c.l.b16 %v681
      %v915 = vunpack.c.h.b16 %v681
      %v916 = vunpack.c.l.b16 %v682
      %v917 = vunpack.c.h.b16 %v682
      %v918 = vunpack.c.l.b16 %v683
      %v919 = vunpack.c.h.b16 %v683
      %v920 = vunpack.c.l.b16 %v684
      %v921 = vunpack.c.h.b16 %v684
      %v922 = vunpack.c.l.b16 %v685
      %v923 = vunpack.c.h.b16 %v685
      %v924 = vunpack.c.l.b16 %v686
      %v925 = vunpack.c.h.b16 %v686
      %v926 = vunpack.c.l.b16 %v687
      %v927 = vunpack.c.h.b16 %v687
      %v928 = vunpack.c.l.b16 %v688
      %v929 = vunpack.c.h.b16 %v688
      %v930 = vunpack.c.l.b16 %v689
      %v931 = vunpack.c.h.b16 %v689
      %v932 = vunpack.c.l.b16 %v690
      %v933 = vunpack.c.h.b16 %v690
      %v934 = vunpack.c.l.b16 %v691
      %v935 = vunpack.c.h.b16 %v691
      %v936 = vunpack.c.l.b16 %v692
      %v937 = vunpack.c.h.b16 %v692
      %v938 = vunpack.c.l.b16 %v693
      %v939 = vunpack.c.h.b16 %v693
      %v940 = vunpack.c.l.b16 %v694
      %v941 = vunpack.c.h.b16 %v694
      %v942 = vunpack.c.l.b16 %v695
      %v943 = vunpack.c.h.b16 %v695
      %v944 = vunpack.c.l.b16 %v696
      %v945 = vunpack.c.h.b16 %v696
      %v946 = vunpack.c.l.b16 %v697
      %v947 = vunpack.c.h.b16 %v697
      %v948 = vunpack.c.l.b16 %v698
      %v949 = vunpack.c.h.b16 %v698
      %v950 = vunpack.c.l.b16 %v699
      %v951 = vunpack.c.h.b16 %v699
      %v952 = vunpack.c.l.b16 %v700
      %v953 = vunpack.c.h.b16 %v700
      %v954 = vunpack.c.l.b16 %v701
      %v955 = vunpack.c.h.b16 %v701
      %v956 = vunpack.c.l.b16 %v702
      %v957 = vunpack.c.h.b16 %v702
      %v958 = vunpack.c.l.b16 %v703
      %v959 = vunpack.c.h.b16 %v703
      %v960 = vunpack.c.l.b16 %v704
      %v961 = vunpack.c.h.b16 %v704
      %v962 = vunpack.c.l.b16 %v705
      %v963 = vunpack.c.h.b16 %v705
      %v964 = vunpack.c.l.b16 %v706
      %v965 = vunpack.c.h.b16 %v706
      %v966 = vunpack.c.l.b16 %v707
      %v967 = vunpack.c.h.b16 %v707
      %v968 = vunpack.c.l.b16 %v708
      %v969 = vunpack.c.h.b16 %v708
      %v970 = vunpack.c.l.b16 %v709
      %v971 = vunpack.c.h.b16 %v709
      %v972 = vunpack.c.l.b16 %v710
      %v973 = vunpack.c.h.b16 %v710
      %v974 = vunpack.c.l.b16 %v711
      %v975 = vunpack.c.h.b16 %v711
      %v976 = vunpack.c.l.b16 %v712
      %v977 = vunpack.c.h.b16 %v712
      %v978 = vunpack.c.l.b16 %v713
      %v979 = vunpack.c.h.b16 %v713
      %v980 = vunpack.c.l.b16 %v714
      %v981 = vunpack.c.h.b16 %v714
      %v982 = vunpack.c.l.b16 %v715
      %v983 = vunpack.c.h.b16 %v715
      %v984 = vunpack.c.l.b16 %v716
      %v985 = vunpack.c.h.b16 %v716
      %v986 = vunpack.c.l.b16 %v717
      %v987 = vunpack.c.h.b16 %v717
      %v988 = vunpack.c.l.b16 %v718
      %v989 = vunpack.c.h.b16 %v718
      %v990 = vunpack.c.l.b16 %v719
      %v991 = vunpack.c.h.b16 %v719
      %v992 = vunpack.c.l.b16 %v720
      %v993 = vunpack.c.h.b16 %v720
      %v994 = vunpack.c.l.b16 %v721
      %v995 = vunpack.c.h.b16 %v721
      %v996 = vunpack.c.l.b16 %v722
      %v997 = vunpack.c.h.b16 %v722
      %v998 = vunpack.c.l.b16 %v723
      %v999 = vunpack.c.h.b16 %v723
      %v1000 = vunpack.c.l.b16 %v724
      %v1001 = vunpack.c.h.b16 %v724
      %v1002 = vunpack.c.l.b16 %v725
      %v1003 = vunpack.c.h.b16 %v725
      %v1004 = vunpack.c.l.b16 %v726
      %v1005 = vunpack.c.h.b16 %v726
      %v1006 = vunpack.c.l.b16 %v727
      %v1007 = vunpack.c.h.b16 %v727
      %v1008 = vunpack.c.l.b16 %v728
      %v1009 = vunpack.c.h.b16 %v728
      %v1010 = vunpack.c.l.b16 %v729
      %v1011 = vunpack.c.h.b16 %v729
      %v1012 = vunpack.c.l.b16 %v730
      %v1013 = vunpack.c.h.b16 %v730
      %v1014 = vunpack.c.l.b16 %v731
      %v1015 = vunpack.c.h.b16 %v731
      %v1016 = vunpack.c.l.b16 %v732
      %v1017 = vunpack.c.h.b16 %v732
      %v1018 = vunpack.c.l.b16 %v733
      %v1019 = vunpack.c.h.b16 %v733
      %v1020 = vunpack.c.l.b16 %v734
      %v1021 = vunpack.c.h.b16 %v734
      %v1022 = vunpack.c.l.b16 %v735
      %v1023 = vunpack.c.h.b16 %v735
      %v1024 = vunpack.c.l.b16 %v736
      %v1025 = vunpack.c.h.b16 %v736
      %v1026 = vunpack.c.l.b16 %v737
      %v1027 = vunpack.c.h.b16 %v737
      %v1028 = vunpack.c.l.b16 %v738
      %v1029 = vunpack.c.h.b16 %v738
      %v1030 = vunpack.c.l.b16 %v739
      %v1031 = vunpack.c.h.b16 %v739
      %v1032 = vunpack.c.l.b16 %v740
      %v1033 = vunpack.c.h.b16 %v740
      %v1034 = vunpack.c.l.b16 %v741
      %v1035 = vunpack.c.h.b16 %v741
      %v1036 = vunpack.c.l.b16 %v742
      %v1037 = vunpack.c.h.b16 %v742
      %v1038 = vunpack.c.l.b16 %v743
      %v1039 = vunpack.c.h.b16 %v743
      %v1040 = vunpack.c.l.b16 %v744
      %v1041 = vunpack.c.h.b16 %v744
      %v1042 = vunpack.c.l.b16 %v745
      %v1043 = vunpack.c.h.b16 %v745
      %v1044 = vunpack.c.l.b16 %v746
      %v1045 = vunpack.c.h.b16 %v746
      %v1046 = vunpack.c.l.b16 %v747
      %v1047 = vunpack.c.h.b16 %v747
      %v1048 = vunpack.c.l.b16 %v748
      %v1049 = vunpack.c.h.b16 %v748
      %v1050 = vunpack.c.l.b16 %v749
      %v1051 = vunpack.c.h.b16 %v749
      %v1052 = vunpack.c.l.b16 %v750
      %v1053 = vunpack.c.h.b16 %v750
      %v1054 = vunpack.c.l.b16 %v751
      %v1055 = vunpack.c.h.b16 %v751
      %v1056 = vunpack.c.l.b16 %v752
      %v1057 = vunpack.c.h.b16 %v752
      %v1058 = vunpack.c.l.b16 %v753
      %v1059 = vunpack.c.h.b16 %v753
      %v1060 = vunpack.c.l.b16 %v754
      %v1061 = vunpack.c.h.b16 %v754
      %v1062 = vunpack.c.l.b16 %v755
      %v1063 = vunpack.c.h.b16 %v755
      %v1064 = vunpack.c.l.b16 %v756
      %v1065 = vunpack.c.h.b16 %v756
      %v1066 = vunpack.c.l.b16 %v757
      %v1067 = vunpack.c.h.b16 %v757
      %v1068 = vunpack.c.l.b16 %v758
      %v1069 = vunpack.c.h.b16 %v758
      %v1070 = vunpack.c.l.b16 %v759
      %v1071 = vunpack.c.h.b16 %v759
      %v1072 = vunpack.c.l.b16 %v760
      %v1073 = vunpack.c.h.b16 %v760
      %v1074 = vunpack.c.l.b16 %v761
      %v1075 = vunpack.c.h.b16 %v761
      %v1076 = vunpack.c.l.b16 %v762
      %v1077 = vunpack.c.h.b16 %v762
      %v1078 = vunpack.c.l.b16 %v763
      %v1079 = vunpack.c.h.b16 %v763
      %v1080 = vunpack.c.l.b16 %v764
      %v1081 = vunpack.c.h.b16 %v764
      %v1082 = vunpack.c.l.b16 %v765
      %v1083 = vunpack.c.h.b16 %v765
      %v1084 = vunpack.c.l.b16 %v766
      %v1085 = vunpack.c.h.b16 %v766
      %v1086 = vunpack.c.l.b16 %v767
      %v1087 = vunpack.c.h.b16 %v767
      %v1088 = vpack.c.b16 %v902, %v896
      %v1089 = vpack.c.b16 %v903, %v897
      %v1090 = vpack.c.b16 %v904, %v898
      %v1091 = vpack.c.b16 %v905, %v899
      %v1092 = vpack.c.b16 %v906, %v900
      %v1093 = vpack.c.b16 %v907, %v901
      %v1094 = vpack.c.b16 %v914, %v908
      %v1095 = vpack.c.b16 %v915, %v909
      %v1096 = vpack.c.b16 %v916, %v910
      %v1097 = vpack.c.b16 %v917, %v911
      %v1098 = vpack.c.b16 %v918, %v912
      %v1099 = vpack.c.b16 %v919, %v913
      %v1100 = vpack.c.b16 %v926, %v920
      %v1101 = vpack.c.b16 %v927, %v921
      %v1102 = vpack.c.b16 %v928, %v922
      %v1103 = vpack.c.b16 %v929, %v923
      %v1104 = vpack.c.b16 %v930, %v924
      %v1105 = vpack.c.b16 %v931, %v925
      %v1106 = vpack.c.b16 %v938, %v932
      %v1107 = vpack.c.b16 %v939, %v933
      %v1108 = vpack.c.b16 %v940, %v934
      %v1109 = vpack.c.b16 %v941, %v935
      %v1110 = vpack.c.b16 %v942, %v936
      %v1111 = vpack.c.b16 %v943, %v937
      %v1112 = vpack.c.b16 %v950, %v944
      %v1113 = vpack.c.b16 %v951, %v945
      %v1114 = vpack.c.b16 %v952, %v946
      %v1115 = vpack.c.b16 %v953, %v947
      %v1116 = vpack.c.b16 %v954, %v948
      %v1117 = vpack.c.b16 %v955, %v949
      %v1118 = vpack.c.b16 %v962, %v956
      %v1119 = vpack.c.b16 %v963, %v957
      %v1120 = vpack.c.b16 %v964, %v958
      %v1121 = vpack.c.b16 %v965, %v959
      %v1122 = vpack.c.b16 %v966, %v960
      %v1123 = vpack.c.b16 %v967, %v961
      %v1124 = vpack.c.b16 %v974, %v968
      %v1125 = vpack.c.b16 %v975, %v969
      %v1126 = vpack.c.b16 %v976, %v970
      %v1127 = vpack.c.b16 %v977, %v971
      %v1128 = vpack.c.b16 %v978, %v972
      %v1129 = vpack.c.b16 %v979, %v973
      %v1130 = vpack.c.b16 %v986, %v980
      %v1131 = vpack.c.b16 %v987, %v981
      %v1132 = vpack.c.b16 %v988, %v982
      %v1133 = vpack.c.b16 %v989, %v983
      %v1134 = vpack.c.b16 %v990, %v984
      %v1135 = vpack.c.b16 %v991, %v985
      %v1136 = vpack.c.b16 %v998, %v992
      %v1137 = vpack.c.b16 %v999, %v993
      %v1138 = vpack.c.b16 %v1000, %v994
      %v1139 = vpack.c.b16 %v1001, %v995
      %v1140 = vpack.c.b16 %v1002, %v996
      %v1141 = vpack.c.b16 %v1003, %v997
      %v1142 = vpack.c.b16 %v1010, %v1004
      %v1143 = vpack.c.b16 %v1011, %v1005
      %v1144 = vpack.c.b16 %v1012, %v1006
      %v1145 = vpack.c.b16 %v1013, %v1007
      %v1146 = vpack.c.b16 %v1014, %v1008
      %v1147 = vpack.c.b16 %v1015, %v1009
      %v1148 = vpack.c.b16 %v1022, %v1016
      %v1149 = vpack.c.b16 %v1023, %v1017
      %v1150 = vpack.c.b16 %v1024, %v1018
      %v1151 = vpack.c.b16 %v1025, %v1019
      %v1152 = vpack.c.b16 %v1026, %v1020
      %v1153 = vpack.c.b16 %v1027, %v1021
      %v1154 = vpack.c.b16 %v1034, %v1028
      %v1155 = vpack.c.b16 %v1035, %v1029
      %v1156 = vpack.c.b16 %v1036, %v1030
      %v1157 = vpack.c.b16 %v1037, %v1031
      %v1158 = vpack.c.b16 %v1038, %v1032
      %v1159 = vpack.c.b16 %v1039, %v1033
      %v1160 = vpack.c.b16 %v1046, %v1040
      %v1161 = vpack.c.b16 %v1047, %v1041
      %v1162 = vpack.c.b16 %v1048, %v1042
      %v1163 = vpack.c.b16 %v1049, %v1043
      %v1164 = vpack.c.b16 %v1050, %v1044
      %v1165 = vpack.c.b16 %v1051, %v1045
      %v1166 = vpack.c.b16 %v1058, %v1052
      %v1167 = vpack.c.b16 %v1059, %v1053
      %v1168 = vpack.c.b16 %v1060, %v1054
      %v1169 = vpack.c.b16 %v1061, %v1055
      %v1170 = vpack.c.b16 %v1062, %v1056
      %v1171 = vpack.c.b16 %v1063, %v1057
      %v1172 = vpack.c.b16 %v1070, %v1064
      %v1173 = vpack.c.b16 %v1071, %v1065
      %v1174 = vpack.c.b16 %v1072, %v1066
      %v1175 = vpack.c.b16 %v1073, %v1067
      %v1176 = vpack.c.b16 %v1074, %v1068
      %v1177 = vpack.c.b16 %v1075, %v1069
      %v1178 = vpack.c.b16 %v1082, %v1076
      %v1179 = vpack.c.b16 %v1083, %v1077
      %v1180 = vpack.c.b16 %v1084, %v1078
      %v1181 = vpack.c.b16 %v1085, %v1079
      %v1182 = vpack.c.b16 %v1086, %v1080
      %v1183 = vpack.c.b16 %v1087, %v1081
      %1280 = vmatprep.subr.bf16.mxu0 %v1089
      %1281 = vmatpush1.bf16.msra.mxu0 %v1088
      %1282 = vmatprep.subr.bf16.mxu0 %v1095
      %1283 = vmatpush1.bf16.msra.mxu0 %v1094
      %1284 = vmatprep.subr.bf16.mxu0 %v1101
      %1285 = vmatpush1.bf16.msra.mxu0 %v1100
      %1286 = vmatprep.subr.bf16.mxu0 %v1107
      %1287 = vmatpush1.bf16.msra.mxu0 %v1106
      %1288 = vmatprep.subr.bf16.mxu0 %v1113
      %1289 = vmatpush1.bf16.msra.mxu0 %v1112
      %1290 = vmatprep.subr.bf16.mxu0 %v1119
      %1291 = vmatpush1.bf16.msra.mxu0 %v1118
      %1292 = vmatprep.subr.bf16.mxu0 %v1125
      %1293 = vmatpush1.bf16.msra.mxu0 %v1124
      %1294 = vmatprep.subr.bf16.mxu0 %v1131
      %1295 = vmatpush1.bf16.msra.mxu0 %v1130
      %1296 = vmatprep.subr.bf16.mxu0 %v1137
      %1297 = vmatpush1.bf16.msra.mxu0 %v1136
      %1298 = vmatprep.subr.bf16.mxu0 %v1143
      %1299 = vmatpush1.bf16.msra.mxu0 %v1142
      %1300 = vmatprep.subr.bf16.mxu0 %v1149
      %1301 = vmatpush1.bf16.msra.mxu0 %v1148
      %1302 = vmatprep.subr.bf16.mxu0 %v1155
      %1303 = vmatpush1.bf16.msra.mxu0 %v1154
      %1304 = vmatprep.subr.bf16.mxu0 %v1161
      %1305 = vmatpush1.bf16.msra.mxu0 %v1160
      %1306 = vmatprep.subr.bf16.mxu0 %v1167
      %1307 = vmatpush1.bf16.msra.mxu0 %v1166
      %1308 = vmatprep.subr.bf16.mxu0 %v1173
      %1309 = vmatpush1.bf16.msra.mxu0 %v1172
      %1310 = vmatprep.subr.bf16.mxu0 %v1179
      %1311 = vmatpush1.bf16.msra.mxu0 %v1178
      %1312 = vmatprep.mubr.bf16.mxu0 %v671
      %1313 = vmatmul.mubr.bf16.gmra.mrb[0].mxu0 %v670
      %v1314 = vpop.f32.mrb[0].mxu0
      %v1315 = vadd.f32 %v773, %v1314
      %v1316 = vpop.f32.mrb[0].mxu0
      %v1317 = vadd.f32 %v777, %v1316
      %v1318 = vpop.f32.mrb[0].mxu0
      %v1319 = vpop.f32.mrb[0].mxu0
      %1320 = vdwg.mxu0
      %1321 = vmatprep.subr.bf16.mxu0 %v1091
      %1322 = vmatpush1.bf16.msra.mxu0 %v1090
      %1323 = vmatprep.subr.bf16.mxu0 %v1097
      %1324 = vmatpush1.bf16.msra.mxu0 %v1096
      %1325 = vmatprep.subr.bf16.mxu0 %v1103
      %1326 = vmatpush1.bf16.msra.mxu0 %v1102
      %1327 = vmatprep.subr.bf16.mxu0 %v1109
      %1328 = vmatpush1.bf16.msra.mxu0 %v1108
      %1329 = vmatprep.subr.bf16.mxu0 %v1115
      %1330 = vmatpush1.bf16.msra.mxu0 %v1114
      %1331 = vmatprep.subr.bf16.mxu0 %v1121
      %1332 = vmatpush1.bf16.msra.mxu0 %v1120
      %1333 = vmatprep.subr.bf16.mxu0 %v1127
      %1334 = vmatpush1.bf16.msra.mxu0 %v1126
      %1335 = vmatprep.subr.bf16.mxu0 %v1133
      %1336 = vmatpush1.bf16.msra.mxu0 %v1132
      %1337 = vmatprep.subr.bf16.mxu0 %v1139
      %1338 = vmatpush1.bf16.msra.mxu0 %v1138
      %1339 = vmatprep.subr.bf16.mxu0 %v1145
      %1340 = vmatpush1.bf16.msra.mxu0 %v1144
      %1341 = vmatprep.subr.bf16.mxu0 %v1151
      %1342 = vmatpush1.bf16.msra.mxu0 %v1150
      %1343 = vmatprep.subr.bf16.mxu0 %v1157
      %1344 = vmatpush1.bf16.msra.mxu0 %v1156
      %1345 = vmatprep.subr.bf16.mxu0 %v1163
      %1346 = vmatpush1.bf16.msra.mxu0 %v1162
      %1347 = vmatprep.subr.bf16.mxu0 %v1169
      %1348 = vmatpush1.bf16.msra.mxu0 %v1168
      %1349 = vmatprep.subr.bf16.mxu0 %v1175
      %1350 = vmatpush1.bf16.msra.mxu0 %v1174
      %1351 = vmatprep.subr.bf16.mxu0 %v1181
      %1352 = vmatpush1.bf16.msra.mxu0 %v1180
      %1353 = vmatprep.mubr.bf16.mxu0 %v671
      %1354 = vmatmul.mubr.bf16.gmra.mrb[0].mxu0 %v670
      %v1355 = vpop.f32.mrb[0].mxu0
      %v1356 = vadd.f32 %v781, %v1355
      %v1357 = vpop.f32.mrb[0].mxu0
      %v1358 = vadd.f32 %v785, %v1357
      %v1359 = vpop.f32.mrb[0].mxu0
      %v1360 = vpop.f32.mrb[0].mxu0
      %1361 = vdwg.mxu0
      %1362 = vmatprep.subr.bf16.mxu0 %v1093
      %1363 = vmatpush1.bf16.msra.mxu0 %v1092
      %1364 = vmatprep.subr.bf16.mxu0 %v1099
      %1365 = vmatpush1.bf16.msra.mxu0 %v1098
      %1366 = vmatprep.subr.bf16.mxu0 %v1105
      %1367 = vmatpush1.bf16.msra.mxu0 %v1104
      %1368 = vmatprep.subr.bf16.mxu0 %v1111
      %1369 = vmatpush1.bf16.msra.mxu0 %v1110
      %1370 = vmatprep.subr.bf16.mxu0 %v1117
      %1371 = vmatpush1.bf16.msra.mxu0 %v1116
      %1372 = vmatprep.subr.bf16.mxu0 %v1123
      %1373 = vmatpush1.bf16.msra.mxu0 %v1122
      %1374 = vmatprep.subr.bf16.mxu0 %v1129
      %1375 = vmatpush1.bf16.msra.mxu0 %v1128
      %1376 = vmatprep.subr.bf16.mxu0 %v1135
      %1377 = vmatpush1.bf16.msra.mxu0 %v1134
      %1378 = vmatprep.subr.bf16.mxu0 %v1141
      %1379 = vmatpush1.bf16.msra.mxu0 %v1140
      %1380 = vmatprep.subr.bf16.mxu0 %v1147
      %1381 = vmatpush1.bf16.msra.mxu0 %v1146
      %1382 = vmatprep.subr.bf16.mxu0 %v1153
      %1383 = vmatpush1.bf16.msra.mxu0 %v1152
      %1384 = vmatprep.subr.bf16.mxu0 %v1159
      %1385 = vmatpush1.bf16.msra.mxu0 %v1158
      %1386 = vmatprep.subr.bf16.mxu0 %v1165
      %1387 = vmatpush1.bf16.msra.mxu0 %v1164
      %1388 = vmatprep.subr.bf16.mxu0 %v1171
      %1389 = vmatpush1.bf16.msra.mxu0 %v1170
      %1390 = vmatprep.subr.bf16.mxu0 %v1177
      %1391 = vmatpush1.bf16.msra.mxu0 %v1176
      %1392 = vmatprep.subr.bf16.mxu0 %v1183
      %1393 = vmatpush1.bf16.msra.mxu0 %v1182
      %1394 = vmatprep.mubr.bf16.mxu0 %v671
      %1395 = vmatmul.mubr.bf16.gmra.mrb[0].mxu0 %v670
      %v1396 = vpop.f32.mrb[0].mxu0
      %v1397 = vadd.f32 %v789, %v1396
      %v1398 = vpop.f32.mrb[0].mxu0
      %v1399 = vadd.f32 %v793, %v1398
      %v1400 = vpop.f32.mrb[0].mxu0
      %v1401 = vpop.f32.mrb[0].mxu0
      %1402 = vdwg.mxu0
      %v1403 = vpack.c.bf16 %v1315, %v1315
      %v1404 = vpack.c.bf16 %v1317, %v1317
      %v1405 = vpack.c.bf16 %v1356, %v1356
      %v1406 = vpack.c.bf16 %v1358, %v1358
      %v1407 = vpack.c.bf16 %v1397, %v1397
      %v1408 = vpack.c.bf16 %v1399, %v1399
      %vm1409 = vcmask 523264
      %v1411 = vsel %vm1409, %v1403, 0
      %v1414 = vsel %vm1409, %v1405, 0
      %1416 = vmatprep.subr.bf16.mxu0 0
      %1417 = vmatpush1.bf16.xpose.msra.mxu0 %v1414
      %1418 = vmatprep.subr.bf16.mxu0 0
      %1419 = vmatpush1.bf16.xpose.msra.mxu0 0
      %1420 = vmatprep.subr.bf16.mxu0 0
      %1421 = vmatpush1.bf16.xpose.msra.mxu0 0
      %1422 = vmatprep.subr.bf16.mxu0 0
      %1423 = vmatpush1.bf16.xpose.msra.mxu0 0
      %1424 = vmatprep.subr.bf16.mxu0 0
      %1425 = vmatpush1.bf16.xpose.msra.mxu0 0
      %1426 = vmatprep.subr.bf16.mxu0 0
      %1427 = vmatpush1.bf16.xpose.msra.mxu0 0
      %1428 = vmatprep.subr.bf16.mxu0 0
      %1429 = vmatpush1.bf16.xpose.msra.mxu0 0
      %1430 = vmatprep.subr.bf16.mxu0 0
      %1431 = vmatpush1.bf16.xpose.msra.mxu0 0
      %1432 = vmatprep.subr.bf16.mxu0 0
      %1433 = vmatpush1.bf16.xpose.msra.mxu0 0
      %1434 = vmatprep.subr.bf16.mxu0 0
      %1435 = vmatpush1.bf16.xpose.msra.mxu0 0
      %1436 = vmatprep.subr.bf16.mxu0 0
      %1437 = vmatpush1.bf16.xpose.msra.mxu0 0
      %1438 = vmatprep.subr.bf16.mxu0 0
      %1439 = vmatpush1.bf16.xpose.msra.mxu0 0
      %1440 = vmatprep.subr.bf16.mxu0 0
      %1441 = vmatpush1.bf16.xpose.msra.mxu0 0
      %1442 = vmatprep.subr.bf16.mxu0 0
      %1443 = vmatpush1.bf16.xpose.msra.mxu0 0
      %1444 = vmatprep.subr.bf16.mxu0 0
      %1445 = vmatpush1.bf16.xpose.msra.mxu0 0
      %1446 = vmatprep.subr.bf16.mxu0 0
      %1447 = vmatpush1.bf16.xpose.msra.mxu0 0
      %1448 = vmatprep.mubr.bf16.mxu0 0
      %1449 = vmatmul.mubr.bf16.gmra.mrb[0].mxu0 %v1411
      %v1450 = vpop.f32.mrb[0].mxu0
      %v1451 = vadd.f32 0.0, %v1450
      %v1452 = vpop.f32.mrb[0].mxu0
      %v1453 = vpop.f32.mrb[0].mxu0
      %v1454 = vpop.f32.mrb[0].mxu0
      %1455 = vdwg.mxu0
      %v1456 = vmul.f32 %v1451, 0.125
      %v1457 = vadd.f32 %v1456, %v630
      %vm1458 = vcmask 64512
      %v1459 = vsel %vm1458, %v1457, -inf
      %1460 = vmax.xlane.f32.xlu0 %v1459
      %v1461 = vpop.xlane.xlu0 %1460
      %v1462 = vsub.f32 %v1457, %v1461
      %v1463 = vmul.f32 %v1462, 1.442695
      %v1464 = vpow.pop %v1463
      %v1465 = vsel %vm1458, %v1464, 0.0
      %1466 = vadd.xlane.f32.xlu0 %v1465
      %v1467 = vpop.xlane.xlu0 %1466
      %v1468 = vrcp.pop %v1467
      %v1469 = vmul.f32 %v1464, %v1468
      %v1470 = vpack.c.bf16 %v1469, %v1469
      %v1472 = vsel %vm1458, %v1470, 0
      %vm1474 = vcmask 1043456
      %v1476 = vsel %vm1474, %v1407, 0
      %1478 = vmatprep.subr.bf16.mxu0 0
      %1479 = vmatpush1.bf16.msra.mxu0 %v1476
      %1480 = vmatprep.subr.bf16.mxu0 0
      %1481 = vmatpush1.bf16.msra.mxu0 0
      %1482 = vmatprep.subr.bf16.mxu0 0
      %1483 = vmatpush1.bf16.msra.mxu0 0
      %1484 = vmatprep.subr.bf16.mxu0 0
      %1485 = vmatpush1.bf16.msra.mxu0 0
      %1486 = vmatprep.subr.bf16.mxu0 0
      %1487 = vmatpush1.bf16.msra.mxu0 0
      %1488 = vmatprep.subr.bf16.mxu0 0
      %1489 = vmatpush1.bf16.msra.mxu0 0
      %1490 = vmatprep.subr.bf16.mxu0 0
      %1491 = vmatpush1.bf16.msra.mxu0 0
      %1492 = vmatprep.subr.bf16.mxu0 0
      %1493 = vmatpush1.bf16.msra.mxu0 0
      %1494 = vmatprep.subr.bf16.mxu0 0
      %1495 = vmatpush1.bf16.msra.mxu0 0
      %1496 = vmatprep.subr.bf16.mxu0 0
      %1497 = vmatpush1.bf16.msra.mxu0 0
      %1498 = vmatprep.subr.bf16.mxu0 0
      %1499 = vmatpush1.bf16.msra.mxu0 0
      %1500 = vmatprep.subr.bf16.mxu0 0
      %1501 = vmatpush1.bf16.msra.mxu0 0
      %1502 = vmatprep.subr.bf16.mxu0 0
      %1503 = vmatpush1.bf16.msra.mxu0 0
      %1504 = vmatprep.subr.bf16.mxu0 0
      %1505 = vmatpush1.bf16.msra.mxu0 0
      %1506 = vmatprep.subr.bf16.mxu0 0
      %1507 = vmatpush1.bf16.msra.mxu0 0
      %1508 = vmatprep.subr.bf16.mxu0 0
      %1509 = vmatpush1.bf16.msra.mxu0 0
      %1510 = vmatprep.mubr.bf16.mxu0 0
      %1511 = vmatmul.mubr.bf16.gmra.mrb[0].mxu0 %v1472
      %v1512 = vpop.f32.mrb[0].mxu0
      %v1513 = vadd.f32 0.0, %v1512
      %v1514 = vpop.f32.mrb[0].mxu0
      %v1515 = vpop.f32.mrb[0].mxu0
      %v1516 = vpop.f32.mrb[0].mxu0
      %1517 = vdwg.mxu0
      %1519 = vrot.lane.b32.xlu0 %v1403, 64
      %v1520 = vpop.permute.xlu0 %1519
      %1522 = vrot.lane.b32.xlu0 %v1405, 64
      %v1523 = vpop.permute.xlu0 %1522
      %v1525 = vsel %vm1409, %v1520, 0
      %v1528 = vsel %vm1409, %v1523, 0
      %1530 = vmatprep.subr.bf16.mxu0 0
      %1531 = vmatpush1.bf16.xpose.msra.mxu0 %v1528
      %1532 = vmatprep.subr.bf16.mxu0 0
      %1533 = vmatpush1.bf16.xpose.msra.mxu0 0
      %1534 = vmatprep.subr.bf16.mxu0 0
      %1535 = vmatpush1.bf16.xpose.msra.mxu0 0
      %1536 = vmatprep.subr.bf16.mxu0 0
      %1537 = vmatpush1.bf16.xpose.msra.mxu0 0
      %1538 = vmatprep.subr.bf16.mxu0 0
      %1539 = vmatpush1.bf16.xpose.msra.mxu0 0
      %1540 = vmatprep.subr.bf16.mxu0 0
      %1541 = vmatpush1.bf16.xpose.msra.mxu0 0
      %1542 = vmatprep.subr.bf16.mxu0 0
      %1543 = vmatpush1.bf16.xpose.msra.mxu0 0
      %1544 = vmatprep.subr.bf16.mxu0 0
      %1545 = vmatpush1.bf16.xpose.msra.mxu0 0
      %1546 = vmatprep.subr.bf16.mxu0 0
      %1547 = vmatpush1.bf16.xpose.msra.mxu0 0
      %1548 = vmatprep.subr.bf16.mxu0 0
      %1549 = vmatpush1.bf16.xpose.msra.mxu0 0
      %1550 = vmatprep.subr.bf16.mxu0 0
      %1551 = vmatpush1.bf16.xpose.msra.mxu0 0
      %1552 = vmatprep.subr.bf16.mxu0 0
      %1553 = vmatpush1.bf16.xpose.msra.mxu0 0
      %1554 = vmatprep.subr.bf16.mxu0 0
      %1555 = vmatpush1.bf16.xpose.msra.mxu0 0
      %1556 = vmatprep.subr.bf16.mxu0 0
      %1557 = vmatpush1.bf16.xpose.msra.mxu0 0
      %1558 = vmatprep.subr.bf16.mxu0 0
      %1559 = vmatpush1.bf16.xpose.msra.mxu0 0
      %1560 = vmatprep.subr.bf16.mxu0 0
      %1561 = vmatpush1.bf16.xpose.msra.mxu0 0
      %1562 = vmatprep.mubr.bf16.mxu0 0
      %1563 = vmatmul.mubr.bf16.gmra.mrb[0].mxu0 %v1525
      %v1564 = vpop.f32.mrb[0].mxu0
      %v1565 = vadd.f32 0.0, %v1564
      %v1566 = vpop.f32.mrb[0].mxu0
      %v1567 = vpop.f32.mrb[0].mxu0
      %v1568 = vpop.f32.mrb[0].mxu0
      %1569 = vdwg.mxu0
      %v1570 = vmul.f32 %v1565, 0.125
      %v1571 = vadd.f32 %v1570, %v630
      %v1572 = vsel %vm1458, %v1571, -inf
      %1573 = vmax.xlane.f32.xlu0 %v1572
      %v1574 = vpop.xlane.xlu0 %1573
      %v1575 = vsub.f32 %v1571, %v1574
      %v1576 = vmul.f32 %v1575, 1.442695
      %v1577 = vpow.pop %v1576
      %v1578 = vsel %vm1458, %v1577, 0.0
      %1579 = vadd.xlane.f32.xlu0 %v1578
      %v1580 = vpop.xlane.xlu0 %1579
      %v1581 = vrcp.pop %v1580
      %v1582 = vmul.f32 %v1577, %v1581
      %v1583 = vpack.c.bf16 %v1582, %v1582
      %1585 = vrot.lane.b32.xlu0 %v1407, 64
      %v1586 = vpop.permute.xlu0 %1585
      %v1588 = vsel %vm1458, %v1583, 0
      %v1591 = vsel %vm1474, %v1586, 0
      %1593 = vmatprep.subr.bf16.mxu0 0
      %1594 = vmatpush1.bf16.msra.mxu0 %v1591
      %1595 = vmatprep.subr.bf16.mxu0 0
      %1596 = vmatpush1.bf16.msra.mxu0 0
      %1597 = vmatprep.subr.bf16.mxu0 0
      %1598 = vmatpush1.bf16.msra.mxu0 0
      %1599 = vmatprep.subr.bf16.mxu0 0
      %1600 = vmatpush1.bf16.msra.mxu0 0
      %1601 = vmatprep.subr.bf16.mxu0 0
      %1602 = vmatpush1.bf16.msra.mxu0 0
      %1603 = vmatprep.subr.bf16.mxu0 0
      %1604 = vmatpush1.bf16.msra.mxu0 0
      %1605 = vmatprep.subr.bf16.mxu0 0
      %1606 = vmatpush1.bf16.msra.mxu0 0
      %1607 = vmatprep.subr.bf16.mxu0 0
      %1608 = vmatpush1.bf16.msra.mxu0 0
      %1609 = vmatprep.subr.bf16.mxu0 0
      %1610 = vmatpush1.bf16.msra.mxu0 0
      %1611 = vmatprep.subr.bf16.mxu0 0
      %1612 = vmatpush1.bf16.msra.mxu0 0
      %1613 = vmatprep.subr.bf16.mxu0 0
      %1614 = vmatpush1.bf16.msra.mxu0 0
      %1615 = vmatprep.subr.bf16.mxu0 0
      %1616 = vmatpush1.bf16.msra.mxu0 0
      %1617 = vmatprep.subr.bf16.mxu0 0
      %1618 = vmatpush1.bf16.msra.mxu0 0
      %1619 = vmatprep.subr.bf16.mxu0 0
      %1620 = vmatpush1.bf16.msra.mxu0 0
      %1621 = vmatprep.subr.bf16.mxu0 0
      %1622 = vmatpush1.bf16.msra.mxu0 0
      %1623 = vmatprep.subr.bf16.mxu0 0
      %1624 = vmatpush1.bf16.msra.mxu0 0
      %1625 = vmatprep.mubr.bf16.mxu0 0
      %1626 = vmatmul.mubr.bf16.gmra.mrb[0].mxu0 %v1588
      %v1627 = vpop.f32.mrb[0].mxu0
      %v1628 = vadd.f32 0.0, %v1627
      %v1629 = vpop.f32.mrb[0].mxu0
      %v1630 = vpop.f32.mrb[0].mxu0
      %v1631 = vpop.f32.mrb[0].mxu0
      %1632 = vdwg.mxu0
      %v1634 = vsel %vm1409, %v1404, 0
      %v1637 = vsel %vm1409, %v1406, 0
      %1639 = vmatprep.subr.bf16.mxu0 0
      %1640 = vmatpush1.bf16.xpose.msra.mxu0 %v1637
      %1641 = vmatprep.subr.bf16.mxu0 0
      %1642 = vmatpush1.bf16.xpose.msra.mxu0 0
      %1643 = vmatprep.subr.bf16.mxu0 0
      %1644 = vmatpush1.bf16.xpose.msra.mxu0 0
      %1645 = vmatprep.subr.bf16.mxu0 0
      %1646 = vmatpush1.bf16.xpose.msra.mxu0 0
      %1647 = vmatprep.subr.bf16.mxu0 0
      %1648 = vmatpush1.bf16.xpose.msra.mxu0 0
      %1649 = vmatprep.subr.bf16.mxu0 0
      %1650 = vmatpush1.bf16.xpose.msra.mxu0 0
      %1651 = vmatprep.subr.bf16.mxu0 0
      %1652 = vmatpush1.bf16.xpose.msra.mxu0 0
      %1653 = vmatprep.subr.bf16.mxu0 0
      %1654 = vmatpush1.bf16.xpose.msra.mxu0 0
      %1655 = vmatprep.subr.bf16.mxu0 0
      %1656 = vmatpush1.bf16.xpose.msra.mxu0 0
      %1657 = vmatprep.subr.bf16.mxu0 0
      %1658 = vmatpush1.bf16.xpose.msra.mxu0 0
      %1659 = vmatprep.subr.bf16.mxu0 0
      %1660 = vmatpush1.bf16.xpose.msra.mxu0 0
      %1661 = vmatprep.subr.bf16.mxu0 0
      %1662 = vmatpush1.bf16.xpose.msra.mxu0 0
      %1663 = vmatprep.subr.bf16.mxu0 0
      %1664 = vmatpush1.bf16.xpose.msra.mxu0 0
      %1665 = vmatprep.subr.bf16.mxu0 0
      %1666 = vmatpush1.bf16.xpose.msra.mxu0 0
      %1667 = vmatprep.subr.bf16.mxu0 0
      %1668 = vmatpush1.bf16.xpose.msra.mxu0 0
      %1669 = vmatprep.subr.bf16.mxu0 0
      %1670 = vmatpush1.bf16.xpose.msra.mxu0 0
      %1671 = vmatprep.mubr.bf16.mxu0 0
      %1672 = vmatmul.mubr.bf16.gmra.mrb[0].mxu0 %v1634
      %v1673 = vpop.f32.mrb[0].mxu0
      %v1674 = vadd.f32 0.0, %v1673
      %v1675 = vpop.f32.mrb[0].mxu0
      %v1676 = vpop.f32.mrb[0].mxu0
      %v1677 = vpop.f32.mrb[0].mxu0
      %1678 = vdwg.mxu0
      %v1679 = vmul.f32 %v1674, 0.125
      %v1680 = vadd.f32 %v1679, %v630
      %v1681 = vsel %vm1458, %v1680, -inf
      %1682 = vmax.xlane.f32.xlu0 %v1681
      %v1683 = vpop.xlane.xlu0 %1682
      %v1684 = vsub.f32 %v1680, %v1683
      %v1685 = vmul.f32 %v1684, 1.442695
      %v1686 = vpow.pop %v1685
      %v1687 = vsel %vm1458, %v1686, 0.0
      %1688 = vadd.xlane.f32.xlu0 %v1687
      %v1689 = vpop.xlane.xlu0 %1688
      %v1690 = vrcp.pop %v1689
      %v1691 = vmul.f32 %v1686, %v1690
      %v1692 = vpack.c.bf16 %v1691, %v1691
      %v1694 = vsel %vm1458, %v1692, 0
      %v1697 = vsel %vm1474, %v1408, 0
      %1699 = vmatprep.subr.bf16.mxu0 0
      %1700 = vmatpush1.bf16.msra.mxu0 %v1697
      %1701 = vmatprep.subr.bf16.mxu0 0
      %1702 = vmatpush1.bf16.msra.mxu0 0
      %1703 = vmatprep.subr.bf16.mxu0 0
      %1704 = vmatpush1.bf16.msra.mxu0 0
      %1705 = vmatprep.subr.bf16.mxu0 0
      %1706 = vmatpush1.bf16.msra.mxu0 0
      %1707 = vmatprep.subr.bf16.mxu0 0
      %1708 = vmatpush1.bf16.msra.mxu0 0
      %1709 = vmatprep.subr.bf16.mxu0 0
      %1710 = vmatpush1.bf16.msra.mxu0 0
      %1711 = vmatprep.subr.bf16.mxu0 0
      %1712 = vmatpush1.bf16.msra.mxu0 0
      %1713 = vmatprep.subr.bf16.mxu0 0
      %1714 = vmatpush1.bf16.msra.mxu0 0
      %1715 = vmatprep.subr.bf16.mxu0 0
      %1716 = vmatpush1.bf16.msra.mxu0 0
      %1717 = vmatprep.subr.bf16.mxu0 0
      %1718 = vmatpush1.bf16.msra.mxu0 0
      %1719 = vmatprep.subr.bf16.mxu0 0
      %1720 = vmatpush1.bf16.msra.mxu0 0
      %1721 = vmatprep.subr.bf16.mxu0 0
      %1722 = vmatpush1.bf16.msra.mxu0 0
      %1723 = vmatprep.subr.bf16.mxu0 0
      %1724 = vmatpush1.bf16.msra.mxu0 0
      %1725 = vmatprep.subr.bf16.mxu0 0
      %1726 = vmatpush1.bf16.msra.mxu0 0
      %1727 = vmatprep.subr.bf16.mxu0 0
      %1728 = vmatpush1.bf16.msra.mxu0 0
      %1729 = vmatprep.subr.bf16.mxu0 0
      %1730 = vmatpush1.bf16.msra.mxu0 0
      %1731 = vmatprep.mubr.bf16.mxu0 0
      %1732 = vmatmul.mubr.bf16.gmra.mrb[0].mxu0 %v1694
      %v1733 = vpop.f32.mrb[0].mxu0
      %v1734 = vadd.f32 0.0, %v1733
      %v1735 = vpop.f32.mrb[0].mxu0
      %v1736 = vpop.f32.mrb[0].mxu0
      %v1737 = vpop.f32.mrb[0].mxu0
      %1738 = vdwg.mxu0
      %1740 = vrot.lane.b32.xlu0 %v1404, 64
      %v1741 = vpop.permute.xlu0 %1740
      %1743 = vrot.lane.b32.xlu0 %v1406, 64
      %v1744 = vpop.permute.xlu0 %1743
      %v1746 = vsel %vm1409, %v1741, 0
      %v1749 = vsel %vm1409, %v1744, 0
      %1751 = vmatprep.subr.bf16.mxu0 0
      %1752 = vmatpush1.bf16.xpose.msra.mxu0 %v1749
      %1753 = vmatprep.subr.bf16.mxu0 0
      %1754 = vmatpush1.bf16.xpose.msra.mxu0 0
      %1755 = vmatprep.subr.bf16.mxu0 0
      %1756 = vmatpush1.bf16.xpose.msra.mxu0 0
      %1757 = vmatprep.subr.bf16.mxu0 0
      %1758 = vmatpush1.bf16.xpose.msra.mxu0 0
      %1759 = vmatprep.subr.bf16.mxu0 0
      %1760 = vmatpush1.bf16.xpose.msra.mxu0 0
      %1761 = vmatprep.subr.bf16.mxu0 0
      %1762 = vmatpush1.bf16.xpose.msra.mxu0 0
      %1763 = vmatprep.subr.bf16.mxu0 0
      %1764 = vmatpush1.bf16.xpose.msra.mxu0 0
      %1765 = vmatprep.subr.bf16.mxu0 0
      %1766 = vmatpush1.bf16.xpose.msra.mxu0 0
      %1767 = vmatprep.subr.bf16.mxu0 0
      %1768 = vmatpush1.bf16.xpose.msra.mxu0 0
      %1769 = vmatprep.subr.bf16.mxu0 0
      %1770 = vmatpush1.bf16.xpose.msra.mxu0 0
      %1771 = vmatprep.subr.bf16.mxu0 0
      %1772 = vmatpush1.bf16.xpose.msra.mxu0 0
      %1773 = vmatprep.subr.bf16.mxu0 0
      %1774 = vmatpush1.bf16.xpose.msra.mxu0 0
      %1775 = vmatprep.subr.bf16.mxu0 0
      %1776 = vmatpush1.bf16.xpose.msra.mxu0 0
      %1777 = vmatprep.subr.bf16.mxu0 0
      %1778 = vmatpush1.bf16.xpose.msra.mxu0 0
      %1779 = vmatprep.subr.bf16.mxu0 0
      %1780 = vmatpush1.bf16.xpose.msra.mxu0 0
      %1781 = vmatprep.subr.bf16.mxu0 0
      %1782 = vmatpush1.bf16.xpose.msra.mxu0 0
      %1783 = vmatprep.mubr.bf16.mxu0 0
      %1784 = vmatmul.mubr.bf16.gmra.mrb[0].mxu0 %v1746
      %v1785 = vpop.f32.mrb[0].mxu0
      %v1786 = vadd.f32 0.0, %v1785
      %v1787 = vpop.f32.mrb[0].mxu0
      %v1788 = vpop.f32.mrb[0].mxu0
      %v1789 = vpop.f32.mrb[0].mxu0
      %1790 = vdwg.mxu0
      %v1791 = vmul.f32 %v1786, 0.125
      %v1792 = vadd.f32 %v1791, %v630
      %v1793 = vsel %vm1458, %v1792, -inf
      %1794 = vmax.xlane.f32.xlu0 %v1793
      %v1795 = vpop.xlane.xlu0 %1794
      %v1796 = vsub.f32 %v1792, %v1795
      %v1797 = vmul.f32 %v1796, 1.442695
      %v1798 = vpow.pop %v1797
      %v1799 = vsel %vm1458, %v1798, 0.0
      %1800 = vadd.xlane.f32.xlu0 %v1799
      %v1801 = vpop.xlane.xlu0 %1800
      %v1802 = vrcp.pop %v1801
      %v1803 = vmul.f32 %v1798, %v1802
      %v1804 = vpack.c.bf16 %v1803, %v1803
      %1806 = vrot.lane.b32.xlu0 %v1408, 64
      %v1807 = vpop.permute.xlu0 %1806
      %v1809 = vsel %vm1458, %v1804, 0
      %v1812 = vsel %vm1474, %v1807, 0
      %1814 = vmatprep.subr.bf16.mxu0 0
      %1815 = vmatpush1.bf16.msra.mxu0 %v1812
      %1816 = vmatprep.subr.bf16.mxu0 0
      %1817 = vmatpush1.bf16.msra.mxu0 0
      %1818 = vmatprep.subr.bf16.mxu0 0
      %1819 = vmatpush1.bf16.msra.mxu0 0
      %1820 = vmatprep.subr.bf16.mxu0 0
      %1821 = vmatpush1.bf16.msra.mxu0 0
      %1822 = vmatprep.subr.bf16.mxu0 0
      %1823 = vmatpush1.bf16.msra.mxu0 0
      %1824 = vmatprep.subr.bf16.mxu0 0
      %1825 = vmatpush1.bf16.msra.mxu0 0
      %1826 = vmatprep.subr.bf16.mxu0 0
      %1827 = vmatpush1.bf16.msra.mxu0 0
      %1828 = vmatprep.subr.bf16.mxu0 0
      %1829 = vmatpush1.bf16.msra.mxu0 0
      %1830 = vmatprep.subr.bf16.mxu0 0
      %1831 = vmatpush1.bf16.msra.mxu0 0
      %1832 = vmatprep.subr.bf16.mxu0 0
      %1833 = vmatpush1.bf16.msra.mxu0 0
      %1834 = vmatprep.subr.bf16.mxu0 0
      %1835 = vmatpush1.bf16.msra.mxu0 0
      %1836 = vmatprep.subr.bf16.mxu0 0
      %1837 = vmatpush1.bf16.msra.mxu0 0
      %1838 = vmatprep.subr.bf16.mxu0 0
      %1839 = vmatpush1.bf16.msra.mxu0 0
      %1840 = vmatprep.subr.bf16.mxu0 0
      %1841 = vmatpush1.bf16.msra.mxu0 0
      %1842 = vmatprep.subr.bf16.mxu0 0
      %1843 = vmatpush1.bf16.msra.mxu0 0
      %1844 = vmatprep.subr.bf16.mxu0 0
      %1845 = vmatpush1.bf16.msra.mxu0 0
      %1846 = vmatprep.mubr.bf16.mxu0 0
      %1847 = vmatmul.mubr.bf16.gmra.mrb[0].mxu0 %v1809
      %v1848 = vpop.f32.mrb[0].mxu0
      %v1849 = vadd.f32 0.0, %v1848
      %v1850 = vpop.f32.mrb[0].mxu0
      %v1851 = vpop.f32.mrb[0].mxu0
      %v1852 = vpop.f32.mrb[0].mxu0
      %1853 = vdwg.mxu0
      %1855 = vrot.lane.b32.xlu0 %v1628, 64
      %v1856 = vpop.permute.xlu0 %1855
      %1859 = vrot.lane.b32.xlu0 %v1849, 64
      %v1860 = vpop.permute.xlu0 %1859
      %v1862 = vsel %vm1409, %v1513, %v1856
      %v1863 = vsel %vm1409, %v1734, %v1860
      %v1864 = vpack.c.bf16 %v1862, %v1862
      %v1865 = vpack.c.bf16 %v1863, %v1863
      %v1866 = vld [vmem:[%s4] sm:$0xff]
      %v1867 = vld [vmem:[%s4 + $0x8] sm:$0xff]
      %v1868 = vld [vmem:[%s4 + $0x10] sm:$0xff]
      %v1869 = vld [vmem:[%s4 + $0x18] sm:$0xff]
      %v1870 = vld [vmem:[%s4 + $0x20] sm:$0xff]
      %v1871 = vld [vmem:[%s4 + $0x28] sm:$0xff]
      %v1872 = vld [vmem:[%s4 + $0x30] sm:$0xff]
      %v1873 = vld [vmem:[%s4 + $0x38] sm:$0xff]
      %v1874 = vld [vmem:[%s4 + $0x40] sm:$0xff]
      %v1875 = vld [vmem:[%s4 + $0x48] sm:$0xff]
      %v1876 = vld [vmem:[%s4 + $0x50] sm:$0xff]
      %v1877 = vld [vmem:[%s4 + $0x58] sm:$0xff]
      %v1878 = vld [vmem:[%s4 + $0x60] sm:$0xff]
      %v1879 = vld [vmem:[%s4 + $0x68] sm:$0xff]
      %v1880 = vld [vmem:[%s4 + $0x70] sm:$0xff]
      %v1881 = vld [vmem:[%s4 + $0x78] sm:$0xff]
      %v1882 = vld [vmem:[%s4 + $0x80] sm:$0xff]
      %v1883 = vld [vmem:[%s4 + $0x88] sm:$0xff]
      %v1884 = vld [vmem:[%s4 + $0x90] sm:$0xff]
      %v1885 = vld [vmem:[%s4 + $0x98] sm:$0xff]
      %v1886 = vld [vmem:[%s4 + $0xa0] sm:$0xff]
      %v1887 = vld [vmem:[%s4 + $0xa8] sm:$0xff]
      %v1888 = vld [vmem:[%s4 + $0xb0] sm:$0xff]
      %v1889 = vld [vmem:[%s4 + $0xb8] sm:$0xff]
      %v1890 = vld [vmem:[%s4 + $0xc0] sm:$0xff]
      %v1891 = vld [vmem:[%s4 + $0xc8] sm:$0xff]
      %v1892 = vld [vmem:[%s4 + $0xd0] sm:$0xff]
      %v1893 = vld [vmem:[%s4 + $0xd8] sm:$0xff]
      %v1894 = vld [vmem:[%s4 + $0xe0] sm:$0xff]
      %v1895 = vld [vmem:[%s4 + $0xe8] sm:$0xff]
      %v1896 = vld [vmem:[%s4 + $0xf0] sm:$0xff]
      %v1897 = vld [vmem:[%s4 + $0xf8] sm:$0xff]
      %v1898 = vlaneseq
      %v1899 = vshrl.u32 %v1898, 7
      %v1900 = vsub.s32 4, %v1899
      %v1901 = vrot.slane %v631, %v1900
      %v1902 = vlaneseq
      %v1903 = vshrl.u32 %v1902, 7
      %v1904 = vsub.s32 4, %v1903
      %v1905 = vrot.slane %v632, %v1904
      %v1938 = vunpack.c.l.b16 %v1866
      %v1939 = vunpack.c.h.b16 %v1866
      %v1940 = vunpack.c.l.b16 %v1867
      %v1941 = vunpack.c.h.b16 %v1867
      %v1942 = vunpack.c.l.b16 %v1868
      %v1943 = vunpack.c.h.b16 %v1868
      %v1944 = vunpack.c.l.b16 %v1869
      %v1945 = vunpack.c.h.b16 %v1869
      %v1946 = vunpack.c.l.b16 %v1870
      %v1947 = vunpack.c.h.b16 %v1870
      %v1948 = vunpack.c.l.b16 %v1871
      %v1949 = vunpack.c.h.b16 %v1871
      %v1950 = vunpack.c.l.b16 %v1872
      %v1951 = vunpack.c.h.b16 %v1872
      %v1952 = vunpack.c.l.b16 %v1873
      %v1953 = vunpack.c.h.b16 %v1873
      %v1954 = vunpack.c.l.b16 %v1874
      %v1955 = vunpack.c.h.b16 %v1874
      %v1956 = vunpack.c.l.b16 %v1875
      %v1957 = vunpack.c.h.b16 %v1875
      %v1958 = vunpack.c.l.b16 %v1876
      %v1959 = vunpack.c.h.b16 %v1876
      %v1960 = vunpack.c.l.b16 %v1877
      %v1961 = vunpack.c.h.b16 %v1877
      %v1962 = vunpack.c.l.b16 %v1878
      %v1963 = vunpack.c.h.b16 %v1878
      %v1964 = vunpack.c.l.b16 %v1879
      %v1965 = vunpack.c.h.b16 %v1879
      %v1966 = vunpack.c.l.b16 %v1880
      %v1967 = vunpack.c.h.b16 %v1880
      %v1968 = vunpack.c.l.b16 %v1881
      %v1969 = vunpack.c.h.b16 %v1881
      %v1970 = vunpack.c.l.b16 %v1882
      %v1971 = vunpack.c.h.b16 %v1882
      %v1972 = vunpack.c.l.b16 %v1883
      %v1973 = vunpack.c.h.b16 %v1883
      %v1974 = vunpack.c.l.b16 %v1884
      %v1975 = vunpack.c.h.b16 %v1884
      %v1976 = vunpack.c.l.b16 %v1885
      %v1977 = vunpack.c.h.b16 %v1885
      %v1978 = vunpack.c.l.b16 %v1886
      %v1979 = vunpack.c.h.b16 %v1886
      %v1980 = vunpack.c.l.b16 %v1887
      %v1981 = vunpack.c.h.b16 %v1887
      %v1982 = vunpack.c.l.b16 %v1888
      %v1983 = vunpack.c.h.b16 %v1888
      %v1984 = vunpack.c.l.b16 %v1889
      %v1985 = vunpack.c.h.b16 %v1889
      %v1986 = vunpack.c.l.b16 %v1890
      %v1987 = vunpack.c.h.b16 %v1890
      %v1988 = vunpack.c.l.b16 %v1891
      %v1989 = vunpack.c.h.b16 %v1891
      %v1990 = vunpack.c.l.b16 %v1892
      %v1991 = vunpack.c.h.b16 %v1892
      %v1992 = vunpack.c.l.b16 %v1893
      %v1993 = vunpack.c.h.b16 %v1893
      %v1994 = vunpack.c.l.b16 %v1894
      %v1995 = vunpack.c.h.b16 %v1894
      %v1996 = vunpack.c.l.b16 %v1895
      %v1997 = vunpack.c.h.b16 %v1895
      %v1998 = vunpack.c.l.b16 %v1896
      %v1999 = vunpack.c.h.b16 %v1896
      %v2000 = vunpack.c.l.b16 %v1897
      %v2001 = vunpack.c.h.b16 %v1897
      %v2002 = vpack.c.b16 %v1940, %v1938
      %v2003 = vpack.c.b16 %v1941, %v1939
      %v2004 = vpack.c.b16 %v1944, %v1942
      %v2005 = vpack.c.b16 %v1945, %v1943
      %v2006 = vpack.c.b16 %v1948, %v1946
      %v2007 = vpack.c.b16 %v1949, %v1947
      %v2008 = vpack.c.b16 %v1952, %v1950
      %v2009 = vpack.c.b16 %v1953, %v1951
      %v2010 = vpack.c.b16 %v1956, %v1954
      %v2011 = vpack.c.b16 %v1957, %v1955
      %v2012 = vpack.c.b16 %v1960, %v1958
      %v2013 = vpack.c.b16 %v1961, %v1959
      %v2014 = vpack.c.b16 %v1964, %v1962
      %v2015 = vpack.c.b16 %v1965, %v1963
      %v2016 = vpack.c.b16 %v1968, %v1966
      %v2017 = vpack.c.b16 %v1969, %v1967
      %v2018 = vpack.c.b16 %v1972, %v1970
      %v2019 = vpack.c.b16 %v1973, %v1971
      %v2020 = vpack.c.b16 %v1976, %v1974
      %v2021 = vpack.c.b16 %v1977, %v1975
      %v2022 = vpack.c.b16 %v1980, %v1978
      %v2023 = vpack.c.b16 %v1981, %v1979
      %v2024 = vpack.c.b16 %v1984, %v1982
      %v2025 = vpack.c.b16 %v1985, %v1983
      %v2026 = vpack.c.b16 %v1988, %v1986
      %v2027 = vpack.c.b16 %v1989, %v1987
      %v2028 = vpack.c.b16 %v1992, %v1990
      %v2029 = vpack.c.b16 %v1993, %v1991
      %v2030 = vpack.c.b16 %v1996, %v1994
      %v2031 = vpack.c.b16 %v1997, %v1995
      %v2032 = vpack.c.b16 %v2000, %v1998
      %v2033 = vpack.c.b16 %v2001, %v1999
      %2066 = vmatprep.subr.bf16.mxu0 %v2003
      %2067 = vmatpush1.bf16.msra.mxu0 %v2002
      %2068 = vmatprep.subr.bf16.mxu0 %v2005
      %2069 = vmatpush1.bf16.msra.mxu0 %v2004
      %2070 = vmatprep.subr.bf16.mxu0 %v2007
      %2071 = vmatpush1.bf16.msra.mxu0 %v2006
      %2072 = vmatprep.subr.bf16.mxu0 %v2009
      %2073 = vmatpush1.bf16.msra.mxu0 %v2008
      %2074 = vmatprep.subr.bf16.mxu0 %v2011
      %2075 = vmatpush1.bf16.msra.mxu0 %v2010
      %2076 = vmatprep.subr.bf16.mxu0 %v2013
      %2077 = vmatpush1.bf16.msra.mxu0 %v2012
      %2078 = vmatprep.subr.bf16.mxu0 %v2015
      %2079 = vmatpush1.bf16.msra.mxu0 %v2014
      %2080 = vmatprep.subr.bf16.mxu0 %v2017
      %2081 = vmatpush1.bf16.msra.mxu0 %v2016
      %2082 = vmatprep.subr.bf16.mxu0 %v2019
      %2083 = vmatpush1.bf16.msra.mxu0 %v2018
      %2084 = vmatprep.subr.bf16.mxu0 %v2021
      %2085 = vmatpush1.bf16.msra.mxu0 %v2020
      %2086 = vmatprep.subr.bf16.mxu0 %v2023
      %2087 = vmatpush1.bf16.msra.mxu0 %v2022
      %2088 = vmatprep.subr.bf16.mxu0 %v2025
      %2089 = vmatpush1.bf16.msra.mxu0 %v2024
      %2090 = vmatprep.subr.bf16.mxu0 %v2027
      %2091 = vmatpush1.bf16.msra.mxu0 %v2026
      %2092 = vmatprep.subr.bf16.mxu0 %v2029
      %2093 = vmatpush1.bf16.msra.mxu0 %v2028
      %2094 = vmatprep.subr.bf16.mxu0 %v2031
      %2095 = vmatpush1.bf16.msra.mxu0 %v2030
      %2096 = vmatprep.subr.bf16.mxu0 %v2033
      %2097 = vmatpush1.bf16.msra.mxu0 %v2032
      %2098 = vmatprep.mubr.bf16.mxu0 %v1865
      %2099 = vmatmul.mubr.bf16.gmra.mrb[0].mxu0 %v1864
      %v2100 = vpop.f32.mrb[0].mxu0
      %v2101 = vadd.f32 %v1901, %v2100
      %v2102 = vpop.f32.mrb[0].mxu0
      %v2103 = vadd.f32 %v1905, %v2102
      %v2104 = vpop.f32.mrb[0].mxu0
      %v2105 = vpop.f32.mrb[0].mxu0
      %2106 = vdwg.mxu0
      %v2107 = vadd.f32 %v625, %v2101
      %v2108 = vadd.f32 %v626, %v2103
      %v2109 = vadd.f32 %v2107, %v2108
      %2110 = vadd.xlane.f32.xlu0 %v2109
      %v2111 = vpop.xlane.xlu0 %2110
      %v2112 = vmul.f32 %v2111, %v636
      %v2113 = vsub.f32 %v2107, %v2112
      %v2114 = vsub.f32 %v2108, %v2112
      %v2115 = vmul.f32 %v2113, %v2113
      %v2116 = vmul.f32 %v2114, %v2114
      %v2117 = vadd.f32 %v2115, %v2116
      %2118 = vadd.xlane.f32.xlu0 %v2117
      %v2119 = vpop.xlane.xlu0 %2118
      %v2120 = vmul.f32 %v2119, %v636
      %v2121 = vadd.f32 %v2120, 1e-05
      %v2122 = vrsqrt.pop %v2121
      %v2123 = vmul.f32 %v2113, %v2122
      %v2124 = vmul.f32 %v2114, %v2122
      %v2125 = vlaneseq
      %v2126 = vshrl.u32 %v2125, 7
      %v2127 = vsub.s32 2, %v2126
      %v2128 = vrot.slane %v631, %v2127
      %v2129 = vlaneseq
      %v2130 = vshrl.u32 %v2129, 7
      %v2131 = vsub.s32 2, %v2130
      %v2132 = vrot.slane %v632, %v2131
      %v2133 = vmul.f32 %v2123, %v2128
      %v2134 = vmul.f32 %v2124, %v2132
      %v2135 = vlaneseq
      %v2136 = vshrl.u32 %v2135, 7
      %v2137 = vsub.s32 3, %v2136
      %v2138 = vrot.slane %v631, %v2137
      %v2139 = vlaneseq
      %v2140 = vshrl.u32 %v2139, 7
      %v2141 = vsub.s32 3, %v2140
      %v2142 = vrot.slane %v632, %v2141
      %v2143 = vadd.f32 %v2133, %v2138
      %v2144 = vadd.f32 %v2134, %v2142
      %v2145 = vpack.c.bf16 %v2143, %v2143
      %v2146 = vpack.c.bf16 %v2144, %v2144
      %v2147 = vld [vmem:[%s5] sm:$0xff]
      %v2148 = vld [vmem:[%s5 + $0x8] sm:$0xff]
      %v2149 = vld [vmem:[%s5 + $0x10] sm:$0xff]
      %v2150 = vld [vmem:[%s5 + $0x18] sm:$0xff]
      %v2151 = vld [vmem:[%s5 + $0x20] sm:$0xff]
      %v2152 = vld [vmem:[%s5 + $0x28] sm:$0xff]
      %v2153 = vld [vmem:[%s5 + $0x30] sm:$0xff]
      %v2154 = vld [vmem:[%s5 + $0x38] sm:$0xff]
      %v2155 = vld [vmem:[%s5 + $0x40] sm:$0xff]
      %v2156 = vld [vmem:[%s5 + $0x48] sm:$0xff]
      %v2157 = vld [vmem:[%s5 + $0x50] sm:$0xff]
      %v2158 = vld [vmem:[%s5 + $0x58] sm:$0xff]
      %v2159 = vld [vmem:[%s5 + $0x60] sm:$0xff]
      %v2160 = vld [vmem:[%s5 + $0x68] sm:$0xff]
      %v2161 = vld [vmem:[%s5 + $0x70] sm:$0xff]
      %v2162 = vld [vmem:[%s5 + $0x78] sm:$0xff]
      %v2163 = vld [vmem:[%s5 + $0x80] sm:$0xff]
      %v2164 = vld [vmem:[%s5 + $0x88] sm:$0xff]
      %v2165 = vld [vmem:[%s5 + $0x90] sm:$0xff]
      %v2166 = vld [vmem:[%s5 + $0x98] sm:$0xff]
      %v2167 = vld [vmem:[%s5 + $0xa0] sm:$0xff]
      %v2168 = vld [vmem:[%s5 + $0xa8] sm:$0xff]
      %v2169 = vld [vmem:[%s5 + $0xb0] sm:$0xff]
      %v2170 = vld [vmem:[%s5 + $0xb8] sm:$0xff]
      %v2171 = vld [vmem:[%s5 + $0xc0] sm:$0xff]
      %v2172 = vld [vmem:[%s5 + $0xc8] sm:$0xff]
      %v2173 = vld [vmem:[%s5 + $0xd0] sm:$0xff]
      %v2174 = vld [vmem:[%s5 + $0xd8] sm:$0xff]
      %v2175 = vld [vmem:[%s5 + $0xe0] sm:$0xff]
      %v2176 = vld [vmem:[%s5 + $0xe8] sm:$0xff]
      %v2177 = vld [vmem:[%s5 + $0xf0] sm:$0xff]
      %v2178 = vld [vmem:[%s5 + $0xf8] sm:$0xff]
      %v2179 = vld [vmem:[%s5 + $0x100] sm:$0xff]
      %v2180 = vld [vmem:[%s5 + $0x108] sm:$0xff]
      %v2181 = vld [vmem:[%s5 + $0x110] sm:$0xff]
      %v2182 = vld [vmem:[%s5 + $0x118] sm:$0xff]
      %v2183 = vld [vmem:[%s5 + $0x120] sm:$0xff]
      %v2184 = vld [vmem:[%s5 + $0x128] sm:$0xff]
      %v2185 = vld [vmem:[%s5 + $0x130] sm:$0xff]
      %v2186 = vld [vmem:[%s5 + $0x138] sm:$0xff]
      %v2187 = vld [vmem:[%s5 + $0x140] sm:$0xff]
      %v2188 = vld [vmem:[%s5 + $0x148] sm:$0xff]
      %v2189 = vld [vmem:[%s5 + $0x150] sm:$0xff]
      %v2190 = vld [vmem:[%s5 + $0x158] sm:$0xff]
      %v2191 = vld [vmem:[%s5 + $0x160] sm:$0xff]
      %v2192 = vld [vmem:[%s5 + $0x168] sm:$0xff]
      %v2193 = vld [vmem:[%s5 + $0x170] sm:$0xff]
      %v2194 = vld [vmem:[%s5 + $0x178] sm:$0xff]
      %v2195 = vld [vmem:[%s5 + $0x180] sm:$0xff]
      %v2196 = vld [vmem:[%s5 + $0x188] sm:$0xff]
      %v2197 = vld [vmem:[%s5 + $0x190] sm:$0xff]
      %v2198 = vld [vmem:[%s5 + $0x198] sm:$0xff]
      %v2199 = vld [vmem:[%s5 + $0x1a0] sm:$0xff]
      %v2200 = vld [vmem:[%s5 + $0x1a8] sm:$0xff]
      %v2201 = vld [vmem:[%s5 + $0x1b0] sm:$0xff]
      %v2202 = vld [vmem:[%s5 + $0x1b8] sm:$0xff]
      %v2203 = vld [vmem:[%s5 + $0x1c0] sm:$0xff]
      %v2204 = vld [vmem:[%s5 + $0x1c8] sm:$0xff]
      %v2205 = vld [vmem:[%s5 + $0x1d0] sm:$0xff]
      %v2206 = vld [vmem:[%s5 + $0x1d8] sm:$0xff]
      %v2207 = vld [vmem:[%s5 + $0x1e0] sm:$0xff]
      %v2208 = vld [vmem:[%s5 + $0x1e8] sm:$0xff]
      %v2209 = vld [vmem:[%s5 + $0x1f0] sm:$0xff]
      %v2210 = vld [vmem:[%s5 + $0x1f8] sm:$0xff]
      %v2211 = vld [vmem:[%s8] sm:$0xf]
      %v2213 = vlaneseq
      %v2214 = vshrl.u32 %v2213, 7
      %v2215 = vsub.s32 0, %v2214
      %v2216 = vrot.slane %v2211, %v2215
      %v2217 = vlaneseq
      %v2218 = vshrl.u32 %v2217, 7
      %v2219 = vsub.s32 1, %v2218
      %v2220 = vrot.slane %v2211, %v2219
      %v2221 = vlaneseq
      %v2222 = vshrl.u32 %v2221, 7
      %v2223 = vsub.s32 2, %v2222
      %v2224 = vrot.slane %v2211, %v2223
      %v2225 = vlaneseq
      %v2226 = vshrl.u32 %v2225, 7
      %v2227 = vsub.s32 3, %v2226
      %v2228 = vrot.slane %v2211, %v2227
      %v2297 = vunpack.c.l.b16 %v2147
      %v2298 = vunpack.c.h.b16 %v2147
      %v2299 = vunpack.c.l.b16 %v2148
      %v2300 = vunpack.c.h.b16 %v2148
      %v2301 = vunpack.c.l.b16 %v2149
      %v2302 = vunpack.c.h.b16 %v2149
      %v2303 = vunpack.c.l.b16 %v2150
      %v2304 = vunpack.c.h.b16 %v2150
      %v2305 = vunpack.c.l.b16 %v2151
      %v2306 = vunpack.c.h.b16 %v2151
      %v2307 = vunpack.c.l.b16 %v2152
      %v2308 = vunpack.c.h.b16 %v2152
      %v2309 = vunpack.c.l.b16 %v2153
      %v2310 = vunpack.c.h.b16 %v2153
      %v2311 = vunpack.c.l.b16 %v2154
      %v2312 = vunpack.c.h.b16 %v2154
      %v2313 = vunpack.c.l.b16 %v2155
      %v2314 = vunpack.c.h.b16 %v2155
      %v2315 = vunpack.c.l.b16 %v2156
      %v2316 = vunpack.c.h.b16 %v2156
      %v2317 = vunpack.c.l.b16 %v2157
      %v2318 = vunpack.c.h.b16 %v2157
      %v2319 = vunpack.c.l.b16 %v2158
      %v2320 = vunpack.c.h.b16 %v2158
      %v2321 = vunpack.c.l.b16 %v2159
      %v2322 = vunpack.c.h.b16 %v2159
      %v2323 = vunpack.c.l.b16 %v2160
      %v2324 = vunpack.c.h.b16 %v2160
      %v2325 = vunpack.c.l.b16 %v2161
      %v2326 = vunpack.c.h.b16 %v2161
      %v2327 = vunpack.c.l.b16 %v2162
      %v2328 = vunpack.c.h.b16 %v2162
      %v2329 = vunpack.c.l.b16 %v2163
      %v2330 = vunpack.c.h.b16 %v2163
      %v2331 = vunpack.c.l.b16 %v2164
      %v2332 = vunpack.c.h.b16 %v2164
      %v2333 = vunpack.c.l.b16 %v2165
      %v2334 = vunpack.c.h.b16 %v2165
      %v2335 = vunpack.c.l.b16 %v2166
      %v2336 = vunpack.c.h.b16 %v2166
      %v2337 = vunpack.c.l.b16 %v2167
      %v2338 = vunpack.c.h.b16 %v2167
      %v2339 = vunpack.c.l.b16 %v2168
      %v2340 = vunpack.c.h.b16 %v2168
      %v2341 = vunpack.c.l.b16 %v2169
      %v2342 = vunpack.c.h.b16 %v2169
      %v2343 = vunpack.c.l.b16 %v2170
      %v2344 = vunpack.c.h.b16 %v2170
      %v2345 = vunpack.c.l.b16 %v2171
      %v2346 = vunpack.c.h.b16 %v2171
      %v2347 = vunpack.c.l.b16 %v2172
      %v2348 = vunpack.c.h.b16 %v2172
      %v2349 = vunpack.c.l.b16 %v2173
      %v2350 = vunpack.c.h.b16 %v2173
      %v2351 = vunpack.c.l.b16 %v2174
      %v2352 = vunpack.c.h.b16 %v2174
      %v2353 = vunpack.c.l.b16 %v2175
      %v2354 = vunpack.c.h.b16 %v2175
      %v2355 = vunpack.c.l.b16 %v2176
      %v2356 = vunpack.c.h.b16 %v2176
      %v2357 = vunpack.c.l.b16 %v2177
      %v2358 = vunpack.c.h.b16 %v2177
      %v2359 = vunpack.c.l.b16 %v2178
      %v2360 = vunpack.c.h.b16 %v2178
      %v2361 = vunpack.c.l.b16 %v2179
      %v2362 = vunpack.c.h.b16 %v2179
      %v2363 = vunpack.c.l.b16 %v2180
      %v2364 = vunpack.c.h.b16 %v2180
      %v2365 = vunpack.c.l.b16 %v2181
      %v2366 = vunpack.c.h.b16 %v2181
      %v2367 = vunpack.c.l.b16 %v2182
      %v2368 = vunpack.c.h.b16 %v2182
      %v2369 = vunpack.c.l.b16 %v2183
      %v2370 = vunpack.c.h.b16 %v2183
      %v2371 = vunpack.c.l.b16 %v2184
      %v2372 = vunpack.c.h.b16 %v2184
      %v2373 = vunpack.c.l.b16 %v2185
      %v2374 = vunpack.c.h.b16 %v2185
      %v2375 = vunpack.c.l.b16 %v2186
      %v2376 = vunpack.c.h.b16 %v2186
      %v2377 = vunpack.c.l.b16 %v2187
      %v2378 = vunpack.c.h.b16 %v2187
      %v2379 = vunpack.c.l.b16 %v2188
      %v2380 = vunpack.c.h.b16 %v2188
      %v2381 = vunpack.c.l.b16 %v2189
      %v2382 = vunpack.c.h.b16 %v2189
      %v2383 = vunpack.c.l.b16 %v2190
      %v2384 = vunpack.c.h.b16 %v2190
      %v2385 = vunpack.c.l.b16 %v2191
      %v2386 = vunpack.c.h.b16 %v2191
      %v2387 = vunpack.c.l.b16 %v2192
      %v2388 = vunpack.c.h.b16 %v2192
      %v2389 = vunpack.c.l.b16 %v2193
      %v2390 = vunpack.c.h.b16 %v2193
      %v2391 = vunpack.c.l.b16 %v2194
      %v2392 = vunpack.c.h.b16 %v2194
      %v2393 = vunpack.c.l.b16 %v2195
      %v2394 = vunpack.c.h.b16 %v2195
      %v2395 = vunpack.c.l.b16 %v2196
      %v2396 = vunpack.c.h.b16 %v2196
      %v2397 = vunpack.c.l.b16 %v2197
      %v2398 = vunpack.c.h.b16 %v2197
      %v2399 = vunpack.c.l.b16 %v2198
      %v2400 = vunpack.c.h.b16 %v2198
      %v2401 = vunpack.c.l.b16 %v2199
      %v2402 = vunpack.c.h.b16 %v2199
      %v2403 = vunpack.c.l.b16 %v2200
      %v2404 = vunpack.c.h.b16 %v2200
      %v2405 = vunpack.c.l.b16 %v2201
      %v2406 = vunpack.c.h.b16 %v2201
      %v2407 = vunpack.c.l.b16 %v2202
      %v2408 = vunpack.c.h.b16 %v2202
      %v2409 = vunpack.c.l.b16 %v2203
      %v2410 = vunpack.c.h.b16 %v2203
      %v2411 = vunpack.c.l.b16 %v2204
      %v2412 = vunpack.c.h.b16 %v2204
      %v2413 = vunpack.c.l.b16 %v2205
      %v2414 = vunpack.c.h.b16 %v2205
      %v2415 = vunpack.c.l.b16 %v2206
      %v2416 = vunpack.c.h.b16 %v2206
      %v2417 = vunpack.c.l.b16 %v2207
      %v2418 = vunpack.c.h.b16 %v2207
      %v2419 = vunpack.c.l.b16 %v2208
      %v2420 = vunpack.c.h.b16 %v2208
      %v2421 = vunpack.c.l.b16 %v2209
      %v2422 = vunpack.c.h.b16 %v2209
      %v2423 = vunpack.c.l.b16 %v2210
      %v2424 = vunpack.c.h.b16 %v2210
      %v2425 = vpack.c.b16 %v2301, %v2297
      %v2426 = vpack.c.b16 %v2302, %v2298
      %v2427 = vpack.c.b16 %v2303, %v2299
      %v2428 = vpack.c.b16 %v2304, %v2300
      %v2429 = vpack.c.b16 %v2309, %v2305
      %v2430 = vpack.c.b16 %v2310, %v2306
      %v2431 = vpack.c.b16 %v2311, %v2307
      %v2432 = vpack.c.b16 %v2312, %v2308
      %v2433 = vpack.c.b16 %v2317, %v2313
      %v2434 = vpack.c.b16 %v2318, %v2314
      %v2435 = vpack.c.b16 %v2319, %v2315
      %v2436 = vpack.c.b16 %v2320, %v2316
      %v2437 = vpack.c.b16 %v2325, %v2321
      %v2438 = vpack.c.b16 %v2326, %v2322
      %v2439 = vpack.c.b16 %v2327, %v2323
      %v2440 = vpack.c.b16 %v2328, %v2324
      %v2441 = vpack.c.b16 %v2333, %v2329
      %v2442 = vpack.c.b16 %v2334, %v2330
      %v2443 = vpack.c.b16 %v2335, %v2331
      %v2444 = vpack.c.b16 %v2336, %v2332
      %v2445 = vpack.c.b16 %v2341, %v2337
      %v2446 = vpack.c.b16 %v2342, %v2338
      %v2447 = vpack.c.b16 %v2343, %v2339
      %v2448 = vpack.c.b16 %v2344, %v2340
      %v2449 = vpack.c.b16 %v2349, %v2345
      %v2450 = vpack.c.b16 %v2350, %v2346
      %v2451 = vpack.c.b16 %v2351, %v2347
      %v2452 = vpack.c.b16 %v2352, %v2348
      %v2453 = vpack.c.b16 %v2357, %v2353
      %v2454 = vpack.c.b16 %v2358, %v2354
      %v2455 = vpack.c.b16 %v2359, %v2355
      %v2456 = vpack.c.b16 %v2360, %v2356
      %v2457 = vpack.c.b16 %v2365, %v2361
      %v2458 = vpack.c.b16 %v2366, %v2362
      %v2459 = vpack.c.b16 %v2367, %v2363
      %v2460 = vpack.c.b16 %v2368, %v2364
      %v2461 = vpack.c.b16 %v2373, %v2369
      %v2462 = vpack.c.b16 %v2374, %v2370
      %v2463 = vpack.c.b16 %v2375, %v2371
      %v2464 = vpack.c.b16 %v2376, %v2372
      %v2465 = vpack.c.b16 %v2381, %v2377
      %v2466 = vpack.c.b16 %v2382, %v2378
      %v2467 = vpack.c.b16 %v2383, %v2379
      %v2468 = vpack.c.b16 %v2384, %v2380
      %v2469 = vpack.c.b16 %v2389, %v2385
      %v2470 = vpack.c.b16 %v2390, %v2386
      %v2471 = vpack.c.b16 %v2391, %v2387
      %v2472 = vpack.c.b16 %v2392, %v2388
      %v2473 = vpack.c.b16 %v2397, %v2393
      %v2474 = vpack.c.b16 %v2398, %v2394
      %v2475 = vpack.c.b16 %v2399, %v2395
      %v2476 = vpack.c.b16 %v2400, %v2396
      %v2477 = vpack.c.b16 %v2405, %v2401
      %v2478 = vpack.c.b16 %v2406, %v2402
      %v2479 = vpack.c.b16 %v2407, %v2403
      %v2480 = vpack.c.b16 %v2408, %v2404
      %v2481 = vpack.c.b16 %v2413, %v2409
      %v2482 = vpack.c.b16 %v2414, %v2410
      %v2483 = vpack.c.b16 %v2415, %v2411
      %v2484 = vpack.c.b16 %v2416, %v2412
      %v2485 = vpack.c.b16 %v2421, %v2417
      %v2486 = vpack.c.b16 %v2422, %v2418
      %v2487 = vpack.c.b16 %v2423, %v2419
      %v2488 = vpack.c.b16 %v2424, %v2420
      %2553 = vmatprep.subr.bf16.mxu0 %v2426
      %2554 = vmatpush1.bf16.msra.mxu0 %v2425
      %2555 = vmatprep.subr.bf16.mxu0 %v2430
      %2556 = vmatpush1.bf16.msra.mxu0 %v2429
      %2557 = vmatprep.subr.bf16.mxu0 %v2434
      %2558 = vmatpush1.bf16.msra.mxu0 %v2433
      %2559 = vmatprep.subr.bf16.mxu0 %v2438
      %2560 = vmatpush1.bf16.msra.mxu0 %v2437
      %2561 = vmatprep.subr.bf16.mxu0 %v2442
      %2562 = vmatpush1.bf16.msra.mxu0 %v2441
      %2563 = vmatprep.subr.bf16.mxu0 %v2446
      %2564 = vmatpush1.bf16.msra.mxu0 %v2445
      %2565 = vmatprep.subr.bf16.mxu0 %v2450
      %2566 = vmatpush1.bf16.msra.mxu0 %v2449
      %2567 = vmatprep.subr.bf16.mxu0 %v2454
      %2568 = vmatpush1.bf16.msra.mxu0 %v2453
      %2569 = vmatprep.subr.bf16.mxu0 %v2458
      %2570 = vmatpush1.bf16.msra.mxu0 %v2457
      %2571 = vmatprep.subr.bf16.mxu0 %v2462
      %2572 = vmatpush1.bf16.msra.mxu0 %v2461
      %2573 = vmatprep.subr.bf16.mxu0 %v2466
      %2574 = vmatpush1.bf16.msra.mxu0 %v2465
      %2575 = vmatprep.subr.bf16.mxu0 %v2470
      %2576 = vmatpush1.bf16.msra.mxu0 %v2469
      %2577 = vmatprep.subr.bf16.mxu0 %v2474
      %2578 = vmatpush1.bf16.msra.mxu0 %v2473
      %2579 = vmatprep.subr.bf16.mxu0 %v2478
      %2580 = vmatpush1.bf16.msra.mxu0 %v2477
      %2581 = vmatprep.subr.bf16.mxu0 %v2482
      %2582 = vmatpush1.bf16.msra.mxu0 %v2481
      %2583 = vmatprep.subr.bf16.mxu0 %v2486
      %2584 = vmatpush1.bf16.msra.mxu0 %v2485
      %2585 = vmatprep.mubr.bf16.mxu0 %v2146
      %2586 = vmatmul.mubr.bf16.gmra.mrb[0].mxu0 %v2145
      %v2587 = vpop.f32.mrb[0].mxu0
      %v2588 = vadd.f32 %v2216, %v2587
      %v2589 = vpop.f32.mrb[0].mxu0
      %v2590 = vadd.f32 %v2220, %v2589
      %v2591 = vpop.f32.mrb[0].mxu0
      %v2592 = vpop.f32.mrb[0].mxu0
      %2593 = vdwg.mxu0
      %2594 = vmatprep.subr.bf16.mxu0 %v2428
      %2595 = vmatpush1.bf16.msra.mxu0 %v2427
      %2596 = vmatprep.subr.bf16.mxu0 %v2432
      %2597 = vmatpush1.bf16.msra.mxu0 %v2431
      %2598 = vmatprep.subr.bf16.mxu0 %v2436
      %2599 = vmatpush1.bf16.msra.mxu0 %v2435
      %2600 = vmatprep.subr.bf16.mxu0 %v2440
      %2601 = vmatpush1.bf16.msra.mxu0 %v2439
      %2602 = vmatprep.subr.bf16.mxu0 %v2444
      %2603 = vmatpush1.bf16.msra.mxu0 %v2443
      %2604 = vmatprep.subr.bf16.mxu0 %v2448
      %2605 = vmatpush1.bf16.msra.mxu0 %v2447
      %2606 = vmatprep.subr.bf16.mxu0 %v2452
      %2607 = vmatpush1.bf16.msra.mxu0 %v2451
      %2608 = vmatprep.subr.bf16.mxu0 %v2456
      %2609 = vmatpush1.bf16.msra.mxu0 %v2455
      %2610 = vmatprep.subr.bf16.mxu0 %v2460
      %2611 = vmatpush1.bf16.msra.mxu0 %v2459
      %2612 = vmatprep.subr.bf16.mxu0 %v2464
      %2613 = vmatpush1.bf16.msra.mxu0 %v2463
      %2614 = vmatprep.subr.bf16.mxu0 %v2468
      %2615 = vmatpush1.bf16.msra.mxu0 %v2467
      %2616 = vmatprep.subr.bf16.mxu0 %v2472
      %2617 = vmatpush1.bf16.msra.mxu0 %v2471
      %2618 = vmatprep.subr.bf16.mxu0 %v2476
      %2619 = vmatpush1.bf16.msra.mxu0 %v2475
      %2620 = vmatprep.subr.bf16.mxu0 %v2480
      %2621 = vmatpush1.bf16.msra.mxu0 %v2479
      %2622 = vmatprep.subr.bf16.mxu0 %v2484
      %2623 = vmatpush1.bf16.msra.mxu0 %v2483
      %2624 = vmatprep.subr.bf16.mxu0 %v2488
      %2625 = vmatpush1.bf16.msra.mxu0 %v2487
      %2626 = vmatprep.mubr.bf16.mxu0 %v2146
      %2627 = vmatmul.mubr.bf16.gmra.mrb[0].mxu0 %v2145
      %v2628 = vpop.f32.mrb[0].mxu0
      %v2629 = vadd.f32 %v2224, %v2628
      %v2630 = vpop.f32.mrb[0].mxu0
      %v2631 = vadd.f32 %v2228, %v2630
      %v2632 = vpop.f32.mrb[0].mxu0
      %v2633 = vpop.f32.mrb[0].mxu0
      %2634 = vdwg.mxu0
      %v2635 = vmul.f32 %v2588, 0.5
      %v2636 = vmul.f32 %v2590, 0.5
      %v2637 = vmul.f32 %v2629, 0.5
      %v2638 = vmul.f32 %v2631, 0.5
      %v2639 = vmul.f32 %v2588, 0.70710677
      %v2640 = vmul.f32 %v2590, 0.70710677
      %v2641 = vmul.f32 %v2629, 0.70710677
      %v2642 = vmul.f32 %v2631, 0.70710677
      %v2643 = vand.u32 2147483647, %v2639
      %v2644 = vand.u32 2147483647, %v2640
      %v2645 = vand.u32 2147483647, %v2641
      %v2646 = vand.u32 2147483647, %v2642
      %v2647 = vmul.f32 %v2643, 0.3275911
      %v2648 = vmul.f32 %v2644, 0.3275911
      %v2649 = vmul.f32 %v2645, 0.3275911
      %v2650 = vmul.f32 %v2646, 0.3275911
      %v2651 = vadd.f32 %v2647, 1.0
      %v2652 = vadd.f32 %v2648, 1.0
      %v2653 = vadd.f32 %v2649, 1.0
      %v2654 = vadd.f32 %v2650, 1.0
      %v2655 = vrcp.pop %v2651
      %v2656 = vmul.f32 1.0, %v2655
      %v2657 = vrcp.pop %v2652
      %v2658 = vmul.f32 1.0, %v2657
      %v2659 = vrcp.pop %v2653
      %v2660 = vmul.f32 1.0, %v2659
      %v2661 = vrcp.pop %v2654
      %v2662 = vmul.f32 1.0, %v2661
      %v2663 = vmul.f32 %v2656, 1.0614054
      %v2664 = vmul.f32 %v2658, 1.0614054
      %v2665 = vmul.f32 %v2660, 1.0614054
      %v2666 = vmul.f32 %v2662, 1.0614054
      %v2667 = vadd.f32 %v2663, -1.4531521
      %v2668 = vadd.f32 %v2664, -1.4531521
      %v2669 = vadd.f32 %v2665, -1.4531521
      %v2670 = vadd.f32 %v2666, -1.4531521
      %v2671 = vmul.f32 %v2667, %v2656
      %v2672 = vmul.f32 %v2668, %v2658
      %v2673 = vmul.f32 %v2669, %v2660
      %v2674 = vmul.f32 %v2670, %v2662
      %v2675 = vadd.f32 %v2671, 1.4214138
      %v2676 = vadd.f32 %v2672, 1.4214138
      %v2677 = vadd.f32 %v2673, 1.4214138
      %v2678 = vadd.f32 %v2674, 1.4214138
      %v2679 = vmul.f32 %v2675, %v2656
      %v2680 = vmul.f32 %v2676, %v2658
      %v2681 = vmul.f32 %v2677, %v2660
      %v2682 = vmul.f32 %v2678, %v2662
      %v2683 = vadd.f32 %v2679, -0.28449672
      %v2684 = vadd.f32 %v2680, -0.28449672
      %v2685 = vadd.f32 %v2681, -0.28449672
      %v2686 = vadd.f32 %v2682, -0.28449672
      %v2687 = vmul.f32 %v2683, %v2656
      %v2688 = vmul.f32 %v2684, %v2658
      %v2689 = vmul.f32 %v2685, %v2660
      %v2690 = vmul.f32 %v2686, %v2662
      %v2691 = vadd.f32 %v2687, 0.2548296
      %v2692 = vadd.f32 %v2688, 0.2548296
      %v2693 = vadd.f32 %v2689, 0.2548296
      %v2694 = vadd.f32 %v2690, 0.2548296
      %v2695 = vmul.f32 %v2691, %v2656
      %v2696 = vmul.f32 %v2692, %v2658
      %v2697 = vmul.f32 %v2693, %v2660
      %v2698 = vmul.f32 %v2694, %v2662
      %v2699 = vsub.f32 0.0, %v2643
      %v2700 = vsub.f32 0.0, %v2644
      %v2701 = vsub.f32 0.0, %v2645
      %v2702 = vsub.f32 0.0, %v2646
      %v2703 = vmul.f32 %v2699, %v2643
      %v2704 = vmul.f32 %v2700, %v2644
      %v2705 = vmul.f32 %v2701, %v2645
      %v2706 = vmul.f32 %v2702, %v2646
      %v2707 = vmul.f32 %v2703, 1.442695
      %v2708 = vpow.pop %v2707
      %v2709 = vmul.f32 %v2704, 1.442695
      %v2710 = vpow.pop %v2709
      %v2711 = vmul.f32 %v2705, 1.442695
      %v2712 = vpow.pop %v2711
      %v2713 = vmul.f32 %v2706, 1.442695
      %v2714 = vpow.pop %v2713
      %v2715 = vmul.f32 %v2695, %v2708
      %v2716 = vmul.f32 %v2696, %v2710
      %v2717 = vmul.f32 %v2697, %v2712
      %v2718 = vmul.f32 %v2698, %v2714
      %v2719 = vsub.f32 1.0, %v2715
      %v2720 = vsub.f32 1.0, %v2716
      %v2721 = vsub.f32 1.0, %v2717
      %v2722 = vsub.f32 1.0, %v2718
      %vm2723 = vcmp.ge.f32.partialorder %v2639, 0.0
      %vm2724 = vcmp.ge.f32.partialorder %v2640, 0.0
      %vm2725 = vcmp.ge.f32.partialorder %v2641, 0.0
      %vm2726 = vcmp.ge.f32.partialorder %v2642, 0.0
      %v2727 = vsub.f32 0.0, %v2719
      %v2728 = vsub.f32 0.0, %v2720
      %v2729 = vsub.f32 0.0, %v2721
      %v2730 = vsub.f32 0.0, %v2722
      %v2731 = vsel %vm2723, %v2719, %v2727
      %v2732 = vsel %vm2724, %v2720, %v2728
      %v2733 = vsel %vm2725, %v2721, %v2729
      %v2734 = vsel %vm2726, %v2722, %v2730
      %v2735 = vadd.f32 %v2731, 1.0
      %v2736 = vadd.f32 %v2732, 1.0
      %v2737 = vadd.f32 %v2733, 1.0
      %v2738 = vadd.f32 %v2734, 1.0
      %v2739 = vmul.f32 %v2635, %v2735
      %v2740 = vmul.f32 %v2636, %v2736
      %v2741 = vmul.f32 %v2637, %v2737
      %v2742 = vmul.f32 %v2638, %v2738
      %v2743 = vpack.c.bf16 %v2739, %v2739
      %v2744 = vpack.c.bf16 %v2740, %v2740
      %v2745 = vpack.c.bf16 %v2741, %v2741
      %v2746 = vpack.c.bf16 %v2742, %v2742
      %v2747 = vld [vmem:[%s6] sm:$0xff]
      %v2748 = vld [vmem:[%s6 + $0x8] sm:$0xff]
      %v2749 = vld [vmem:[%s6 + $0x10] sm:$0xff]
      %v2750 = vld [vmem:[%s6 + $0x18] sm:$0xff]
      %v2751 = vld [vmem:[%s6 + $0x20] sm:$0xff]
      %v2752 = vld [vmem:[%s6 + $0x28] sm:$0xff]
      %v2753 = vld [vmem:[%s6 + $0x30] sm:$0xff]
      %v2754 = vld [vmem:[%s6 + $0x38] sm:$0xff]
      %v2755 = vld [vmem:[%s6 + $0x40] sm:$0xff]
      %v2756 = vld [vmem:[%s6 + $0x48] sm:$0xff]
      %v2757 = vld [vmem:[%s6 + $0x50] sm:$0xff]
      %v2758 = vld [vmem:[%s6 + $0x58] sm:$0xff]
      %v2759 = vld [vmem:[%s6 + $0x60] sm:$0xff]
      %v2760 = vld [vmem:[%s6 + $0x68] sm:$0xff]
      %v2761 = vld [vmem:[%s6 + $0x70] sm:$0xff]
      %v2762 = vld [vmem:[%s6 + $0x78] sm:$0xff]
      %v2763 = vld [vmem:[%s6 + $0x80] sm:$0xff]
      %v2764 = vld [vmem:[%s6 + $0x88] sm:$0xff]
      %v2765 = vld [vmem:[%s6 + $0x90] sm:$0xff]
      %v2766 = vld [vmem:[%s6 + $0x98] sm:$0xff]
      %v2767 = vld [vmem:[%s6 + $0xa0] sm:$0xff]
      %v2768 = vld [vmem:[%s6 + $0xa8] sm:$0xff]
      %v2769 = vld [vmem:[%s6 + $0xb0] sm:$0xff]
      %v2770 = vld [vmem:[%s6 + $0xb8] sm:$0xff]
      %v2771 = vld [vmem:[%s6 + $0xc0] sm:$0xff]
      %v2772 = vld [vmem:[%s6 + $0xc8] sm:$0xff]
      %v2773 = vld [vmem:[%s6 + $0xd0] sm:$0xff]
      %v2774 = vld [vmem:[%s6 + $0xd8] sm:$0xff]
      %v2775 = vld [vmem:[%s6 + $0xe0] sm:$0xff]
      %v2776 = vld [vmem:[%s6 + $0xe8] sm:$0xff]
      %v2777 = vld [vmem:[%s6 + $0xf0] sm:$0xff]
      %v2778 = vld [vmem:[%s6 + $0xf8] sm:$0xff]
      %v2779 = vld [vmem:[%s6 + $0x100] sm:$0xff]
      %v2780 = vld [vmem:[%s6 + $0x108] sm:$0xff]
      %v2781 = vld [vmem:[%s6 + $0x110] sm:$0xff]
      %v2782 = vld [vmem:[%s6 + $0x118] sm:$0xff]
      %v2783 = vld [vmem:[%s6 + $0x120] sm:$0xff]
      %v2784 = vld [vmem:[%s6 + $0x128] sm:$0xff]
      %v2785 = vld [vmem:[%s6 + $0x130] sm:$0xff]
      %v2786 = vld [vmem:[%s6 + $0x138] sm:$0xff]
      %v2787 = vld [vmem:[%s6 + $0x140] sm:$0xff]
      %v2788 = vld [vmem:[%s6 + $0x148] sm:$0xff]
      %v2789 = vld [vmem:[%s6 + $0x150] sm:$0xff]
      %v2790 = vld [vmem:[%s6 + $0x158] sm:$0xff]
      %v2791 = vld [vmem:[%s6 + $0x160] sm:$0xff]
      %v2792 = vld [vmem:[%s6 + $0x168] sm:$0xff]
      %v2793 = vld [vmem:[%s6 + $0x170] sm:$0xff]
      %v2794 = vld [vmem:[%s6 + $0x178] sm:$0xff]
      %v2795 = vld [vmem:[%s6 + $0x180] sm:$0xff]
      %v2796 = vld [vmem:[%s6 + $0x188] sm:$0xff]
      %v2797 = vld [vmem:[%s6 + $0x190] sm:$0xff]
      %v2798 = vld [vmem:[%s6 + $0x198] sm:$0xff]
      %v2799 = vld [vmem:[%s6 + $0x1a0] sm:$0xff]
      %v2800 = vld [vmem:[%s6 + $0x1a8] sm:$0xff]
      %v2801 = vld [vmem:[%s6 + $0x1b0] sm:$0xff]
      %v2802 = vld [vmem:[%s6 + $0x1b8] sm:$0xff]
      %v2803 = vld [vmem:[%s6 + $0x1c0] sm:$0xff]
      %v2804 = vld [vmem:[%s6 + $0x1c8] sm:$0xff]
      %v2805 = vld [vmem:[%s6 + $0x1d0] sm:$0xff]
      %v2806 = vld [vmem:[%s6 + $0x1d8] sm:$0xff]
      %v2807 = vld [vmem:[%s6 + $0x1e0] sm:$0xff]
      %v2808 = vld [vmem:[%s6 + $0x1e8] sm:$0xff]
      %v2809 = vld [vmem:[%s6 + $0x1f0] sm:$0xff]
      %v2810 = vld [vmem:[%s6 + $0x1f8] sm:$0xff]
      %v2811 = vlaneseq
      %v2812 = vshrl.u32 %v2811, 7
      %v2813 = vsub.s32 5, %v2812
      %v2814 = vrot.slane %v631, %v2813
      %v2815 = vlaneseq
      %v2816 = vshrl.u32 %v2815, 7
      %v2817 = vsub.s32 5, %v2816
      %v2818 = vrot.slane %v632, %v2817
      %v2883 = vunpack.c.l.b16 %v2747
      %v2884 = vunpack.c.h.b16 %v2747
      %v2885 = vunpack.c.l.b16 %v2748
      %v2886 = vunpack.c.h.b16 %v2748
      %v2887 = vunpack.c.l.b16 %v2749
      %v2888 = vunpack.c.h.b16 %v2749
      %v2889 = vunpack.c.l.b16 %v2750
      %v2890 = vunpack.c.h.b16 %v2750
      %v2891 = vunpack.c.l.b16 %v2751
      %v2892 = vunpack.c.h.b16 %v2751
      %v2893 = vunpack.c.l.b16 %v2752
      %v2894 = vunpack.c.h.b16 %v2752
      %v2895 = vunpack.c.l.b16 %v2753
      %v2896 = vunpack.c.h.b16 %v2753
      %v2897 = vunpack.c.l.b16 %v2754
      %v2898 = vunpack.c.h.b16 %v2754
      %v2899 = vunpack.c.l.b16 %v2755
      %v2900 = vunpack.c.h.b16 %v2755
      %v2901 = vunpack.c.l.b16 %v2756
      %v2902 = vunpack.c.h.b16 %v2756
      %v2903 = vunpack.c.l.b16 %v2757
      %v2904 = vunpack.c.h.b16 %v2757
      %v2905 = vunpack.c.l.b16 %v2758
      %v2906 = vunpack.c.h.b16 %v2758
      %v2907 = vunpack.c.l.b16 %v2759
      %v2908 = vunpack.c.h.b16 %v2759
      %v2909 = vunpack.c.l.b16 %v2760
      %v2910 = vunpack.c.h.b16 %v2760
      %v2911 = vunpack.c.l.b16 %v2761
      %v2912 = vunpack.c.h.b16 %v2761
      %v2913 = vunpack.c.l.b16 %v2762
      %v2914 = vunpack.c.h.b16 %v2762
      %v2915 = vunpack.c.l.b16 %v2763
      %v2916 = vunpack.c.h.b16 %v2763
      %v2917 = vunpack.c.l.b16 %v2764
      %v2918 = vunpack.c.h.b16 %v2764
      %v2919 = vunpack.c.l.b16 %v2765
      %v2920 = vunpack.c.h.b16 %v2765
      %v2921 = vunpack.c.l.b16 %v2766
      %v2922 = vunpack.c.h.b16 %v2766
      %v2923 = vunpack.c.l.b16 %v2767
      %v2924 = vunpack.c.h.b16 %v2767
      %v2925 = vunpack.c.l.b16 %v2768
      %v2926 = vunpack.c.h.b16 %v2768
      %v2927 = vunpack.c.l.b16 %v2769
      %v2928 = vunpack.c.h.b16 %v2769
      %v2929 = vunpack.c.l.b16 %v2770
      %v2930 = vunpack.c.h.b16 %v2770
      %v2931 = vunpack.c.l.b16 %v2771
      %v2932 = vunpack.c.h.b16 %v2771
      %v2933 = vunpack.c.l.b16 %v2772
      %v2934 = vunpack.c.h.b16 %v2772
      %v2935 = vunpack.c.l.b16 %v2773
      %v2936 = vunpack.c.h.b16 %v2773
      %v2937 = vunpack.c.l.b16 %v2774
      %v2938 = vunpack.c.h.b16 %v2774
      %v2939 = vunpack.c.l.b16 %v2775
      %v2940 = vunpack.c.h.b16 %v2775
      %v2941 = vunpack.c.l.b16 %v2776
      %v2942 = vunpack.c.h.b16 %v2776
      %v2943 = vunpack.c.l.b16 %v2777
      %v2944 = vunpack.c.h.b16 %v2777
      %v2945 = vunpack.c.l.b16 %v2778
      %v2946 = vunpack.c.h.b16 %v2778
      %v2947 = vunpack.c.l.b16 %v2779
      %v2948 = vunpack.c.h.b16 %v2779
      %v2949 = vunpack.c.l.b16 %v2780
      %v2950 = vunpack.c.h.b16 %v2780
      %v2951 = vunpack.c.l.b16 %v2781
      %v2952 = vunpack.c.h.b16 %v2781
      %v2953 = vunpack.c.l.b16 %v2782
      %v2954 = vunpack.c.h.b16 %v2782
      %v2955 = vunpack.c.l.b16 %v2783
      %v2956 = vunpack.c.h.b16 %v2783
      %v2957 = vunpack.c.l.b16 %v2784
      %v2958 = vunpack.c.h.b16 %v2784
      %v2959 = vunpack.c.l.b16 %v2785
      %v2960 = vunpack.c.h.b16 %v2785
      %v2961 = vunpack.c.l.b16 %v2786
      %v2962 = vunpack.c.h.b16 %v2786
      %v2963 = vunpack.c.l.b16 %v2787
      %v2964 = vunpack.c.h.b16 %v2787
      %v2965 = vunpack.c.l.b16 %v2788
      %v2966 = vunpack.c.h.b16 %v2788
      %v2967 = vunpack.c.l.b16 %v2789
      %v2968 = vunpack.c.h.b16 %v2789
      %v2969 = vunpack.c.l.b16 %v2790
      %v2970 = vunpack.c.h.b16 %v2790
      %v2971 = vunpack.c.l.b16 %v2791
      %v2972 = vunpack.c.h.b16 %v2791
      %v2973 = vunpack.c.l.b16 %v2792
      %v2974 = vunpack.c.h.b16 %v2792
      %v2975 = vunpack.c.l.b16 %v2793
      %v2976 = vunpack.c.h.b16 %v2793
      %v2977 = vunpack.c.l.b16 %v2794
      %v2978 = vunpack.c.h.b16 %v2794
      %v2979 = vunpack.c.l.b16 %v2795
      %v2980 = vunpack.c.h.b16 %v2795
      %v2981 = vunpack.c.l.b16 %v2796
      %v2982 = vunpack.c.h.b16 %v2796
      %v2983 = vunpack.c.l.b16 %v2797
      %v2984 = vunpack.c.h.b16 %v2797
      %v2985 = vunpack.c.l.b16 %v2798
      %v2986 = vunpack.c.h.b16 %v2798
      %v2987 = vunpack.c.l.b16 %v2799
      %v2988 = vunpack.c.h.b16 %v2799
      %v2989 = vunpack.c.l.b16 %v2800
      %v2990 = vunpack.c.h.b16 %v2800
      %v2991 = vunpack.c.l.b16 %v2801
      %v2992 = vunpack.c.h.b16 %v2801
      %v2993 = vunpack.c.l.b16 %v2802
      %v2994 = vunpack.c.h.b16 %v2802
      %v2995 = vunpack.c.l.b16 %v2803
      %v2996 = vunpack.c.h.b16 %v2803
      %v2997 = vunpack.c.l.b16 %v2804
      %v2998 = vunpack.c.h.b16 %v2804
      %v2999 = vunpack.c.l.b16 %v2805
      %v3000 = vunpack.c.h.b16 %v2805
      %v3001 = vunpack.c.l.b16 %v2806
      %v3002 = vunpack.c.h.b16 %v2806
      %v3003 = vunpack.c.l.b16 %v2807
      %v3004 = vunpack.c.h.b16 %v2807
      %v3005 = vunpack.c.l.b16 %v2808
      %v3006 = vunpack.c.h.b16 %v2808
      %v3007 = vunpack.c.l.b16 %v2809
      %v3008 = vunpack.c.h.b16 %v2809
      %v3009 = vunpack.c.l.b16 %v2810
      %v3010 = vunpack.c.h.b16 %v2810
      %v3011 = vpack.c.b16 %v2885, %v2883
      %v3012 = vpack.c.b16 %v2886, %v2884
      %v3013 = vpack.c.b16 %v2889, %v2887
      %v3014 = vpack.c.b16 %v2890, %v2888
      %v3015 = vpack.c.b16 %v2893, %v2891
      %v3016 = vpack.c.b16 %v2894, %v2892
      %v3017 = vpack.c.b16 %v2897, %v2895
      %v3018 = vpack.c.b16 %v2898, %v2896
      %v3019 = vpack.c.b16 %v2901, %v2899
      %v3020 = vpack.c.b16 %v2902, %v2900
      %v3021 = vpack.c.b16 %v2905, %v2903
      %v3022 = vpack.c.b16 %v2906, %v2904
      %v3023 = vpack.c.b16 %v2909, %v2907
      %v3024 = vpack.c.b16 %v2910, %v2908
      %v3025 = vpack.c.b16 %v2913, %v2911
      %v3026 = vpack.c.b16 %v2914, %v2912
      %v3027 = vpack.c.b16 %v2917, %v2915
      %v3028 = vpack.c.b16 %v2918, %v2916
      %v3029 = vpack.c.b16 %v2921, %v2919
      %v3030 = vpack.c.b16 %v2922, %v2920
      %v3031 = vpack.c.b16 %v2925, %v2923
      %v3032 = vpack.c.b16 %v2926, %v2924
      %v3033 = vpack.c.b16 %v2929, %v2927
      %v3034 = vpack.c.b16 %v2930, %v2928
      %v3035 = vpack.c.b16 %v2933, %v2931
      %v3036 = vpack.c.b16 %v2934, %v2932
      %v3037 = vpack.c.b16 %v2937, %v2935
      %v3038 = vpack.c.b16 %v2938, %v2936
      %v3039 = vpack.c.b16 %v2941, %v2939
      %v3040 = vpack.c.b16 %v2942, %v2940
      %v3041 = vpack.c.b16 %v2945, %v2943
      %v3042 = vpack.c.b16 %v2946, %v2944
      %v3043 = vpack.c.b16 %v2949, %v2947
      %v3044 = vpack.c.b16 %v2950, %v2948
      %v3045 = vpack.c.b16 %v2953, %v2951
      %v3046 = vpack.c.b16 %v2954, %v2952
      %v3047 = vpack.c.b16 %v2957, %v2955
      %v3048 = vpack.c.b16 %v2958, %v2956
      %v3049 = vpack.c.b16 %v2961, %v2959
      %v3050 = vpack.c.b16 %v2962, %v2960
      %v3051 = vpack.c.b16 %v2965, %v2963
      %v3052 = vpack.c.b16 %v2966, %v2964
      %v3053 = vpack.c.b16 %v2969, %v2967
      %v3054 = vpack.c.b16 %v2970, %v2968
      %v3055 = vpack.c.b16 %v2973, %v2971
      %v3056 = vpack.c.b16 %v2974, %v2972
      %v3057 = vpack.c.b16 %v2977, %v2975
      %v3058 = vpack.c.b16 %v2978, %v2976
      %v3059 = vpack.c.b16 %v2981, %v2979
      %v3060 = vpack.c.b16 %v2982, %v2980
      %v3061 = vpack.c.b16 %v2985, %v2983
      %v3062 = vpack.c.b16 %v2986, %v2984
      %v3063 = vpack.c.b16 %v2989, %v2987
      %v3064 = vpack.c.b16 %v2990, %v2988
      %v3065 = vpack.c.b16 %v2993, %v2991
      %v3066 = vpack.c.b16 %v2994, %v2992
      %v3067 = vpack.c.b16 %v2997, %v2995
      %v3068 = vpack.c.b16 %v2998, %v2996
      %v3069 = vpack.c.b16 %v3001, %v2999
      %v3070 = vpack.c.b16 %v3002, %v3000
      %v3071 = vpack.c.b16 %v3005, %v3003
      %v3072 = vpack.c.b16 %v3006, %v3004
      %v3073 = vpack.c.b16 %v3009, %v3007
      %v3074 = vpack.c.b16 %v3010, %v3008
      %3139 = vmatprep.subr.bf16.mxu0 %v3012
      %3140 = vmatpush1.bf16.msra.mxu0 %v3011
      %3141 = vmatprep.subr.bf16.mxu0 %v3014
      %3142 = vmatpush1.bf16.msra.mxu0 %v3013
      %3143 = vmatprep.subr.bf16.mxu0 %v3016
      %3144 = vmatpush1.bf16.msra.mxu0 %v3015
      %3145 = vmatprep.subr.bf16.mxu0 %v3018
      %3146 = vmatpush1.bf16.msra.mxu0 %v3017
      %3147 = vmatprep.subr.bf16.mxu0 %v3020
      %3148 = vmatpush1.bf16.msra.mxu0 %v3019
      %3149 = vmatprep.subr.bf16.mxu0 %v3022
      %3150 = vmatpush1.bf16.msra.mxu0 %v3021
      %3151 = vmatprep.subr.bf16.mxu0 %v3024
      %3152 = vmatpush1.bf16.msra.mxu0 %v3023
      %3153 = vmatprep.subr.bf16.mxu0 %v3026
      %3154 = vmatpush1.bf16.msra.mxu0 %v3025
      %3155 = vmatprep.subr.bf16.mxu0 %v3028
      %3156 = vmatpush1.bf16.msra.mxu0 %v3027
      %3157 = vmatprep.subr.bf16.mxu0 %v3030
      %3158 = vmatpush1.bf16.msra.mxu0 %v3029
      %3159 = vmatprep.subr.bf16.mxu0 %v3032
      %3160 = vmatpush1.bf16.msra.mxu0 %v3031
      %3161 = vmatprep.subr.bf16.mxu0 %v3034
      %3162 = vmatpush1.bf16.msra.mxu0 %v3033
      %3163 = vmatprep.subr.bf16.mxu0 %v3036
      %3164 = vmatpush1.bf16.msra.mxu0 %v3035
      %3165 = vmatprep.subr.bf16.mxu0 %v3038
      %3166 = vmatpush1.bf16.msra.mxu0 %v3037
      %3167 = vmatprep.subr.bf16.mxu0 %v3040
      %3168 = vmatpush1.bf16.msra.mxu0 %v3039
      %3169 = vmatprep.subr.bf16.mxu0 %v3042
      %3170 = vmatpush1.bf16.msra.mxu0 %v3041
      %3171 = vmatprep.mubr.bf16.mxu0 %v2744
      %3172 = vmatmul.mubr.bf16.gmra.mrb[0].mxu0 %v2743
      %v3173 = vpop.f32.mrb[0].mxu0
      %v3174 = vadd.f32 %v2814, %v3173
      %v3175 = vpop.f32.mrb[0].mxu0
      %v3176 = vadd.f32 %v2818, %v3175
      %v3177 = vpop.f32.mrb[0].mxu0
      %v3178 = vpop.f32.mrb[0].mxu0
      %3179 = vdwg.mxu0
      %3180 = vmatprep.subr.bf16.mxu0 %v3044
      %3181 = vmatpush1.bf16.msra.mxu0 %v3043
      %3182 = vmatprep.subr.bf16.mxu0 %v3046
      %3183 = vmatpush1.bf16.msra.mxu0 %v3045
      %3184 = vmatprep.subr.bf16.mxu0 %v3048
      %3185 = vmatpush1.bf16.msra.mxu0 %v3047
      %3186 = vmatprep.subr.bf16.mxu0 %v3050
      %3187 = vmatpush1.bf16.msra.mxu0 %v3049
      %3188 = vmatprep.subr.bf16.mxu0 %v3052
      %3189 = vmatpush1.bf16.msra.mxu0 %v3051
      %3190 = vmatprep.subr.bf16.mxu0 %v3054
      %3191 = vmatpush1.bf16.msra.mxu0 %v3053
      %3192 = vmatprep.subr.bf16.mxu0 %v3056
      %3193 = vmatpush1.bf16.msra.mxu0 %v3055
      %3194 = vmatprep.subr.bf16.mxu0 %v3058
      %3195 = vmatpush1.bf16.msra.mxu0 %v3057
      %3196 = vmatprep.subr.bf16.mxu0 %v3060
      %3197 = vmatpush1.bf16.msra.mxu0 %v3059
      %3198 = vmatprep.subr.bf16.mxu0 %v3062
      %3199 = vmatpush1.bf16.msra.mxu0 %v3061
      %3200 = vmatprep.subr.bf16.mxu0 %v3064
      %3201 = vmatpush1.bf16.msra.mxu0 %v3063
      %3202 = vmatprep.subr.bf16.mxu0 %v3066
      %3203 = vmatpush1.bf16.msra.mxu0 %v3065
      %3204 = vmatprep.subr.bf16.mxu0 %v3068
      %3205 = vmatpush1.bf16.msra.mxu0 %v3067
      %3206 = vmatprep.subr.bf16.mxu0 %v3070
      %3207 = vmatpush1.bf16.msra.mxu0 %v3069
      %3208 = vmatprep.subr.bf16.mxu0 %v3072
      %3209 = vmatpush1.bf16.msra.mxu0 %v3071
      %3210 = vmatprep.subr.bf16.mxu0 %v3074
      %3211 = vmatpush1.bf16.msra.mxu0 %v3073
      %3212 = vmatprep.mubr.bf16.mxu0 %v2746
      %3213 = vmatmul.mubr.bf16.gmra.mrb[0].mxu0 %v2745
      %v3214 = vpop.f32.mrb[0].mxu0
      %v3215 = vadd.f32 %v3174, %v3214
      %v3216 = vpop.f32.mrb[0].mxu0
      %v3217 = vadd.f32 %v3176, %v3216
      %v3218 = vpop.f32.mrb[0].mxu0
      %v3219 = vpop.f32.mrb[0].mxu0
      %3220 = vdwg.mxu0
      %v3221 = vadd.f32 %v2107, %v3215
      %v3222 = vadd.f32 %v2108, %v3217
      %s3223 = scalar_lea.vmem %s9, 16
      %v3224 = vld [vmem:[%s3223] sm:$0x3f]
      %v3225 = vld [vmem:[%s3223 + $0x8] sm:$0x3f]
      %v3226 = vadd.f32 %v3221, %v3222
      %3227 = vadd.xlane.f32.xlu0 %v3226
      %v3228 = vpop.xlane.xlu0 %3227
      %v3229 = vmul.f32 %v3228, %v636
      %v3230 = vsub.f32 %v3221, %v3229
      %v3231 = vsub.f32 %v3222, %v3229
      %v3232 = vmul.f32 %v3230, %v3230
      %v3233 = vmul.f32 %v3231, %v3231
      %v3234 = vadd.f32 %v3232, %v3233
      %3235 = vadd.xlane.f32.xlu0 %v3234
      %v3236 = vpop.xlane.xlu0 %3235
      %v3237 = vmul.f32 %v3236, %v636
      %v3238 = vadd.f32 %v3237, 1e-05
      %v3239 = vrsqrt.pop %v3238
      %v3240 = vmul.f32 %v3230, %v3239
      %v3241 = vmul.f32 %v3231, %v3239
      %v3242 = vlaneseq
      %v3243 = vshrl.u32 %v3242, 7
      %v3244 = vsub.s32 0, %v3243
      %v3245 = vrot.slane %v3224, %v3244
      %v3246 = vlaneseq
      %v3247 = vshrl.u32 %v3246, 7
      %v3248 = vsub.s32 0, %v3247
      %v3249 = vrot.slane %v3225, %v3248
      %v3250 = vmul.f32 %v3240, %v3245
      %v3251 = vmul.f32 %v3241, %v3249
      %v3252 = vlaneseq
      %v3253 = vshrl.u32 %v3252, 7
      %v3254 = vsub.s32 1, %v3253
      %v3255 = vrot.slane %v3224, %v3254
      %v3256 = vlaneseq
      %v3257 = vshrl.u32 %v3256, 7
      %v3258 = vsub.s32 1, %v3257
      %v3259 = vrot.slane %v3225, %v3258
      %v3260 = vadd.f32 %v3250, %v3255
      %v3261 = vadd.f32 %v3251, %v3259
      %v3262 = vpack.c.bf16 %v3260, %v3260
      %v3263 = vpack.c.bf16 %v3261, %v3261
      %s3264 = scalar_lea.vmem %s3, 768
      %v3265 = vld [vmem:[%s3264] sm:$0xff]
      %v3266 = vld [vmem:[%s3264 + $0x8] sm:$0xff]
      %v3267 = vld [vmem:[%s3264 + $0x10] sm:$0xff]
      %v3268 = vld [vmem:[%s3264 + $0x18] sm:$0xff]
      %v3269 = vld [vmem:[%s3264 + $0x20] sm:$0xff]
      %v3270 = vld [vmem:[%s3264 + $0x28] sm:$0xff]
      %v3271 = vld [vmem:[%s3264 + $0x30] sm:$0xff]
      %v3272 = vld [vmem:[%s3264 + $0x38] sm:$0xff]
      %v3273 = vld [vmem:[%s3264 + $0x40] sm:$0xff]
      %v3274 = vld [vmem:[%s3264 + $0x48] sm:$0xff]
      %v3275 = vld [vmem:[%s3264 + $0x50] sm:$0xff]
      %v3276 = vld [vmem:[%s3264 + $0x58] sm:$0xff]
      %v3277 = vld [vmem:[%s3264 + $0x60] sm:$0xff]
      %v3278 = vld [vmem:[%s3264 + $0x68] sm:$0xff]
      %v3279 = vld [vmem:[%s3264 + $0x70] sm:$0xff]
      %v3280 = vld [vmem:[%s3264 + $0x78] sm:$0xff]
      %v3281 = vld [vmem:[%s3264 + $0x80] sm:$0xff]
      %v3282 = vld [vmem:[%s3264 + $0x88] sm:$0xff]
      %v3283 = vld [vmem:[%s3264 + $0x90] sm:$0xff]
      %v3284 = vld [vmem:[%s3264 + $0x98] sm:$0xff]
      %v3285 = vld [vmem:[%s3264 + $0xa0] sm:$0xff]
      %v3286 = vld [vmem:[%s3264 + $0xa8] sm:$0xff]
      %v3287 = vld [vmem:[%s3264 + $0xb0] sm:$0xff]
      %v3288 = vld [vmem:[%s3264 + $0xb8] sm:$0xff]
      %v3289 = vld [vmem:[%s3264 + $0xc0] sm:$0xff]
      %v3290 = vld [vmem:[%s3264 + $0xc8] sm:$0xff]
      %v3291 = vld [vmem:[%s3264 + $0xd0] sm:$0xff]
      %v3292 = vld [vmem:[%s3264 + $0xd8] sm:$0xff]
      %v3293 = vld [vmem:[%s3264 + $0xe0] sm:$0xff]
      %v3294 = vld [vmem:[%s3264 + $0xe8] sm:$0xff]
      %v3295 = vld [vmem:[%s3264 + $0xf0] sm:$0xff]
      %v3296 = vld [vmem:[%s3264 + $0xf8] sm:$0xff]
      %v3297 = vld [vmem:[%s3264 + $0x100] sm:$0xff]
      %v3298 = vld [vmem:[%s3264 + $0x108] sm:$0xff]
      %v3299 = vld [vmem:[%s3264 + $0x110] sm:$0xff]
      %v3300 = vld [vmem:[%s3264 + $0x118] sm:$0xff]
      %v3301 = vld [vmem:[%s3264 + $0x120] sm:$0xff]
      %v3302 = vld [vmem:[%s3264 + $0x128] sm:$0xff]
      %v3303 = vld [vmem:[%s3264 + $0x130] sm:$0xff]
      %v3304 = vld [vmem:[%s3264 + $0x138] sm:$0xff]
      %v3305 = vld [vmem:[%s3264 + $0x140] sm:$0xff]
      %v3306 = vld [vmem:[%s3264 + $0x148] sm:$0xff]
      %v3307 = vld [vmem:[%s3264 + $0x150] sm:$0xff]
      %v3308 = vld [vmem:[%s3264 + $0x158] sm:$0xff]
      %v3309 = vld [vmem:[%s3264 + $0x160] sm:$0xff]
      %v3310 = vld [vmem:[%s3264 + $0x168] sm:$0xff]
      %v3311 = vld [vmem:[%s3264 + $0x170] sm:$0xff]
      %v3312 = vld [vmem:[%s3264 + $0x178] sm:$0xff]
      %v3313 = vld [vmem:[%s3264 + $0x180] sm:$0xff]
      %v3314 = vld [vmem:[%s3264 + $0x188] sm:$0xff]
      %v3315 = vld [vmem:[%s3264 + $0x190] sm:$0xff]
      %v3316 = vld [vmem:[%s3264 + $0x198] sm:$0xff]
      %v3317 = vld [vmem:[%s3264 + $0x1a0] sm:$0xff]
      %v3318 = vld [vmem:[%s3264 + $0x1a8] sm:$0xff]
      %v3319 = vld [vmem:[%s3264 + $0x1b0] sm:$0xff]
      %v3320 = vld [vmem:[%s3264 + $0x1b8] sm:$0xff]
      %v3321 = vld [vmem:[%s3264 + $0x1c0] sm:$0xff]
      %v3322 = vld [vmem:[%s3264 + $0x1c8] sm:$0xff]
      %v3323 = vld [vmem:[%s3264 + $0x1d0] sm:$0xff]
      %v3324 = vld [vmem:[%s3264 + $0x1d8] sm:$0xff]
      %v3325 = vld [vmem:[%s3264 + $0x1e0] sm:$0xff]
      %v3326 = vld [vmem:[%s3264 + $0x1e8] sm:$0xff]
      %v3327 = vld [vmem:[%s3264 + $0x1f0] sm:$0xff]
      %v3328 = vld [vmem:[%s3264 + $0x1f8] sm:$0xff]
      %v3329 = vld [vmem:[%s3264 + $0x200] sm:$0xff]
      %v3330 = vld [vmem:[%s3264 + $0x208] sm:$0xff]
      %v3331 = vld [vmem:[%s3264 + $0x210] sm:$0xff]
      %v3332 = vld [vmem:[%s3264 + $0x218] sm:$0xff]
      %v3333 = vld [vmem:[%s3264 + $0x220] sm:$0xff]
      %v3334 = vld [vmem:[%s3264 + $0x228] sm:$0xff]
      %v3335 = vld [vmem:[%s3264 + $0x230] sm:$0xff]
      %v3336 = vld [vmem:[%s3264 + $0x238] sm:$0xff]
      %v3337 = vld [vmem:[%s3264 + $0x240] sm:$0xff]
      %v3338 = vld [vmem:[%s3264 + $0x248] sm:$0xff]
      %v3339 = vld [vmem:[%s3264 + $0x250] sm:$0xff]
      %v3340 = vld [vmem:[%s3264 + $0x258] sm:$0xff]
      %v3341 = vld [vmem:[%s3264 + $0x260] sm:$0xff]
      %v3342 = vld [vmem:[%s3264 + $0x268] sm:$0xff]
      %v3343 = vld [vmem:[%s3264 + $0x270] sm:$0xff]
      %v3344 = vld [vmem:[%s3264 + $0x278] sm:$0xff]
      %v3345 = vld [vmem:[%s3264 + $0x280] sm:$0xff]
      %v3346 = vld [vmem:[%s3264 + $0x288] sm:$0xff]
      %v3347 = vld [vmem:[%s3264 + $0x290] sm:$0xff]
      %v3348 = vld [vmem:[%s3264 + $0x298] sm:$0xff]
      %v3349 = vld [vmem:[%s3264 + $0x2a0] sm:$0xff]
      %v3350 = vld [vmem:[%s3264 + $0x2a8] sm:$0xff]
      %v3351 = vld [vmem:[%s3264 + $0x2b0] sm:$0xff]
      %v3352 = vld [vmem:[%s3264 + $0x2b8] sm:$0xff]
      %v3353 = vld [vmem:[%s3264 + $0x2c0] sm:$0xff]
      %v3354 = vld [vmem:[%s3264 + $0x2c8] sm:$0xff]
      %v3355 = vld [vmem:[%s3264 + $0x2d0] sm:$0xff]
      %v3356 = vld [vmem:[%s3264 + $0x2d8] sm:$0xff]
      %v3357 = vld [vmem:[%s3264 + $0x2e0] sm:$0xff]
      %v3358 = vld [vmem:[%s3264 + $0x2e8] sm:$0xff]
      %v3359 = vld [vmem:[%s3264 + $0x2f0] sm:$0xff]
      %v3360 = vld [vmem:[%s3264 + $0x2f8] sm:$0xff]
      %s3361 = scalar_lea.vmem %s7, 6
      %v3362 = vld [vmem:[%s3361] sm:$0x3f]
      %v3364 = vlaneseq
      %v3365 = vshrl.u32 %v3364, 7
      %v3366 = vsub.s32 0, %v3365
      %v3367 = vrot.slane %v3362, %v3366
      %v3368 = vlaneseq
      %v3369 = vshrl.u32 %v3368, 7
      %v3370 = vsub.s32 1, %v3369
      %v3371 = vrot.slane %v3362, %v3370
      %v3372 = vlaneseq
      %v3373 = vshrl.u32 %v3372, 7
      %v3374 = vsub.s32 2, %v3373
      %v3375 = vrot.slane %v3362, %v3374
      %v3376 = vlaneseq
      %v3377 = vshrl.u32 %v3376, 7
      %v3378 = vsub.s32 3, %v3377
      %v3379 = vrot.slane %v3362, %v3378
      %v3380 = vlaneseq
      %v3381 = vshrl.u32 %v3380, 7
      %v3382 = vsub.s32 4, %v3381
      %v3383 = vrot.slane %v3362, %v3382
      %v3384 = vlaneseq
      %v3385 = vshrl.u32 %v3384, 7
      %v3386 = vsub.s32 5, %v3385
      %v3387 = vrot.slane %v3362, %v3386
      %v3490 = vunpack.c.l.b16 %v3265
      %v3491 = vunpack.c.h.b16 %v3265
      %v3492 = vunpack.c.l.b16 %v3266
      %v3493 = vunpack.c.h.b16 %v3266
      %v3494 = vunpack.c.l.b16 %v3267
      %v3495 = vunpack.c.h.b16 %v3267
      %v3496 = vunpack.c.l.b16 %v3268
      %v3497 = vunpack.c.h.b16 %v3268
      %v3498 = vunpack.c.l.b16 %v3269
      %v3499 = vunpack.c.h.b16 %v3269
      %v3500 = vunpack.c.l.b16 %v3270
      %v3501 = vunpack.c.h.b16 %v3270
      %v3502 = vunpack.c.l.b16 %v3271
      %v3503 = vunpack.c.h.b16 %v3271
      %v3504 = vunpack.c.l.b16 %v3272
      %v3505 = vunpack.c.h.b16 %v3272
      %v3506 = vunpack.c.l.b16 %v3273
      %v3507 = vunpack.c.h.b16 %v3273
      %v3508 = vunpack.c.l.b16 %v3274
      %v3509 = vunpack.c.h.b16 %v3274
      %v3510 = vunpack.c.l.b16 %v3275
      %v3511 = vunpack.c.h.b16 %v3275
      %v3512 = vunpack.c.l.b16 %v3276
      %v3513 = vunpack.c.h.b16 %v3276
      %v3514 = vunpack.c.l.b16 %v3277
      %v3515 = vunpack.c.h.b16 %v3277
      %v3516 = vunpack.c.l.b16 %v3278
      %v3517 = vunpack.c.h.b16 %v3278
      %v3518 = vunpack.c.l.b16 %v3279
      %v3519 = vunpack.c.h.b16 %v3279
      %v3520 = vunpack.c.l.b16 %v3280
      %v3521 = vunpack.c.h.b16 %v3280
      %v3522 = vunpack.c.l.b16 %v3281
      %v3523 = vunpack.c.h.b16 %v3281
      %v3524 = vunpack.c.l.b16 %v3282
      %v3525 = vunpack.c.h.b16 %v3282
      %v3526 = vunpack.c.l.b16 %v3283
      %v3527 = vunpack.c.h.b16 %v3283
      %v3528 = vunpack.c.l.b16 %v3284
      %v3529 = vunpack.c.h.b16 %v3284
      %v3530 = vunpack.c.l.b16 %v3285
      %v3531 = vunpack.c.h.b16 %v3285
      %v3532 = vunpack.c.l.b16 %v3286
      %v3533 = vunpack.c.h.b16 %v3286
      %v3534 = vunpack.c.l.b16 %v3287
      %v3535 = vunpack.c.h.b16 %v3287
      %v3536 = vunpack.c.l.b16 %v3288
      %v3537 = vunpack.c.h.b16 %v3288
      %v3538 = vunpack.c.l.b16 %v3289
      %v3539 = vunpack.c.h.b16 %v3289
      %v3540 = vunpack.c.l.b16 %v3290
      %v3541 = vunpack.c.h.b16 %v3290
      %v3542 = vunpack.c.l.b16 %v3291
      %v3543 = vunpack.c.h.b16 %v3291
      %v3544 = vunpack.c.l.b16 %v3292
      %v3545 = vunpack.c.h.b16 %v3292
      %v3546 = vunpack.c.l.b16 %v3293
      %v3547 = vunpack.c.h.b16 %v3293
      %v3548 = vunpack.c.l.b16 %v3294
      %v3549 = vunpack.c.h.b16 %v3294
      %v3550 = vunpack.c.l.b16 %v3295
      %v3551 = vunpack.c.h.b16 %v3295
      %v3552 = vunpack.c.l.b16 %v3296
      %v3553 = vunpack.c.h.b16 %v3296
      %v3554 = vunpack.c.l.b16 %v3297
      %v3555 = vunpack.c.h.b16 %v3297
      %v3556 = vunpack.c.l.b16 %v3298
      %v3557 = vunpack.c.h.b16 %v3298
      %v3558 = vunpack.c.l.b16 %v3299
      %v3559 = vunpack.c.h.b16 %v3299
      %v3560 = vunpack.c.l.b16 %v3300
      %v3561 = vunpack.c.h.b16 %v3300
      %v3562 = vunpack.c.l.b16 %v3301
      %v3563 = vunpack.c.h.b16 %v3301
      %v3564 = vunpack.c.l.b16 %v3302
      %v3565 = vunpack.c.h.b16 %v3302
      %v3566 = vunpack.c.l.b16 %v3303
      %v3567 = vunpack.c.h.b16 %v3303
      %v3568 = vunpack.c.l.b16 %v3304
      %v3569 = vunpack.c.h.b16 %v3304
      %v3570 = vunpack.c.l.b16 %v3305
      %v3571 = vunpack.c.h.b16 %v3305
      %v3572 = vunpack.c.l.b16 %v3306
      %v3573 = vunpack.c.h.b16 %v3306
      %v3574 = vunpack.c.l.b16 %v3307
      %v3575 = vunpack.c.h.b16 %v3307
      %v3576 = vunpack.c.l.b16 %v3308
      %v3577 = vunpack.c.h.b16 %v3308
      %v3578 = vunpack.c.l.b16 %v3309
      %v3579 = vunpack.c.h.b16 %v3309
      %v3580 = vunpack.c.l.b16 %v3310
      %v3581 = vunpack.c.h.b16 %v3310
      %v3582 = vunpack.c.l.b16 %v3311
      %v3583 = vunpack.c.h.b16 %v3311
      %v3584 = vunpack.c.l.b16 %v3312
      %v3585 = vunpack.c.h.b16 %v3312
      %v3586 = vunpack.c.l.b16 %v3313
      %v3587 = vunpack.c.h.b16 %v3313
      %v3588 = vunpack.c.l.b16 %v3314
      %v3589 = vunpack.c.h.b16 %v3314
      %v3590 = vunpack.c.l.b16 %v3315
      %v3591 = vunpack.c.h.b16 %v3315
      %v3592 = vunpack.c.l.b16 %v3316
      %v3593 = vunpack.c.h.b16 %v3316
      %v3594 = vunpack.c.l.b16 %v3317
      %v3595 = vunpack.c.h.b16 %v3317
      %v3596 = vunpack.c.l.b16 %v3318
      %v3597 = vunpack.c.h.b16 %v3318
      %v3598 = vunpack.c.l.b16 %v3319
      %v3599 = vunpack.c.h.b16 %v3319
      %v3600 = vunpack.c.l.b16 %v3320
      %v3601 = vunpack.c.h.b16 %v3320
      %v3602 = vunpack.c.l.b16 %v3321
      %v3603 = vunpack.c.h.b16 %v3321
      %v3604 = vunpack.c.l.b16 %v3322
      %v3605 = vunpack.c.h.b16 %v3322
      %v3606 = vunpack.c.l.b16 %v3323
      %v3607 = vunpack.c.h.b16 %v3323
      %v3608 = vunpack.c.l.b16 %v3324
      %v3609 = vunpack.c.h.b16 %v3324
      %v3610 = vunpack.c.l.b16 %v3325
      %v3611 = vunpack.c.h.b16 %v3325
      %v3612 = vunpack.c.l.b16 %v3326
      %v3613 = vunpack.c.h.b16 %v3326
      %v3614 = vunpack.c.l.b16 %v3327
      %v3615 = vunpack.c.h.b16 %v3327
      %v3616 = vunpack.c.l.b16 %v3328
      %v3617 = vunpack.c.h.b16 %v3328
      %v3618 = vunpack.c.l.b16 %v3329
      %v3619 = vunpack.c.h.b16 %v3329
      %v3620 = vunpack.c.l.b16 %v3330
      %v3621 = vunpack.c.h.b16 %v3330
      %v3622 = vunpack.c.l.b16 %v3331
      %v3623 = vunpack.c.h.b16 %v3331
      %v3624 = vunpack.c.l.b16 %v3332
      %v3625 = vunpack.c.h.b16 %v3332
      %v3626 = vunpack.c.l.b16 %v3333
      %v3627 = vunpack.c.h.b16 %v3333
      %v3628 = vunpack.c.l.b16 %v3334
      %v3629 = vunpack.c.h.b16 %v3334
      %v3630 = vunpack.c.l.b16 %v3335
      %v3631 = vunpack.c.h.b16 %v3335
      %v3632 = vunpack.c.l.b16 %v3336
      %v3633 = vunpack.c.h.b16 %v3336
      %v3634 = vunpack.c.l.b16 %v3337
      %v3635 = vunpack.c.h.b16 %v3337
      %v3636 = vunpack.c.l.b16 %v3338
      %v3637 = vunpack.c.h.b16 %v3338
      %v3638 = vunpack.c.l.b16 %v3339
      %v3639 = vunpack.c.h.b16 %v3339
      %v3640 = vunpack.c.l.b16 %v3340
      %v3641 = vunpack.c.h.b16 %v3340
      %v3642 = vunpack.c.l.b16 %v3341
      %v3643 = vunpack.c.h.b16 %v3341
      %v3644 = vunpack.c.l.b16 %v3342
      %v3645 = vunpack.c.h.b16 %v3342
      %v3646 = vunpack.c.l.b16 %v3343
      %v3647 = vunpack.c.h.b16 %v3343
      %v3648 = vunpack.c.l.b16 %v3344
      %v3649 = vunpack.c.h.b16 %v3344
      %v3650 = vunpack.c.l.b16 %v3345
      %v3651 = vunpack.c.h.b16 %v3345
      %v3652 = vunpack.c.l.b16 %v3346
      %v3653 = vunpack.c.h.b16 %v3346
      %v3654 = vunpack.c.l.b16 %v3347
      %v3655 = vunpack.c.h.b16 %v3347
      %v3656 = vunpack.c.l.b16 %v3348
      %v3657 = vunpack.c.h.b16 %v3348
      %v3658 = vunpack.c.l.b16 %v3349
      %v3659 = vunpack.c.h.b16 %v3349
      %v3660 = vunpack.c.l.b16 %v3350
      %v3661 = vunpack.c.h.b16 %v3350
      %v3662 = vunpack.c.l.b16 %v3351
      %v3663 = vunpack.c.h.b16 %v3351
      %v3664 = vunpack.c.l.b16 %v3352
      %v3665 = vunpack.c.h.b16 %v3352
      %v3666 = vunpack.c.l.b16 %v3353
      %v3667 = vunpack.c.h.b16 %v3353
      %v3668 = vunpack.c.l.b16 %v3354
      %v3669 = vunpack.c.h.b16 %v3354
      %v3670 = vunpack.c.l.b16 %v3355
      %v3671 = vunpack.c.h.b16 %v3355
      %v3672 = vunpack.c.l.b16 %v3356
      %v3673 = vunpack.c.h.b16 %v3356
      %v3674 = vunpack.c.l.b16 %v3357
      %v3675 = vunpack.c.h.b16 %v3357
      %v3676 = vunpack.c.l.b16 %v3358
      %v3677 = vunpack.c.h.b16 %v3358
      %v3678 = vunpack.c.l.b16 %v3359
      %v3679 = vunpack.c.h.b16 %v3359
      %v3680 = vunpack.c.l.b16 %v3360
      %v3681 = vunpack.c.h.b16 %v3360
      %v3682 = vpack.c.b16 %v3496, %v3490
      %v3683 = vpack.c.b16 %v3497, %v3491
      %v3684 = vpack.c.b16 %v3498, %v3492
      %v3685 = vpack.c.b16 %v3499, %v3493
      %v3686 = vpack.c.b16 %v3500, %v3494
      %v3687 = vpack.c.b16 %v3501, %v3495
      %v3688 = vpack.c.b16 %v3508, %v3502
      %v3689 = vpack.c.b16 %v3509, %v3503
      %v3690 = vpack.c.b16 %v3510, %v3504
      %v3691 = vpack.c.b16 %v3511, %v3505
      %v3692 = vpack.c.b16 %v3512, %v3506
      %v3693 = vpack.c.b16 %v3513, %v3507
      %v3694 = vpack.c.b16 %v3520, %v3514
      %v3695 = vpack.c.b16 %v3521, %v3515
      %v3696 = vpack.c.b16 %v3522, %v3516
      %v3697 = vpack.c.b16 %v3523, %v3517
      %v3698 = vpack.c.b16 %v3524, %v3518
      %v3699 = vpack.c.b16 %v3525, %v3519
      %v3700 = vpack.c.b16 %v3532, %v3526
      %v3701 = vpack.c.b16 %v3533, %v3527
      %v3702 = vpack.c.b16 %v3534, %v3528
      %v3703 = vpack.c.b16 %v3535, %v3529
      %v3704 = vpack.c.b16 %v3536, %v3530
      %v3705 = vpack.c.b16 %v3537, %v3531
      %v3706 = vpack.c.b16 %v3544, %v3538
      %v3707 = vpack.c.b16 %v3545, %v3539
      %v3708 = vpack.c.b16 %v3546, %v3540
      %v3709 = vpack.c.b16 %v3547, %v3541
      %v3710 = vpack.c.b16 %v3548, %v3542
      %v3711 = vpack.c.b16 %v3549, %v3543
      %v3712 = vpack.c.b16 %v3556, %v3550
      %v3713 = vpack.c.b16 %v3557, %v3551
      %v3714 = vpack.c.b16 %v3558, %v3552
      %v3715 = vpack.c.b16 %v3559, %v3553
      %v3716 = vpack.c.b16 %v3560, %v3554
      %v3717 = vpack.c.b16 %v3561, %v3555
      %v3718 = vpack.c.b16 %v3568, %v3562
      %v3719 = vpack.c.b16 %v3569, %v3563
      %v3720 = vpack.c.b16 %v3570, %v3564
      %v3721 = vpack.c.b16 %v3571, %v3565
      %v3722 = vpack.c.b16 %v3572, %v3566
      %v3723 = vpack.c.b16 %v3573, %v3567
      %v3724 = vpack.c.b16 %v3580, %v3574
      %v3725 = vpack.c.b16 %v3581, %v3575
      %v3726 = vpack.c.b16 %v3582, %v3576
      %v3727 = vpack.c.b16 %v3583, %v3577
      %v3728 = vpack.c.b16 %v3584, %v3578
      %v3729 = vpack.c.b16 %v3585, %v3579
      %v3730 = vpack.c.b16 %v3592, %v3586
      %v3731 = vpack.c.b16 %v3593, %v3587
      %v3732 = vpack.c.b16 %v3594, %v3588
      %v3733 = vpack.c.b16 %v3595, %v3589
      %v3734 = vpack.c.b16 %v3596, %v3590
      %v3735 = vpack.c.b16 %v3597, %v3591
      %v3736 = vpack.c.b16 %v3604, %v3598
      %v3737 = vpack.c.b16 %v3605, %v3599
      %v3738 = vpack.c.b16 %v3606, %v3600
      %v3739 = vpack.c.b16 %v3607, %v3601
      %v3740 = vpack.c.b16 %v3608, %v3602
      %v3741 = vpack.c.b16 %v3609, %v3603
      %v3742 = vpack.c.b16 %v3616, %v3610
      %v3743 = vpack.c.b16 %v3617, %v3611
      %v3744 = vpack.c.b16 %v3618, %v3612
      %v3745 = vpack.c.b16 %v3619, %v3613
      %v3746 = vpack.c.b16 %v3620, %v3614
      %v3747 = vpack.c.b16 %v3621, %v3615
      %v3748 = vpack.c.b16 %v3628, %v3622
      %v3749 = vpack.c.b16 %v3629, %v3623
      %v3750 = vpack.c.b16 %v3630, %v3624
      %v3751 = vpack.c.b16 %v3631, %v3625
      %v3752 = vpack.c.b16 %v3632, %v3626
      %v3753 = vpack.c.b16 %v3633, %v3627
      %v3754 = vpack.c.b16 %v3640, %v3634
      %v3755 = vpack.c.b16 %v3641, %v3635
      %v3756 = vpack.c.b16 %v3642, %v3636
      %v3757 = vpack.c.b16 %v3643, %v3637
      %v3758 = vpack.c.b16 %v3644, %v3638
      %v3759 = vpack.c.b16 %v3645, %v3639
      %v3760 = vpack.c.b16 %v3652, %v3646
      %v3761 = vpack.c.b16 %v3653, %v3647
      %v3762 = vpack.c.b16 %v3654, %v3648
      %v3763 = vpack.c.b16 %v3655, %v3649
      %v3764 = vpack.c.b16 %v3656, %v3650
      %v3765 = vpack.c.b16 %v3657, %v3651
      %v3766 = vpack.c.b16 %v3664, %v3658
      %v3767 = vpack.c.b16 %v3665, %v3659
      %v3768 = vpack.c.b16 %v3666, %v3660
      %v3769 = vpack.c.b16 %v3667, %v3661
      %v3770 = vpack.c.b16 %v3668, %v3662
      %v3771 = vpack.c.b16 %v3669, %v3663
      %v3772 = vpack.c.b16 %v3676, %v3670
      %v3773 = vpack.c.b16 %v3677, %v3671
      %v3774 = vpack.c.b16 %v3678, %v3672
      %v3775 = vpack.c.b16 %v3679, %v3673
      %v3776 = vpack.c.b16 %v3680, %v3674
      %v3777 = vpack.c.b16 %v3681, %v3675
      %3874 = vmatprep.subr.bf16.mxu0 %v3683
      %3875 = vmatpush1.bf16.msra.mxu0 %v3682
      %3876 = vmatprep.subr.bf16.mxu0 %v3689
      %3877 = vmatpush1.bf16.msra.mxu0 %v3688
      %3878 = vmatprep.subr.bf16.mxu0 %v3695
      %3879 = vmatpush1.bf16.msra.mxu0 %v3694
      %3880 = vmatprep.subr.bf16.mxu0 %v3701
      %3881 = vmatpush1.bf16.msra.mxu0 %v3700
      %3882 = vmatprep.subr.bf16.mxu0 %v3707
      %3883 = vmatpush1.bf16.msra.mxu0 %v3706
      %3884 = vmatprep.subr.bf16.mxu0 %v3713
      %3885 = vmatpush1.bf16.msra.mxu0 %v3712
      %3886 = vmatprep.subr.bf16.mxu0 %v3719
      %3887 = vmatpush1.bf16.msra.mxu0 %v3718
      %3888 = vmatprep.subr.bf16.mxu0 %v3725
      %3889 = vmatpush1.bf16.msra.mxu0 %v3724
      %3890 = vmatprep.subr.bf16.mxu0 %v3731
      %3891 = vmatpush1.bf16.msra.mxu0 %v3730
      %3892 = vmatprep.subr.bf16.mxu0 %v3737
      %3893 = vmatpush1.bf16.msra.mxu0 %v3736
      %3894 = vmatprep.subr.bf16.mxu0 %v3743
      %3895 = vmatpush1.bf16.msra.mxu0 %v3742
      %3896 = vmatprep.subr.bf16.mxu0 %v3749
      %3897 = vmatpush1.bf16.msra.mxu0 %v3748
      %3898 = vmatprep.subr.bf16.mxu0 %v3755
      %3899 = vmatpush1.bf16.msra.mxu0 %v3754
      %3900 = vmatprep.subr.bf16.mxu0 %v3761
      %3901 = vmatpush1.bf16.msra.mxu0 %v3760
      %3902 = vmatprep.subr.bf16.mxu0 %v3767
      %3903 = vmatpush1.bf16.msra.mxu0 %v3766
      %3904 = vmatprep.subr.bf16.mxu0 %v3773
      %3905 = vmatpush1.bf16.msra.mxu0 %v3772
      %3906 = vmatprep.mubr.bf16.mxu0 %v3263
      %3907 = vmatmul.mubr.bf16.gmra.mrb[0].mxu0 %v3262
      %v3908 = vpop.f32.mrb[0].mxu0
      %v3909 = vadd.f32 %v3367, %v3908
      %v3910 = vpop.f32.mrb[0].mxu0
      %v3911 = vadd.f32 %v3371, %v3910
      %v3912 = vpop.f32.mrb[0].mxu0
      %v3913 = vpop.f32.mrb[0].mxu0
      %3914 = vdwg.mxu0
      %3915 = vmatprep.subr.bf16.mxu0 %v3685
      %3916 = vmatpush1.bf16.msra.mxu0 %v3684
      %3917 = vmatprep.subr.bf16.mxu0 %v3691
      %3918 = vmatpush1.bf16.msra.mxu0 %v3690
      %3919 = vmatprep.subr.bf16.mxu0 %v3697
      %3920 = vmatpush1.bf16.msra.mxu0 %v3696
      %3921 = vmatprep.subr.bf16.mxu0 %v3703
      %3922 = vmatpush1.bf16.msra.mxu0 %v3702
      %3923 = vmatprep.subr.bf16.mxu0 %v3709
      %3924 = vmatpush1.bf16.msra.mxu0 %v3708
      %3925 = vmatprep.subr.bf16.mxu0 %v3715
      %3926 = vmatpush1.bf16.msra.mxu0 %v3714
      %3927 = vmatprep.subr.bf16.mxu0 %v3721
      %3928 = vmatpush1.bf16.msra.mxu0 %v3720
      %3929 = vmatprep.subr.bf16.mxu0 %v3727
      %3930 = vmatpush1.bf16.msra.mxu0 %v3726
      %3931 = vmatprep.subr.bf16.mxu0 %v3733
      %3932 = vmatpush1.bf16.msra.mxu0 %v3732
      %3933 = vmatprep.subr.bf16.mxu0 %v3739
      %3934 = vmatpush1.bf16.msra.mxu0 %v3738
      %3935 = vmatprep.subr.bf16.mxu0 %v3745
      %3936 = vmatpush1.bf16.msra.mxu0 %v3744
      %3937 = vmatprep.subr.bf16.mxu0 %v3751
      %3938 = vmatpush1.bf16.msra.mxu0 %v3750
      %3939 = vmatprep.subr.bf16.mxu0 %v3757
      %3940 = vmatpush1.bf16.msra.mxu0 %v3756
      %3941 = vmatprep.subr.bf16.mxu0 %v3763
      %3942 = vmatpush1.bf16.msra.mxu0 %v3762
      %3943 = vmatprep.subr.bf16.mxu0 %v3769
      %3944 = vmatpush1.bf16.msra.mxu0 %v3768
      %3945 = vmatprep.subr.bf16.mxu0 %v3775
      %3946 = vmatpush1.bf16.msra.mxu0 %v3774
      %3947 = vmatprep.mubr.bf16.mxu0 %v3263
      %3948 = vmatmul.mubr.bf16.gmra.mrb[0].mxu0 %v3262
      %v3949 = vpop.f32.mrb[0].mxu0
      %v3950 = vadd.f32 %v3375, %v3949
      %v3951 = vpop.f32.mrb[0].mxu0
      %v3952 = vadd.f32 %v3379, %v3951
      %v3953 = vpop.f32.mrb[0].mxu0
      %v3954 = vpop.f32.mrb[0].mxu0
      %3955 = vdwg.mxu0
      %3956 = vmatprep.subr.bf16.mxu0 %v3687
      %3957 = vmatpush1.bf16.msra.mxu0 %v3686
      %3958 = vmatprep.subr.bf16.mxu0 %v3693
      %3959 = vmatpush1.bf16.msra.mxu0 %v3692
      %3960 = vmatprep.subr.bf16.mxu0 %v3699
      %3961 = vmatpush1.bf16.msra.mxu0 %v3698
      %3962 = vmatprep.subr.bf16.mxu0 %v3705
      %3963 = vmatpush1.bf16.msra.mxu0 %v3704
      %3964 = vmatprep.subr.bf16.mxu0 %v3711
      %3965 = vmatpush1.bf16.msra.mxu0 %v3710
      %3966 = vmatprep.subr.bf16.mxu0 %v3717
      %3967 = vmatpush1.bf16.msra.mxu0 %v3716
      %3968 = vmatprep.subr.bf16.mxu0 %v3723
      %3969 = vmatpush1.bf16.msra.mxu0 %v3722
      %3970 = vmatprep.subr.bf16.mxu0 %v3729
      %3971 = vmatpush1.bf16.msra.mxu0 %v3728
      %3972 = vmatprep.subr.bf16.mxu0 %v3735
      %3973 = vmatpush1.bf16.msra.mxu0 %v3734
      %3974 = vmatprep.subr.bf16.mxu0 %v3741
      %3975 = vmatpush1.bf16.msra.mxu0 %v3740
      %3976 = vmatprep.subr.bf16.mxu0 %v3747
      %3977 = vmatpush1.bf16.msra.mxu0 %v3746
      %3978 = vmatprep.subr.bf16.mxu0 %v3753
      %3979 = vmatpush1.bf16.msra.mxu0 %v3752
      %3980 = vmatprep.subr.bf16.mxu0 %v3759
      %3981 = vmatpush1.bf16.msra.mxu0 %v3758
      %3982 = vmatprep.subr.bf16.mxu0 %v3765
      %3983 = vmatpush1.bf16.msra.mxu0 %v3764
      %3984 = vmatprep.subr.bf16.mxu0 %v3771
      %3985 = vmatpush1.bf16.msra.mxu0 %v3770
      %3986 = vmatprep.subr.bf16.mxu0 %v3777
      %3987 = vmatpush1.bf16.msra.mxu0 %v3776
      %3988 = vmatprep.mubr.bf16.mxu0 %v3263
      %3989 = vmatmul.mubr.bf16.gmra.mrb[0].mxu0 %v3262
      %v3990 = vpop.f32.mrb[0].mxu0
      %v3991 = vadd.f32 %v3383, %v3990
      %v3992 = vpop.f32.mrb[0].mxu0
      %v3993 = vadd.f32 %v3387, %v3992
      %v3994 = vpop.f32.mrb[0].mxu0
      %v3995 = vpop.f32.mrb[0].mxu0
      %3996 = vdwg.mxu0
      %v3997 = vpack.c.bf16 %v3909, %v3909
      %v3998 = vpack.c.bf16 %v3911, %v3911
      %v3999 = vpack.c.bf16 %v3950, %v3950
      %v4000 = vpack.c.bf16 %v3952, %v3952
      %v4001 = vpack.c.bf16 %v3991, %v3991
      %v4002 = vpack.c.bf16 %v3993, %v3993
      %v4004 = vsel %vm1409, %v3997, 0
      %v4007 = vsel %vm1409, %v3999, 0
      %4009 = vmatprep.subr.bf16.mxu0 0
      %4010 = vmatpush1.bf16.xpose.msra.mxu0 %v4007
      %4011 = vmatprep.subr.bf16.mxu0 0
      %4012 = vmatpush1.bf16.xpose.msra.mxu0 0
      %4013 = vmatprep.subr.bf16.mxu0 0
      %4014 = vmatpush1.bf16.xpose.msra.mxu0 0
      %4015 = vmatprep.subr.bf16.mxu0 0
      %4016 = vmatpush1.bf16.xpose.msra.mxu0 0
      %4017 = vmatprep.subr.bf16.mxu0 0
      %4018 = vmatpush1.bf16.xpose.msra.mxu0 0
      %4019 = vmatprep.subr.bf16.mxu0 0
      %4020 = vmatpush1.bf16.xpose.msra.mxu0 0
      %4021 = vmatprep.subr.bf16.mxu0 0
      %4022 = vmatpush1.bf16.xpose.msra.mxu0 0
      %4023 = vmatprep.subr.bf16.mxu0 0
      %4024 = vmatpush1.bf16.xpose.msra.mxu0 0
      %4025 = vmatprep.subr.bf16.mxu0 0
      %4026 = vmatpush1.bf16.xpose.msra.mxu0 0
      %4027 = vmatprep.subr.bf16.mxu0 0
      %4028 = vmatpush1.bf16.xpose.msra.mxu0 0
      %4029 = vmatprep.subr.bf16.mxu0 0
      %4030 = vmatpush1.bf16.xpose.msra.mxu0 0
      %4031 = vmatprep.subr.bf16.mxu0 0
      %4032 = vmatpush1.bf16.xpose.msra.mxu0 0
      %4033 = vmatprep.subr.bf16.mxu0 0
      %4034 = vmatpush1.bf16.xpose.msra.mxu0 0
      %4035 = vmatprep.subr.bf16.mxu0 0
      %4036 = vmatpush1.bf16.xpose.msra.mxu0 0
      %4037 = vmatprep.subr.bf16.mxu0 0
      %4038 = vmatpush1.bf16.xpose.msra.mxu0 0
      %4039 = vmatprep.subr.bf16.mxu0 0
      %4040 = vmatpush1.bf16.xpose.msra.mxu0 0
      %4041 = vmatprep.mubr.bf16.mxu0 0
      %4042 = vmatmul.mubr.bf16.gmra.mrb[0].mxu0 %v4004
      %v4043 = vpop.f32.mrb[0].mxu0
      %v4044 = vadd.f32 0.0, %v4043
      %v4045 = vpop.f32.mrb[0].mxu0
      %v4046 = vpop.f32.mrb[0].mxu0
      %v4047 = vpop.f32.mrb[0].mxu0
      %4048 = vdwg.mxu0
      %v4049 = vmul.f32 %v4044, 0.125
      %v4050 = vadd.f32 %v4049, %v630
      %v4051 = vsel %vm1458, %v4050, -inf
      %4052 = vmax.xlane.f32.xlu0 %v4051
      %v4053 = vpop.xlane.xlu0 %4052
      %v4054 = vsub.f32 %v4050, %v4053
      %v4055 = vmul.f32 %v4054, 1.442695
      %v4056 = vpow.pop %v4055
      %v4057 = vsel %vm1458, %v4056, 0.0
      %4058 = vadd.xlane.f32.xlu0 %v4057
      %v4059 = vpop.xlane.xlu0 %4058
      %v4060 = vrcp.pop %v4059
      %v4061 = vmul.f32 %v4056, %v4060
      %v4062 = vpack.c.bf16 %v4061, %v4061
      %v4064 = vsel %vm1458, %v4062, 0
      %v4067 = vsel %vm1474, %v4001, 0
      %4069 = vmatprep.subr.bf16.mxu0 0
      %4070 = vmatpush1.bf16.msra.mxu0 %v4067
      %4071 = vmatprep.subr.bf16.mxu0 0
      %4072 = vmatpush1.bf16.msra.mxu0 0
      %4073 = vmatprep.subr.bf16.mxu0 0
      %4074 = vmatpush1.bf16.msra.mxu0 0
      %4075 = vmatprep.subr.bf16.mxu0 0
      %4076 = vmatpush1.bf16.msra.mxu0 0
      %4077 = vmatprep.subr.bf16.mxu0 0
      %4078 = vmatpush1.bf16.msra.mxu0 0
      %4079 = vmatprep.subr.bf16.mxu0 0
      %4080 = vmatpush1.bf16.msra.mxu0 0
      %4081 = vmatprep.subr.bf16.mxu0 0
      %4082 = vmatpush1.bf16.msra.mxu0 0
      %4083 = vmatprep.subr.bf16.mxu0 0
      %4084 = vmatpush1.bf16.msra.mxu0 0
      %4085 = vmatprep.subr.bf16.mxu0 0
      %4086 = vmatpush1.bf16.msra.mxu0 0
      %4087 = vmatprep.subr.bf16.mxu0 0
      %4088 = vmatpush1.bf16.msra.mxu0 0
      %4089 = vmatprep.subr.bf16.mxu0 0
      %4090 = vmatpush1.bf16.msra.mxu0 0
      %4091 = vmatprep.subr.bf16.mxu0 0
      %4092 = vmatpush1.bf16.msra.mxu0 0
      %4093 = vmatprep.subr.bf16.mxu0 0
      %4094 = vmatpush1.bf16.msra.mxu0 0
      %4095 = vmatprep.subr.bf16.mxu0 0
      %4096 = vmatpush1.bf16.msra.mxu0 0
      %4097 = vmatprep.subr.bf16.mxu0 0
      %4098 = vmatpush1.bf16.msra.mxu0 0
      %4099 = vmatprep.subr.bf16.mxu0 0
      %4100 = vmatpush1.bf16.msra.mxu0 0
      %4101 = vmatprep.mubr.bf16.mxu0 0
      %4102 = vmatmul.mubr.bf16.gmra.mrb[0].mxu0 %v4064
      %v4103 = vpop.f32.mrb[0].mxu0
      %v4104 = vadd.f32 0.0, %v4103
      %v4105 = vpop.f32.mrb[0].mxu0
      %v4106 = vpop.f32.mrb[0].mxu0
      %v4107 = vpop.f32.mrb[0].mxu0
      %4108 = vdwg.mxu0
      %4110 = vrot.lane.b32.xlu0 %v3997, 64
      %v4111 = vpop.permute.xlu0 %4110
      %4113 = vrot.lane.b32.xlu0 %v3999, 64
      %v4114 = vpop.permute.xlu0 %4113
      %v4116 = vsel %vm1409, %v4111, 0
      %v4119 = vsel %vm1409, %v4114, 0
      %4121 = vmatprep.subr.bf16.mxu0 0
      %4122 = vmatpush1.bf16.xpose.msra.mxu0 %v4119
      %4123 = vmatprep.subr.bf16.mxu0 0
      %4124 = vmatpush1.bf16.xpose.msra.mxu0 0
      %4125 = vmatprep.subr.bf16.mxu0 0
      %4126 = vmatpush1.bf16.xpose.msra.mxu0 0
      %4127 = vmatprep.subr.bf16.mxu0 0
      %4128 = vmatpush1.bf16.xpose.msra.mxu0 0
      %4129 = vmatprep.subr.bf16.mxu0 0
      %4130 = vmatpush1.bf16.xpose.msra.mxu0 0
      %4131 = vmatprep.subr.bf16.mxu0 0
      %4132 = vmatpush1.bf16.xpose.msra.mxu0 0
      %4133 = vmatprep.subr.bf16.mxu0 0
      %4134 = vmatpush1.bf16.xpose.msra.mxu0 0
      %4135 = vmatprep.subr.bf16.mxu0 0
      %4136 = vmatpush1.bf16.xpose.msra.mxu0 0
      %4137 = vmatprep.subr.bf16.mxu0 0
      %4138 = vmatpush1.bf16.xpose.msra.mxu0 0
      %4139 = vmatprep.subr.bf16.mxu0 0
      %4140 = vmatpush1.bf16.xpose.msra.mxu0 0
      %4141 = vmatprep.subr.bf16.mxu0 0
      %4142 = vmatpush1.bf16.xpose.msra.mxu0 0
      %4143 = vmatprep.subr.bf16.mxu0 0
      %4144 = vmatpush1.bf16.xpose.msra.mxu0 0
      %4145 = vmatprep.subr.bf16.mxu0 0
      %4146 = vmatpush1.bf16.xpose.msra.mxu0 0
      %4147 = vmatprep.subr.bf16.mxu0 0
      %4148 = vmatpush1.bf16.xpose.msra.mxu0 0
      %4149 = vmatprep.subr.bf16.mxu0 0
      %4150 = vmatpush1.bf16.xpose.msra.mxu0 0
      %4151 = vmatprep.subr.bf16.mxu0 0
      %4152 = vmatpush1.bf16.xpose.msra.mxu0 0
      %4153 = vmatprep.mubr.bf16.mxu0 0
      %4154 = vmatmul.mubr.bf16.gmra.mrb[0].mxu0 %v4116
      %v4155 = vpop.f32.mrb[0].mxu0
      %v4156 = vadd.f32 0.0, %v4155
      %v4157 = vpop.f32.mrb[0].mxu0
      %v4158 = vpop.f32.mrb[0].mxu0
      %v4159 = vpop.f32.mrb[0].mxu0
      %4160 = vdwg.mxu0
      %v4161 = vmul.f32 %v4156, 0.125
      %v4162 = vadd.f32 %v4161, %v630
      %v4163 = vsel %vm1458, %v4162, -inf
      %4164 = vmax.xlane.f32.xlu0 %v4163
      %v4165 = vpop.xlane.xlu0 %4164
      %v4166 = vsub.f32 %v4162, %v4165
      %v4167 = vmul.f32 %v4166, 1.442695
      %v4168 = vpow.pop %v4167
      %v4169 = vsel %vm1458, %v4168, 0.0
      %4170 = vadd.xlane.f32.xlu0 %v4169
      %v4171 = vpop.xlane.xlu0 %4170
      %v4172 = vrcp.pop %v4171
      %v4173 = vmul.f32 %v4168, %v4172
      %v4174 = vpack.c.bf16 %v4173, %v4173
      %4176 = vrot.lane.b32.xlu0 %v4001, 64
      %v4177 = vpop.permute.xlu0 %4176
      %v4179 = vsel %vm1458, %v4174, 0
      %v4182 = vsel %vm1474, %v4177, 0
      %4184 = vmatprep.subr.bf16.mxu0 0
      %4185 = vmatpush1.bf16.msra.mxu0 %v4182
      %4186 = vmatprep.subr.bf16.mxu0 0
      %4187 = vmatpush1.bf16.msra.mxu0 0
      %4188 = vmatprep.subr.bf16.mxu0 0
      %4189 = vmatpush1.bf16.msra.mxu0 0
      %4190 = vmatprep.subr.bf16.mxu0 0
      %4191 = vmatpush1.bf16.msra.mxu0 0
      %4192 = vmatprep.subr.bf16.mxu0 0
      %4193 = vmatpush1.bf16.msra.mxu0 0
      %4194 = vmatprep.subr.bf16.mxu0 0
      %4195 = vmatpush1.bf16.msra.mxu0 0
      %4196 = vmatprep.subr.bf16.mxu0 0
      %4197 = vmatpush1.bf16.msra.mxu0 0
      %4198 = vmatprep.subr.bf16.mxu0 0
      %4199 = vmatpush1.bf16.msra.mxu0 0
      %4200 = vmatprep.subr.bf16.mxu0 0
      %4201 = vmatpush1.bf16.msra.mxu0 0
      %4202 = vmatprep.subr.bf16.mxu0 0
      %4203 = vmatpush1.bf16.msra.mxu0 0
      %4204 = vmatprep.subr.bf16.mxu0 0
      %4205 = vmatpush1.bf16.msra.mxu0 0
      %4206 = vmatprep.subr.bf16.mxu0 0
      %4207 = vmatpush1.bf16.msra.mxu0 0
      %4208 = vmatprep.subr.bf16.mxu0 0
      %4209 = vmatpush1.bf16.msra.mxu0 0
      %4210 = vmatprep.subr.bf16.mxu0 0
      %4211 = vmatpush1.bf16.msra.mxu0 0
      %4212 = vmatprep.subr.bf16.mxu0 0
      %4213 = vmatpush1.bf16.msra.mxu0 0
      %4214 = vmatprep.subr.bf16.mxu0 0
      %4215 = vmatpush1.bf16.msra.mxu0 0
      %4216 = vmatprep.mubr.bf16.mxu0 0
      %4217 = vmatmul.mubr.bf16.gmra.mrb[0].mxu0 %v4179
      %v4218 = vpop.f32.mrb[0].mxu0
      %v4219 = vadd.f32 0.0, %v4218
      %v4220 = vpop.f32.mrb[0].mxu0
      %v4221 = vpop.f32.mrb[0].mxu0
      %v4222 = vpop.f32.mrb[0].mxu0
      %4223 = vdwg.mxu0
      %v4225 = vsel %vm1409, %v3998, 0
      %v4228 = vsel %vm1409, %v4000, 0
      %4230 = vmatprep.subr.bf16.mxu0 0
      %4231 = vmatpush1.bf16.xpose.msra.mxu0 %v4228
      %4232 = vmatprep.subr.bf16.mxu0 0
      %4233 = vmatpush1.bf16.xpose.msra.mxu0 0
      %4234 = vmatprep.subr.bf16.mxu0 0
      %4235 = vmatpush1.bf16.xpose.msra.mxu0 0
      %4236 = vmatprep.subr.bf16.mxu0 0
      %4237 = vmatpush1.bf16.xpose.msra.mxu0 0
      %4238 = vmatprep.subr.bf16.mxu0 0
      %4239 = vmatpush1.bf16.xpose.msra.mxu0 0
      %4240 = vmatprep.subr.bf16.mxu0 0
      %4241 = vmatpush1.bf16.xpose.msra.mxu0 0
      %4242 = vmatprep.subr.bf16.mxu0 0
      %4243 = vmatpush1.bf16.xpose.msra.mxu0 0
      %4244 = vmatprep.subr.bf16.mxu0 0
      %4245 = vmatpush1.bf16.xpose.msra.mxu0 0
      %4246 = vmatprep.subr.bf16.mxu0 0
      %4247 = vmatpush1.bf16.xpose.msra.mxu0 0
      %4248 = vmatprep.subr.bf16.mxu0 0
      %4249 = vmatpush1.bf16.xpose.msra.mxu0 0
      %4250 = vmatprep.subr.bf16.mxu0 0
      %4251 = vmatpush1.bf16.xpose.msra.mxu0 0
      %4252 = vmatprep.subr.bf16.mxu0 0
      %4253 = vmatpush1.bf16.xpose.msra.mxu0 0
      %4254 = vmatprep.subr.bf16.mxu0 0
      %4255 = vmatpush1.bf16.xpose.msra.mxu0 0
      %4256 = vmatprep.subr.bf16.mxu0 0
      %4257 = vmatpush1.bf16.xpose.msra.mxu0 0
      %4258 = vmatprep.subr.bf16.mxu0 0
      %4259 = vmatpush1.bf16.xpose.msra.mxu0 0
      %4260 = vmatprep.subr.bf16.mxu0 0
      %4261 = vmatpush1.bf16.xpose.msra.mxu0 0
      %4262 = vmatprep.mubr.bf16.mxu0 0
      %4263 = vmatmul.mubr.bf16.gmra.mrb[0].mxu0 %v4225
      %v4264 = vpop.f32.mrb[0].mxu0
      %v4265 = vadd.f32 0.0, %v4264
      %v4266 = vpop.f32.mrb[0].mxu0
      %v4267 = vpop.f32.mrb[0].mxu0
      %v4268 = vpop.f32.mrb[0].mxu0
      %4269 = vdwg.mxu0
      %v4270 = vmul.f32 %v4265, 0.125
      %v4271 = vadd.f32 %v4270, %v630
      %v4272 = vsel %vm1458, %v4271, -inf
      %4273 = vmax.xlane.f32.xlu0 %v4272
      %v4274 = vpop.xlane.xlu0 %4273
      %v4275 = vsub.f32 %v4271, %v4274
      %v4276 = vmul.f32 %v4275, 1.442695
      %v4277 = vpow.pop %v4276
      %v4278 = vsel %vm1458, %v4277, 0.0
      %4279 = vadd.xlane.f32.xlu0 %v4278
      %v4280 = vpop.xlane.xlu0 %4279
      %v4281 = vrcp.pop %v4280
      %v4282 = vmul.f32 %v4277, %v4281
      %v4283 = vpack.c.bf16 %v4282, %v4282
      %v4285 = vsel %vm1458, %v4283, 0
      %v4288 = vsel %vm1474, %v4002, 0
      %4290 = vmatprep.subr.bf16.mxu0 0
      %4291 = vmatpush1.bf16.msra.mxu0 %v4288
      %4292 = vmatprep.subr.bf16.mxu0 0
      %4293 = vmatpush1.bf16.msra.mxu0 0
      %4294 = vmatprep.subr.bf16.mxu0 0
      %4295 = vmatpush1.bf16.msra.mxu0 0
      %4296 = vmatprep.subr.bf16.mxu0 0
      %4297 = vmatpush1.bf16.msra.mxu0 0
      %4298 = vmatprep.subr.bf16.mxu0 0
      %4299 = vmatpush1.bf16.msra.mxu0 0
      %4300 = vmatprep.subr.bf16.mxu0 0
      %4301 = vmatpush1.bf16.msra.mxu0 0
      %4302 = vmatprep.subr.bf16.mxu0 0
      %4303 = vmatpush1.bf16.msra.mxu0 0
      %4304 = vmatprep.subr.bf16.mxu0 0
      %4305 = vmatpush1.bf16.msra.mxu0 0
      %4306 = vmatprep.subr.bf16.mxu0 0
      %4307 = vmatpush1.bf16.msra.mxu0 0
      %4308 = vmatprep.subr.bf16.mxu0 0
      %4309 = vmatpush1.bf16.msra.mxu0 0
      %4310 = vmatprep.subr.bf16.mxu0 0
      %4311 = vmatpush1.bf16.msra.mxu0 0
      %4312 = vmatprep.subr.bf16.mxu0 0
      %4313 = vmatpush1.bf16.msra.mxu0 0
      %4314 = vmatprep.subr.bf16.mxu0 0
      %4315 = vmatpush1.bf16.msra.mxu0 0
      %4316 = vmatprep.subr.bf16.mxu0 0
      %4317 = vmatpush1.bf16.msra.mxu0 0
      %4318 = vmatprep.subr.bf16.mxu0 0
      %4319 = vmatpush1.bf16.msra.mxu0 0
      %4320 = vmatprep.subr.bf16.mxu0 0
      %4321 = vmatpush1.bf16.msra.mxu0 0
      %4322 = vmatprep.mubr.bf16.mxu0 0
      %4323 = vmatmul.mubr.bf16.gmra.mrb[0].mxu0 %v4285
      %v4324 = vpop.f32.mrb[0].mxu0
      %v4325 = vadd.f32 0.0, %v4324
      %v4326 = vpop.f32.mrb[0].mxu0
      %v4327 = vpop.f32.mrb[0].mxu0
      %v4328 = vpop.f32.mrb[0].mxu0
      %4329 = vdwg.mxu0
      %4331 = vrot.lane.b32.xlu0 %v3998, 64
      %v4332 = vpop.permute.xlu0 %4331
      %4334 = vrot.lane.b32.xlu0 %v4000, 64
      %v4335 = vpop.permute.xlu0 %4334
      %v4337 = vsel %vm1409, %v4332, 0
      %v4340 = vsel %vm1409, %v4335, 0
      %4342 = vmatprep.subr.bf16.mxu0 0
      %4343 = vmatpush1.bf16.xpose.msra.mxu0 %v4340
      %4344 = vmatprep.subr.bf16.mxu0 0
      %4345 = vmatpush1.bf16.xpose.msra.mxu0 0
      %4346 = vmatprep.subr.bf16.mxu0 0
      %4347 = vmatpush1.bf16.xpose.msra.mxu0 0
      %4348 = vmatprep.subr.bf16.mxu0 0
      %4349 = vmatpush1.bf16.xpose.msra.mxu0 0
      %4350 = vmatprep.subr.bf16.mxu0 0
      %4351 = vmatpush1.bf16.xpose.msra.mxu0 0
      %4352 = vmatprep.subr.bf16.mxu0 0
      %4353 = vmatpush1.bf16.xpose.msra.mxu0 0
      %4354 = vmatprep.subr.bf16.mxu0 0
      %4355 = vmatpush1.bf16.xpose.msra.mxu0 0
      %4356 = vmatprep.subr.bf16.mxu0 0
      %4357 = vmatpush1.bf16.xpose.msra.mxu0 0
      %4358 = vmatprep.subr.bf16.mxu0 0
      %4359 = vmatpush1.bf16.xpose.msra.mxu0 0
      %4360 = vmatprep.subr.bf16.mxu0 0
      %4361 = vmatpush1.bf16.xpose.msra.mxu0 0
      %4362 = vmatprep.subr.bf16.mxu0 0
      %4363 = vmatpush1.bf16.xpose.msra.mxu0 0
      %4364 = vmatprep.subr.bf16.mxu0 0
      %4365 = vmatpush1.bf16.xpose.msra.mxu0 0
      %4366 = vmatprep.subr.bf16.mxu0 0
      %4367 = vmatpush1.bf16.xpose.msra.mxu0 0
      %4368 = vmatprep.subr.bf16.mxu0 0
      %4369 = vmatpush1.bf16.xpose.msra.mxu0 0
      %4370 = vmatprep.subr.bf16.mxu0 0
      %4371 = vmatpush1.bf16.xpose.msra.mxu0 0
      %4372 = vmatprep.subr.bf16.mxu0 0
      %4373 = vmatpush1.bf16.xpose.msra.mxu0 0
      %4374 = vmatprep.mubr.bf16.mxu0 0
      %4375 = vmatmul.mubr.bf16.gmra.mrb[0].mxu0 %v4337
      %v4376 = vpop.f32.mrb[0].mxu0
      %v4377 = vadd.f32 0.0, %v4376
      %v4378 = vpop.f32.mrb[0].mxu0
      %v4379 = vpop.f32.mrb[0].mxu0
      %v4380 = vpop.f32.mrb[0].mxu0
      %4381 = vdwg.mxu0
      %v4382 = vmul.f32 %v4377, 0.125
      %v4383 = vadd.f32 %v4382, %v630
      %v4384 = vsel %vm1458, %v4383, -inf
      %4385 = vmax.xlane.f32.xlu0 %v4384
      %v4386 = vpop.xlane.xlu0 %4385
      %v4387 = vsub.f32 %v4383, %v4386
      %v4388 = vmul.f32 %v4387, 1.442695
      %v4389 = vpow.pop %v4388
      %v4390 = vsel %vm1458, %v4389, 0.0
      %4391 = vadd.xlane.f32.xlu0 %v4390
      %v4392 = vpop.xlane.xlu0 %4391
      %v4393 = vrcp.pop %v4392
      %v4394 = vmul.f32 %v4389, %v4393
      %v4395 = vpack.c.bf16 %v4394, %v4394
      %4397 = vrot.lane.b32.xlu0 %v4002, 64
      %v4398 = vpop.permute.xlu0 %4397
      %v4400 = vsel %vm1458, %v4395, 0
      %v4403 = vsel %vm1474, %v4398, 0
      %4405 = vmatprep.subr.bf16.mxu0 0
      %4406 = vmatpush1.bf16.msra.mxu0 %v4403
      %4407 = vmatprep.subr.bf16.mxu0 0
      %4408 = vmatpush1.bf16.msra.mxu0 0
      %4409 = vmatprep.subr.bf16.mxu0 0
      %4410 = vmatpush1.bf16.msra.mxu0 0
      %4411 = vmatprep.subr.bf16.mxu0 0
      %4412 = vmatpush1.bf16.msra.mxu0 0
      %4413 = vmatprep.subr.bf16.mxu0 0
      %4414 = vmatpush1.bf16.msra.mxu0 0
      %4415 = vmatprep.subr.bf16.mxu0 0
      %4416 = vmatpush1.bf16.msra.mxu0 0
      %4417 = vmatprep.subr.bf16.mxu0 0
      %4418 = vmatpush1.bf16.msra.mxu0 0
      %4419 = vmatprep.subr.bf16.mxu0 0
      %4420 = vmatpush1.bf16.msra.mxu0 0
      %4421 = vmatprep.subr.bf16.mxu0 0
      %4422 = vmatpush1.bf16.msra.mxu0 0
      %4423 = vmatprep.subr.bf16.mxu0 0
      %4424 = vmatpush1.bf16.msra.mxu0 0
      %4425 = vmatprep.subr.bf16.mxu0 0
      %4426 = vmatpush1.bf16.msra.mxu0 0
      %4427 = vmatprep.subr.bf16.mxu0 0
      %4428 = vmatpush1.bf16.msra.mxu0 0
      %4429 = vmatprep.subr.bf16.mxu0 0
      %4430 = vmatpush1.bf16.msra.mxu0 0
      %4431 = vmatprep.subr.bf16.mxu0 0
      %4432 = vmatpush1.bf16.msra.mxu0 0
      %4433 = vmatprep.subr.bf16.mxu0 0
      %4434 = vmatpush1.bf16.msra.mxu0 0
      %4435 = vmatprep.subr.bf16.mxu0 0
      %4436 = vmatpush1.bf16.msra.mxu0 0
      %4437 = vmatprep.mubr.bf16.mxu0 0
      %4438 = vmatmul.mubr.bf16.gmra.mrb[0].mxu0 %v4400
      %v4439 = vpop.f32.mrb[0].mxu0
      %v4440 = vadd.f32 0.0, %v4439
      %v4441 = vpop.f32.mrb[0].mxu0
      %v4442 = vpop.f32.mrb[0].mxu0
      %v4443 = vpop.f32.mrb[0].mxu0
      %4444 = vdwg.mxu0
      %4446 = vrot.lane.b32.xlu0 %v4219, 64
      %v4447 = vpop.permute.xlu0 %4446
      %4450 = vrot.lane.b32.xlu0 %v4440, 64
      %v4451 = vpop.permute.xlu0 %4450
      %v4453 = vsel %vm1409, %v4104, %v4447
      %v4454 = vsel %vm1409, %v4325, %v4451
      %v4455 = vpack.c.bf16 %v4453, %v4453
      %v4456 = vpack.c.bf16 %v4454, %v4454
      %s4457 = scalar_lea.vmem %s4, 256
      %v4458 = vld [vmem:[%s4457] sm:$0xff]
      %v4459 = vld [vmem:[%s4457 + $0x8] sm:$0xff]
      %v4460 = vld [vmem:[%s4457 + $0x10] sm:$0xff]
      %v4461 = vld [vmem:[%s4457 + $0x18] sm:$0xff]
      %v4462 = vld [vmem:[%s4457 + $0x20] sm:$0xff]
      %v4463 = vld [vmem:[%s4457 + $0x28] sm:$0xff]
      %v4464 = vld [vmem:[%s4457 + $0x30] sm:$0xff]
      %v4465 = vld [vmem:[%s4457 + $0x38] sm:$0xff]
      %v4466 = vld [vmem:[%s4457 + $0x40] sm:$0xff]
      %v4467 = vld [vmem:[%s4457 + $0x48] sm:$0xff]
      %v4468 = vld [vmem:[%s4457 + $0x50] sm:$0xff]
      %v4469 = vld [vmem:[%s4457 + $0x58] sm:$0xff]
      %v4470 = vld [vmem:[%s4457 + $0x60] sm:$0xff]
      %v4471 = vld [vmem:[%s4457 + $0x68] sm:$0xff]
      %v4472 = vld [vmem:[%s4457 + $0x70] sm:$0xff]
      %v4473 = vld [vmem:[%s4457 + $0x78] sm:$0xff]
      %v4474 = vld [vmem:[%s4457 + $0x80] sm:$0xff]
      %v4475 = vld [vmem:[%s4457 + $0x88] sm:$0xff]
      %v4476 = vld [vmem:[%s4457 + $0x90] sm:$0xff]
      %v4477 = vld [vmem:[%s4457 + $0x98] sm:$0xff]
      %v4478 = vld [vmem:[%s4457 + $0xa0] sm:$0xff]
      %v4479 = vld [vmem:[%s4457 + $0xa8] sm:$0xff]
      %v4480 = vld [vmem:[%s4457 + $0xb0] sm:$0xff]
      %v4481 = vld [vmem:[%s4457 + $0xb8] sm:$0xff]
      %v4482 = vld [vmem:[%s4457 + $0xc0] sm:$0xff]
      %v4483 = vld [vmem:[%s4457 + $0xc8] sm:$0xff]
      %v4484 = vld [vmem:[%s4457 + $0xd0] sm:$0xff]
      %v4485 = vld [vmem:[%s4457 + $0xd8] sm:$0xff]
      %v4486 = vld [vmem:[%s4457 + $0xe0] sm:$0xff]
      %v4487 = vld [vmem:[%s4457 + $0xe8] sm:$0xff]
      %v4488 = vld [vmem:[%s4457 + $0xf0] sm:$0xff]
      %v4489 = vld [vmem:[%s4457 + $0xf8] sm:$0xff]
      %v4490 = vlaneseq
      %v4491 = vshrl.u32 %v4490, 7
      %v4492 = vsub.s32 4, %v4491
      %v4493 = vrot.slane %v3224, %v4492
      %v4494 = vlaneseq
      %v4495 = vshrl.u32 %v4494, 7
      %v4496 = vsub.s32 4, %v4495
      %v4497 = vrot.slane %v3225, %v4496
      %v4530 = vunpack.c.l.b16 %v4458
      %v4531 = vunpack.c.h.b16 %v4458
      %v4532 = vunpack.c.l.b16 %v4459
      %v4533 = vunpack.c.h.b16 %v4459
      %v4534 = vunpack.c.l.b16 %v4460
      %v4535 = vunpack.c.h.b16 %v4460
      %v4536 = vunpack.c.l.b16 %v4461
      %v4537 = vunpack.c.h.b16 %v4461
      %v4538 = vunpack.c.l.b16 %v4462
      %v4539 = vunpack.c.h.b16 %v4462
      %v4540 = vunpack.c.l.b16 %v4463
      %v4541 = vunpack.c.h.b16 %v4463
      %v4542 = vunpack.c.l.b16 %v4464
      %v4543 = vunpack.c.h.b16 %v4464
      %v4544 = vunpack.c.l.b16 %v4465
      %v4545 = vunpack.c.h.b16 %v4465
      %v4546 = vunpack.c.l.b16 %v4466
      %v4547 = vunpack.c.h.b16 %v4466
      %v4548 = vunpack.c.l.b16 %v4467
      %v4549 = vunpack.c.h.b16 %v4467
      %v4550 = vunpack.c.l.b16 %v4468
      %v4551 = vunpack.c.h.b16 %v4468
      %v4552 = vunpack.c.l.b16 %v4469
      %v4553 = vunpack.c.h.b16 %v4469
      %v4554 = vunpack.c.l.b16 %v4470
      %v4555 = vunpack.c.h.b16 %v4470
      %v4556 = vunpack.c.l.b16 %v4471
      %v4557 = vunpack.c.h.b16 %v4471
      %v4558 = vunpack.c.l.b16 %v4472
      %v4559 = vunpack.c.h.b16 %v4472
      %v4560 = vunpack.c.l.b16 %v4473
      %v4561 = vunpack.c.h.b16 %v4473
      %v4562 = vunpack.c.l.b16 %v4474
      %v4563 = vunpack.c.h.b16 %v4474
      %v4564 = vunpack.c.l.b16 %v4475
      %v4565 = vunpack.c.h.b16 %v4475
      %v4566 = vunpack.c.l.b16 %v4476
      %v4567 = vunpack.c.h.b16 %v4476
      %v4568 = vunpack.c.l.b16 %v4477
      %v4569 = vunpack.c.h.b16 %v4477
      %v4570 = vunpack.c.l.b16 %v4478
      %v4571 = vunpack.c.h.b16 %v4478
      %v4572 = vunpack.c.l.b16 %v4479
      %v4573 = vunpack.c.h.b16 %v4479
      %v4574 = vunpack.c.l.b16 %v4480
      %v4575 = vunpack.c.h.b16 %v4480
      %v4576 = vunpack.c.l.b16 %v4481
      %v4577 = vunpack.c.h.b16 %v4481
      %v4578 = vunpack.c.l.b16 %v4482
      %v4579 = vunpack.c.h.b16 %v4482
      %v4580 = vunpack.c.l.b16 %v4483
      %v4581 = vunpack.c.h.b16 %v4483
      %v4582 = vunpack.c.l.b16 %v4484
      %v4583 = vunpack.c.h.b16 %v4484
      %v4584 = vunpack.c.l.b16 %v4485
      %v4585 = vunpack.c.h.b16 %v4485
      %v4586 = vunpack.c.l.b16 %v4486
      %v4587 = vunpack.c.h.b16 %v4486
      %v4588 = vunpack.c.l.b16 %v4487
      %v4589 = vunpack.c.h.b16 %v4487
      %v4590 = vunpack.c.l.b16 %v4488
      %v4591 = vunpack.c.h.b16 %v4488
      %v4592 = vunpack.c.l.b16 %v4489
      %v4593 = vunpack.c.h.b16 %v4489
      %v4594 = vpack.c.b16 %v4532, %v4530
      %v4595 = vpack.c.b16 %v4533, %v4531
      %v4596 = vpack.c.b16 %v4536, %v4534
      %v4597 = vpack.c.b16 %v4537, %v4535
      %v4598 = vpack.c.b16 %v4540, %v4538
      %v4599 = vpack.c.b16 %v4541, %v4539
      %v4600 = vpack.c.b16 %v4544, %v4542
      %v4601 = vpack.c.b16 %v4545, %v4543
      %v4602 = vpack.c.b16 %v4548, %v4546
      %v4603 = vpack.c.b16 %v4549, %v4547
      %v4604 = vpack.c.b16 %v4552, %v4550
      %v4605 = vpack.c.b16 %v4553, %v4551
      %v4606 = vpack.c.b16 %v4556, %v4554
      %v4607 = vpack.c.b16 %v4557, %v4555
      %v4608 = vpack.c.b16 %v4560, %v4558
      %v4609 = vpack.c.b16 %v4561, %v4559
      %v4610 = vpack.c.b16 %v4564, %v4562
      %v4611 = vpack.c.b16 %v4565, %v4563
      %v4612 = vpack.c.b16 %v4568, %v4566
      %v4613 = vpack.c.b16 %v4569, %v4567
      %v4614 = vpack.c.b16 %v4572, %v4570
      %v4615 = vpack.c.b16 %v4573, %v4571
      %v4616 = vpack.c.b16 %v4576, %v4574
      %v4617 = vpack.c.b16 %v4577, %v4575
      %v4618 = vpack.c.b16 %v4580, %v4578
      %v4619 = vpack.c.b16 %v4581, %v4579
      %v4620 = vpack.c.b16 %v4584, %v4582
      %v4621 = vpack.c.b16 %v4585, %v4583
      %v4622 = vpack.c.b16 %v4588, %v4586
      %v4623 = vpack.c.b16 %v4589, %v4587
      %v4624 = vpack.c.b16 %v4592, %v4590
      %v4625 = vpack.c.b16 %v4593, %v4591
      %4658 = vmatprep.subr.bf16.mxu0 %v4595
      %4659 = vmatpush1.bf16.msra.mxu0 %v4594
      %4660 = vmatprep.subr.bf16.mxu0 %v4597
      %4661 = vmatpush1.bf16.msra.mxu0 %v4596
      %4662 = vmatprep.subr.bf16.mxu0 %v4599
      %4663 = vmatpush1.bf16.msra.mxu0 %v4598
      %4664 = vmatprep.subr.bf16.mxu0 %v4601
      %4665 = vmatpush1.bf16.msra.mxu0 %v4600
      %4666 = vmatprep.subr.bf16.mxu0 %v4603
      %4667 = vmatpush1.bf16.msra.mxu0 %v4602
      %4668 = vmatprep.subr.bf16.mxu0 %v4605
      %4669 = vmatpush1.bf16.msra.mxu0 %v4604
      %4670 = vmatprep.subr.bf16.mxu0 %v4607
      %4671 = vmatpush1.bf16.msra.mxu0 %v4606
      %4672 = vmatprep.subr.bf16.mxu0 %v4609
      %4673 = vmatpush1.bf16.msra.mxu0 %v4608
      %4674 = vmatprep.subr.bf16.mxu0 %v4611
      %4675 = vmatpush1.bf16.msra.mxu0 %v4610
      %4676 = vmatprep.subr.bf16.mxu0 %v4613
      %4677 = vmatpush1.bf16.msra.mxu0 %v4612
      %4678 = vmatprep.subr.bf16.mxu0 %v4615
      %4679 = vmatpush1.bf16.msra.mxu0 %v4614
      %4680 = vmatprep.subr.bf16.mxu0 %v4617
      %4681 = vmatpush1.bf16.msra.mxu0 %v4616
      %4682 = vmatprep.subr.bf16.mxu0 %v4619
      %4683 = vmatpush1.bf16.msra.mxu0 %v4618
      %4684 = vmatprep.subr.bf16.mxu0 %v4621
      %4685 = vmatpush1.bf16.msra.mxu0 %v4620
      %4686 = vmatprep.subr.bf16.mxu0 %v4623
      %4687 = vmatpush1.bf16.msra.mxu0 %v4622
      %4688 = vmatprep.subr.bf16.mxu0 %v4625
      %4689 = vmatpush1.bf16.msra.mxu0 %v4624
      %4690 = vmatprep.mubr.bf16.mxu0 %v4456
      %4691 = vmatmul.mubr.bf16.gmra.mrb[0].mxu0 %v4455
      %v4692 = vpop.f32.mrb[0].mxu0
      %v4693 = vadd.f32 %v4493, %v4692
      %v4694 = vpop.f32.mrb[0].mxu0
      %v4695 = vadd.f32 %v4497, %v4694
      %v4696 = vpop.f32.mrb[0].mxu0
      %v4697 = vpop.f32.mrb[0].mxu0
      %4698 = vdwg.mxu0
      %v4699 = vadd.f32 %v3221, %v4693
      %v4700 = vadd.f32 %v3222, %v4695
      %v4701 = vadd.f32 %v4699, %v4700
      %4702 = vadd.xlane.f32.xlu0 %v4701
      %v4703 = vpop.xlane.xlu0 %4702
      %v4704 = vmul.f32 %v4703, %v636
      %v4705 = vsub.f32 %v4699, %v4704
      %v4706 = vsub.f32 %v4700, %v4704
      %v4707 = vmul.f32 %v4705, %v4705
      %v4708 = vmul.f32 %v4706, %v4706
      %v4709 = vadd.f32 %v4707, %v4708
      %4710 = vadd.xlane.f32.xlu0 %v4709
      %v4711 = vpop.xlane.xlu0 %4710
      %v4712 = vmul.f32 %v4711, %v636
      %v4713 = vadd.f32 %v4712, 1e-05
      %v4714 = vrsqrt.pop %v4713
      %v4715 = vmul.f32 %v4705, %v4714
      %v4716 = vmul.f32 %v4706, %v4714
      %v4717 = vlaneseq
      %v4718 = vshrl.u32 %v4717, 7
      %v4719 = vsub.s32 2, %v4718
      %v4720 = vrot.slane %v3224, %v4719
      %v4721 = vlaneseq
      %v4722 = vshrl.u32 %v4721, 7
      %v4723 = vsub.s32 2, %v4722
      %v4724 = vrot.slane %v3225, %v4723
      %v4725 = vmul.f32 %v4715, %v4720
      %v4726 = vmul.f32 %v4716, %v4724
      %v4727 = vlaneseq
      %v4728 = vshrl.u32 %v4727, 7
      %v4729 = vsub.s32 3, %v4728
      %v4730 = vrot.slane %v3224, %v4729
      %v4731 = vlaneseq
      %v4732 = vshrl.u32 %v4731, 7
      %v4733 = vsub.s32 3, %v4732
      %v4734 = vrot.slane %v3225, %v4733
      %v4735 = vadd.f32 %v4725, %v4730
      %v4736 = vadd.f32 %v4726, %v4734
      %v4737 = vpack.c.bf16 %v4735, %v4735
      %v4738 = vpack.c.bf16 %v4736, %v4736
      %s4739 = scalar_lea.vmem %s5, 512
      %v4740 = vld [vmem:[%s4739] sm:$0xff]
      %v4741 = vld [vmem:[%s4739 + $0x8] sm:$0xff]
      %v4742 = vld [vmem:[%s4739 + $0x10] sm:$0xff]
      %v4743 = vld [vmem:[%s4739 + $0x18] sm:$0xff]
      %v4744 = vld [vmem:[%s4739 + $0x20] sm:$0xff]
      %v4745 = vld [vmem:[%s4739 + $0x28] sm:$0xff]
      %v4746 = vld [vmem:[%s4739 + $0x30] sm:$0xff]
      %v4747 = vld [vmem:[%s4739 + $0x38] sm:$0xff]
      %v4748 = vld [vmem:[%s4739 + $0x40] sm:$0xff]
      %v4749 = vld [vmem:[%s4739 + $0x48] sm:$0xff]
      %v4750 = vld [vmem:[%s4739 + $0x50] sm:$0xff]
      %v4751 = vld [vmem:[%s4739 + $0x58] sm:$0xff]
      %v4752 = vld [vmem:[%s4739 + $0x60] sm:$0xff]
      %v4753 = vld [vmem:[%s4739 + $0x68] sm:$0xff]
      %v4754 = vld [vmem:[%s4739 + $0x70] sm:$0xff]
      %v4755 = vld [vmem:[%s4739 + $0x78] sm:$0xff]
      %v4756 = vld [vmem:[%s4739 + $0x80] sm:$0xff]
      %v4757 = vld [vmem:[%s4739 + $0x88] sm:$0xff]
      %v4758 = vld [vmem:[%s4739 + $0x90] sm:$0xff]
      %v4759 = vld [vmem:[%s4739 + $0x98] sm:$0xff]
      %v4760 = vld [vmem:[%s4739 + $0xa0] sm:$0xff]
      %v4761 = vld [vmem:[%s4739 + $0xa8] sm:$0xff]
      %v4762 = vld [vmem:[%s4739 + $0xb0] sm:$0xff]
      %v4763 = vld [vmem:[%s4739 + $0xb8] sm:$0xff]
      %v4764 = vld [vmem:[%s4739 + $0xc0] sm:$0xff]
      %v4765 = vld [vmem:[%s4739 + $0xc8] sm:$0xff]
      %v4766 = vld [vmem:[%s4739 + $0xd0] sm:$0xff]
      %v4767 = vld [vmem:[%s4739 + $0xd8] sm:$0xff]
      %v4768 = vld [vmem:[%s4739 + $0xe0] sm:$0xff]
      %v4769 = vld [vmem:[%s4739 + $0xe8] sm:$0xff]
      %v4770 = vld [vmem:[%s4739 + $0xf0] sm:$0xff]
      %v4771 = vld [vmem:[%s4739 + $0xf8] sm:$0xff]
      %v4772 = vld [vmem:[%s4739 + $0x100] sm:$0xff]
      %v4773 = vld [vmem:[%s4739 + $0x108] sm:$0xff]
      %v4774 = vld [vmem:[%s4739 + $0x110] sm:$0xff]
      %v4775 = vld [vmem:[%s4739 + $0x118] sm:$0xff]
      %v4776 = vld [vmem:[%s4739 + $0x120] sm:$0xff]
      %v4777 = vld [vmem:[%s4739 + $0x128] sm:$0xff]
      %v4778 = vld [vmem:[%s4739 + $0x130] sm:$0xff]
      %v4779 = vld [vmem:[%s4739 + $0x138] sm:$0xff]
      %v4780 = vld [vmem:[%s4739 + $0x140] sm:$0xff]
      %v4781 = vld [vmem:[%s4739 + $0x148] sm:$0xff]
      %v4782 = vld [vmem:[%s4739 + $0x150] sm:$0xff]
      %v4783 = vld [vmem:[%s4739 + $0x158] sm:$0xff]
      %v4784 = vld [vmem:[%s4739 + $0x160] sm:$0xff]
      %v4785 = vld [vmem:[%s4739 + $0x168] sm:$0xff]
      %v4786 = vld [vmem:[%s4739 + $0x170] sm:$0xff]
      %v4787 = vld [vmem:[%s4739 + $0x178] sm:$0xff]
      %v4788 = vld [vmem:[%s4739 + $0x180] sm:$0xff]
      %v4789 = vld [vmem:[%s4739 + $0x188] sm:$0xff]
      %v4790 = vld [vmem:[%s4739 + $0x190] sm:$0xff]
      %v4791 = vld [vmem:[%s4739 + $0x198] sm:$0xff]
      %v4792 = vld [vmem:[%s4739 + $0x1a0] sm:$0xff]
      %v4793 = vld [vmem:[%s4739 + $0x1a8] sm:$0xff]
      %v4794 = vld [vmem:[%s4739 + $0x1b0] sm:$0xff]
      %v4795 = vld [vmem:[%s4739 + $0x1b8] sm:$0xff]
      %v4796 = vld [vmem:[%s4739 + $0x1c0] sm:$0xff]
      %v4797 = vld [vmem:[%s4739 + $0x1c8] sm:$0xff]
      %v4798 = vld [vmem:[%s4739 + $0x1d0] sm:$0xff]
      %v4799 = vld [vmem:[%s4739 + $0x1d8] sm:$0xff]
      %v4800 = vld [vmem:[%s4739 + $0x1e0] sm:$0xff]
      %v4801 = vld [vmem:[%s4739 + $0x1e8] sm:$0xff]
      %v4802 = vld [vmem:[%s4739 + $0x1f0] sm:$0xff]
      %v4803 = vld [vmem:[%s4739 + $0x1f8] sm:$0xff]
      %s4804 = scalar_lea.vmem %s8, 4
      %v4805 = vld [vmem:[%s4804] sm:$0xf]
      %v4807 = vlaneseq
      %v4808 = vshrl.u32 %v4807, 7
      %v4809 = vsub.s32 0, %v4808
      %v4810 = vrot.slane %v4805, %v4809
      %v4811 = vlaneseq
      %v4812 = vshrl.u32 %v4811, 7
      %v4813 = vsub.s32 1, %v4812
      %v4814 = vrot.slane %v4805, %v4813
      %v4815 = vlaneseq
      %v4816 = vshrl.u32 %v4815, 7
      %v4817 = vsub.s32 2, %v4816
      %v4818 = vrot.slane %v4805, %v4817
      %v4819 = vlaneseq
      %v4820 = vshrl.u32 %v4819, 7
      %v4821 = vsub.s32 3, %v4820
      %v4822 = vrot.slane %v4805, %v4821
      %v4891 = vunpack.c.l.b16 %v4740
      %v4892 = vunpack.c.h.b16 %v4740
      %v4893 = vunpack.c.l.b16 %v4741
      %v4894 = vunpack.c.h.b16 %v4741
      %v4895 = vunpack.c.l.b16 %v4742
      %v4896 = vunpack.c.h.b16 %v4742
      %v4897 = vunpack.c.l.b16 %v4743
      %v4898 = vunpack.c.h.b16 %v4743
      %v4899 = vunpack.c.l.b16 %v4744
      %v4900 = vunpack.c.h.b16 %v4744
      %v4901 = vunpack.c.l.b16 %v4745
      %v4902 = vunpack.c.h.b16 %v4745
      %v4903 = vunpack.c.l.b16 %v4746
      %v4904 = vunpack.c.h.b16 %v4746
      %v4905 = vunpack.c.l.b16 %v4747
      %v4906 = vunpack.c.h.b16 %v4747
      %v4907 = vunpack.c.l.b16 %v4748
      %v4908 = vunpack.c.h.b16 %v4748
      %v4909 = vunpack.c.l.b16 %v4749
      %v4910 = vunpack.c.h.b16 %v4749
      %v4911 = vunpack.c.l.b16 %v4750
      %v4912 = vunpack.c.h.b16 %v4750
      %v4913 = vunpack.c.l.b16 %v4751
      %v4914 = vunpack.c.h.b16 %v4751
      %v4915 = vunpack.c.l.b16 %v4752
      %v4916 = vunpack.c.h.b16 %v4752
      %v4917 = vunpack.c.l.b16 %v4753
      %v4918 = vunpack.c.h.b16 %v4753
      %v4919 = vunpack.c.l.b16 %v4754
      %v4920 = vunpack.c.h.b16 %v4754
      %v4921 = vunpack.c.l.b16 %v4755
      %v4922 = vunpack.c.h.b16 %v4755
      %v4923 = vunpack.c.l.b16 %v4756
      %v4924 = vunpack.c.h.b16 %v4756
      %v4925 = vunpack.c.l.b16 %v4757
      %v4926 = vunpack.c.h.b16 %v4757
      %v4927 = vunpack.c.l.b16 %v4758
      %v4928 = vunpack.c.h.b16 %v4758
      %v4929 = vunpack.c.l.b16 %v4759
      %v4930 = vunpack.c.h.b16 %v4759
      %v4931 = vunpack.c.l.b16 %v4760
      %v4932 = vunpack.c.h.b16 %v4760
      %v4933 = vunpack.c.l.b16 %v4761
      %v4934 = vunpack.c.h.b16 %v4761
      %v4935 = vunpack.c.l.b16 %v4762
      %v4936 = vunpack.c.h.b16 %v4762
      %v4937 = vunpack.c.l.b16 %v4763
      %v4938 = vunpack.c.h.b16 %v4763
      %v4939 = vunpack.c.l.b16 %v4764
      %v4940 = vunpack.c.h.b16 %v4764
      %v4941 = vunpack.c.l.b16 %v4765
      %v4942 = vunpack.c.h.b16 %v4765
      %v4943 = vunpack.c.l.b16 %v4766
      %v4944 = vunpack.c.h.b16 %v4766
      %v4945 = vunpack.c.l.b16 %v4767
      %v4946 = vunpack.c.h.b16 %v4767
      %v4947 = vunpack.c.l.b16 %v4768
      %v4948 = vunpack.c.h.b16 %v4768
      %v4949 = vunpack.c.l.b16 %v4769
      %v4950 = vunpack.c.h.b16 %v4769
      %v4951 = vunpack.c.l.b16 %v4770
      %v4952 = vunpack.c.h.b16 %v4770
      %v4953 = vunpack.c.l.b16 %v4771
      %v4954 = vunpack.c.h.b16 %v4771
      %v4955 = vunpack.c.l.b16 %v4772
      %v4956 = vunpack.c.h.b16 %v4772
      %v4957 = vunpack.c.l.b16 %v4773
      %v4958 = vunpack.c.h.b16 %v4773
      %v4959 = vunpack.c.l.b16 %v4774
      %v4960 = vunpack.c.h.b16 %v4774
      %v4961 = vunpack.c.l.b16 %v4775
      %v4962 = vunpack.c.h.b16 %v4775
      %v4963 = vunpack.c.l.b16 %v4776
      %v4964 = vunpack.c.h.b16 %v4776
      %v4965 = vunpack.c.l.b16 %v4777
      %v4966 = vunpack.c.h.b16 %v4777
      %v4967 = vunpack.c.l.b16 %v4778
      %v4968 = vunpack.c.h.b16 %v4778
      %v4969 = vunpack.c.l.b16 %v4779
      %v4970 = vunpack.c.h.b16 %v4779
      %v4971 = vunpack.c.l.b16 %v4780
      %v4972 = vunpack.c.h.b16 %v4780
      %v4973 = vunpack.c.l.b16 %v4781
      %v4974 = vunpack.c.h.b16 %v4781
      %v4975 = vunpack.c.l.b16 %v4782
      %v4976 = vunpack.c.h.b16 %v4782
      %v4977 = vunpack.c.l.b16 %v4783
      %v4978 = vunpack.c.h.b16 %v4783
      %v4979 = vunpack.c.l.b16 %v4784
      %v4980 = vunpack.c.h.b16 %v4784
      %v4981 = vunpack.c.l.b16 %v4785
      %v4982 = vunpack.c.h.b16 %v4785
      %v4983 = vunpack.c.l.b16 %v4786
      %v4984 = vunpack.c.h.b16 %v4786
      %v4985 = vunpack.c.l.b16 %v4787
      %v4986 = vunpack.c.h.b16 %v4787
      %v4987 = vunpack.c.l.b16 %v4788
      %v4988 = vunpack.c.h.b16 %v4788
      %v4989 = vunpack.c.l.b16 %v4789
      %v4990 = vunpack.c.h.b16 %v4789
      %v4991 = vunpack.c.l.b16 %v4790
      %v4992 = vunpack.c.h.b16 %v4790
      %v4993 = vunpack.c.l.b16 %v4791
      %v4994 = vunpack.c.h.b16 %v4791
      %v4995 = vunpack.c.l.b16 %v4792
      %v4996 = vunpack.c.h.b16 %v4792
      %v4997 = vunpack.c.l.b16 %v4793
      %v4998 = vunpack.c.h.b16 %v4793
      %v4999 = vunpack.c.l.b16 %v4794
      %v5000 = vunpack.c.h.b16 %v4794
      %v5001 = vunpack.c.l.b16 %v4795
      %v5002 = vunpack.c.h.b16 %v4795
      %v5003 = vunpack.c.l.b16 %v4796
      %v5004 = vunpack.c.h.b16 %v4796
      %v5005 = vunpack.c.l.b16 %v4797
      %v5006 = vunpack.c.h.b16 %v4797
      %v5007 = vunpack.c.l.b16 %v4798
      %v5008 = vunpack.c.h.b16 %v4798
      %v5009 = vunpack.c.l.b16 %v4799
      %v5010 = vunpack.c.h.b16 %v4799
      %v5011 = vunpack.c.l.b16 %v4800
      %v5012 = vunpack.c.h.b16 %v4800
      %v5013 = vunpack.c.l.b16 %v4801
      %v5014 = vunpack.c.h.b16 %v4801
      %v5015 = vunpack.c.l.b16 %v4802
      %v5016 = vunpack.c.h.b16 %v4802
      %v5017 = vunpack.c.l.b16 %v4803
      %v5018 = vunpack.c.h.b16 %v4803
      %v5019 = vpack.c.b16 %v4895, %v4891
      %v5020 = vpack.c.b16 %v4896, %v4892
      %v5021 = vpack.c.b16 %v4897, %v4893
      %v5022 = vpack.c.b16 %v4898, %v4894
      %v5023 = vpack.c.b16 %v4903, %v4899
      %v5024 = vpack.c.b16 %v4904, %v4900
      %v5025 = vpack.c.b16 %v4905, %v4901
      %v5026 = vpack.c.b16 %v4906, %v4902
      %v5027 = vpack.c.b16 %v4911, %v4907
      %v5028 = vpack.c.b16 %v4912, %v4908
      %v5029 = vpack.c.b16 %v4913, %v4909
      %v5030 = vpack.c.b16 %v4914, %v4910
      %v5031 = vpack.c.b16 %v4919, %v4915
      %v5032 = vpack.c.b16 %v4920, %v4916
      %v5033 = vpack.c.b16 %v4921, %v4917
      %v5034 = vpack.c.b16 %v4922, %v4918
      %v5035 = vpack.c.b16 %v4927, %v4923
      %v5036 = vpack.c.b16 %v4928, %v4924
      %v5037 = vpack.c.b16 %v4929, %v4925
      %v5038 = vpack.c.b16 %v4930, %v4926
      %v5039 = vpack.c.b16 %v4935, %v4931
      %v5040 = vpack.c.b16 %v4936, %v4932
      %v5041 = vpack.c.b16 %v4937, %v4933
      %v5042 = vpack.c.b16 %v4938, %v4934
      %v5043 = vpack.c.b16 %v4943, %v4939
      %v5044 = vpack.c.b16 %v4944, %v4940
      %v5045 = vpack.c.b16 %v4945, %v4941
      %v5046 = vpack.c.b16 %v4946, %v4942
      %v5047 = vpack.c.b16 %v4951, %v4947
      %v5048 = vpack.c.b16 %v4952, %v4948
      %v5049 = vpack.c.b16 %v4953, %v4949
      %v5050 = vpack.c.b16 %v4954, %v4950
      %v5051 = vpack.c.b16 %v4959, %v4955
      %v5052 = vpack.c.b16 %v4960, %v4956
      %v5053 = vpack.c.b16 %v4961, %v4957
      %v5054 = vpack.c.b16 %v4962, %v4958
      %v5055 = vpack.c.b16 %v4967, %v4963
      %v5056 = vpack.c.b16 %v4968, %v4964
      %v5057 = vpack.c.b16 %v4969, %v4965
      %v5058 = vpack.c.b16 %v4970, %v4966
      %v5059 = vpack.c.b16 %v4975, %v4971
      %v5060 = vpack.c.b16 %v4976, %v4972
      %v5061 = vpack.c.b16 %v4977, %v4973
      %v5062 = vpack.c.b16 %v4978, %v4974
      %v5063 = vpack.c.b16 %v4983, %v4979
      %v5064 = vpack.c.b16 %v4984, %v4980
      %v5065 = vpack.c.b16 %v4985, %v4981
      %v5066 = vpack.c.b16 %v4986, %v4982
      %v5067 = vpack.c.b16 %v4991, %v4987
      %v5068 = vpack.c.b16 %v4992, %v4988
      %v5069 = vpack.c.b16 %v4993, %v4989
      %v5070 = vpack.c.b16 %v4994, %v4990
      %v5071 = vpack.c.b16 %v4999, %v4995
      %v5072 = vpack.c.b16 %v5000, %v4996
      %v5073 = vpack.c.b16 %v5001, %v4997
      %v5074 = vpack.c.b16 %v5002, %v4998
      %v5075 = vpack.c.b16 %v5007, %v5003
      %v5076 = vpack.c.b16 %v5008, %v5004
      %v5077 = vpack.c.b16 %v5009, %v5005
      %v5078 = vpack.c.b16 %v5010, %v5006
      %v5079 = vpack.c.b16 %v5015, %v5011
      %v5080 = vpack.c.b16 %v5016, %v5012
      %v5081 = vpack.c.b16 %v5017, %v5013
      %v5082 = vpack.c.b16 %v5018, %v5014
      %5147 = vmatprep.subr.bf16.mxu0 %v5020
      %5148 = vmatpush1.bf16.msra.mxu0 %v5019
      %5149 = vmatprep.subr.bf16.mxu0 %v5024
      %5150 = vmatpush1.bf16.msra.mxu0 %v5023
      %5151 = vmatprep.subr.bf16.mxu0 %v5028
      %5152 = vmatpush1.bf16.msra.mxu0 %v5027
      %5153 = vmatprep.subr.bf16.mxu0 %v5032
      %5154 = vmatpush1.bf16.msra.mxu0 %v5031
      %5155 = vmatprep.subr.bf16.mxu0 %v5036
      %5156 = vmatpush1.bf16.msra.mxu0 %v5035
      %5157 = vmatprep.subr.bf16.mxu0 %v5040
      %5158 = vmatpush1.bf16.msra.mxu0 %v5039
      %5159 = vmatprep.subr.bf16.mxu0 %v5044
      %5160 = vmatpush1.bf16.msra.mxu0 %v5043
      %5161 = vmatprep.subr.bf16.mxu0 %v5048
      %5162 = vmatpush1.bf16.msra.mxu0 %v5047
      %5163 = vmatprep.subr.bf16.mxu0 %v5052
      %5164 = vmatpush1.bf16.msra.mxu0 %v5051
      %5165 = vmatprep.subr.bf16.mxu0 %v5056
      %5166 = vmatpush1.bf16.msra.mxu0 %v5055
      %5167 = vmatprep.subr.bf16.mxu0 %v5060
      %5168 = vmatpush1.bf16.msra.mxu0 %v5059
      %5169 = vmatprep.subr.bf16.mxu0 %v5064
      %5170 = vmatpush1.bf16.msra.mxu0 %v5063
      %5171 = vmatprep.subr.bf16.mxu0 %v5068
      %5172 = vmatpush1.bf16.msra.mxu0 %v5067
      %5173 = vmatprep.subr.bf16.mxu0 %v5072
      %5174 = vmatpush1.bf16.msra.mxu0 %v5071
      %5175 = vmatprep.subr.bf16.mxu0 %v5076
      %5176 = vmatpush1.bf16.msra.mxu0 %v5075
      %5177 = vmatprep.subr.bf16.mxu0 %v5080
      %5178 = vmatpush1.bf16.msra.mxu0 %v5079
      %5179 = vmatprep.mubr.bf16.mxu0 %v4738
      %5180 = vmatmul.mubr.bf16.gmra.mrb[0].mxu0 %v4737
      %v5181 = vpop.f32.mrb[0].mxu0
      %v5182 = vadd.f32 %v4810, %v5181
      %v5183 = vpop.f32.mrb[0].mxu0
      %v5184 = vadd.f32 %v4814, %v5183
      %v5185 = vpop.f32.mrb[0].mxu0
      %v5186 = vpop.f32.mrb[0].mxu0
      %5187 = vdwg.mxu0
      %5188 = vmatprep.subr.bf16.mxu0 %v5022
      %5189 = vmatpush1.bf16.msra.mxu0 %v5021
      %5190 = vmatprep.subr.bf16.mxu0 %v5026
      %5191 = vmatpush1.bf16.msra.mxu0 %v5025
      %5192 = vmatprep.subr.bf16.mxu0 %v5030
      %5193 = vmatpush1.bf16.msra.mxu0 %v5029
      %5194 = vmatprep.subr.bf16.mxu0 %v5034
      %5195 = vmatpush1.bf16.msra.mxu0 %v5033
      %5196 = vmatprep.subr.bf16.mxu0 %v5038
      %5197 = vmatpush1.bf16.msra.mxu0 %v5037
      %5198 = vmatprep.subr.bf16.mxu0 %v5042
      %5199 = vmatpush1.bf16.msra.mxu0 %v5041
      %5200 = vmatprep.subr.bf16.mxu0 %v5046
      %5201 = vmatpush1.bf16.msra.mxu0 %v5045
      %5202 = vmatprep.subr.bf16.mxu0 %v5050
      %5203 = vmatpush1.bf16.msra.mxu0 %v5049
      %5204 = vmatprep.subr.bf16.mxu0 %v5054
      %5205 = vmatpush1.bf16.msra.mxu0 %v5053
      %5206 = vmatprep.subr.bf16.mxu0 %v5058
      %5207 = vmatpush1.bf16.msra.mxu0 %v5057
      %5208 = vmatprep.subr.bf16.mxu0 %v5062
      %5209 = vmatpush1.bf16.msra.mxu0 %v5061
      %5210 = vmatprep.subr.bf16.mxu0 %v5066
      %5211 = vmatpush1.bf16.msra.mxu0 %v5065
      %5212 = vmatprep.subr.bf16.mxu0 %v5070
      %5213 = vmatpush1.bf16.msra.mxu0 %v5069
      %5214 = vmatprep.subr.bf16.mxu0 %v5074
      %5215 = vmatpush1.bf16.msra.mxu0 %v5073
      %5216 = vmatprep.subr.bf16.mxu0 %v5078
      %5217 = vmatpush1.bf16.msra.mxu0 %v5077
      %5218 = vmatprep.subr.bf16.mxu0 %v5082
      %5219 = vmatpush1.bf16.msra.mxu0 %v5081
      %5220 = vmatprep.mubr.bf16.mxu0 %v4738
      %5221 = vmatmul.mubr.bf16.gmra.mrb[0].mxu0 %v4737
      %v5222 = vpop.f32.mrb[0].mxu0
      %v5223 = vadd.f32 %v4818, %v5222
      %v5224 = vpop.f32.mrb[0].mxu0
      %v5225 = vadd.f32 %v4822, %v5224
      %v5226 = vpop.f32.mrb[0].mxu0
      %v5227 = vpop.f32.mrb[0].mxu0
      %5228 = vdwg.mxu0
      %v5229 = vmul.f32 %v5182, 0.5
      %v5230 = vmul.f32 %v5184, 0.5
      %v5231 = vmul.f32 %v5223, 0.5
      %v5232 = vmul.f32 %v5225, 0.5
      %v5233 = vmul.f32 %v5182, 0.70710677
      %v5234 = vmul.f32 %v5184, 0.70710677
      %v5235 = vmul.f32 %v5223, 0.70710677
      %v5236 = vmul.f32 %v5225, 0.70710677
      %v5237 = vand.u32 2147483647, %v5233
      %v5238 = vand.u32 2147483647, %v5234
      %v5239 = vand.u32 2147483647, %v5235
      %v5240 = vand.u32 2147483647, %v5236
      %v5241 = vmul.f32 %v5237, 0.3275911
      %v5242 = vmul.f32 %v5238, 0.3275911
      %v5243 = vmul.f32 %v5239, 0.3275911
      %v5244 = vmul.f32 %v5240, 0.3275911
      %v5245 = vadd.f32 %v5241, 1.0
      %v5246 = vadd.f32 %v5242, 1.0
      %v5247 = vadd.f32 %v5243, 1.0
      %v5248 = vadd.f32 %v5244, 1.0
      %v5249 = vrcp.pop %v5245
      %v5250 = vmul.f32 1.0, %v5249
      %v5251 = vrcp.pop %v5246
      %v5252 = vmul.f32 1.0, %v5251
      %v5253 = vrcp.pop %v5247
      %v5254 = vmul.f32 1.0, %v5253
      %v5255 = vrcp.pop %v5248
      %v5256 = vmul.f32 1.0, %v5255
      %v5257 = vmul.f32 %v5250, 1.0614054
      %v5258 = vmul.f32 %v5252, 1.0614054
      %v5259 = vmul.f32 %v5254, 1.0614054
      %v5260 = vmul.f32 %v5256, 1.0614054
      %v5261 = vadd.f32 %v5257, -1.4531521
      %v5262 = vadd.f32 %v5258, -1.4531521
      %v5263 = vadd.f32 %v5259, -1.4531521
      %v5264 = vadd.f32 %v5260, -1.4531521
      %v5265 = vmul.f32 %v5261, %v5250
      %v5266 = vmul.f32 %v5262, %v5252
      %v5267 = vmul.f32 %v5263, %v5254
      %v5268 = vmul.f32 %v5264, %v5256
      %v5269 = vadd.f32 %v5265, 1.4214138
      %v5270 = vadd.f32 %v5266, 1.4214138
      %v5271 = vadd.f32 %v5267, 1.4214138
      %v5272 = vadd.f32 %v5268, 1.4214138
      %v5273 = vmul.f32 %v5269, %v5250
      %v5274 = vmul.f32 %v5270, %v5252
      %v5275 = vmul.f32 %v5271, %v5254
      %v5276 = vmul.f32 %v5272, %v5256
      %v5277 = vadd.f32 %v5273, -0.28449672
      %v5278 = vadd.f32 %v5274, -0.28449672
      %v5279 = vadd.f32 %v5275, -0.28449672
      %v5280 = vadd.f32 %v5276, -0.28449672
      %v5281 = vmul.f32 %v5277, %v5250
      %v5282 = vmul.f32 %v5278, %v5252
      %v5283 = vmul.f32 %v5279, %v5254
      %v5284 = vmul.f32 %v5280, %v5256
      %v5285 = vadd.f32 %v5281, 0.2548296
      %v5286 = vadd.f32 %v5282, 0.2548296
      %v5287 = vadd.f32 %v5283, 0.2548296
      %v5288 = vadd.f32 %v5284, 0.2548296
      %v5289 = vmul.f32 %v5285, %v5250
      %v5290 = vmul.f32 %v5286, %v5252
      %v5291 = vmul.f32 %v5287, %v5254
      %v5292 = vmul.f32 %v5288, %v5256
      %v5293 = vsub.f32 0.0, %v5237
      %v5294 = vsub.f32 0.0, %v5238
      %v5295 = vsub.f32 0.0, %v5239
      %v5296 = vsub.f32 0.0, %v5240
      %v5297 = vmul.f32 %v5293, %v5237
      %v5298 = vmul.f32 %v5294, %v5238
      %v5299 = vmul.f32 %v5295, %v5239
      %v5300 = vmul.f32 %v5296, %v5240
      %v5301 = vmul.f32 %v5297, 1.442695
      %v5302 = vpow.pop %v5301
      %v5303 = vmul.f32 %v5298, 1.442695
      %v5304 = vpow.pop %v5303
      %v5305 = vmul.f32 %v5299, 1.442695
      %v5306 = vpow.pop %v5305
      %v5307 = vmul.f32 %v5300, 1.442695
      %v5308 = vpow.pop %v5307
      %v5309 = vmul.f32 %v5289, %v5302
      %v5310 = vmul.f32 %v5290, %v5304
      %v5311 = vmul.f32 %v5291, %v5306
      %v5312 = vmul.f32 %v5292, %v5308
      %v5313 = vsub.f32 1.0, %v5309
      %v5314 = vsub.f32 1.0, %v5310
      %v5315 = vsub.f32 1.0, %v5311
      %v5316 = vsub.f32 1.0, %v5312
      %vm5317 = vcmp.ge.f32.partialorder %v5233, 0.0
      %vm5318 = vcmp.ge.f32.partialorder %v5234, 0.0
      %vm5319 = vcmp.ge.f32.partialorder %v5235, 0.0
      %vm5320 = vcmp.ge.f32.partialorder %v5236, 0.0
      %v5321 = vsub.f32 0.0, %v5313
      %v5322 = vsub.f32 0.0, %v5314
      %v5323 = vsub.f32 0.0, %v5315
      %v5324 = vsub.f32 0.0, %v5316
      %v5325 = vsel %vm5317, %v5313, %v5321
      %v5326 = vsel %vm5318, %v5314, %v5322
      %v5327 = vsel %vm5319, %v5315, %v5323
      %v5328 = vsel %vm5320, %v5316, %v5324
      %v5329 = vadd.f32 %v5325, 1.0
      %v5330 = vadd.f32 %v5326, 1.0
      %v5331 = vadd.f32 %v5327, 1.0
      %v5332 = vadd.f32 %v5328, 1.0
      %v5333 = vmul.f32 %v5229, %v5329
      %v5334 = vmul.f32 %v5230, %v5330
      %v5335 = vmul.f32 %v5231, %v5331
      %v5336 = vmul.f32 %v5232, %v5332
      %v5337 = vpack.c.bf16 %v5333, %v5333
      %v5338 = vpack.c.bf16 %v5334, %v5334
      %v5339 = vpack.c.bf16 %v5335, %v5335
      %v5340 = vpack.c.bf16 %v5336, %v5336
      %s5341 = scalar_lea.vmem %s6, 512
      %v5342 = vld [vmem:[%s5341] sm:$0xff]
      %v5343 = vld [vmem:[%s5341 + $0x8] sm:$0xff]
      %v5344 = vld [vmem:[%s5341 + $0x10] sm:$0xff]
      %v5345 = vld [vmem:[%s5341 + $0x18] sm:$0xff]
      %v5346 = vld [vmem:[%s5341 + $0x20] sm:$0xff]
      %v5347 = vld [vmem:[%s5341 + $0x28] sm:$0xff]
      %v5348 = vld [vmem:[%s5341 + $0x30] sm:$0xff]
      %v5349 = vld [vmem:[%s5341 + $0x38] sm:$0xff]
      %v5350 = vld [vmem:[%s5341 + $0x40] sm:$0xff]
      %v5351 = vld [vmem:[%s5341 + $0x48] sm:$0xff]
      %v5352 = vld [vmem:[%s5341 + $0x50] sm:$0xff]
      %v5353 = vld [vmem:[%s5341 + $0x58] sm:$0xff]
      %v5354 = vld [vmem:[%s5341 + $0x60] sm:$0xff]
      %v5355 = vld [vmem:[%s5341 + $0x68] sm:$0xff]
      %v5356 = vld [vmem:[%s5341 + $0x70] sm:$0xff]
      %v5357 = vld [vmem:[%s5341 + $0x78] sm:$0xff]
      %v5358 = vld [vmem:[%s5341 + $0x80] sm:$0xff]
      %v5359 = vld [vmem:[%s5341 + $0x88] sm:$0xff]
      %v5360 = vld [vmem:[%s5341 + $0x90] sm:$0xff]
      %v5361 = vld [vmem:[%s5341 + $0x98] sm:$0xff]
      %v5362 = vld [vmem:[%s5341 + $0xa0] sm:$0xff]
      %v5363 = vld [vmem:[%s5341 + $0xa8] sm:$0xff]
      %v5364 = vld [vmem:[%s5341 + $0xb0] sm:$0xff]
      %v5365 = vld [vmem:[%s5341 + $0xb8] sm:$0xff]
      %v5366 = vld [vmem:[%s5341 + $0xc0] sm:$0xff]
      %v5367 = vld [vmem:[%s5341 + $0xc8] sm:$0xff]
      %v5368 = vld [vmem:[%s5341 + $0xd0] sm:$0xff]
      %v5369 = vld [vmem:[%s5341 + $0xd8] sm:$0xff]
      %v5370 = vld [vmem:[%s5341 + $0xe0] sm:$0xff]
      %v5371 = vld [vmem:[%s5341 + $0xe8] sm:$0xff]
      %v5372 = vld [vmem:[%s5341 + $0xf0] sm:$0xff]
      %v5373 = vld [vmem:[%s5341 + $0xf8] sm:$0xff]
      %v5374 = vld [vmem:[%s5341 + $0x100] sm:$0xff]
      %v5375 = vld [vmem:[%s5341 + $0x108] sm:$0xff]
      %v5376 = vld [vmem:[%s5341 + $0x110] sm:$0xff]
      %v5377 = vld [vmem:[%s5341 + $0x118] sm:$0xff]
      %v5378 = vld [vmem:[%s5341 + $0x120] sm:$0xff]
      %v5379 = vld [vmem:[%s5341 + $0x128] sm:$0xff]
      %v5380 = vld [vmem:[%s5341 + $0x130] sm:$0xff]
      %v5381 = vld [vmem:[%s5341 + $0x138] sm:$0xff]
      %v5382 = vld [vmem:[%s5341 + $0x140] sm:$0xff]
      %v5383 = vld [vmem:[%s5341 + $0x148] sm:$0xff]
      %v5384 = vld [vmem:[%s5341 + $0x150] sm:$0xff]
      %v5385 = vld [vmem:[%s5341 + $0x158] sm:$0xff]
      %v5386 = vld [vmem:[%s5341 + $0x160] sm:$0xff]
      %v5387 = vld [vmem:[%s5341 + $0x168] sm:$0xff]
      %v5388 = vld [vmem:[%s5341 + $0x170] sm:$0xff]
      %v5389 = vld [vmem:[%s5341 + $0x178] sm:$0xff]
      %v5390 = vld [vmem:[%s5341 + $0x180] sm:$0xff]
      %v5391 = vld [vmem:[%s5341 + $0x188] sm:$0xff]
      %v5392 = vld [vmem:[%s5341 + $0x190] sm:$0xff]
      %v5393 = vld [vmem:[%s5341 + $0x198] sm:$0xff]
      %v5394 = vld [vmem:[%s5341 + $0x1a0] sm:$0xff]
      %v5395 = vld [vmem:[%s5341 + $0x1a8] sm:$0xff]
      %v5396 = vld [vmem:[%s5341 + $0x1b0] sm:$0xff]
      %v5397 = vld [vmem:[%s5341 + $0x1b8] sm:$0xff]
      %v5398 = vld [vmem:[%s5341 + $0x1c0] sm:$0xff]
      %v5399 = vld [vmem:[%s5341 + $0x1c8] sm:$0xff]
      %v5400 = vld [vmem:[%s5341 + $0x1d0] sm:$0xff]
      %v5401 = vld [vmem:[%s5341 + $0x1d8] sm:$0xff]
      %v5402 = vld [vmem:[%s5341 + $0x1e0] sm:$0xff]
      %v5403 = vld [vmem:[%s5341 + $0x1e8] sm:$0xff]
      %v5404 = vld [vmem:[%s5341 + $0x1f0] sm:$0xff]
      %v5405 = vld [vmem:[%s5341 + $0x1f8] sm:$0xff]
      %v5406 = vlaneseq
      %v5407 = vshrl.u32 %v5406, 7
      %v5408 = vsub.s32 5, %v5407
      %v5409 = vrot.slane %v3224, %v5408
      %v5410 = vlaneseq
      %v5411 = vshrl.u32 %v5410, 7
      %v5412 = vsub.s32 5, %v5411
      %v5413 = vrot.slane %v3225, %v5412
      %v5478 = vunpack.c.l.b16 %v5342
      %v5479 = vunpack.c.h.b16 %v5342
      %v5480 = vunpack.c.l.b16 %v5343
      %v5481 = vunpack.c.h.b16 %v5343
      %v5482 = vunpack.c.l.b16 %v5344
      %v5483 = vunpack.c.h.b16 %v5344
      %v5484 = vunpack.c.l.b16 %v5345
      %v5485 = vunpack.c.h.b16 %v5345
      %v5486 = vunpack.c.l.b16 %v5346
      %v5487 = vunpack.c.h.b16 %v5346
      %v5488 = vunpack.c.l.b16 %v5347
      %v5489 = vunpack.c.h.b16 %v5347
      %v5490 = vunpack.c.l.b16 %v5348
      %v5491 = vunpack.c.h.b16 %v5348
      %v5492 = vunpack.c.l.b16 %v5349
      %v5493 = vunpack.c.h.b16 %v5349
      %v5494 = vunpack.c.l.b16 %v5350
      %v5495 = vunpack.c.h.b16 %v5350
      %v5496 = vunpack.c.l.b16 %v5351
      %v5497 = vunpack.c.h.b16 %v5351
      %v5498 = vunpack.c.l.b16 %v5352
      %v5499 = vunpack.c.h.b16 %v5352
      %v5500 = vunpack.c.l.b16 %v5353
      %v5501 = vunpack.c.h.b16 %v5353
      %v5502 = vunpack.c.l.b16 %v5354
      %v5503 = vunpack.c.h.b16 %v5354
      %v5504 = vunpack.c.l.b16 %v5355
      %v5505 = vunpack.c.h.b16 %v5355
      %v5506 = vunpack.c.l.b16 %v5356
      %v5507 = vunpack.c.h.b16 %v5356
      %v5508 = vunpack.c.l.b16 %v5357
      %v5509 = vunpack.c.h.b16 %v5357
      %v5510 = vunpack.c.l.b16 %v5358
      %v5511 = vunpack.c.h.b16 %v5358
      %v5512 = vunpack.c.l.b16 %v5359
      %v5513 = vunpack.c.h.b16 %v5359
      %v5514 = vunpack.c.l.b16 %v5360
      %v5515 = vunpack.c.h.b16 %v5360
      %v5516 = vunpack.c.l.b16 %v5361
      %v5517 = vunpack.c.h.b16 %v5361
      %v5518 = vunpack.c.l.b16 %v5362
      %v5519 = vunpack.c.h.b16 %v5362
      %v5520 = vunpack.c.l.b16 %v5363
      %v5521 = vunpack.c.h.b16 %v5363
      %v5522 = vunpack.c.l.b16 %v5364
      %v5523 = vunpack.c.h.b16 %v5364
      %v5524 = vunpack.c.l.b16 %v5365
      %v5525 = vunpack.c.h.b16 %v5365
      %v5526 = vunpack.c.l.b16 %v5366
      %v5527 = vunpack.c.h.b16 %v5366
      %v5528 = vunpack.c.l.b16 %v5367
      %v5529 = vunpack.c.h.b16 %v5367
      %v5530 = vunpack.c.l.b16 %v5368
      %v5531 = vunpack.c.h.b16 %v5368
      %v5532 = vunpack.c.l.b16 %v5369
      %v5533 = vunpack.c.h.b16 %v5369
      %v5534 = vunpack.c.l.b16 %v5370
      %v5535 = vunpack.c.h.b16 %v5370
      %v5536 = vunpack.c.l.b16 %v5371
      %v5537 = vunpack.c.h.b16 %v5371
      %v5538 = vunpack.c.l.b16 %v5372
      %v5539 = vunpack.c.h.b16 %v5372
      %v5540 = vunpack.c.l.b16 %v5373
      %v5541 = vunpack.c.h.b16 %v5373
      %v5542 = vunpack.c.l.b16 %v5374
      %v5543 = vunpack.c.h.b16 %v5374
      %v5544 = vunpack.c.l.b16 %v5375
      %v5545 = vunpack.c.h.b16 %v5375
      %v5546 = vunpack.c.l.b16 %v5376
      %v5547 = vunpack.c.h.b16 %v5376
      %v5548 = vunpack.c.l.b16 %v5377
      %v5549 = vunpack.c.h.b16 %v5377
      %v5550 = vunpack.c.l.b16 %v5378
      %v5551 = vunpack.c.h.b16 %v5378
      %v5552 = vunpack.c.l.b16 %v5379
      %v5553 = vunpack.c.h.b16 %v5379
      %v5554 = vunpack.c.l.b16 %v5380
      %v5555 = vunpack.c.h.b16 %v5380
      %v5556 = vunpack.c.l.b16 %v5381
      %v5557 = vunpack.c.h.b16 %v5381
      %v5558 = vunpack.c.l.b16 %v5382
      %v5559 = vunpack.c.h.b16 %v5382
      %v5560 = vunpack.c.l.b16 %v5383
      %v5561 = vunpack.c.h.b16 %v5383
      %v5562 = vunpack.c.l.b16 %v5384
      %v5563 = vunpack.c.h.b16 %v5384
      %v5564 = vunpack.c.l.b16 %v5385
      %v5565 = vunpack.c.h.b16 %v5385
      %v5566 = vunpack.c.l.b16 %v5386
      %v5567 = vunpack.c.h.b16 %v5386
      %v5568 = vunpack.c.l.b16 %v5387
      %v5569 = vunpack.c.h.b16 %v5387
      %v5570 = vunpack.c.l.b16 %v5388
      %v5571 = vunpack.c.h.b16 %v5388
      %v5572 = vunpack.c.l.b16 %v5389
      %v5573 = vunpack.c.h.b16 %v5389
      %v5574 = vunpack.c.l.b16 %v5390
      %v5575 = vunpack.c.h.b16 %v5390
      %v5576 = vunpack.c.l.b16 %v5391
      %v5577 = vunpack.c.h.b16 %v5391
      %v5578 = vunpack.c.l.b16 %v5392
      %v5579 = vunpack.c.h.b16 %v5392
      %v5580 = vunpack.c.l.b16 %v5393
      %v5581 = vunpack.c.h.b16 %v5393
      %v5582 = vunpack.c.l.b16 %v5394
      %v5583 = vunpack.c.h.b16 %v5394
      %v5584 = vunpack.c.l.b16 %v5395
      %v5585 = vunpack.c.h.b16 %v5395
      %v5586 = vunpack.c.l.b16 %v5396
      %v5587 = vunpack.c.h.b16 %v5396
      %v5588 = vunpack.c.l.b16 %v5397
      %v5589 = vunpack.c.h.b16 %v5397
      %v5590 = vunpack.c.l.b16 %v5398
      %v5591 = vunpack.c.h.b16 %v5398
      %v5592 = vunpack.c.l.b16 %v5399
      %v5593 = vunpack.c.h.b16 %v5399
      %v5594 = vunpack.c.l.b16 %v5400
      %v5595 = vunpack.c.h.b16 %v5400
      %v5596 = vunpack.c.l.b16 %v5401
      %v5597 = vunpack.c.h.b16 %v5401
      %v5598 = vunpack.c.l.b16 %v5402
      %v5599 = vunpack.c.h.b16 %v5402
      %v5600 = vunpack.c.l.b16 %v5403
      %v5601 = vunpack.c.h.b16 %v5403
      %v5602 = vunpack.c.l.b16 %v5404
      %v5603 = vunpack.c.h.b16 %v5404
      %v5604 = vunpack.c.l.b16 %v5405
      %v5605 = vunpack.c.h.b16 %v5405
      %v5606 = vpack.c.b16 %v5480, %v5478
      %v5607 = vpack.c.b16 %v5481, %v5479
      %v5608 = vpack.c.b16 %v5484, %v5482
      %v5609 = vpack.c.b16 %v5485, %v5483
      %v5610 = vpack.c.b16 %v5488, %v5486
      %v5611 = vpack.c.b16 %v5489, %v5487
      %v5612 = vpack.c.b16 %v5492, %v5490
      %v5613 = vpack.c.b16 %v5493, %v5491
      %v5614 = vpack.c.b16 %v5496, %v5494
      %v5615 = vpack.c.b16 %v5497, %v5495
      %v5616 = vpack.c.b16 %v5500, %v5498
      %v5617 = vpack.c.b16 %v5501, %v5499
      %v5618 = vpack.c.b16 %v5504, %v5502
      %v5619 = vpack.c.b16 %v5505, %v5503
      %v5620 = vpack.c.b16 %v5508, %v5506
      %v5621 = vpack.c.b16 %v5509, %v5507
      %v5622 = vpack.c.b16 %v5512, %v5510
      %v5623 = vpack.c.b16 %v5513, %v5511
      %v5624 = vpack.c.b16 %v5516, %v5514
      %v5625 = vpack.c.b16 %v5517, %v5515
      %v5626 = vpack.c.b16 %v5520, %v5518
      %v5627 = vpack.c.b16 %v5521, %v5519
      %v5628 = vpack.c.b16 %v5524, %v5522
      %v5629 = vpack.c.b16 %v5525, %v5523
      %v5630 = vpack.c.b16 %v5528, %v5526
      %v5631 = vpack.c.b16 %v5529, %v5527
      %v5632 = vpack.c.b16 %v5532, %v5530
      %v5633 = vpack.c.b16 %v5533, %v5531
      %v5634 = vpack.c.b16 %v5536, %v5534
      %v5635 = vpack.c.b16 %v5537, %v5535
      %v5636 = vpack.c.b16 %v5540, %v5538
      %v5637 = vpack.c.b16 %v5541, %v5539
      %v5638 = vpack.c.b16 %v5544, %v5542
      %v5639 = vpack.c.b16 %v5545, %v5543
      %v5640 = vpack.c.b16 %v5548, %v5546
      %v5641 = vpack.c.b16 %v5549, %v5547
      %v5642 = vpack.c.b16 %v5552, %v5550
      %v5643 = vpack.c.b16 %v5553, %v5551
      %v5644 = vpack.c.b16 %v5556, %v5554
      %v5645 = vpack.c.b16 %v5557, %v5555
      %v5646 = vpack.c.b16 %v5560, %v5558
      %v5647 = vpack.c.b16 %v5561, %v5559
      %v5648 = vpack.c.b16 %v5564, %v5562
      %v5649 = vpack.c.b16 %v5565, %v5563
      %v5650 = vpack.c.b16 %v5568, %v5566
      %v5651 = vpack.c.b16 %v5569, %v5567
      %v5652 = vpack.c.b16 %v5572, %v5570
      %v5653 = vpack.c.b16 %v5573, %v5571
      %v5654 = vpack.c.b16 %v5576, %v5574
      %v5655 = vpack.c.b16 %v5577, %v5575
      %v5656 = vpack.c.b16 %v5580, %v5578
      %v5657 = vpack.c.b16 %v5581, %v5579
      %v5658 = vpack.c.b16 %v5584, %v5582
      %v5659 = vpack.c.b16 %v5585, %v5583
      %v5660 = vpack.c.b16 %v5588, %v5586
      %v5661 = vpack.c.b16 %v5589, %v5587
      %v5662 = vpack.c.b16 %v5592, %v5590
      %v5663 = vpack.c.b16 %v5593, %v5591
      %v5664 = vpack.c.b16 %v5596, %v5594
      %v5665 = vpack.c.b16 %v5597, %v5595
      %v5666 = vpack.c.b16 %v5600, %v5598
      %v5667 = vpack.c.b16 %v5601, %v5599
      %v5668 = vpack.c.b16 %v5604, %v5602
      %v5669 = vpack.c.b16 %v5605, %v5603
      %5734 = vmatprep.subr.bf16.mxu0 %v5607
      %5735 = vmatpush1.bf16.msra.mxu0 %v5606
      %5736 = vmatprep.subr.bf16.mxu0 %v5609
      %5737 = vmatpush1.bf16.msra.mxu0 %v5608
      %5738 = vmatprep.subr.bf16.mxu0 %v5611
      %5739 = vmatpush1.bf16.msra.mxu0 %v5610
      %5740 = vmatprep.subr.bf16.mxu0 %v5613
      %5741 = vmatpush1.bf16.msra.mxu0 %v5612
      %5742 = vmatprep.subr.bf16.mxu0 %v5615
      %5743 = vmatpush1.bf16.msra.mxu0 %v5614
      %5744 = vmatprep.subr.bf16.mxu0 %v5617
      %5745 = vmatpush1.bf16.msra.mxu0 %v5616
      %5746 = vmatprep.subr.bf16.mxu0 %v5619
      %5747 = vmatpush1.bf16.msra.mxu0 %v5618
      %5748 = vmatprep.subr.bf16.mxu0 %v5621
      %5749 = vmatpush1.bf16.msra.mxu0 %v5620
      %5750 = vmatprep.subr.bf16.mxu0 %v5623
      %5751 = vmatpush1.bf16.msra.mxu0 %v5622
      %5752 = vmatprep.subr.bf16.mxu0 %v5625
      %5753 = vmatpush1.bf16.msra.mxu0 %v5624
      %5754 = vmatprep.subr.bf16.mxu0 %v5627
      %5755 = vmatpush1.bf16.msra.mxu0 %v5626
      %5756 = vmatprep.subr.bf16.mxu0 %v5629
      %5757 = vmatpush1.bf16.msra.mxu0 %v5628
      %5758 = vmatprep.subr.bf16.mxu0 %v5631
      %5759 = vmatpush1.bf16.msra.mxu0 %v5630
      %5760 = vmatprep.subr.bf16.mxu0 %v5633
      %5761 = vmatpush1.bf16.msra.mxu0 %v5632
      %5762 = vmatprep.subr.bf16.mxu0 %v5635
      %5763 = vmatpush1.bf16.msra.mxu0 %v5634
      %5764 = vmatprep.subr.bf16.mxu0 %v5637
      %5765 = vmatpush1.bf16.msra.mxu0 %v5636
      %5766 = vmatprep.mubr.bf16.mxu0 %v5338
      %5767 = vmatmul.mubr.bf16.gmra.mrb[0].mxu0 %v5337
      %v5768 = vpop.f32.mrb[0].mxu0
      %v5769 = vadd.f32 %v5409, %v5768
      %v5770 = vpop.f32.mrb[0].mxu0
      %v5771 = vadd.f32 %v5413, %v5770
      %v5772 = vpop.f32.mrb[0].mxu0
      %v5773 = vpop.f32.mrb[0].mxu0
      %5774 = vdwg.mxu0
      %5775 = vmatprep.subr.bf16.mxu0 %v5639
      %5776 = vmatpush1.bf16.msra.mxu0 %v5638
      %5777 = vmatprep.subr.bf16.mxu0 %v5641
      %5778 = vmatpush1.bf16.msra.mxu0 %v5640
      %5779 = vmatprep.subr.bf16.mxu0 %v5643
      %5780 = vmatpush1.bf16.msra.mxu0 %v5642
      %5781 = vmatprep.subr.bf16.mxu0 %v5645
      %5782 = vmatpush1.bf16.msra.mxu0 %v5644
      %5783 = vmatprep.subr.bf16.mxu0 %v5647
      %5784 = vmatpush1.bf16.msra.mxu0 %v5646
      %5785 = vmatprep.subr.bf16.mxu0 %v5649
      %5786 = vmatpush1.bf16.msra.mxu0 %v5648
      %5787 = vmatprep.subr.bf16.mxu0 %v5651
      %5788 = vmatpush1.bf16.msra.mxu0 %v5650
      %5789 = vmatprep.subr.bf16.mxu0 %v5653
      %5790 = vmatpush1.bf16.msra.mxu0 %v5652
      %5791 = vmatprep.subr.bf16.mxu0 %v5655
      %5792 = vmatpush1.bf16.msra.mxu0 %v5654
      %5793 = vmatprep.subr.bf16.mxu0 %v5657
      %5794 = vmatpush1.bf16.msra.mxu0 %v5656
      %5795 = vmatprep.subr.bf16.mxu0 %v5659
      %5796 = vmatpush1.bf16.msra.mxu0 %v5658
      %5797 = vmatprep.subr.bf16.mxu0 %v5661
      %5798 = vmatpush1.bf16.msra.mxu0 %v5660
      %5799 = vmatprep.subr.bf16.mxu0 %v5663
      %5800 = vmatpush1.bf16.msra.mxu0 %v5662
      %5801 = vmatprep.subr.bf16.mxu0 %v5665
      %5802 = vmatpush1.bf16.msra.mxu0 %v5664
      %5803 = vmatprep.subr.bf16.mxu0 %v5667
      %5804 = vmatpush1.bf16.msra.mxu0 %v5666
      %5805 = vmatprep.subr.bf16.mxu0 %v5669
      %5806 = vmatpush1.bf16.msra.mxu0 %v5668
      %5807 = vmatprep.mubr.bf16.mxu0 %v5340
      %5808 = vmatmul.mubr.bf16.gmra.mrb[0].mxu0 %v5339
      %v5809 = vpop.f32.mrb[0].mxu0
      %v5810 = vadd.f32 %v5769, %v5809
      %v5811 = vpop.f32.mrb[0].mxu0
      %v5812 = vadd.f32 %v5771, %v5811
      %v5813 = vpop.f32.mrb[0].mxu0
      %v5814 = vpop.f32.mrb[0].mxu0
      %5815 = vdwg.mxu0
      %v5816 = vadd.f32 %v4699, %v5810
      %v5817 = vadd.f32 %v4700, %v5812
      %s5818 = scalar_lea.vmem %s9, 32
      %v5819 = vld [vmem:[%s5818] sm:$0x3f]
      %v5820 = vld [vmem:[%s5818 + $0x8] sm:$0x3f]
      %v5821 = vadd.f32 %v5816, %v5817
      %5822 = vadd.xlane.f32.xlu0 %v5821
      %v5823 = vpop.xlane.xlu0 %5822
      %v5824 = vmul.f32 %v5823, %v636
      %v5825 = vsub.f32 %v5816, %v5824
      %v5826 = vsub.f32 %v5817, %v5824
      %v5827 = vmul.f32 %v5825, %v5825
      %v5828 = vmul.f32 %v5826, %v5826
      %v5829 = vadd.f32 %v5827, %v5828
      %5830 = vadd.xlane.f32.xlu0 %v5829
      %v5831 = vpop.xlane.xlu0 %5830
      %v5832 = vmul.f32 %v5831, %v636
      %v5833 = vadd.f32 %v5832, 1e-05
      %v5834 = vrsqrt.pop %v5833
      %v5835 = vmul.f32 %v5825, %v5834
      %v5836 = vmul.f32 %v5826, %v5834
      %v5837 = vlaneseq
      %v5838 = vshrl.u32 %v5837, 7
      %v5839 = vsub.s32 0, %v5838
      %v5840 = vrot.slane %v5819, %v5839
      %v5841 = vlaneseq
      %v5842 = vshrl.u32 %v5841, 7
      %v5843 = vsub.s32 0, %v5842
      %v5844 = vrot.slane %v5820, %v5843
      %v5845 = vmul.f32 %v5835, %v5840
      %v5846 = vmul.f32 %v5836, %v5844
      %v5847 = vlaneseq
      %v5848 = vshrl.u32 %v5847, 7
      %v5849 = vsub.s32 1, %v5848
      %v5850 = vrot.slane %v5819, %v5849
      %v5851 = vlaneseq
      %v5852 = vshrl.u32 %v5851, 7
      %v5853 = vsub.s32 1, %v5852
      %v5854 = vrot.slane %v5820, %v5853
      %v5855 = vadd.f32 %v5845, %v5850
      %v5856 = vadd.f32 %v5846, %v5854
      %v5857 = vpack.c.bf16 %v5855, %v5855
      %v5858 = vpack.c.bf16 %v5856, %v5856
      %s5859 = scalar_lea.vmem %s3, 1536
      %v5860 = vld [vmem:[%s5859] sm:$0xff]
      %v5861 = vld [vmem:[%s5859 + $0x8] sm:$0xff]
      %v5862 = vld [vmem:[%s5859 + $0x10] sm:$0xff]
      %v5863 = vld [vmem:[%s5859 + $0x18] sm:$0xff]
      %v5864 = vld [vmem:[%s5859 + $0x20] sm:$0xff]
      %v5865 = vld [vmem:[%s5859 + $0x28] sm:$0xff]
      %v5866 = vld [vmem:[%s5859 + $0x30] sm:$0xff]
      %v5867 = vld [vmem:[%s5859 + $0x38] sm:$0xff]
      %v5868 = vld [vmem:[%s5859 + $0x40] sm:$0xff]
      %v5869 = vld [vmem:[%s5859 + $0x48] sm:$0xff]
      %v5870 = vld [vmem:[%s5859 + $0x50] sm:$0xff]
      %v5871 = vld [vmem:[%s5859 + $0x58] sm:$0xff]
      %v5872 = vld [vmem:[%s5859 + $0x60] sm:$0xff]
      %v5873 = vld [vmem:[%s5859 + $0x68] sm:$0xff]
      %v5874 = vld [vmem:[%s5859 + $0x70] sm:$0xff]
      %v5875 = vld [vmem:[%s5859 + $0x78] sm:$0xff]
      %v5876 = vld [vmem:[%s5859 + $0x80] sm:$0xff]
      %v5877 = vld [vmem:[%s5859 + $0x88] sm:$0xff]
      %v5878 = vld [vmem:[%s5859 + $0x90] sm:$0xff]
      %v5879 = vld [vmem:[%s5859 + $0x98] sm:$0xff]
      %v5880 = vld [vmem:[%s5859 + $0xa0] sm:$0xff]
      %v5881 = vld [vmem:[%s5859 + $0xa8] sm:$0xff]
      %v5882 = vld [vmem:[%s5859 + $0xb0] sm:$0xff]
      %v5883 = vld [vmem:[%s5859 + $0xb8] sm:$0xff]
      %v5884 = vld [vmem:[%s5859 + $0xc0] sm:$0xff]
      %v5885 = vld [vmem:[%s5859 + $0xc8] sm:$0xff]
      %v5886 = vld [vmem:[%s5859 + $0xd0] sm:$0xff]
      %v5887 = vld [vmem:[%s5859 + $0xd8] sm:$0xff]
      %v5888 = vld [vmem:[%s5859 + $0xe0] sm:$0xff]
      %v5889 = vld [vmem:[%s5859 + $0xe8] sm:$0xff]
      %v5890 = vld [vmem:[%s5859 + $0xf0] sm:$0xff]
      %v5891 = vld [vmem:[%s5859 + $0xf8] sm:$0xff]
      %v5892 = vld [vmem:[%s5859 + $0x100] sm:$0xff]
      %v5893 = vld [vmem:[%s5859 + $0x108] sm:$0xff]
      %v5894 = vld [vmem:[%s5859 + $0x110] sm:$0xff]
      %v5895 = vld [vmem:[%s5859 + $0x118] sm:$0xff]
      %v5896 = vld [vmem:[%s5859 + $0x120] sm:$0xff]
      %v5897 = vld [vmem:[%s5859 + $0x128] sm:$0xff]
      %v5898 = vld [vmem:[%s5859 + $0x130] sm:$0xff]
      %v5899 = vld [vmem:[%s5859 + $0x138] sm:$0xff]
      %v5900 = vld [vmem:[%s5859 + $0x140] sm:$0xff]
      %v5901 = vld [vmem:[%s5859 + $0x148] sm:$0xff]
      %v5902 = vld [vmem:[%s5859 + $0x150] sm:$0xff]
      %v5903 = vld [vmem:[%s5859 + $0x158] sm:$0xff]
      %v5904 = vld [vmem:[%s5859 + $0x160] sm:$0xff]
      %v5905 = vld [vmem:[%s5859 + $0x168] sm:$0xff]
      %v5906 = vld [vmem:[%s5859 + $0x170] sm:$0xff]
      %v5907 = vld [vmem:[%s5859 + $0x178] sm:$0xff]
      %v5908 = vld [vmem:[%s5859 + $0x180] sm:$0xff]
      %v5909 = vld [vmem:[%s5859 + $0x188] sm:$0xff]
      %v5910 = vld [vmem:[%s5859 + $0x190] sm:$0xff]
      %v5911 = vld [vmem:[%s5859 + $0x198] sm:$0xff]
      %v5912 = vld [vmem:[%s5859 + $0x1a0] sm:$0xff]
      %v5913 = vld [vmem:[%s5859 + $0x1a8] sm:$0xff]
      %v5914 = vld [vmem:[%s5859 + $0x1b0] sm:$0xff]
      %v5915 = vld [vmem:[%s5859 + $0x1b8] sm:$0xff]
      %v5916 = vld [vmem:[%s5859 + $0x1c0] sm:$0xff]
      %v5917 = vld [vmem:[%s5859 + $0x1c8] sm:$0xff]
      %v5918 = vld [vmem:[%s5859 + $0x1d0] sm:$0xff]
      %v5919 = vld [vmem:[%s5859 + $0x1d8] sm:$0xff]
      %v5920 = vld [vmem:[%s5859 + $0x1e0] sm:$0xff]
      %v5921 = vld [vmem:[%s5859 + $0x1e8] sm:$0xff]
      %v5922 = vld [vmem:[%s5859 + $0x1f0] sm:$0xff]
      %v5923 = vld [vmem:[%s5859 + $0x1f8] sm:$0xff]
      %v5924 = vld [vmem:[%s5859 + $0x200] sm:$0xff]
      %v5925 = vld [vmem:[%s5859 + $0x208] sm:$0xff]
      %v5926 = vld [vmem:[%s5859 + $0x210] sm:$0xff]
      %v5927 = vld [vmem:[%s5859 + $0x218] sm:$0xff]
      %v5928 = vld [vmem:[%s5859 + $0x220] sm:$0xff]
      %v5929 = vld [vmem:[%s5859 + $0x228] sm:$0xff]
      %v5930 = vld [vmem:[%s5859 + $0x230] sm:$0xff]
      %v5931 = vld [vmem:[%s5859 + $0x238] sm:$0xff]
      %v5932 = vld [vmem:[%s5859 + $0x240] sm:$0xff]
      %v5933 = vld [vmem:[%s5859 + $0x248] sm:$0xff]
      %v5934 = vld [vmem:[%s5859 + $0x250] sm:$0xff]
      %v5935 = vld [vmem:[%s5859 + $0x258] sm:$0xff]
      %v5936 = vld [vmem:[%s5859 + $0x260] sm:$0xff]
      %v5937 = vld [vmem:[%s5859 + $0x268] sm:$0xff]
      %v5938 = vld [vmem:[%s5859 + $0x270] sm:$0xff]
      %v5939 = vld [vmem:[%s5859 + $0x278] sm:$0xff]
      %v5940 = vld [vmem:[%s5859 + $0x280] sm:$0xff]
      %v5941 = vld [vmem:[%s5859 + $0x288] sm:$0xff]
      %v5942 = vld [vmem:[%s5859 + $0x290] sm:$0xff]
      %v5943 = vld [vmem:[%s5859 + $0x298] sm:$0xff]
      %v5944 = vld [vmem:[%s5859 + $0x2a0] sm:$0xff]
      %v5945 = vld [vmem:[%s5859 + $0x2a8] sm:$0xff]
      %v5946 = vld [vmem:[%s5859 + $0x2b0] sm:$0xff]
      %v5947 = vld [vmem:[%s5859 + $0x2b8] sm:$0xff]
      %v5948 = vld [vmem:[%s5859 + $0x2c0] sm:$0xff]
      %v5949 = vld [vmem:[%s5859 + $0x2c8] sm:$0xff]
      %v5950 = vld [vmem:[%s5859 + $0x2d0] sm:$0xff]
      %v5951 = vld [vmem:[%s5859 + $0x2d8] sm:$0xff]
      %v5952 = vld [vmem:[%s5859 + $0x2e0] sm:$0xff]
      %v5953 = vld [vmem:[%s5859 + $0x2e8] sm:$0xff]
      %v5954 = vld [vmem:[%s5859 + $0x2f0] sm:$0xff]
      %v5955 = vld [vmem:[%s5859 + $0x2f8] sm:$0xff]
      %s5956 = scalar_lea.vmem %s7, 12
      %v5957 = vld [vmem:[%s5956] sm:$0x3f]
      %v5959 = vlaneseq
      %v5960 = vshrl.u32 %v5959, 7
      %v5961 = vsub.s32 0, %v5960
      %v5962 = vrot.slane %v5957, %v5961
      %v5963 = vlaneseq
      %v5964 = vshrl.u32 %v5963, 7
      %v5965 = vsub.s32 1, %v5964
      %v5966 = vrot.slane %v5957, %v5965
      %v5967 = vlaneseq
      %v5968 = vshrl.u32 %v5967, 7
      %v5969 = vsub.s32 2, %v5968
      %v5970 = vrot.slane %v5957, %v5969
      %v5971 = vlaneseq
      %v5972 = vshrl.u32 %v5971, 7
      %v5973 = vsub.s32 3, %v5972
      %v5974 = vrot.slane %v5957, %v5973
      %v5975 = vlaneseq
      %v5976 = vshrl.u32 %v5975, 7
      %v5977 = vsub.s32 4, %v5976
      %v5978 = vrot.slane %v5957, %v5977
      %v5979 = vlaneseq
      %v5980 = vshrl.u32 %v5979, 7
      %v5981 = vsub.s32 5, %v5980
      %v5982 = vrot.slane %v5957, %v5981
      %v6085 = vunpack.c.l.b16 %v5860
      %v6086 = vunpack.c.h.b16 %v5860
      %v6087 = vunpack.c.l.b16 %v5861
      %v6088 = vunpack.c.h.b16 %v5861
      %v6089 = vunpack.c.l.b16 %v5862
      %v6090 = vunpack.c.h.b16 %v5862
      %v6091 = vunpack.c.l.b16 %v5863
      %v6092 = vunpack.c.h.b16 %v5863
      %v6093 = vunpack.c.l.b16 %v5864
      %v6094 = vunpack.c.h.b16 %v5864
      %v6095 = vunpack.c.l.b16 %v5865
      %v6096 = vunpack.c.h.b16 %v5865
      %v6097 = vunpack.c.l.b16 %v5866
      %v6098 = vunpack.c.h.b16 %v5866
      %v6099 = vunpack.c.l.b16 %v5867
      %v6100 = vunpack.c.h.b16 %v5867
      %v6101 = vunpack.c.l.b16 %v5868
      %v6102 = vunpack.c.h.b16 %v5868
      %v6103 = vunpack.c.l.b16 %v5869
      %v6104 = vunpack.c.h.b16 %v5869
      %v6105 = vunpack.c.l.b16 %v5870
      %v6106 = vunpack.c.h.b16 %v5870
      %v6107 = vunpack.c.l.b16 %v5871
      %v6108 = vunpack.c.h.b16 %v5871
      %v6109 = vunpack.c.l.b16 %v5872
      %v6110 = vunpack.c.h.b16 %v5872
      %v6111 = vunpack.c.l.b16 %v5873
      %v6112 = vunpack.c.h.b16 %v5873
      %v6113 = vunpack.c.l.b16 %v5874
      %v6114 = vunpack.c.h.b16 %v5874
      %v6115 = vunpack.c.l.b16 %v5875
      %v6116 = vunpack.c.h.b16 %v5875
      %v6117 = vunpack.c.l.b16 %v5876
      %v6118 = vunpack.c.h.b16 %v5876
      %v6119 = vunpack.c.l.b16 %v5877
      %v6120 = vunpack.c.h.b16 %v5877
      %v6121 = vunpack.c.l.b16 %v5878
      %v6122 = vunpack.c.h.b16 %v5878
      %v6123 = vunpack.c.l.b16 %v5879
      %v6124 = vunpack.c.h.b16 %v5879
      %v6125 = vunpack.c.l.b16 %v5880
      %v6126 = vunpack.c.h.b16 %v5880
      %v6127 = vunpack.c.l.b16 %v5881
      %v6128 = vunpack.c.h.b16 %v5881
      %v6129 = vunpack.c.l.b16 %v5882
      %v6130 = vunpack.c.h.b16 %v5882
      %v6131 = vunpack.c.l.b16 %v5883
      %v6132 = vunpack.c.h.b16 %v5883
      %v6133 = vunpack.c.l.b16 %v5884
      %v6134 = vunpack.c.h.b16 %v5884
      %v6135 = vunpack.c.l.b16 %v5885
      %v6136 = vunpack.c.h.b16 %v5885
      %v6137 = vunpack.c.l.b16 %v5886
      %v6138 = vunpack.c.h.b16 %v5886
      %v6139 = vunpack.c.l.b16 %v5887
      %v6140 = vunpack.c.h.b16 %v5887
      %v6141 = vunpack.c.l.b16 %v5888
      %v6142 = vunpack.c.h.b16 %v5888
      %v6143 = vunpack.c.l.b16 %v5889
      %v6144 = vunpack.c.h.b16 %v5889
      %v6145 = vunpack.c.l.b16 %v5890
      %v6146 = vunpack.c.h.b16 %v5890
      %v6147 = vunpack.c.l.b16 %v5891
      %v6148 = vunpack.c.h.b16 %v5891
      %v6149 = vunpack.c.l.b16 %v5892
      %v6150 = vunpack.c.h.b16 %v5892
      %v6151 = vunpack.c.l.b16 %v5893
      %v6152 = vunpack.c.h.b16 %v5893
      %v6153 = vunpack.c.l.b16 %v5894
      %v6154 = vunpack.c.h.b16 %v5894
      %v6155 = vunpack.c.l.b16 %v5895
      %v6156 = vunpack.c.h.b16 %v5895
      %v6157 = vunpack.c.l.b16 %v5896
      %v6158 = vunpack.c.h.b16 %v5896
      %v6159 = vunpack.c.l.b16 %v5897
      %v6160 = vunpack.c.h.b16 %v5897
      %v6161 = vunpack.c.l.b16 %v5898
      %v6162 = vunpack.c.h.b16 %v5898
      %v6163 = vunpack.c.l.b16 %v5899
      %v6164 = vunpack.c.h.b16 %v5899
      %v6165 = vunpack.c.l.b16 %v5900
      %v6166 = vunpack.c.h.b16 %v5900
      %v6167 = vunpack.c.l.b16 %v5901
      %v6168 = vunpack.c.h.b16 %v5901
      %v6169 = vunpack.c.l.b16 %v5902
      %v6170 = vunpack.c.h.b16 %v5902
      %v6171 = vunpack.c.l.b16 %v5903
      %v6172 = vunpack.c.h.b16 %v5903
      %v6173 = vunpack.c.l.b16 %v5904
      %v6174 = vunpack.c.h.b16 %v5904
      %v6175 = vunpack.c.l.b16 %v5905
      %v6176 = vunpack.c.h.b16 %v5905
      %v6177 = vunpack.c.l.b16 %v5906
      %v6178 = vunpack.c.h.b16 %v5906
      %v6179 = vunpack.c.l.b16 %v5907
      %v6180 = vunpack.c.h.b16 %v5907
      %v6181 = vunpack.c.l.b16 %v5908
      %v6182 = vunpack.c.h.b16 %v5908
      %v6183 = vunpack.c.l.b16 %v5909
      %v6184 = vunpack.c.h.b16 %v5909
      %v6185 = vunpack.c.l.b16 %v5910
      %v6186 = vunpack.c.h.b16 %v5910
      %v6187 = vunpack.c.l.b16 %v5911
      %v6188 = vunpack.c.h.b16 %v5911
      %v6189 = vunpack.c.l.b16 %v5912
      %v6190 = vunpack.c.h.b16 %v5912
      %v6191 = vunpack.c.l.b16 %v5913
      %v6192 = vunpack.c.h.b16 %v5913
      %v6193 = vunpack.c.l.b16 %v5914
      %v6194 = vunpack.c.h.b16 %v5914
      %v6195 = vunpack.c.l.b16 %v5915
      %v6196 = vunpack.c.h.b16 %v5915
      %v6197 = vunpack.c.l.b16 %v5916
      %v6198 = vunpack.c.h.b16 %v5916
      %v6199 = vunpack.c.l.b16 %v5917
      %v6200 = vunpack.c.h.b16 %v5917
      %v6201 = vunpack.c.l.b16 %v5918
      %v6202 = vunpack.c.h.b16 %v5918
      %v6203 = vunpack.c.l.b16 %v5919
      %v6204 = vunpack.c.h.b16 %v5919
      %v6205 = vunpack.c.l.b16 %v5920
      %v6206 = vunpack.c.h.b16 %v5920
      %v6207 = vunpack.c.l.b16 %v5921
      %v6208 = vunpack.c.h.b16 %v5921
      %v6209 = vunpack.c.l.b16 %v5922
      %v6210 = vunpack.c.h.b16 %v5922
      %v6211 = vunpack.c.l.b16 %v5923
      %v6212 = vunpack.c.h.b16 %v5923
      %v6213 = vunpack.c.l.b16 %v5924
      %v6214 = vunpack.c.h.b16 %v5924
      %v6215 = vunpack.c.l.b16 %v5925
      %v6216 = vunpack.c.h.b16 %v5925
      %v6217 = vunpack.c.l.b16 %v5926
      %v6218 = vunpack.c.h.b16 %v5926
      %v6219 = vunpack.c.l.b16 %v5927
      %v6220 = vunpack.c.h.b16 %v5927
      %v6221 = vunpack.c.l.b16 %v5928
      %v6222 = vunpack.c.h.b16 %v5928
      %v6223 = vunpack.c.l.b16 %v5929
      %v6224 = vunpack.c.h.b16 %v5929
      %v6225 = vunpack.c.l.b16 %v5930
      %v6226 = vunpack.c.h.b16 %v5930
      %v6227 = vunpack.c.l.b16 %v5931
      %v6228 = vunpack.c.h.b16 %v5931
      %v6229 = vunpack.c.l.b16 %v5932
      %v6230 = vunpack.c.h.b16 %v5932
      %v6231 = vunpack.c.l.b16 %v5933
      %v6232 = vunpack.c.h.b16 %v5933
      %v6233 = vunpack.c.l.b16 %v5934
      %v6234 = vunpack.c.h.b16 %v5934
      %v6235 = vunpack.c.l.b16 %v5935
      %v6236 = vunpack.c.h.b16 %v5935
      %v6237 = vunpack.c.l.b16 %v5936
      %v6238 = vunpack.c.h.b16 %v5936
      %v6239 = vunpack.c.l.b16 %v5937
      %v6240 = vunpack.c.h.b16 %v5937
      %v6241 = vunpack.c.l.b16 %v5938
      %v6242 = vunpack.c.h.b16 %v5938
      %v6243 = vunpack.c.l.b16 %v5939
      %v6244 = vunpack.c.h.b16 %v5939
      %v6245 = vunpack.c.l.b16 %v5940
      %v6246 = vunpack.c.h.b16 %v5940
      %v6247 = vunpack.c.l.b16 %v5941
      %v6248 = vunpack.c.h.b16 %v5941
      %v6249 = vunpack.c.l.b16 %v5942
      %v6250 = vunpack.c.h.b16 %v5942
      %v6251 = vunpack.c.l.b16 %v5943
      %v6252 = vunpack.c.h.b16 %v5943
      %v6253 = vunpack.c.l.b16 %v5944
      %v6254 = vunpack.c.h.b16 %v5944
      %v6255 = vunpack.c.l.b16 %v5945
      %v6256 = vunpack.c.h.b16 %v5945
      %v6257 = vunpack.c.l.b16 %v5946
      %v6258 = vunpack.c.h.b16 %v5946
      %v6259 = vunpack.c.l.b16 %v5947
      %v6260 = vunpack.c.h.b16 %v5947
      %v6261 = vunpack.c.l.b16 %v5948
      %v6262 = vunpack.c.h.b16 %v5948
      %v6263 = vunpack.c.l.b16 %v5949
      %v6264 = vunpack.c.h.b16 %v5949
      %v6265 = vunpack.c.l.b16 %v5950
      %v6266 = vunpack.c.h.b16 %v5950
      %v6267 = vunpack.c.l.b16 %v5951
      %v6268 = vunpack.c.h.b16 %v5951
      %v6269 = vunpack.c.l.b16 %v5952
      %v6270 = vunpack.c.h.b16 %v5952
      %v6271 = vunpack.c.l.b16 %v5953
      %v6272 = vunpack.c.h.b16 %v5953
      %v6273 = vunpack.c.l.b16 %v5954
      %v6274 = vunpack.c.h.b16 %v5954
      %v6275 = vunpack.c.l.b16 %v5955
      %v6276 = vunpack.c.h.b16 %v5955
      %v6277 = vpack.c.b16 %v6091, %v6085
      %v6278 = vpack.c.b16 %v6092, %v6086
      %v6279 = vpack.c.b16 %v6093, %v6087
      %v6280 = vpack.c.b16 %v6094, %v6088
      %v6281 = vpack.c.b16 %v6095, %v6089
      %v6282 = vpack.c.b16 %v6096, %v6090
      %v6283 = vpack.c.b16 %v6103, %v6097
      %v6284 = vpack.c.b16 %v6104, %v6098
      %v6285 = vpack.c.b16 %v6105, %v6099
      %v6286 = vpack.c.b16 %v6106, %v6100
      %v6287 = vpack.c.b16 %v6107, %v6101
      %v6288 = vpack.c.b16 %v6108, %v6102
      %v6289 = vpack.c.b16 %v6115, %v6109
      %v6290 = vpack.c.b16 %v6116, %v6110
      %v6291 = vpack.c.b16 %v6117, %v6111
      %v6292 = vpack.c.b16 %v6118, %v6112
      %v6293 = vpack.c.b16 %v6119, %v6113
      %v6294 = vpack.c.b16 %v6120, %v6114
      %v6295 = vpack.c.b16 %v6127, %v6121
      %v6296 = vpack.c.b16 %v6128, %v6122
      %v6297 = vpack.c.b16 %v6129, %v6123
      %v6298 = vpack.c.b16 %v6130, %v6124
      %v6299 = vpack.c.b16 %v6131, %v6125
      %v6300 = vpack.c.b16 %v6132, %v6126
      %v6301 = vpack.c.b16 %v6139, %v6133
      %v6302 = vpack.c.b16 %v6140, %v6134
      %v6303 = vpack.c.b16 %v6141, %v6135
      %v6304 = vpack.c.b16 %v6142, %v6136
      %v6305 = vpack.c.b16 %v6143, %v6137
      %v6306 = vpack.c.b16 %v6144, %v6138
      %v6307 = vpack.c.b16 %v6151, %v6145
      %v6308 = vpack.c.b16 %v6152, %v6146
      %v6309 = vpack.c.b16 %v6153, %v6147
      %v6310 = vpack.c.b16 %v6154, %v6148
      %v6311 = vpack.c.b16 %v6155, %v6149
      %v6312 = vpack.c.b16 %v6156, %v6150
      %v6313 = vpack.c.b16 %v6163, %v6157
      %v6314 = vpack.c.b16 %v6164, %v6158
      %v6315 = vpack.c.b16 %v6165, %v6159
      %v6316 = vpack.c.b16 %v6166, %v6160
      %v6317 = vpack.c.b16 %v6167, %v6161
      %v6318 = vpack.c.b16 %v6168, %v6162
      %v6319 = vpack.c.b16 %v6175, %v6169
      %v6320 = vpack.c.b16 %v6176, %v6170
      %v6321 = vpack.c.b16 %v6177, %v6171
      %v6322 = vpack.c.b16 %v6178, %v6172
      %v6323 = vpack.c.b16 %v6179, %v6173
      %v6324 = vpack.c.b16 %v6180, %v6174
      %v6325 = vpack.c.b16 %v6187, %v6181
      %v6326 = vpack.c.b16 %v6188, %v6182
      %v6327 = vpack.c.b16 %v6189, %v6183
      %v6328 = vpack.c.b16 %v6190, %v6184
      %v6329 = vpack.c.b16 %v6191, %v6185
      %v6330 = vpack.c.b16 %v6192, %v6186
      %v6331 = vpack.c.b16 %v6199, %v6193
      %v6332 = vpack.c.b16 %v6200, %v6194
      %v6333 = vpack.c.b16 %v6201, %v6195
      %v6334 = vpack.c.b16 %v6202, %v6196
      %v6335 = vpack.c.b16 %v6203, %v6197
      %v6336 = vpack.c.b16 %v6204, %v6198
      %v6337 = vpack.c.b16 %v6211, %v6205
      %v6338 = vpack.c.b16 %v6212, %v6206
      %v6339 = vpack.c.b16 %v6213, %v6207
      %v6340 = vpack.c.b16 %v6214, %v6208
      %v6341 = vpack.c.b16 %v6215, %v6209
      %v6342 = vpack.c.b16 %v6216, %v6210
      %v6343 = vpack.c.b16 %v6223, %v6217
      %v6344 = vpack.c.b16 %v6224, %v6218
      %v6345 = vpack.c.b16 %v6225, %v6219
      %v6346 = vpack.c.b16 %v6226, %v6220
      %v6347 = vpack.c.b16 %v6227, %v6221
      %v6348 = vpack.c.b16 %v6228, %v6222
      %v6349 = vpack.c.b16 %v6235, %v6229
      %v6350 = vpack.c.b16 %v6236, %v6230
      %v6351 = vpack.c.b16 %v6237, %v6231
      %v6352 = vpack.c.b16 %v6238, %v6232
      %v6353 = vpack.c.b16 %v6239, %v6233
      %v6354 = vpack.c.b16 %v6240, %v6234
      %v6355 = vpack.c.b16 %v6247, %v6241
      %v6356 = vpack.c.b16 %v6248, %v6242
      %v6357 = vpack.c.b16 %v6249, %v6243
      %v6358 = vpack.c.b16 %v6250, %v6244
      %v6359 = vpack.c.b16 %v6251, %v6245
      %v6360 = vpack.c.b16 %v6252, %v6246
      %v6361 = vpack.c.b16 %v6259, %v6253
      %v6362 = vpack.c.b16 %v6260, %v6254
      %v6363 = vpack.c.b16 %v6261, %v6255
      %v6364 = vpack.c.b16 %v6262, %v6256
      %v6365 = vpack.c.b16 %v6263, %v6257
      %v6366 = vpack.c.b16 %v6264, %v6258
      %v6367 = vpack.c.b16 %v6271, %v6265
      %v6368 = vpack.c.b16 %v6272, %v6266
      %v6369 = vpack.c.b16 %v6273, %v6267
      %v6370 = vpack.c.b16 %v6274, %v6268
      %v6371 = vpack.c.b16 %v6275, %v6269
      %v6372 = vpack.c.b16 %v6276, %v6270
      %6469 = vmatprep.subr.bf16.mxu0 %v6278
      %6470 = vmatpush1.bf16.msra.mxu0 %v6277
      %6471 = vmatprep.subr.bf16.mxu0 %v6284
      %6472 = vmatpush1.bf16.msra.mxu0 %v6283
      %6473 = vmatprep.subr.bf16.mxu0 %v6290
      %6474 = vmatpush1.bf16.msra.mxu0 %v6289
      %6475 = vmatprep.subr.bf16.mxu0 %v6296
      %6476 = vmatpush1.bf16.msra.mxu0 %v6295
      %6477 = vmatprep.subr.bf16.mxu0 %v6302
      %6478 = vmatpush1.bf16.msra.mxu0 %v6301
      %6479 = vmatprep.subr.bf16.mxu0 %v6308
      %6480 = vmatpush1.bf16.msra.mxu0 %v6307
      %6481 = vmatprep.subr.bf16.mxu0 %v6314
      %6482 = vmatpush1.bf16.msra.mxu0 %v6313
      %6483 = vmatprep.subr.bf16.mxu0 %v6320
      %6484 = vmatpush1.bf16.msra.mxu0 %v6319
      %6485 = vmatprep.subr.bf16.mxu0 %v6326
      %6486 = vmatpush1.bf16.msra.mxu0 %v6325
      %6487 = vmatprep.subr.bf16.mxu0 %v6332
      %6488 = vmatpush1.bf16.msra.mxu0 %v6331
      %6489 = vmatprep.subr.bf16.mxu0 %v6338
      %6490 = vmatpush1.bf16.msra.mxu0 %v6337
      %6491 = vmatprep.subr.bf16.mxu0 %v6344
      %6492 = vmatpush1.bf16.msra.mxu0 %v6343
      %6493 = vmatprep.subr.bf16.mxu0 %v6350
      %6494 = vmatpush1.bf16.msra.mxu0 %v6349
      %6495 = vmatprep.subr.bf16.mxu0 %v6356
      %6496 = vmatpush1.bf16.msra.mxu0 %v6355
      %6497 = vmatprep.subr.bf16.mxu0 %v6362
      %6498 = vmatpush1.bf16.msra.mxu0 %v6361
      %6499 = vmatprep.subr.bf16.mxu0 %v6368
      %6500 = vmatpush1.bf16.msra.mxu0 %v6367
      %6501 = vmatprep.mubr.bf16.mxu0 %v5858
      %6502 = vmatmul.mubr.bf16.gmra.mrb[0].mxu0 %v5857
      %v6503 = vpop.f32.mrb[0].mxu0
      %v6504 = vadd.f32 %v5962, %v6503
      %v6505 = vpop.f32.mrb[0].mxu0
      %v6506 = vadd.f32 %v5966, %v6505
      %v6507 = vpop.f32.mrb[0].mxu0
      %v6508 = vpop.f32.mrb[0].mxu0
      %6509 = vdwg.mxu0
      %6510 = vmatprep.subr.bf16.mxu0 %v6280
      %6511 = vmatpush1.bf16.msra.mxu0 %v6279
      %6512 = vmatprep.subr.bf16.mxu0 %v6286
      %6513 = vmatpush1.bf16.msra.mxu0 %v6285
      %6514 = vmatprep.subr.bf16.mxu0 %v6292
      %6515 = vmatpush1.bf16.msra.mxu0 %v6291
      %6516 = vmatprep.subr.bf16.mxu0 %v6298
      %6517 = vmatpush1.bf16.msra.mxu0 %v6297
      %6518 = vmatprep.subr.bf16.mxu0 %v6304
      %6519 = vmatpush1.bf16.msra.mxu0 %v6303
      %6520 = vmatprep.subr.bf16.mxu0 %v6310
      %6521 = vmatpush1.bf16.msra.mxu0 %v6309
      %6522 = vmatprep.subr.bf16.mxu0 %v6316
      %6523 = vmatpush1.bf16.msra.mxu0 %v6315
      %6524 = vmatprep.subr.bf16.mxu0 %v6322
      %6525 = vmatpush1.bf16.msra.mxu0 %v6321
      %6526 = vmatprep.subr.bf16.mxu0 %v6328
      %6527 = vmatpush1.bf16.msra.mxu0 %v6327
      %6528 = vmatprep.subr.bf16.mxu0 %v6334
      %6529 = vmatpush1.bf16.msra.mxu0 %v6333
      %6530 = vmatprep.subr.bf16.mxu0 %v6340
      %6531 = vmatpush1.bf16.msra.mxu0 %v6339
      %6532 = vmatprep.subr.bf16.mxu0 %v6346
      %6533 = vmatpush1.bf16.msra.mxu0 %v6345
      %6534 = vmatprep.subr.bf16.mxu0 %v6352
      %6535 = vmatpush1.bf16.msra.mxu0 %v6351
      %6536 = vmatprep.subr.bf16.mxu0 %v6358
      %6537 = vmatpush1.bf16.msra.mxu0 %v6357
      %6538 = vmatprep.subr.bf16.mxu0 %v6364
      %6539 = vmatpush1.bf16.msra.mxu0 %v6363
      %6540 = vmatprep.subr.bf16.mxu0 %v6370
      %6541 = vmatpush1.bf16.msra.mxu0 %v6369
      %6542 = vmatprep.mubr.bf16.mxu0 %v5858
      %6543 = vmatmul.mubr.bf16.gmra.mrb[0].mxu0 %v5857
      %v6544 = vpop.f32.mrb[0].mxu0
      %v6545 = vadd.f32 %v5970, %v6544
      %v6546 = vpop.f32.mrb[0].mxu0
      %v6547 = vadd.f32 %v5974, %v6546
      %v6548 = vpop.f32.mrb[0].mxu0
      %v6549 = vpop.f32.mrb[0].mxu0
      %6550 = vdwg.mxu0
      %6551 = vmatprep.subr.bf16.mxu0 %v6282
      %6552 = vmatpush1.bf16.msra.mxu0 %v6281
      %6553 = vmatprep.subr.bf16.mxu0 %v6288
      %6554 = vmatpush1.bf16.msra.mxu0 %v6287
      %6555 = vmatprep.subr.bf16.mxu0 %v6294
      %6556 = vmatpush1.bf16.msra.mxu0 %v6293
      %6557 = vmatprep.subr.bf16.mxu0 %v6300
      %6558 = vmatpush1.bf16.msra.mxu0 %v6299
      %6559 = vmatprep.subr.bf16.mxu0 %v6306
      %6560 = vmatpush1.bf16.msra.mxu0 %v6305
      %6561 = vmatprep.subr.bf16.mxu0 %v6312
      %6562 = vmatpush1.bf16.msra.mxu0 %v6311
      %6563 = vmatprep.subr.bf16.mxu0 %v6318
      %6564 = vmatpush1.bf16.msra.mxu0 %v6317
      %6565 = vmatprep.subr.bf16.mxu0 %v6324
      %6566 = vmatpush1.bf16.msra.mxu0 %v6323
      %6567 = vmatprep.subr.bf16.mxu0 %v6330
      %6568 = vmatpush1.bf16.msra.mxu0 %v6329
      %6569 = vmatprep.subr.bf16.mxu0 %v6336
      %6570 = vmatpush1.bf16.msra.mxu0 %v6335
      %6571 = vmatprep.subr.bf16.mxu0 %v6342
      %6572 = vmatpush1.bf16.msra.mxu0 %v6341
      %6573 = vmatprep.subr.bf16.mxu0 %v6348
      %6574 = vmatpush1.bf16.msra.mxu0 %v6347
      %6575 = vmatprep.subr.bf16.mxu0 %v6354
      %6576 = vmatpush1.bf16.msra.mxu0 %v6353
      %6577 = vmatprep.subr.bf16.mxu0 %v6360
      %6578 = vmatpush1.bf16.msra.mxu0 %v6359
      %6579 = vmatprep.subr.bf16.mxu0 %v6366
      %6580 = vmatpush1.bf16.msra.mxu0 %v6365
      %6581 = vmatprep.subr.bf16.mxu0 %v6372
      %6582 = vmatpush1.bf16.msra.mxu0 %v6371
      %6583 = vmatprep.mubr.bf16.mxu0 %v5858
      %6584 = vmatmul.mubr.bf16.gmra.mrb[0].mxu0 %v5857
      %v6585 = vpop.f32.mrb[0].mxu0
      %v6586 = vadd.f32 %v5978, %v6585
      %v6587 = vpop.f32.mrb[0].mxu0
      %v6588 = vadd.f32 %v5982, %v6587
      %v6589 = vpop.f32.mrb[0].mxu0
      %v6590 = vpop.f32.mrb[0].mxu0
      %6591 = vdwg.mxu0
      %v6592 = vpack.c.bf16 %v6504, %v6504
      %v6593 = vpack.c.bf16 %v6506, %v6506
      %v6594 = vpack.c.bf16 %v6545, %v6545
      %v6595 = vpack.c.bf16 %v6547, %v6547
      %v6596 = vpack.c.bf16 %v6586, %v6586
      %v6597 = vpack.c.bf16 %v6588, %v6588
      %v6599 = vsel %vm1409, %v6592, 0
      %v6602 = vsel %vm1409, %v6594, 0
      %6604 = vmatprep.subr.bf16.mxu0 0
      %6605 = vmatpush1.bf16.xpose.msra.mxu0 %v6602
      %6606 = vmatprep.subr.bf16.mxu0 0
      %6607 = vmatpush1.bf16.xpose.msra.mxu0 0
      %6608 = vmatprep.subr.bf16.mxu0 0
      %6609 = vmatpush1.bf16.xpose.msra.mxu0 0
      %6610 = vmatprep.subr.bf16.mxu0 0
      %6611 = vmatpush1.bf16.xpose.msra.mxu0 0
      %6612 = vmatprep.subr.bf16.mxu0 0
      %6613 = vmatpush1.bf16.xpose.msra.mxu0 0
      %6614 = vmatprep.subr.bf16.mxu0 0
      %6615 = vmatpush1.bf16.xpose.msra.mxu0 0
      %6616 = vmatprep.subr.bf16.mxu0 0
      %6617 = vmatpush1.bf16.xpose.msra.mxu0 0
      %6618 = vmatprep.subr.bf16.mxu0 0
      %6619 = vmatpush1.bf16.xpose.msra.mxu0 0
      %6620 = vmatprep.subr.bf16.mxu0 0
      %6621 = vmatpush1.bf16.xpose.msra.mxu0 0
      %6622 = vmatprep.subr.bf16.mxu0 0
      %6623 = vmatpush1.bf16.xpose.msra.mxu0 0
      %6624 = vmatprep.subr.bf16.mxu0 0
      %6625 = vmatpush1.bf16.xpose.msra.mxu0 0
      %6626 = vmatprep.subr.bf16.mxu0 0
      %6627 = vmatpush1.bf16.xpose.msra.mxu0 0
      %6628 = vmatprep.subr.bf16.mxu0 0
      %6629 = vmatpush1.bf16.xpose.msra.mxu0 0
      %6630 = vmatprep.subr.bf16.mxu0 0
      %6631 = vmatpush1.bf16.xpose.msra.mxu0 0
      %6632 = vmatprep.subr.bf16.mxu0 0
      %6633 = vmatpush1.bf16.xpose.msra.mxu0 0
      %6634 = vmatprep.subr.bf16.mxu0 0
      %6635 = vmatpush1.bf16.xpose.msra.mxu0 0
      %6636 = vmatprep.mubr.bf16.mxu0 0
      %6637 = vmatmul.mubr.bf16.gmra.mrb[0].mxu0 %v6599
      %v6638 = vpop.f32.mrb[0].mxu0
      %v6639 = vadd.f32 0.0, %v6638
      %v6640 = vpop.f32.mrb[0].mxu0
      %v6641 = vpop.f32.mrb[0].mxu0
      %v6642 = vpop.f32.mrb[0].mxu0
      %6643 = vdwg.mxu0
      %v6644 = vmul.f32 %v6639, 0.125
      %v6645 = vadd.f32 %v6644, %v630
      %v6646 = vsel %vm1458, %v6645, -inf
      %6647 = vmax.xlane.f32.xlu0 %v6646
      %v6648 = vpop.xlane.xlu0 %6647
      %v6649 = vsub.f32 %v6645, %v6648
      %v6650 = vmul.f32 %v6649, 1.442695
      %v6651 = vpow.pop %v6650
      %v6652 = vsel %vm1458, %v6651, 0.0
      %6653 = vadd.xlane.f32.xlu0 %v6652
      %v6654 = vpop.xlane.xlu0 %6653
      %v6655 = vrcp.pop %v6654
      %v6656 = vmul.f32 %v6651, %v6655
      %v6657 = vpack.c.bf16 %v6656, %v6656
      %v6659 = vsel %vm1458, %v6657, 0
      %v6662 = vsel %vm1474, %v6596, 0
      %6664 = vmatprep.subr.bf16.mxu0 0
      %6665 = vmatpush1.bf16.msra.mxu0 %v6662
      %6666 = vmatprep.subr.bf16.mxu0 0
      %6667 = vmatpush1.bf16.msra.mxu0 0
      %6668 = vmatprep.subr.bf16.mxu0 0
      %6669 = vmatpush1.bf16.msra.mxu0 0
      %6670 = vmatprep.subr.bf16.mxu0 0
      %6671 = vmatpush1.bf16.msra.mxu0 0
      %6672 = vmatprep.subr.bf16.mxu0 0
      %6673 = vmatpush1.bf16.msra.mxu0 0
      %6674 = vmatprep.subr.bf16.mxu0 0
      %6675 = vmatpush1.bf16.msra.mxu0 0
      %6676 = vmatprep.subr.bf16.mxu0 0
      %6677 = vmatpush1.bf16.msra.mxu0 0
      %6678 = vmatprep.subr.bf16.mxu0 0
      %6679 = vmatpush1.bf16.msra.mxu0 0
      %6680 = vmatprep.subr.bf16.mxu0 0
      %6681 = vmatpush1.bf16.msra.mxu0 0
      %6682 = vmatprep.subr.bf16.mxu0 0
      %6683 = vmatpush1.bf16.msra.mxu0 0
      %6684 = vmatprep.subr.bf16.mxu0 0
      %6685 = vmatpush1.bf16.msra.mxu0 0
      %6686 = vmatprep.subr.bf16.mxu0 0
      %6687 = vmatpush1.bf16.msra.mxu0 0
      %6688 = vmatprep.subr.bf16.mxu0 0
      %6689 = vmatpush1.bf16.msra.mxu0 0
      %6690 = vmatprep.subr.bf16.mxu0 0
      %6691 = vmatpush1.bf16.msra.mxu0 0
      %6692 = vmatprep.subr.bf16.mxu0 0
      %6693 = vmatpush1.bf16.msra.mxu0 0
      %6694 = vmatprep.subr.bf16.mxu0 0
      %6695 = vmatpush1.bf16.msra.mxu0 0
      %6696 = vmatprep.mubr.bf16.mxu0 0
      %6697 = vmatmul.mubr.bf16.gmra.mrb[0].mxu0 %v6659
      %v6698 = vpop.f32.mrb[0].mxu0
      %v6699 = vadd.f32 0.0, %v6698
      %v6700 = vpop.f32.mrb[0].mxu0
      %v6701 = vpop.f32.mrb[0].mxu0
      %v6702 = vpop.f32.mrb[0].mxu0
      %6703 = vdwg.mxu0
      %6705 = vrot.lane.b32.xlu0 %v6592, 64
      %v6706 = vpop.permute.xlu0 %6705
      %6708 = vrot.lane.b32.xlu0 %v6594, 64
      %v6709 = vpop.permute.xlu0 %6708
      %v6711 = vsel %vm1409, %v6706, 0
      %v6714 = vsel %vm1409, %v6709, 0
      %6716 = vmatprep.subr.bf16.mxu0 0
      %6717 = vmatpush1.bf16.xpose.msra.mxu0 %v6714
      %6718 = vmatprep.subr.bf16.mxu0 0
      %6719 = vmatpush1.bf16.xpose.msra.mxu0 0
      %6720 = vmatprep.subr.bf16.mxu0 0
      %6721 = vmatpush1.bf16.xpose.msra.mxu0 0
      %6722 = vmatprep.subr.bf16.mxu0 0
      %6723 = vmatpush1.bf16.xpose.msra.mxu0 0
      %6724 = vmatprep.subr.bf16.mxu0 0
      %6725 = vmatpush1.bf16.xpose.msra.mxu0 0
      %6726 = vmatprep.subr.bf16.mxu0 0
      %6727 = vmatpush1.bf16.xpose.msra.mxu0 0
      %6728 = vmatprep.subr.bf16.mxu0 0
      %6729 = vmatpush1.bf16.xpose.msra.mxu0 0
      %6730 = vmatprep.subr.bf16.mxu0 0
      %6731 = vmatpush1.bf16.xpose.msra.mxu0 0
      %6732 = vmatprep.subr.bf16.mxu0 0
      %6733 = vmatpush1.bf16.xpose.msra.mxu0 0
      %6734 = vmatprep.subr.bf16.mxu0 0
      %6735 = vmatpush1.bf16.xpose.msra.mxu0 0
      %6736 = vmatprep.subr.bf16.mxu0 0
      %6737 = vmatpush1.bf16.xpose.msra.mxu0 0
      %6738 = vmatprep.subr.bf16.mxu0 0
      %6739 = vmatpush1.bf16.xpose.msra.mxu0 0
      %6740 = vmatprep.subr.bf16.mxu0 0
      %6741 = vmatpush1.bf16.xpose.msra.mxu0 0
      %6742 = vmatprep.subr.bf16.mxu0 0
      %6743 = vmatpush1.bf16.xpose.msra.mxu0 0
      %6744 = vmatprep.subr.bf16.mxu0 0
      %6745 = vmatpush1.bf16.xpose.msra.mxu0 0
      %6746 = vmatprep.subr.bf16.mxu0 0
      %6747 = vmatpush1.bf16.xpose.msra.mxu0 0
      %6748 = vmatprep.mubr.bf16.mxu0 0
      %6749 = vmatmul.mubr.bf16.gmra.mrb[0].mxu0 %v6711
      %v6750 = vpop.f32.mrb[0].mxu0
      %v6751 = vadd.f32 0.0, %v6750
      %v6752 = vpop.f32.mrb[0].mxu0
      %v6753 = vpop.f32.mrb[0].mxu0
      %v6754 = vpop.f32.mrb[0].mxu0
      %6755 = vdwg.mxu0
      %v6756 = vmul.f32 %v6751, 0.125
      %v6757 = vadd.f32 %v6756, %v630
      %v6758 = vsel %vm1458, %v6757, -inf
      %6759 = vmax.xlane.f32.xlu0 %v6758
      %v6760 = vpop.xlane.xlu0 %6759
      %v6761 = vsub.f32 %v6757, %v6760
      %v6762 = vmul.f32 %v6761, 1.442695
      %v6763 = vpow.pop %v6762
      %v6764 = vsel %vm1458, %v6763, 0.0
      %6765 = vadd.xlane.f32.xlu0 %v6764
      %v6766 = vpop.xlane.xlu0 %6765
      %v6767 = vrcp.pop %v6766
      %v6768 = vmul.f32 %v6763, %v6767
      %v6769 = vpack.c.bf16 %v6768, %v6768
      %6771 = vrot.lane.b32.xlu0 %v6596, 64
      %v6772 = vpop.permute.xlu0 %6771
      %v6774 = vsel %vm1458, %v6769, 0
      %v6777 = vsel %vm1474, %v6772, 0
      %6779 = vmatprep.subr.bf16.mxu0 0
      %6780 = vmatpush1.bf16.msra.mxu0 %v6777
      %6781 = vmatprep.subr.bf16.mxu0 0
      %6782 = vmatpush1.bf16.msra.mxu0 0
      %6783 = vmatprep.subr.bf16.mxu0 0
      %6784 = vmatpush1.bf16.msra.mxu0 0
      %6785 = vmatprep.subr.bf16.mxu0 0
      %6786 = vmatpush1.bf16.msra.mxu0 0
      %6787 = vmatprep.subr.bf16.mxu0 0
      %6788 = vmatpush1.bf16.msra.mxu0 0
      %6789 = vmatprep.subr.bf16.mxu0 0
      %6790 = vmatpush1.bf16.msra.mxu0 0
      %6791 = vmatprep.subr.bf16.mxu0 0
      %6792 = vmatpush1.bf16.msra.mxu0 0
      %6793 = vmatprep.subr.bf16.mxu0 0
      %6794 = vmatpush1.bf16.msra.mxu0 0
      %6795 = vmatprep.subr.bf16.mxu0 0
      %6796 = vmatpush1.bf16.msra.mxu0 0
      %6797 = vmatprep.subr.bf16.mxu0 0
      %6798 = vmatpush1.bf16.msra.mxu0 0
      %6799 = vmatprep.subr.bf16.mxu0 0
      %6800 = vmatpush1.bf16.msra.mxu0 0
      %6801 = vmatprep.subr.bf16.mxu0 0
      %6802 = vmatpush1.bf16.msra.mxu0 0
      %6803 = vmatprep.subr.bf16.mxu0 0
      %6804 = vmatpush1.bf16.msra.mxu0 0
      %6805 = vmatprep.subr.bf16.mxu0 0
      %6806 = vmatpush1.bf16.msra.mxu0 0
      %6807 = vmatprep.subr.bf16.mxu0 0
      %6808 = vmatpush1.bf16.msra.mxu0 0
      %6809 = vmatprep.subr.bf16.mxu0 0
      %6810 = vmatpush1.bf16.msra.mxu0 0
      %6811 = vmatprep.mubr.bf16.mxu0 0
      %6812 = vmatmul.mubr.bf16.gmra.mrb[0].mxu0 %v6774
      %v6813 = vpop.f32.mrb[0].mxu0
      %v6814 = vadd.f32 0.0, %v6813
      %v6815 = vpop.f32.mrb[0].mxu0
      %v6816 = vpop.f32.mrb[0].mxu0
      %v6817 = vpop.f32.mrb[0].mxu0
      %6818 = vdwg.mxu0
      %v6820 = vsel %vm1409, %v6593, 0
      %v6823 = vsel %vm1409, %v6595, 0
      %6825 = vmatprep.subr.bf16.mxu0 0
      %6826 = vmatpush1.bf16.xpose.msra.mxu0 %v6823
      %6827 = vmatprep.subr.bf16.mxu0 0
      %6828 = vmatpush1.bf16.xpose.msra.mxu0 0
      %6829 = vmatprep.subr.bf16.mxu0 0
      %6830 = vmatpush1.bf16.xpose.msra.mxu0 0
      %6831 = vmatprep.subr.bf16.mxu0 0
      %6832 = vmatpush1.bf16.xpose.msra.mxu0 0
      %6833 = vmatprep.subr.bf16.mxu0 0
      %6834 = vmatpush1.bf16.xpose.msra.mxu0 0
      %6835 = vmatprep.subr.bf16.mxu0 0
      %6836 = vmatpush1.bf16.xpose.msra.mxu0 0
      %6837 = vmatprep.subr.bf16.mxu0 0
      %6838 = vmatpush1.bf16.xpose.msra.mxu0 0
      %6839 = vmatprep.subr.bf16.mxu0 0
      %6840 = vmatpush1.bf16.xpose.msra.mxu0 0
      %6841 = vmatprep.subr.bf16.mxu0 0
      %6842 = vmatpush1.bf16.xpose.msra.mxu0 0
      %6843 = vmatprep.subr.bf16.mxu0 0
      %6844 = vmatpush1.bf16.xpose.msra.mxu0 0
      %6845 = vmatprep.subr.bf16.mxu0 0
      %6846 = vmatpush1.bf16.xpose.msra.mxu0 0
      %6847 = vmatprep.subr.bf16.mxu0 0
      %6848 = vmatpush1.bf16.xpose.msra.mxu0 0
      %6849 = vmatprep.subr.bf16.mxu0 0
      %6850 = vmatpush1.bf16.xpose.msra.mxu0 0
      %6851 = vmatprep.subr.bf16.mxu0 0
      %6852 = vmatpush1.bf16.xpose.msra.mxu0 0
      %6853 = vmatprep.subr.bf16.mxu0 0
      %6854 = vmatpush1.bf16.xpose.msra.mxu0 0
      %6855 = vmatprep.subr.bf16.mxu0 0
      %6856 = vmatpush1.bf16.xpose.msra.mxu0 0
      %6857 = vmatprep.mubr.bf16.mxu0 0
      %6858 = vmatmul.mubr.bf16.gmra.mrb[0].mxu0 %v6820
      %v6859 = vpop.f32.mrb[0].mxu0
      %v6860 = vadd.f32 0.0, %v6859
      %v6861 = vpop.f32.mrb[0].mxu0
      %v6862 = vpop.f32.mrb[0].mxu0
      %v6863 = vpop.f32.mrb[0].mxu0
      %6864 = vdwg.mxu0
      %v6865 = vmul.f32 %v6860, 0.125
      %v6866 = vadd.f32 %v6865, %v630
      %v6867 = vsel %vm1458, %v6866, -inf
      %6868 = vmax.xlane.f32.xlu0 %v6867
      %v6869 = vpop.xlane.xlu0 %6868
      %v6870 = vsub.f32 %v6866, %v6869
      %v6871 = vmul.f32 %v6870, 1.442695
      %v6872 = vpow.pop %v6871
      %v6873 = vsel %vm1458, %v6872, 0.0
      %6874 = vadd.xlane.f32.xlu0 %v6873
      %v6875 = vpop.xlane.xlu0 %6874
      %v6876 = vrcp.pop %v6875
      %v6877 = vmul.f32 %v6872, %v6876
      %v6878 = vpack.c.bf16 %v6877, %v6877
      %v6880 = vsel %vm1458, %v6878, 0
      %v6883 = vsel %vm1474, %v6597, 0
      %6885 = vmatprep.subr.bf16.mxu0 0
      %6886 = vmatpush1.bf16.msra.mxu0 %v6883
      %6887 = vmatprep.subr.bf16.mxu0 0
      %6888 = vmatpush1.bf16.msra.mxu0 0
      %6889 = vmatprep.subr.bf16.mxu0 0
      %6890 = vmatpush1.bf16.msra.mxu0 0
      %6891 = vmatprep.subr.bf16.mxu0 0
      %6892 = vmatpush1.bf16.msra.mxu0 0
      %6893 = vmatprep.subr.bf16.mxu0 0
      %6894 = vmatpush1.bf16.msra.mxu0 0
      %6895 = vmatprep.subr.bf16.mxu0 0
      %6896 = vmatpush1.bf16.msra.mxu0 0
      %6897 = vmatprep.subr.bf16.mxu0 0
      %6898 = vmatpush1.bf16.msra.mxu0 0
      %6899 = vmatprep.subr.bf16.mxu0 0
      %6900 = vmatpush1.bf16.msra.mxu0 0
      %6901 = vmatprep.subr.bf16.mxu0 0
      %6902 = vmatpush1.bf16.msra.mxu0 0
      %6903 = vmatprep.subr.bf16.mxu0 0
      %6904 = vmatpush1.bf16.msra.mxu0 0
      %6905 = vmatprep.subr.bf16.mxu0 0
      %6906 = vmatpush1.bf16.msra.mxu0 0
      %6907 = vmatprep.subr.bf16.mxu0 0
      %6908 = vmatpush1.bf16.msra.mxu0 0
      %6909 = vmatprep.subr.bf16.mxu0 0
      %6910 = vmatpush1.bf16.msra.mxu0 0
      %6911 = vmatprep.subr.bf16.mxu0 0
      %6912 = vmatpush1.bf16.msra.mxu0 0
      %6913 = vmatprep.subr.bf16.mxu0 0
      %6914 = vmatpush1.bf16.msra.mxu0 0
      %6915 = vmatprep.subr.bf16.mxu0 0
      %6916 = vmatpush1.bf16.msra.mxu0 0
      %6917 = vmatprep.mubr.bf16.mxu0 0
      %6918 = vmatmul.mubr.bf16.gmra.mrb[0].mxu0 %v6880
      %v6919 = vpop.f32.mrb[0].mxu0
      %v6920 = vadd.f32 0.0, %v6919
      %v6921 = vpop.f32.mrb[0].mxu0
      %v6922 = vpop.f32.mrb[0].mxu0
      %v6923 = vpop.f32.mrb[0].mxu0
      %6924 = vdwg.mxu0
      %6926 = vrot.lane.b32.xlu0 %v6593, 64
      %v6927 = vpop.permute.xlu0 %6926
      %6929 = vrot.lane.b32.xlu0 %v6595, 64
      %v6930 = vpop.permute.xlu0 %6929
      %v6932 = vsel %vm1409, %v6927, 0
      %v6935 = vsel %vm1409, %v6930, 0
      %6937 = vmatprep.subr.bf16.mxu0 0
      %6938 = vmatpush1.bf16.xpose.msra.mxu0 %v6935
      %6939 = vmatprep.subr.bf16.mxu0 0
      %6940 = vmatpush1.bf16.xpose.msra.mxu0 0
      %6941 = vmatprep.subr.bf16.mxu0 0
      %6942 = vmatpush1.bf16.xpose.msra.mxu0 0
      %6943 = vmatprep.subr.bf16.mxu0 0
      %6944 = vmatpush1.bf16.xpose.msra.mxu0 0
      %6945 = vmatprep.subr.bf16.mxu0 0
      %6946 = vmatpush1.bf16.xpose.msra.mxu0 0
      %6947 = vmatprep.subr.bf16.mxu0 0
      %6948 = vmatpush1.bf16.xpose.msra.mxu0 0
      %6949 = vmatprep.subr.bf16.mxu0 0
      %6950 = vmatpush1.bf16.xpose.msra.mxu0 0
      %6951 = vmatprep.subr.bf16.mxu0 0
      %6952 = vmatpush1.bf16.xpose.msra.mxu0 0
      %6953 = vmatprep.subr.bf16.mxu0 0
      %6954 = vmatpush1.bf16.xpose.msra.mxu0 0
      %6955 = vmatprep.subr.bf16.mxu0 0
      %6956 = vmatpush1.bf16.xpose.msra.mxu0 0
      %6957 = vmatprep.subr.bf16.mxu0 0
      %6958 = vmatpush1.bf16.xpose.msra.mxu0 0
      %6959 = vmatprep.subr.bf16.mxu0 0
      %6960 = vmatpush1.bf16.xpose.msra.mxu0 0
      %6961 = vmatprep.subr.bf16.mxu0 0
      %6962 = vmatpush1.bf16.xpose.msra.mxu0 0
      %6963 = vmatprep.subr.bf16.mxu0 0
      %6964 = vmatpush1.bf16.xpose.msra.mxu0 0
      %6965 = vmatprep.subr.bf16.mxu0 0
      %6966 = vmatpush1.bf16.xpose.msra.mxu0 0
      %6967 = vmatprep.subr.bf16.mxu0 0
      %6968 = vmatpush1.bf16.xpose.msra.mxu0 0
      %6969 = vmatprep.mubr.bf16.mxu0 0
      %6970 = vmatmul.mubr.bf16.gmra.mrb[0].mxu0 %v6932
      %v6971 = vpop.f32.mrb[0].mxu0
      %v6972 = vadd.f32 0.0, %v6971
      %v6973 = vpop.f32.mrb[0].mxu0
      %v6974 = vpop.f32.mrb[0].mxu0
      %v6975 = vpop.f32.mrb[0].mxu0
      %6976 = vdwg.mxu0
      %v6977 = vmul.f32 %v6972, 0.125
      %v6978 = vadd.f32 %v6977, %v630
      %v6979 = vsel %vm1458, %v6978, -inf
      %6980 = vmax.xlane.f32.xlu0 %v6979
      %v6981 = vpop.xlane.xlu0 %6980
      %v6982 = vsub.f32 %v6978, %v6981
      %v6983 = vmul.f32 %v6982, 1.442695
      %v6984 = vpow.pop %v6983
      %v6985 = vsel %vm1458, %v6984, 0.0
      %6986 = vadd.xlane.f32.xlu0 %v6985
      %v6987 = vpop.xlane.xlu0 %6986
      %v6988 = vrcp.pop %v6987
      %v6989 = vmul.f32 %v6984, %v6988
      %v6990 = vpack.c.bf16 %v6989, %v6989
      %6992 = vrot.lane.b32.xlu0 %v6597, 64
      %v6993 = vpop.permute.xlu0 %6992
      %v6995 = vsel %vm1458, %v6990, 0
      %v6998 = vsel %vm1474, %v6993, 0
      %7000 = vmatprep.subr.bf16.mxu0 0
      %7001 = vmatpush1.bf16.msra.mxu0 %v6998
      %7002 = vmatprep.subr.bf16.mxu0 0
      %7003 = vmatpush1.bf16.msra.mxu0 0
      %7004 = vmatprep.subr.bf16.mxu0 0
      %7005 = vmatpush1.bf16.msra.mxu0 0
      %7006 = vmatprep.subr.bf16.mxu0 0
      %7007 = vmatpush1.bf16.msra.mxu0 0
      %7008 = vmatprep.subr.bf16.mxu0 0
      %7009 = vmatpush1.bf16.msra.mxu0 0
      %7010 = vmatprep.subr.bf16.mxu0 0
      %7011 = vmatpush1.bf16.msra.mxu0 0
      %7012 = vmatprep.subr.bf16.mxu0 0
      %7013 = vmatpush1.bf16.msra.mxu0 0
      %7014 = vmatprep.subr.bf16.mxu0 0
      %7015 = vmatpush1.bf16.msra.mxu0 0
      %7016 = vmatprep.subr.bf16.mxu0 0
      %7017 = vmatpush1.bf16.msra.mxu0 0
      %7018 = vmatprep.subr.bf16.mxu0 0
      %7019 = vmatpush1.bf16.msra.mxu0 0
      %7020 = vmatprep.subr.bf16.mxu0 0
      %7021 = vmatpush1.bf16.msra.mxu0 0
      %7022 = vmatprep.subr.bf16.mxu0 0
      %7023 = vmatpush1.bf16.msra.mxu0 0
      %7024 = vmatprep.subr.bf16.mxu0 0
      %7025 = vmatpush1.bf16.msra.mxu0 0
      %7026 = vmatprep.subr.bf16.mxu0 0
      %7027 = vmatpush1.bf16.msra.mxu0 0
      %7028 = vmatprep.subr.bf16.mxu0 0
      %7029 = vmatpush1.bf16.msra.mxu0 0
      %7030 = vmatprep.subr.bf16.mxu0 0
      %7031 = vmatpush1.bf16.msra.mxu0 0
      %7032 = vmatprep.mubr.bf16.mxu0 0
      %7033 = vmatmul.mubr.bf16.gmra.mrb[0].mxu0 %v6995
      %v7034 = vpop.f32.mrb[0].mxu0
      %v7035 = vadd.f32 0.0, %v7034
      %v7036 = vpop.f32.mrb[0].mxu0
      %v7037 = vpop.f32.mrb[0].mxu0
      %v7038 = vpop.f32.mrb[0].mxu0
      %7039 = vdwg.mxu0
      %7041 = vrot.lane.b32.xlu0 %v6814, 64
      %v7042 = vpop.permute.xlu0 %7041
      %7045 = vrot.lane.b32.xlu0 %v7035, 64
      %v7046 = vpop.permute.xlu0 %7045
      %v7048 = vsel %vm1409, %v6699, %v7042
      %v7049 = vsel %vm1409, %v6920, %v7046
      %v7050 = vpack.c.bf16 %v7048, %v7048
      %v7051 = vpack.c.bf16 %v7049, %v7049
      %s7052 = scalar_lea.vmem %s4, 512
      %v7053 = vld [vmem:[%s7052] sm:$0xff]
      %v7054 = vld [vmem:[%s7052 + $0x8] sm:$0xff]
      %v7055 = vld [vmem:[%s7052 + $0x10] sm:$0xff]
      %v7056 = vld [vmem:[%s7052 + $0x18] sm:$0xff]
      %v7057 = vld [vmem:[%s7052 + $0x20] sm:$0xff]
      %v7058 = vld [vmem:[%s7052 + $0x28] sm:$0xff]
      %v7059 = vld [vmem:[%s7052 + $0x30] sm:$0xff]
      %v7060 = vld [vmem:[%s7052 + $0x38] sm:$0xff]
      %v7061 = vld [vmem:[%s7052 + $0x40] sm:$0xff]
      %v7062 = vld [vmem:[%s7052 + $0x48] sm:$0xff]
      %v7063 = vld [vmem:[%s7052 + $0x50] sm:$0xff]
      %v7064 = vld [vmem:[%s7052 + $0x58] sm:$0xff]
      %v7065 = vld [vmem:[%s7052 + $0x60] sm:$0xff]
      %v7066 = vld [vmem:[%s7052 + $0x68] sm:$0xff]
      %v7067 = vld [vmem:[%s7052 + $0x70] sm:$0xff]
      %v7068 = vld [vmem:[%s7052 + $0x78] sm:$0xff]
      %v7069 = vld [vmem:[%s7052 + $0x80] sm:$0xff]
      %v7070 = vld [vmem:[%s7052 + $0x88] sm:$0xff]
      %v7071 = vld [vmem:[%s7052 + $0x90] sm:$0xff]
      %v7072 = vld [vmem:[%s7052 + $0x98] sm:$0xff]
      %v7073 = vld [vmem:[%s7052 + $0xa0] sm:$0xff]
      %v7074 = vld [vmem:[%s7052 + $0xa8] sm:$0xff]
      %v7075 = vld [vmem:[%s7052 + $0xb0] sm:$0xff]
      %v7076 = vld [vmem:[%s7052 + $0xb8] sm:$0xff]
      %v7077 = vld [vmem:[%s7052 + $0xc0] sm:$0xff]
      %v7078 = vld [vmem:[%s7052 + $0xc8] sm:$0xff]
      %v7079 = vld [vmem:[%s7052 + $0xd0] sm:$0xff]
      %v7080 = vld [vmem:[%s7052 + $0xd8] sm:$0xff]
      %v7081 = vld [vmem:[%s7052 + $0xe0] sm:$0xff]
      %v7082 = vld [vmem:[%s7052 + $0xe8] sm:$0xff]
      %v7083 = vld [vmem:[%s7052 + $0xf0] sm:$0xff]
      %v7084 = vld [vmem:[%s7052 + $0xf8] sm:$0xff]
      %v7085 = vlaneseq
      %v7086 = vshrl.u32 %v7085, 7
      %v7087 = vsub.s32 4, %v7086
      %v7088 = vrot.slane %v5819, %v7087
      %v7089 = vlaneseq
      %v7090 = vshrl.u32 %v7089, 7
      %v7091 = vsub.s32 4, %v7090
      %v7092 = vrot.slane %v5820, %v7091
      %v7125 = vunpack.c.l.b16 %v7053
      %v7126 = vunpack.c.h.b16 %v7053
      %v7127 = vunpack.c.l.b16 %v7054
      %v7128 = vunpack.c.h.b16 %v7054
      %v7129 = vunpack.c.l.b16 %v7055
      %v7130 = vunpack.c.h.b16 %v7055
      %v7131 = vunpack.c.l.b16 %v7056
      %v7132 = vunpack.c.h.b16 %v7056
      %v7133 = vunpack.c.l.b16 %v7057
      %v7134 = vunpack.c.h.b16 %v7057
      %v7135 = vunpack.c.l.b16 %v7058
      %v7136 = vunpack.c.h.b16 %v7058
      %v7137 = vunpack.c.l.b16 %v7059
      %v7138 = vunpack.c.h.b16 %v7059
      %v7139 = vunpack.c.l.b16 %v7060
      %v7140 = vunpack.c.h.b16 %v7060
      %v7141 = vunpack.c.l.b16 %v7061
      %v7142 = vunpack.c.h.b16 %v7061
      %v7143 = vunpack.c.l.b16 %v7062
      %v7144 = vunpack.c.h.b16 %v7062
      %v7145 = vunpack.c.l.b16 %v7063
      %v7146 = vunpack.c.h.b16 %v7063
      %v7147 = vunpack.c.l.b16 %v7064
      %v7148 = vunpack.c.h.b16 %v7064
      %v7149 = vunpack.c.l.b16 %v7065
      %v7150 = vunpack.c.h.b16 %v7065
      %v7151 = vunpack.c.l.b16 %v7066
      %v7152 = vunpack.c.h.b16 %v7066
      %v7153 = vunpack.c.l.b16 %v7067
      %v7154 = vunpack.c.h.b16 %v7067
      %v7155 = vunpack.c.l.b16 %v7068
      %v7156 = vunpack.c.h.b16 %v7068
      %v7157 = vunpack.c.l.b16 %v7069
      %v7158 = vunpack.c.h.b16 %v7069
      %v7159 = vunpack.c.l.b16 %v7070
      %v7160 = vunpack.c.h.b16 %v7070
      %v7161 = vunpack.c.l.b16 %v7071
      %v7162 = vunpack.c.h.b16 %v7071
      %v7163 = vunpack.c.l.b16 %v7072
      %v7164 = vunpack.c.h.b16 %v7072
      %v7165 = vunpack.c.l.b16 %v7073
      %v7166 = vunpack.c.h.b16 %v7073
      %v7167 = vunpack.c.l.b16 %v7074
      %v7168 = vunpack.c.h.b16 %v7074
      %v7169 = vunpack.c.l.b16 %v7075
      %v7170 = vunpack.c.h.b16 %v7075
      %v7171 = vunpack.c.l.b16 %v7076
      %v7172 = vunpack.c.h.b16 %v7076
      %v7173 = vunpack.c.l.b16 %v7077
      %v7174 = vunpack.c.h.b16 %v7077
      %v7175 = vunpack.c.l.b16 %v7078
      %v7176 = vunpack.c.h.b16 %v7078
      %v7177 = vunpack.c.l.b16 %v7079
      %v7178 = vunpack.c.h.b16 %v7079
      %v7179 = vunpack.c.l.b16 %v7080
      %v7180 = vunpack.c.h.b16 %v7080
      %v7181 = vunpack.c.l.b16 %v7081
      %v7182 = vunpack.c.h.b16 %v7081
      %v7183 = vunpack.c.l.b16 %v7082
      %v7184 = vunpack.c.h.b16 %v7082
      %v7185 = vunpack.c.l.b16 %v7083
      %v7186 = vunpack.c.h.b16 %v7083
      %v7187 = vunpack.c.l.b16 %v7084
      %v7188 = vunpack.c.h.b16 %v7084
      %v7189 = vpack.c.b16 %v7127, %v7125
      %v7190 = vpack.c.b16 %v7128, %v7126
      %v7191 = vpack.c.b16 %v7131, %v7129
      %v7192 = vpack.c.b16 %v7132, %v7130
      %v7193 = vpack.c.b16 %v7135, %v7133
      %v7194 = vpack.c.b16 %v7136, %v7134
      %v7195 = vpack.c.b16 %v7139, %v7137
      %v7196 = vpack.c.b16 %v7140, %v7138
      %v7197 = vpack.c.b16 %v7143, %v7141
      %v7198 = vpack.c.b16 %v7144, %v7142
      %v7199 = vpack.c.b16 %v7147, %v7145
      %v7200 = vpack.c.b16 %v7148, %v7146
      %v7201 = vpack.c.b16 %v7151, %v7149
      %v7202 = vpack.c.b16 %v7152, %v7150
      %v7203 = vpack.c.b16 %v7155, %v7153
      %v7204 = vpack.c.b16 %v7156, %v7154
      %v7205 = vpack.c.b16 %v7159, %v7157
      %v7206 = vpack.c.b16 %v7160, %v7158
      %v7207 = vpack.c.b16 %v7163, %v7161
      %v7208 = vpack.c.b16 %v7164, %v7162
      %v7209 = vpack.c.b16 %v7167, %v7165
      %v7210 = vpack.c.b16 %v7168, %v7166
      %v7211 = vpack.c.b16 %v7171, %v7169
      %v7212 = vpack.c.b16 %v7172, %v7170
      %v7213 = vpack.c.b16 %v7175, %v7173
      %v7214 = vpack.c.b16 %v7176, %v7174
      %v7215 = vpack.c.b16 %v7179, %v7177
      %v7216 = vpack.c.b16 %v7180, %v7178
      %v7217 = vpack.c.b16 %v7183, %v7181
      %v7218 = vpack.c.b16 %v7184, %v7182
      %v7219 = vpack.c.b16 %v7187, %v7185
      %v7220 = vpack.c.b16 %v7188, %v7186
      %7253 = vmatprep.subr.bf16.mxu0 %v7190
      %7254 = vmatpush1.bf16.msra.mxu0 %v7189
      %7255 = vmatprep.subr.bf16.mxu0 %v7192
      %7256 = vmatpush1.bf16.msra.mxu0 %v7191
      %7257 = vmatprep.subr.bf16.mxu0 %v7194
      %7258 = vmatpush1.bf16.msra.mxu0 %v7193
      %7259 = vmatprep.subr.bf16.mxu0 %v7196
      %7260 = vmatpush1.bf16.msra.mxu0 %v7195
      %7261 = vmatprep.subr.bf16.mxu0 %v7198
      %7262 = vmatpush1.bf16.msra.mxu0 %v7197
      %7263 = vmatprep.subr.bf16.mxu0 %v7200
      %7264 = vmatpush1.bf16.msra.mxu0 %v7199
      %7265 = vmatprep.subr.bf16.mxu0 %v7202
      %7266 = vmatpush1.bf16.msra.mxu0 %v7201
      %7267 = vmatprep.subr.bf16.mxu0 %v7204
      %7268 = vmatpush1.bf16.msra.mxu0 %v7203
      %7269 = vmatprep.subr.bf16.mxu0 %v7206
      %7270 = vmatpush1.bf16.msra.mxu0 %v7205
      %7271 = vmatprep.subr.bf16.mxu0 %v7208
      %7272 = vmatpush1.bf16.msra.mxu0 %v7207
      %7273 = vmatprep.subr.bf16.mxu0 %v7210
      %7274 = vmatpush1.bf16.msra.mxu0 %v7209
      %7275 = vmatprep.subr.bf16.mxu0 %v7212
      %7276 = vmatpush1.bf16.msra.mxu0 %v7211
      %7277 = vmatprep.subr.bf16.mxu0 %v7214
      %7278 = vmatpush1.bf16.msra.mxu0 %v7213
      %7279 = vmatprep.subr.bf16.mxu0 %v7216
      %7280 = vmatpush1.bf16.msra.mxu0 %v7215
      %7281 = vmatprep.subr.bf16.mxu0 %v7218
      %7282 = vmatpush1.bf16.msra.mxu0 %v7217
      %7283 = vmatprep.subr.bf16.mxu0 %v7220
      %7284 = vmatpush1.bf16.msra.mxu0 %v7219
      %7285 = vmatprep.mubr.bf16.mxu0 %v7051
      %7286 = vmatmul.mubr.bf16.gmra.mrb[0].mxu0 %v7050
      %v7287 = vpop.f32.mrb[0].mxu0
      %v7288 = vadd.f32 %v7088, %v7287
      %v7289 = vpop.f32.mrb[0].mxu0
      %v7290 = vadd.f32 %v7092, %v7289
      %v7291 = vpop.f32.mrb[0].mxu0
      %v7292 = vpop.f32.mrb[0].mxu0
      %7293 = vdwg.mxu0
      %v7294 = vadd.f32 %v5816, %v7288
      %v7295 = vadd.f32 %v5817, %v7290
      %v7296 = vadd.f32 %v7294, %v7295
      %7297 = vadd.xlane.f32.xlu0 %v7296
      %v7298 = vpop.xlane.xlu0 %7297
      %v7299 = vmul.f32 %v7298, %v636
      %v7300 = vsub.f32 %v7294, %v7299
      %v7301 = vsub.f32 %v7295, %v7299
      %v7302 = vmul.f32 %v7300, %v7300
      %v7303 = vmul.f32 %v7301, %v7301
      %v7304 = vadd.f32 %v7302, %v7303
      %7305 = vadd.xlane.f32.xlu0 %v7304
      %v7306 = vpop.xlane.xlu0 %7305
      %v7307 = vmul.f32 %v7306, %v636
      %v7308 = vadd.f32 %v7307, 1e-05
      %v7309 = vrsqrt.pop %v7308
      %v7310 = vmul.f32 %v7300, %v7309
      %v7311 = vmul.f32 %v7301, %v7309
      %v7312 = vlaneseq
      %v7313 = vshrl.u32 %v7312, 7
      %v7314 = vsub.s32 2, %v7313
      %v7315 = vrot.slane %v5819, %v7314
      %v7316 = vlaneseq
      %v7317 = vshrl.u32 %v7316, 7
      %v7318 = vsub.s32 2, %v7317
      %v7319 = vrot.slane %v5820, %v7318
      %v7320 = vmul.f32 %v7310, %v7315
      %v7321 = vmul.f32 %v7311, %v7319
      %v7322 = vlaneseq
      %v7323 = vshrl.u32 %v7322, 7
      %v7324 = vsub.s32 3, %v7323
      %v7325 = vrot.slane %v5819, %v7324
      %v7326 = vlaneseq
      %v7327 = vshrl.u32 %v7326, 7
      %v7328 = vsub.s32 3, %v7327
      %v7329 = vrot.slane %v5820, %v7328
      %v7330 = vadd.f32 %v7320, %v7325
      %v7331 = vadd.f32 %v7321, %v7329
      %v7332 = vpack.c.bf16 %v7330, %v7330
      %v7333 = vpack.c.bf16 %v7331, %v7331
      %s7334 = scalar_lea.vmem %s5, 1024
      %v7335 = vld [vmem:[%s7334] sm:$0xff]
      %v7336 = vld [vmem:[%s7334 + $0x8] sm:$0xff]
      %v7337 = vld [vmem:[%s7334 + $0x10] sm:$0xff]
      %v7338 = vld [vmem:[%s7334 + $0x18] sm:$0xff]
      %v7339 = vld [vmem:[%s7334 + $0x20] sm:$0xff]
      %v7340 = vld [vmem:[%s7334 + $0x28] sm:$0xff]
      %v7341 = vld [vmem:[%s7334 + $0x30] sm:$0xff]
      %v7342 = vld [vmem:[%s7334 + $0x38] sm:$0xff]
      %v7343 = vld [vmem:[%s7334 + $0x40] sm:$0xff]
      %v7344 = vld [vmem:[%s7334 + $0x48] sm:$0xff]
      %v7345 = vld [vmem:[%s7334 + $0x50] sm:$0xff]
      %v7346 = vld [vmem:[%s7334 + $0x58] sm:$0xff]
      %v7347 = vld [vmem:[%s7334 + $0x60] sm:$0xff]
      %v7348 = vld [vmem:[%s7334 + $0x68] sm:$0xff]
      %v7349 = vld [vmem:[%s7334 + $0x70] sm:$0xff]
      %v7350 = vld [vmem:[%s7334 + $0x78] sm:$0xff]
      %v7351 = vld [vmem:[%s7334 + $0x80] sm:$0xff]
      %v7352 = vld [vmem:[%s7334 + $0x88] sm:$0xff]
      %v7353 = vld [vmem:[%s7334 + $0x90] sm:$0xff]
      %v7354 = vld [vmem:[%s7334 + $0x98] sm:$0xff]
      %v7355 = vld [vmem:[%s7334 + $0xa0] sm:$0xff]
      %v7356 = vld [vmem:[%s7334 + $0xa8] sm:$0xff]
      %v7357 = vld [vmem:[%s7334 + $0xb0] sm:$0xff]
      %v7358 = vld [vmem:[%s7334 + $0xb8] sm:$0xff]
      %v7359 = vld [vmem:[%s7334 + $0xc0] sm:$0xff]
      %v7360 = vld [vmem:[%s7334 + $0xc8] sm:$0xff]
      %v7361 = vld [vmem:[%s7334 + $0xd0] sm:$0xff]
      %v7362 = vld [vmem:[%s7334 + $0xd8] sm:$0xff]
      %v7363 = vld [vmem:[%s7334 + $0xe0] sm:$0xff]
      %v7364 = vld [vmem:[%s7334 + $0xe8] sm:$0xff]
      %v7365 = vld [vmem:[%s7334 + $0xf0] sm:$0xff]
      %v7366 = vld [vmem:[%s7334 + $0xf8] sm:$0xff]
      %v7367 = vld [vmem:[%s7334 + $0x100] sm:$0xff]
      %v7368 = vld [vmem:[%s7334 + $0x108] sm:$0xff]
      %v7369 = vld [vmem:[%s7334 + $0x110] sm:$0xff]
      %v7370 = vld [vmem:[%s7334 + $0x118] sm:$0xff]
      %v7371 = vld [vmem:[%s7334 + $0x120] sm:$0xff]
      %v7372 = vld [vmem:[%s7334 + $0x128] sm:$0xff]
      %v7373 = vld [vmem:[%s7334 + $0x130] sm:$0xff]
      %v7374 = vld [vmem:[%s7334 + $0x138] sm:$0xff]
      %v7375 = vld [vmem:[%s7334 + $0x140] sm:$0xff]
      %v7376 = vld [vmem:[%s7334 + $0x148] sm:$0xff]
      %v7377 = vld [vmem:[%s7334 + $0x150] sm:$0xff]
      %v7378 = vld [vmem:[%s7334 + $0x158] sm:$0xff]
      %v7379 = vld [vmem:[%s7334 + $0x160] sm:$0xff]
      %v7380 = vld [vmem:[%s7334 + $0x168] sm:$0xff]
      %v7381 = vld [vmem:[%s7334 + $0x170] sm:$0xff]
      %v7382 = vld [vmem:[%s7334 + $0x178] sm:$0xff]
      %v7383 = vld [vmem:[%s7334 + $0x180] sm:$0xff]
      %v7384 = vld [vmem:[%s7334 + $0x188] sm:$0xff]
      %v7385 = vld [vmem:[%s7334 + $0x190] sm:$0xff]
      %v7386 = vld [vmem:[%s7334 + $0x198] sm:$0xff]
      %v7387 = vld [vmem:[%s7334 + $0x1a0] sm:$0xff]
      %v7388 = vld [vmem:[%s7334 + $0x1a8] sm:$0xff]
      %v7389 = vld [vmem:[%s7334 + $0x1b0] sm:$0xff]
      %v7390 = vld [vmem:[%s7334 + $0x1b8] sm:$0xff]
      %v7391 = vld [vmem:[%s7334 + $0x1c0] sm:$0xff]
      %v7392 = vld [vmem:[%s7334 + $0x1c8] sm:$0xff]
      %v7393 = vld [vmem:[%s7334 + $0x1d0] sm:$0xff]
      %v7394 = vld [vmem:[%s7334 + $0x1d8] sm:$0xff]
      %v7395 = vld [vmem:[%s7334 + $0x1e0] sm:$0xff]
      %v7396 = vld [vmem:[%s7334 + $0x1e8] sm:$0xff]
      %v7397 = vld [vmem:[%s7334 + $0x1f0] sm:$0xff]
      %v7398 = vld [vmem:[%s7334 + $0x1f8] sm:$0xff]
      %s7399 = scalar_lea.vmem %s8, 8
      %v7400 = vld [vmem:[%s7399] sm:$0xf]
      %v7402 = vlaneseq
      %v7403 = vshrl.u32 %v7402, 7
      %v7404 = vsub.s32 0, %v7403
      %v7405 = vrot.slane %v7400, %v7404
      %v7406 = vlaneseq
      %v7407 = vshrl.u32 %v7406, 7
      %v7408 = vsub.s32 1, %v7407
      %v7409 = vrot.slane %v7400, %v7408
      %v7410 = vlaneseq
      %v7411 = vshrl.u32 %v7410, 7
      %v7412 = vsub.s32 2, %v7411
      %v7413 = vrot.slane %v7400, %v7412
      %v7414 = vlaneseq
      %v7415 = vshrl.u32 %v7414, 7
      %v7416 = vsub.s32 3, %v7415
      %v7417 = vrot.slane %v7400, %v7416
      %v7486 = vunpack.c.l.b16 %v7335
      %v7487 = vunpack.c.h.b16 %v7335
      %v7488 = vunpack.c.l.b16 %v7336
      %v7489 = vunpack.c.h.b16 %v7336
      %v7490 = vunpack.c.l.b16 %v7337
      %v7491 = vunpack.c.h.b16 %v7337
      %v7492 = vunpack.c.l.b16 %v7338
      %v7493 = vunpack.c.h.b16 %v7338
      %v7494 = vunpack.c.l.b16 %v7339
      %v7495 = vunpack.c.h.b16 %v7339
      %v7496 = vunpack.c.l.b16 %v7340
      %v7497 = vunpack.c.h.b16 %v7340
      %v7498 = vunpack.c.l.b16 %v7341
      %v7499 = vunpack.c.h.b16 %v7341
      %v7500 = vunpack.c.l.b16 %v7342
      %v7501 = vunpack.c.h.b16 %v7342
      %v7502 = vunpack.c.l.b16 %v7343
      %v7503 = vunpack.c.h.b16 %v7343
      %v7504 = vunpack.c.l.b16 %v7344
      %v7505 = vunpack.c.h.b16 %v7344
      %v7506 = vunpack.c.l.b16 %v7345
      %v7507 = vunpack.c.h.b16 %v7345
      %v7508 = vunpack.c.l.b16 %v7346
      %v7509 = vunpack.c.h.b16 %v7346
      %v7510 = vunpack.c.l.b16 %v7347
      %v7511 = vunpack.c.h.b16 %v7347
      %v7512 = vunpack.c.l.b16 %v7348
      %v7513 = vunpack.c.h.b16 %v7348
      %v7514 = vunpack.c.l.b16 %v7349
      %v7515 = vunpack.c.h.b16 %v7349
      %v7516 = vunpack.c.l.b16 %v7350
      %v7517 = vunpack.c.h.b16 %v7350
      %v7518 = vunpack.c.l.b16 %v7351
      %v7519 = vunpack.c.h.b16 %v7351
      %v7520 = vunpack.c.l.b16 %v7352
      %v7521 = vunpack.c.h.b16 %v7352
      %v7522 = vunpack.c.l.b16 %v7353
      %v7523 = vunpack.c.h.b16 %v7353
      %v7524 = vunpack.c.l.b16 %v7354
      %v7525 = vunpack.c.h.b16 %v7354
      %v7526 = vunpack.c.l.b16 %v7355
      %v7527 = vunpack.c.h.b16 %v7355
      %v7528 = vunpack.c.l.b16 %v7356
      %v7529 = vunpack.c.h.b16 %v7356
      %v7530 = vunpack.c.l.b16 %v7357
      %v7531 = vunpack.c.h.b16 %v7357
      %v7532 = vunpack.c.l.b16 %v7358
      %v7533 = vunpack.c.h.b16 %v7358
      %v7534 = vunpack.c.l.b16 %v7359
      %v7535 = vunpack.c.h.b16 %v7359
      %v7536 = vunpack.c.l.b16 %v7360
      %v7537 = vunpack.c.h.b16 %v7360
      %v7538 = vunpack.c.l.b16 %v7361
      %v7539 = vunpack.c.h.b16 %v7361
      %v7540 = vunpack.c.l.b16 %v7362
      %v7541 = vunpack.c.h.b16 %v7362
      %v7542 = vunpack.c.l.b16 %v7363
      %v7543 = vunpack.c.h.b16 %v7363
      %v7544 = vunpack.c.l.b16 %v7364
      %v7545 = vunpack.c.h.b16 %v7364
      %v7546 = vunpack.c.l.b16 %v7365
      %v7547 = vunpack.c.h.b16 %v7365
      %v7548 = vunpack.c.l.b16 %v7366
      %v7549 = vunpack.c.h.b16 %v7366
      %v7550 = vunpack.c.l.b16 %v7367
      %v7551 = vunpack.c.h.b16 %v7367
      %v7552 = vunpack.c.l.b16 %v7368
      %v7553 = vunpack.c.h.b16 %v7368
      %v7554 = vunpack.c.l.b16 %v7369
      %v7555 = vunpack.c.h.b16 %v7369
      %v7556 = vunpack.c.l.b16 %v7370
      %v7557 = vunpack.c.h.b16 %v7370
      %v7558 = vunpack.c.l.b16 %v7371
      %v7559 = vunpack.c.h.b16 %v7371
      %v7560 = vunpack.c.l.b16 %v7372
      %v7561 = vunpack.c.h.b16 %v7372
      %v7562 = vunpack.c.l.b16 %v7373
      %v7563 = vunpack.c.h.b16 %v7373
      %v7564 = vunpack.c.l.b16 %v7374
      %v7565 = vunpack.c.h.b16 %v7374
      %v7566 = vunpack.c.l.b16 %v7375
      %v7567 = vunpack.c.h.b16 %v7375
      %v7568 = vunpack.c.l.b16 %v7376
      %v7569 = vunpack.c.h.b16 %v7376
      %v7570 = vunpack.c.l.b16 %v7377
      %v7571 = vunpack.c.h.b16 %v7377
      %v7572 = vunpack.c.l.b16 %v7378
      %v7573 = vunpack.c.h.b16 %v7378
      %v7574 = vunpack.c.l.b16 %v7379
      %v7575 = vunpack.c.h.b16 %v7379
      %v7576 = vunpack.c.l.b16 %v7380
      %v7577 = vunpack.c.h.b16 %v7380
      %v7578 = vunpack.c.l.b16 %v7381
      %v7579 = vunpack.c.h.b16 %v7381
      %v7580 = vunpack.c.l.b16 %v7382
      %v7581 = vunpack.c.h.b16 %v7382
      %v7582 = vunpack.c.l.b16 %v7383
      %v7583 = vunpack.c.h.b16 %v7383
      %v7584 = vunpack.c.l.b16 %v7384
      %v7585 = vunpack.c.h.b16 %v7384
      %v7586 = vunpack.c.l.b16 %v7385
      %v7587 = vunpack.c.h.b16 %v7385
      %v7588 = vunpack.c.l.b16 %v7386
      %v7589 = vunpack.c.h.b16 %v7386
      %v7590 = vunpack.c.l.b16 %v7387
      %v7591 = vunpack.c.h.b16 %v7387
      %v7592 = vunpack.c.l.b16 %v7388
      %v7593 = vunpack.c.h.b16 %v7388
      %v7594 = vunpack.c.l.b16 %v7389
      %v7595 = vunpack.c.h.b16 %v7389
      %v7596 = vunpack.c.l.b16 %v7390
      %v7597 = vunpack.c.h.b16 %v7390
      %v7598 = vunpack.c.l.b16 %v7391
      %v7599 = vunpack.c.h.b16 %v7391
      %v7600 = vunpack.c.l.b16 %v7392
      %v7601 = vunpack.c.h.b16 %v7392
      %v7602 = vunpack.c.l.b16 %v7393
      %v7603 = vunpack.c.h.b16 %v7393
      %v7604 = vunpack.c.l.b16 %v7394
      %v7605 = vunpack.c.h.b16 %v7394
      %v7606 = vunpack.c.l.b16 %v7395
      %v7607 = vunpack.c.h.b16 %v7395
      %v7608 = vunpack.c.l.b16 %v7396
      %v7609 = vunpack.c.h.b16 %v7396
      %v7610 = vunpack.c.l.b16 %v7397
      %v7611 = vunpack.c.h.b16 %v7397
      %v7612 = vunpack.c.l.b16 %v7398
      %v7613 = vunpack.c.h.b16 %v7398
      %v7614 = vpack.c.b16 %v7490, %v7486
      %v7615 = vpack.c.b16 %v7491, %v7487
      %v7616 = vpack.c.b16 %v7492, %v7488
      %v7617 = vpack.c.b16 %v7493, %v7489
      %v7618 = vpack.c.b16 %v7498, %v7494
      %v7619 = vpack.c.b16 %v7499, %v7495
      %v7620 = vpack.c.b16 %v7500, %v7496
      %v7621 = vpack.c.b16 %v7501, %v7497
      %v7622 = vpack.c.b16 %v7506, %v7502
      %v7623 = vpack.c.b16 %v7507, %v7503
      %v7624 = vpack.c.b16 %v7508, %v7504
      %v7625 = vpack.c.b16 %v7509, %v7505
      %v7626 = vpack.c.b16 %v7514, %v7510
      %v7627 = vpack.c.b16 %v7515, %v7511
      %v7628 = vpack.c.b16 %v7516, %v7512
      %v7629 = vpack.c.b16 %v7517, %v7513
      %v7630 = vpack.c.b16 %v7522, %v7518
      %v7631 = vpack.c.b16 %v7523, %v7519
      %v7632 = vpack.c.b16 %v7524, %v7520
      %v7633 = vpack.c.b16 %v7525, %v7521
      %v7634 = vpack.c.b16 %v7530, %v7526
      %v7635 = vpack.c.b16 %v7531, %v7527
      %v7636 = vpack.c.b16 %v7532, %v7528
      %v7637 = vpack.c.b16 %v7533, %v7529
      %v7638 = vpack.c.b16 %v7538, %v7534
      %v7639 = vpack.c.b16 %v7539, %v7535
      %v7640 = vpack.c.b16 %v7540, %v7536
      %v7641 = vpack.c.b16 %v7541, %v7537
      %v7642 = vpack.c.b16 %v7546, %v7542
      %v7643 = vpack.c.b16 %v7547, %v7543
      %v7644 = vpack.c.b16 %v7548, %v7544
      %v7645 = vpack.c.b16 %v7549, %v7545
      %v7646 = vpack.c.b16 %v7554, %v7550
      %v7647 = vpack.c.b16 %v7555, %v7551
      %v7648 = vpack.c.b16 %v7556, %v7552
      %v7649 = vpack.c.b16 %v7557, %v7553
      %v7650 = vpack.c.b16 %v7562, %v7558
      %v7651 = vpack.c.b16 %v7563, %v7559
      %v7652 = vpack.c.b16 %v7564, %v7560
      %v7653 = vpack.c.b16 %v7565, %v7561
      %v7654 = vpack.c.b16 %v7570, %v7566
      %v7655 = vpack.c.b16 %v7571, %v7567
      %v7656 = vpack.c.b16 %v7572, %v7568
      %v7657 = vpack.c.b16 %v7573, %v7569
      %v7658 = vpack.c.b16 %v7578, %v7574
      %v7659 = vpack.c.b16 %v7579, %v7575
      %v7660 = vpack.c.b16 %v7580, %v7576
      %v7661 = vpack.c.b16 %v7581, %v7577
      %v7662 = vpack.c.b16 %v7586, %v7582
      %v7663 = vpack.c.b16 %v7587, %v7583
      %v7664 = vpack.c.b16 %v7588, %v7584
      %v7665 = vpack.c.b16 %v7589, %v7585
      %v7666 = vpack.c.b16 %v7594, %v7590
      %v7667 = vpack.c.b16 %v7595, %v7591
      %v7668 = vpack.c.b16 %v7596, %v7592
      %v7669 = vpack.c.b16 %v7597, %v7593
      %v7670 = vpack.c.b16 %v7602, %v7598
      %v7671 = vpack.c.b16 %v7603, %v7599
      %v7672 = vpack.c.b16 %v7604, %v7600
      %v7673 = vpack.c.b16 %v7605, %v7601
      %v7674 = vpack.c.b16 %v7610, %v7606
      %v7675 = vpack.c.b16 %v7611, %v7607
      %v7676 = vpack.c.b16 %v7612, %v7608
      %v7677 = vpack.c.b16 %v7613, %v7609
      %7742 = vmatprep.subr.bf16.mxu0 %v7615
      %7743 = vmatpush1.bf16.msra.mxu0 %v7614
      %7744 = vmatprep.subr.bf16.mxu0 %v7619
      %7745 = vmatpush1.bf16.msra.mxu0 %v7618
      %7746 = vmatprep.subr.bf16.mxu0 %v7623
      %7747 = vmatpush1.bf16.msra.mxu0 %v7622
      %7748 = vmatprep.subr.bf16.mxu0 %v7627
      %7749 = vmatpush1.bf16.msra.mxu0 %v7626
      %7750 = vmatprep.subr.bf16.mxu0 %v7631
      %7751 = vmatpush1.bf16.msra.mxu0 %v7630
      %7752 = vmatprep.subr.bf16.mxu0 %v7635
      %7753 = vmatpush1.bf16.msra.mxu0 %v7634
      %7754 = vmatprep.subr.bf16.mxu0 %v7639
      %7755 = vmatpush1.bf16.msra.mxu0 %v7638
      %7756 = vmatprep.subr.bf16.mxu0 %v7643
      %7757 = vmatpush1.bf16.msra.mxu0 %v7642
      %7758 = vmatprep.subr.bf16.mxu0 %v7647
      %7759 = vmatpush1.bf16.msra.mxu0 %v7646
      %7760 = vmatprep.subr.bf16.mxu0 %v7651
      %7761 = vmatpush1.bf16.msra.mxu0 %v7650
      %7762 = vmatprep.subr.bf16.mxu0 %v7655
      %7763 = vmatpush1.bf16.msra.mxu0 %v7654
      %7764 = vmatprep.subr.bf16.mxu0 %v7659
      %7765 = vmatpush1.bf16.msra.mxu0 %v7658
      %7766 = vmatprep.subr.bf16.mxu0 %v7663
      %7767 = vmatpush1.bf16.msra.mxu0 %v7662
      %7768 = vmatprep.subr.bf16.mxu0 %v7667
      %7769 = vmatpush1.bf16.msra.mxu0 %v7666
      %7770 = vmatprep.subr.bf16.mxu0 %v7671
      %7771 = vmatpush1.bf16.msra.mxu0 %v7670
      %7772 = vmatprep.subr.bf16.mxu0 %v7675
      %7773 = vmatpush1.bf16.msra.mxu0 %v7674
      %7774 = vmatprep.mubr.bf16.mxu0 %v7333
      %7775 = vmatmul.mubr.bf16.gmra.mrb[0].mxu0 %v7332
      %v7776 = vpop.f32.mrb[0].mxu0
      %v7777 = vadd.f32 %v7405, %v7776
      %v7778 = vpop.f32.mrb[0].mxu0
      %v7779 = vadd.f32 %v7409, %v7778
      %v7780 = vpop.f32.mrb[0].mxu0
      %v7781 = vpop.f32.mrb[0].mxu0
      %7782 = vdwg.mxu0
      %7783 = vmatprep.subr.bf16.mxu0 %v7617
      %7784 = vmatpush1.bf16.msra.mxu0 %v7616
      %7785 = vmatprep.subr.bf16.mxu0 %v7621
      %7786 = vmatpush1.bf16.msra.mxu0 %v7620
      %7787 = vmatprep.subr.bf16.mxu0 %v7625
      %7788 = vmatpush1.bf16.msra.mxu0 %v7624
      %7789 = vmatprep.subr.bf16.mxu0 %v7629
      %7790 = vmatpush1.bf16.msra.mxu0 %v7628
      %7791 = vmatprep.subr.bf16.mxu0 %v7633
      %7792 = vmatpush1.bf16.msra.mxu0 %v7632
      %7793 = vmatprep.subr.bf16.mxu0 %v7637
      %7794 = vmatpush1.bf16.msra.mxu0 %v7636
      %7795 = vmatprep.subr.bf16.mxu0 %v7641
      %7796 = vmatpush1.bf16.msra.mxu0 %v7640
      %7797 = vmatprep.subr.bf16.mxu0 %v7645
      %7798 = vmatpush1.bf16.msra.mxu0 %v7644
      %7799 = vmatprep.subr.bf16.mxu0 %v7649
      %7800 = vmatpush1.bf16.msra.mxu0 %v7648
      %7801 = vmatprep.subr.bf16.mxu0 %v7653
      %7802 = vmatpush1.bf16.msra.mxu0 %v7652
      %7803 = vmatprep.subr.bf16.mxu0 %v7657
      %7804 = vmatpush1.bf16.msra.mxu0 %v7656
      %7805 = vmatprep.subr.bf16.mxu0 %v7661
      %7806 = vmatpush1.bf16.msra.mxu0 %v7660
      %7807 = vmatprep.subr.bf16.mxu0 %v7665
      %7808 = vmatpush1.bf16.msra.mxu0 %v7664
      %7809 = vmatprep.subr.bf16.mxu0 %v7669
      %7810 = vmatpush1.bf16.msra.mxu0 %v7668
      %7811 = vmatprep.subr.bf16.mxu0 %v7673
      %7812 = vmatpush1.bf16.msra.mxu0 %v7672
      %7813 = vmatprep.subr.bf16.mxu0 %v7677
      %7814 = vmatpush1.bf16.msra.mxu0 %v7676
      %7815 = vmatprep.mubr.bf16.mxu0 %v7333
      %7816 = vmatmul.mubr.bf16.gmra.mrb[0].mxu0 %v7332
      %v7817 = vpop.f32.mrb[0].mxu0
      %v7818 = vadd.f32 %v7413, %v7817
      %v7819 = vpop.f32.mrb[0].mxu0
      %v7820 = vadd.f32 %v7417, %v7819
      %v7821 = vpop.f32.mrb[0].mxu0
      %v7822 = vpop.f32.mrb[0].mxu0
      %7823 = vdwg.mxu0
      %v7824 = vmul.f32 %v7777, 0.5
      %v7825 = vmul.f32 %v7779, 0.5
      %v7826 = vmul.f32 %v7818, 0.5
      %v7827 = vmul.f32 %v7820, 0.5
      %v7828 = vmul.f32 %v7777, 0.70710677
      %v7829 = vmul.f32 %v7779, 0.70710677
      %v7830 = vmul.f32 %v7818, 0.70710677
      %v7831 = vmul.f32 %v7820, 0.70710677
      %v7832 = vand.u32 2147483647, %v7828
      %v7833 = vand.u32 2147483647, %v7829
      %v7834 = vand.u32 2147483647, %v7830
      %v7835 = vand.u32 2147483647, %v7831
      %v7836 = vmul.f32 %v7832, 0.3275911
      %v7837 = vmul.f32 %v7833, 0.3275911
      %v7838 = vmul.f32 %v7834, 0.3275911
      %v7839 = vmul.f32 %v7835, 0.3275911
      %v7840 = vadd.f32 %v7836, 1.0
      %v7841 = vadd.f32 %v7837, 1.0
      %v7842 = vadd.f32 %v7838, 1.0
      %v7843 = vadd.f32 %v7839, 1.0
      %v7844 = vrcp.pop %v7840
      %v7845 = vmul.f32 1.0, %v7844
      %v7846 = vrcp.pop %v7841
      %v7847 = vmul.f32 1.0, %v7846
      %v7848 = vrcp.pop %v7842
      %v7849 = vmul.f32 1.0, %v7848
      %v7850 = vrcp.pop %v7843
      %v7851 = vmul.f32 1.0, %v7850
      %v7852 = vmul.f32 %v7845, 1.0614054
      %v7853 = vmul.f32 %v7847, 1.0614054
      %v7854 = vmul.f32 %v7849, 1.0614054
      %v7855 = vmul.f32 %v7851, 1.0614054
      %v7856 = vadd.f32 %v7852, -1.4531521
      %v7857 = vadd.f32 %v7853, -1.4531521
      %v7858 = vadd.f32 %v7854, -1.4531521
      %v7859 = vadd.f32 %v7855, -1.4531521
      %v7860 = vmul.f32 %v7856, %v7845
      %v7861 = vmul.f32 %v7857, %v7847
      %v7862 = vmul.f32 %v7858, %v7849
      %v7863 = vmul.f32 %v7859, %v7851
      %v7864 = vadd.f32 %v7860, 1.4214138
      %v7865 = vadd.f32 %v7861, 1.4214138
      %v7866 = vadd.f32 %v7862, 1.4214138
      %v7867 = vadd.f32 %v7863, 1.4214138
      %v7868 = vmul.f32 %v7864, %v7845
      %v7869 = vmul.f32 %v7865, %v7847
      %v7870 = vmul.f32 %v7866, %v7849
      %v7871 = vmul.f32 %v7867, %v7851
      %v7872 = vadd.f32 %v7868, -0.28449672
      %v7873 = vadd.f32 %v7869, -0.28449672
      %v7874 = vadd.f32 %v7870, -0.28449672
      %v7875 = vadd.f32 %v7871, -0.28449672
      %v7876 = vmul.f32 %v7872, %v7845
      %v7877 = vmul.f32 %v7873, %v7847
      %v7878 = vmul.f32 %v7874, %v7849
      %v7879 = vmul.f32 %v7875, %v7851
      %v7880 = vadd.f32 %v7876, 0.2548296
      %v7881 = vadd.f32 %v7877, 0.2548296
      %v7882 = vadd.f32 %v7878, 0.2548296
      %v7883 = vadd.f32 %v7879, 0.2548296
      %v7884 = vmul.f32 %v7880, %v7845
      %v7885 = vmul.f32 %v7881, %v7847
      %v7886 = vmul.f32 %v7882, %v7849
      %v7887 = vmul.f32 %v7883, %v7851
      %v7888 = vsub.f32 0.0, %v7832
      %v7889 = vsub.f32 0.0, %v7833
      %v7890 = vsub.f32 0.0, %v7834
      %v7891 = vsub.f32 0.0, %v7835
      %v7892 = vmul.f32 %v7888, %v7832
      %v7893 = vmul.f32 %v7889, %v7833
      %v7894 = vmul.f32 %v7890, %v7834
      %v7895 = vmul.f32 %v7891, %v7835
      %v7896 = vmul.f32 %v7892, 1.442695
      %v7897 = vpow.pop %v7896
      %v7898 = vmul.f32 %v7893, 1.442695
      %v7899 = vpow.pop %v7898
      %v7900 = vmul.f32 %v7894, 1.442695
      %v7901 = vpow.pop %v7900
      %v7902 = vmul.f32 %v7895, 1.442695
      %v7903 = vpow.pop %v7902
      %v7904 = vmul.f32 %v7884, %v7897
      %v7905 = vmul.f32 %v7885, %v7899
      %v7906 = vmul.f32 %v7886, %v7901
      %v7907 = vmul.f32 %v7887, %v7903
      %v7908 = vsub.f32 1.0, %v7904
      %v7909 = vsub.f32 1.0, %v7905
      %v7910 = vsub.f32 1.0, %v7906
      %v7911 = vsub.f32 1.0, %v7907
      %vm7912 = vcmp.ge.f32.partialorder %v7828, 0.0
      %vm7913 = vcmp.ge.f32.partialorder %v7829, 0.0
      %vm7914 = vcmp.ge.f32.partialorder %v7830, 0.0
      %vm7915 = vcmp.ge.f32.partialorder %v7831, 0.0
      %v7916 = vsub.f32 0.0, %v7908
      %v7917 = vsub.f32 0.0, %v7909
      %v7918 = vsub.f32 0.0, %v7910
      %v7919 = vsub.f32 0.0, %v7911
      %v7920 = vsel %vm7912, %v7908, %v7916
      %v7921 = vsel %vm7913, %v7909, %v7917
      %v7922 = vsel %vm7914, %v7910, %v7918
      %v7923 = vsel %vm7915, %v7911, %v7919
      %v7924 = vadd.f32 %v7920, 1.0
      %v7925 = vadd.f32 %v7921, 1.0
      %v7926 = vadd.f32 %v7922, 1.0
      %v7927 = vadd.f32 %v7923, 1.0
      %v7928 = vmul.f32 %v7824, %v7924
      %v7929 = vmul.f32 %v7825, %v7925
      %v7930 = vmul.f32 %v7826, %v7926
      %v7931 = vmul.f32 %v7827, %v7927
      %v7932 = vpack.c.bf16 %v7928, %v7928
      %v7933 = vpack.c.bf16 %v7929, %v7929
      %v7934 = vpack.c.bf16 %v7930, %v7930
      %v7935 = vpack.c.bf16 %v7931, %v7931
      %s7936 = scalar_lea.vmem %s6, 1024
      %v7937 = vld [vmem:[%s7936] sm:$0xff]
      %v7938 = vld [vmem:[%s7936 + $0x8] sm:$0xff]
      %v7939 = vld [vmem:[%s7936 + $0x10] sm:$0xff]
      %v7940 = vld [vmem:[%s7936 + $0x18] sm:$0xff]
      %v7941 = vld [vmem:[%s7936 + $0x20] sm:$0xff]
      %v7942 = vld [vmem:[%s7936 + $0x28] sm:$0xff]
      %v7943 = vld [vmem:[%s7936 + $0x30] sm:$0xff]
      %v7944 = vld [vmem:[%s7936 + $0x38] sm:$0xff]
      %v7945 = vld [vmem:[%s7936 + $0x40] sm:$0xff]
      %v7946 = vld [vmem:[%s7936 + $0x48] sm:$0xff]
      %v7947 = vld [vmem:[%s7936 + $0x50] sm:$0xff]
      %v7948 = vld [vmem:[%s7936 + $0x58] sm:$0xff]
      %v7949 = vld [vmem:[%s7936 + $0x60] sm:$0xff]
      %v7950 = vld [vmem:[%s7936 + $0x68] sm:$0xff]
      %v7951 = vld [vmem:[%s7936 + $0x70] sm:$0xff]
      %v7952 = vld [vmem:[%s7936 + $0x78] sm:$0xff]
      %v7953 = vld [vmem:[%s7936 + $0x80] sm:$0xff]
      %v7954 = vld [vmem:[%s7936 + $0x88] sm:$0xff]
      %v7955 = vld [vmem:[%s7936 + $0x90] sm:$0xff]
      %v7956 = vld [vmem:[%s7936 + $0x98] sm:$0xff]
      %v7957 = vld [vmem:[%s7936 + $0xa0] sm:$0xff]
      %v7958 = vld [vmem:[%s7936 + $0xa8] sm:$0xff]
      %v7959 = vld [vmem:[%s7936 + $0xb0] sm:$0xff]
      %v7960 = vld [vmem:[%s7936 + $0xb8] sm:$0xff]
      %v7961 = vld [vmem:[%s7936 + $0xc0] sm:$0xff]
      %v7962 = vld [vmem:[%s7936 + $0xc8] sm:$0xff]
      %v7963 = vld [vmem:[%s7936 + $0xd0] sm:$0xff]
      %v7964 = vld [vmem:[%s7936 + $0xd8] sm:$0xff]
      %v7965 = vld [vmem:[%s7936 + $0xe0] sm:$0xff]
      %v7966 = vld [vmem:[%s7936 + $0xe8] sm:$0xff]
      %v7967 = vld [vmem:[%s7936 + $0xf0] sm:$0xff]
      %v7968 = vld [vmem:[%s7936 + $0xf8] sm:$0xff]
      %v7969 = vld [vmem:[%s7936 + $0x100] sm:$0xff]
      %v7970 = vld [vmem:[%s7936 + $0x108] sm:$0xff]
      %v7971 = vld [vmem:[%s7936 + $0x110] sm:$0xff]
      %v7972 = vld [vmem:[%s7936 + $0x118] sm:$0xff]
      %v7973 = vld [vmem:[%s7936 + $0x120] sm:$0xff]
      %v7974 = vld [vmem:[%s7936 + $0x128] sm:$0xff]
      %v7975 = vld [vmem:[%s7936 + $0x130] sm:$0xff]
      %v7976 = vld [vmem:[%s7936 + $0x138] sm:$0xff]
      %v7977 = vld [vmem:[%s7936 + $0x140] sm:$0xff]
      %v7978 = vld [vmem:[%s7936 + $0x148] sm:$0xff]
      %v7979 = vld [vmem:[%s7936 + $0x150] sm:$0xff]
      %v7980 = vld [vmem:[%s7936 + $0x158] sm:$0xff]
      %v7981 = vld [vmem:[%s7936 + $0x160] sm:$0xff]
      %v7982 = vld [vmem:[%s7936 + $0x168] sm:$0xff]
      %v7983 = vld [vmem:[%s7936 + $0x170] sm:$0xff]
      %v7984 = vld [vmem:[%s7936 + $0x178] sm:$0xff]
      %v7985 = vld [vmem:[%s7936 + $0x180] sm:$0xff]
      %v7986 = vld [vmem:[%s7936 + $0x188] sm:$0xff]
      %v7987 = vld [vmem:[%s7936 + $0x190] sm:$0xff]
      %v7988 = vld [vmem:[%s7936 + $0x198] sm:$0xff]
      %v7989 = vld [vmem:[%s7936 + $0x1a0] sm:$0xff]
      %v7990 = vld [vmem:[%s7936 + $0x1a8] sm:$0xff]
      %v7991 = vld [vmem:[%s7936 + $0x1b0] sm:$0xff]
      %v7992 = vld [vmem:[%s7936 + $0x1b8] sm:$0xff]
      %v7993 = vld [vmem:[%s7936 + $0x1c0] sm:$0xff]
      %v7994 = vld [vmem:[%s7936 + $0x1c8] sm:$0xff]
      %v7995 = vld [vmem:[%s7936 + $0x1d0] sm:$0xff]
      %v7996 = vld [vmem:[%s7936 + $0x1d8] sm:$0xff]
      %v7997 = vld [vmem:[%s7936 + $0x1e0] sm:$0xff]
      %v7998 = vld [vmem:[%s7936 + $0x1e8] sm:$0xff]
      %v7999 = vld [vmem:[%s7936 + $0x1f0] sm:$0xff]
      %v8000 = vld [vmem:[%s7936 + $0x1f8] sm:$0xff]
      %v8001 = vlaneseq
      %v8002 = vshrl.u32 %v8001, 7
      %v8003 = vsub.s32 5, %v8002
      %v8004 = vrot.slane %v5819, %v8003
      %v8005 = vlaneseq
      %v8006 = vshrl.u32 %v8005, 7
      %v8007 = vsub.s32 5, %v8006
      %v8008 = vrot.slane %v5820, %v8007
      %v8073 = vunpack.c.l.b16 %v7937
      %v8074 = vunpack.c.h.b16 %v7937
      %v8075 = vunpack.c.l.b16 %v7938
      %v8076 = vunpack.c.h.b16 %v7938
      %v8077 = vunpack.c.l.b16 %v7939
      %v8078 = vunpack.c.h.b16 %v7939
      %v8079 = vunpack.c.l.b16 %v7940
      %v8080 = vunpack.c.h.b16 %v7940
      %v8081 = vunpack.c.l.b16 %v7941
      %v8082 = vunpack.c.h.b16 %v7941
      %v8083 = vunpack.c.l.b16 %v7942
      %v8084 = vunpack.c.h.b16 %v7942
      %v8085 = vunpack.c.l.b16 %v7943
      %v8086 = vunpack.c.h.b16 %v7943
      %v8087 = vunpack.c.l.b16 %v7944
      %v8088 = vunpack.c.h.b16 %v7944
      %v8089 = vunpack.c.l.b16 %v7945
      %v8090 = vunpack.c.h.b16 %v7945
      %v8091 = vunpack.c.l.b16 %v7946
      %v8092 = vunpack.c.h.b16 %v7946
      %v8093 = vunpack.c.l.b16 %v7947
      %v8094 = vunpack.c.h.b16 %v7947
      %v8095 = vunpack.c.l.b16 %v7948
      %v8096 = vunpack.c.h.b16 %v7948
      %v8097 = vunpack.c.l.b16 %v7949
      %v8098 = vunpack.c.h.b16 %v7949
      %v8099 = vunpack.c.l.b16 %v7950
      %v8100 = vunpack.c.h.b16 %v7950
      %v8101 = vunpack.c.l.b16 %v7951
      %v8102 = vunpack.c.h.b16 %v7951
      %v8103 = vunpack.c.l.b16 %v7952
      %v8104 = vunpack.c.h.b16 %v7952
      %v8105 = vunpack.c.l.b16 %v7953
      %v8106 = vunpack.c.h.b16 %v7953
      %v8107 = vunpack.c.l.b16 %v7954
      %v8108 = vunpack.c.h.b16 %v7954
      %v8109 = vunpack.c.l.b16 %v7955
      %v8110 = vunpack.c.h.b16 %v7955
      %v8111 = vunpack.c.l.b16 %v7956
      %v8112 = vunpack.c.h.b16 %v7956
      %v8113 = vunpack.c.l.b16 %v7957
      %v8114 = vunpack.c.h.b16 %v7957
      %v8115 = vunpack.c.l.b16 %v7958
      %v8116 = vunpack.c.h.b16 %v7958
      %v8117 = vunpack.c.l.b16 %v7959
      %v8118 = vunpack.c.h.b16 %v7959
      %v8119 = vunpack.c.l.b16 %v7960
      %v8120 = vunpack.c.h.b16 %v7960
      %v8121 = vunpack.c.l.b16 %v7961
      %v8122 = vunpack.c.h.b16 %v7961
      %v8123 = vunpack.c.l.b16 %v7962
      %v8124 = vunpack.c.h.b16 %v7962
      %v8125 = vunpack.c.l.b16 %v7963
      %v8126 = vunpack.c.h.b16 %v7963
      %v8127 = vunpack.c.l.b16 %v7964
      %v8128 = vunpack.c.h.b16 %v7964
      %v8129 = vunpack.c.l.b16 %v7965
      %v8130 = vunpack.c.h.b16 %v7965
      %v8131 = vunpack.c.l.b16 %v7966
      %v8132 = vunpack.c.h.b16 %v7966
      %v8133 = vunpack.c.l.b16 %v7967
      %v8134 = vunpack.c.h.b16 %v7967
      %v8135 = vunpack.c.l.b16 %v7968
      %v8136 = vunpack.c.h.b16 %v7968
      %v8137 = vunpack.c.l.b16 %v7969
      %v8138 = vunpack.c.h.b16 %v7969
      %v8139 = vunpack.c.l.b16 %v7970
      %v8140 = vunpack.c.h.b16 %v7970
      %v8141 = vunpack.c.l.b16 %v7971
      %v8142 = vunpack.c.h.b16 %v7971
      %v8143 = vunpack.c.l.b16 %v7972
      %v8144 = vunpack.c.h.b16 %v7972
      %v8145 = vunpack.c.l.b16 %v7973
      %v8146 = vunpack.c.h.b16 %v7973
      %v8147 = vunpack.c.l.b16 %v7974
      %v8148 = vunpack.c.h.b16 %v7974
      %v8149 = vunpack.c.l.b16 %v7975
      %v8150 = vunpack.c.h.b16 %v7975
      %v8151 = vunpack.c.l.b16 %v7976
      %v8152 = vunpack.c.h.b16 %v7976
      %v8153 = vunpack.c.l.b16 %v7977
      %v8154 = vunpack.c.h.b16 %v7977
      %v8155 = vunpack.c.l.b16 %v7978
      %v8156 = vunpack.c.h.b16 %v7978
      %v8157 = vunpack.c.l.b16 %v7979
      %v8158 = vunpack.c.h.b16 %v7979
      %v8159 = vunpack.c.l.b16 %v7980
      %v8160 = vunpack.c.h.b16 %v7980
      %v8161 = vunpack.c.l.b16 %v7981
      %v8162 = vunpack.c.h.b16 %v7981
      %v8163 = vunpack.c.l.b16 %v7982
      %v8164 = vunpack.c.h.b16 %v7982
      %v8165 = vunpack.c.l.b16 %v7983
      %v8166 = vunpack.c.h.b16 %v7983
      %v8167 = vunpack.c.l.b16 %v7984
      %v8168 = vunpack.c.h.b16 %v7984
      %v8169 = vunpack.c.l.b16 %v7985
      %v8170 = vunpack.c.h.b16 %v7985
      %v8171 = vunpack.c.l.b16 %v7986
      %v8172 = vunpack.c.h.b16 %v7986
      %v8173 = vunpack.c.l.b16 %v7987
      %v8174 = vunpack.c.h.b16 %v7987
      %v8175 = vunpack.c.l.b16 %v7988
      %v8176 = vunpack.c.h.b16 %v7988
      %v8177 = vunpack.c.l.b16 %v7989
      %v8178 = vunpack.c.h.b16 %v7989
      %v8179 = vunpack.c.l.b16 %v7990
      %v8180 = vunpack.c.h.b16 %v7990
      %v8181 = vunpack.c.l.b16 %v7991
      %v8182 = vunpack.c.h.b16 %v7991
      %v8183 = vunpack.c.l.b16 %v7992
      %v8184 = vunpack.c.h.b16 %v7992
      %v8185 = vunpack.c.l.b16 %v7993
      %v8186 = vunpack.c.h.b16 %v7993
      %v8187 = vunpack.c.l.b16 %v7994
      %v8188 = vunpack.c.h.b16 %v7994
      %v8189 = vunpack.c.l.b16 %v7995
      %v8190 = vunpack.c.h.b16 %v7995
      %v8191 = vunpack.c.l.b16 %v7996
      %v8192 = vunpack.c.h.b16 %v7996
      %v8193 = vunpack.c.l.b16 %v7997
      %v8194 = vunpack.c.h.b16 %v7997
      %v8195 = vunpack.c.l.b16 %v7998
      %v8196 = vunpack.c.h.b16 %v7998
      %v8197 = vunpack.c.l.b16 %v7999
      %v8198 = vunpack.c.h.b16 %v7999
      %v8199 = vunpack.c.l.b16 %v8000
      %v8200 = vunpack.c.h.b16 %v8000
      %v8201 = vpack.c.b16 %v8075, %v8073
      %v8202 = vpack.c.b16 %v8076, %v8074
      %v8203 = vpack.c.b16 %v8079, %v8077
      %v8204 = vpack.c.b16 %v8080, %v8078
      %v8205 = vpack.c.b16 %v8083, %v8081
      %v8206 = vpack.c.b16 %v8084, %v8082
      %v8207 = vpack.c.b16 %v8087, %v8085
      %v8208 = vpack.c.b16 %v8088, %v8086
      %v8209 = vpack.c.b16 %v8091, %v8089
      %v8210 = vpack.c.b16 %v8092, %v8090
      %v8211 = vpack.c.b16 %v8095, %v8093
      %v8212 = vpack.c.b16 %v8096, %v8094
      %v8213 = vpack.c.b16 %v8099, %v8097
      %v8214 = vpack.c.b16 %v8100, %v8098
      %v8215 = vpack.c.b16 %v8103, %v8101
      %v8216 = vpack.c.b16 %v8104, %v8102
      %v8217 = vpack.c.b16 %v8107, %v8105
      %v8218 = vpack.c.b16 %v8108, %v8106
      %v8219 = vpack.c.b16 %v8111, %v8109
      %v8220 = vpack.c.b16 %v8112, %v8110
      %v8221 = vpack.c.b16 %v8115, %v8113
      %v8222 = vpack.c.b16 %v8116, %v8114
      %v8223 = vpack.c.b16 %v8119, %v8117
      %v8224 = vpack.c.b16 %v8120, %v8118
      %v8225 = vpack.c.b16 %v8123, %v8121
      %v8226 = vpack.c.b16 %v8124, %v8122
      %v8227 = vpack.c.b16 %v8127, %v8125
      %v8228 = vpack.c.b16 %v8128, %v8126
      %v8229 = vpack.c.b16 %v8131, %v8129
      %v8230 = vpack.c.b16 %v8132, %v8130
      %v8231 = vpack.c.b16 %v8135, %v8133
      %v8232 = vpack.c.b16 %v8136, %v8134
      %v8233 = vpack.c.b16 %v8139, %v8137
      %v8234 = vpack.c.b16 %v8140, %v8138
      %v8235 = vpack.c.b16 %v8143, %v8141
      %v8236 = vpack.c.b16 %v8144, %v8142
      %v8237 = vpack.c.b16 %v8147, %v8145
      %v8238 = vpack.c.b16 %v8148, %v8146
      %v8239 = vpack.c.b16 %v8151, %v8149
      %v8240 = vpack.c.b16 %v8152, %v8150
      %v8241 = vpack.c.b16 %v8155, %v8153
      %v8242 = vpack.c.b16 %v8156, %v8154
      %v8243 = vpack.c.b16 %v8159, %v8157
      %v8244 = vpack.c.b16 %v8160, %v8158
      %v8245 = vpack.c.b16 %v8163, %v8161
      %v8246 = vpack.c.b16 %v8164, %v8162
      %v8247 = vpack.c.b16 %v8167, %v8165
      %v8248 = vpack.c.b16 %v8168, %v8166
      %v8249 = vpack.c.b16 %v8171, %v8169
      %v8250 = vpack.c.b16 %v8172, %v8170
      %v8251 = vpack.c.b16 %v8175, %v8173
      %v8252 = vpack.c.b16 %v8176, %v8174
      %v8253 = vpack.c.b16 %v8179, %v8177
      %v8254 = vpack.c.b16 %v8180, %v8178
      %v8255 = vpack.c.b16 %v8183, %v8181
      %v8256 = vpack.c.b16 %v8184, %v8182
      %v8257 = vpack.c.b16 %v8187, %v8185
      %v8258 = vpack.c.b16 %v8188, %v8186
      %v8259 = vpack.c.b16 %v8191, %v8189
      %v8260 = vpack.c.b16 %v8192, %v8190
      %v8261 = vpack.c.b16 %v8195, %v8193
      %v8262 = vpack.c.b16 %v8196, %v8194
      %v8263 = vpack.c.b16 %v8199, %v8197
      %v8264 = vpack.c.b16 %v8200, %v8198
      %8329 = vmatprep.subr.bf16.mxu0 %v8202
      %8330 = vmatpush1.bf16.msra.mxu0 %v8201
      %8331 = vmatprep.subr.bf16.mxu0 %v8204
      %8332 = vmatpush1.bf16.msra.mxu0 %v8203
      %8333 = vmatprep.subr.bf16.mxu0 %v8206
      %8334 = vmatpush1.bf16.msra.mxu0 %v8205
      %8335 = vmatprep.subr.bf16.mxu0 %v8208
      %8336 = vmatpush1.bf16.msra.mxu0 %v8207
      %8337 = vmatprep.subr.bf16.mxu0 %v8210
      %8338 = vmatpush1.bf16.msra.mxu0 %v8209
      %8339 = vmatprep.subr.bf16.mxu0 %v8212
      %8340 = vmatpush1.bf16.msra.mxu0 %v8211
      %8341 = vmatprep.subr.bf16.mxu0 %v8214
      %8342 = vmatpush1.bf16.msra.mxu0 %v8213
      %8343 = vmatprep.subr.bf16.mxu0 %v8216
      %8344 = vmatpush1.bf16.msra.mxu0 %v8215
      %8345 = vmatprep.subr.bf16.mxu0 %v8218
      %8346 = vmatpush1.bf16.msra.mxu0 %v8217
      %8347 = vmatprep.subr.bf16.mxu0 %v8220
      %8348 = vmatpush1.bf16.msra.mxu0 %v8219
      %8349 = vmatprep.subr.bf16.mxu0 %v8222
      %8350 = vmatpush1.bf16.msra.mxu0 %v8221
      %8351 = vmatprep.subr.bf16.mxu0 %v8224
      %8352 = vmatpush1.bf16.msra.mxu0 %v8223
      %8353 = vmatprep.subr.bf16.mxu0 %v8226
      %8354 = vmatpush1.bf16.msra.mxu0 %v8225
      %8355 = vmatprep.subr.bf16.mxu0 %v8228
      %8356 = vmatpush1.bf16.msra.mxu0 %v8227
      %8357 = vmatprep.subr.bf16.mxu0 %v8230
      %8358 = vmatpush1.bf16.msra.mxu0 %v8229
      %8359 = vmatprep.subr.bf16.mxu0 %v8232
      %8360 = vmatpush1.bf16.msra.mxu0 %v8231
      %8361 = vmatprep.mubr.bf16.mxu0 %v7933
      %8362 = vmatmul.mubr.bf16.gmra.mrb[0].mxu0 %v7932
      %v8363 = vpop.f32.mrb[0].mxu0
      %v8364 = vadd.f32 %v8004, %v8363
      %v8365 = vpop.f32.mrb[0].mxu0
      %v8366 = vadd.f32 %v8008, %v8365
      %v8367 = vpop.f32.mrb[0].mxu0
      %v8368 = vpop.f32.mrb[0].mxu0
      %8369 = vdwg.mxu0
      %8370 = vmatprep.subr.bf16.mxu0 %v8234
      %8371 = vmatpush1.bf16.msra.mxu0 %v8233
      %8372 = vmatprep.subr.bf16.mxu0 %v8236
      %8373 = vmatpush1.bf16.msra.mxu0 %v8235
      %8374 = vmatprep.subr.bf16.mxu0 %v8238
      %8375 = vmatpush1.bf16.msra.mxu0 %v8237
      %8376 = vmatprep.subr.bf16.mxu0 %v8240
      %8377 = vmatpush1.bf16.msra.mxu0 %v8239
      %8378 = vmatprep.subr.bf16.mxu0 %v8242
      %8379 = vmatpush1.bf16.msra.mxu0 %v8241
      %8380 = vmatprep.subr.bf16.mxu0 %v8244
      %8381 = vmatpush1.bf16.msra.mxu0 %v8243
      %8382 = vmatprep.subr.bf16.mxu0 %v8246
      %8383 = vmatpush1.bf16.msra.mxu0 %v8245
      %8384 = vmatprep.subr.bf16.mxu0 %v8248
      %8385 = vmatpush1.bf16.msra.mxu0 %v8247
      %8386 = vmatprep.subr.bf16.mxu0 %v8250
      %8387 = vmatpush1.bf16.msra.mxu0 %v8249
      %8388 = vmatprep.subr.bf16.mxu0 %v8252
      %8389 = vmatpush1.bf16.msra.mxu0 %v8251
      %8390 = vmatprep.subr.bf16.mxu0 %v8254
      %8391 = vmatpush1.bf16.msra.mxu0 %v8253
      %8392 = vmatprep.subr.bf16.mxu0 %v8256
      %8393 = vmatpush1.bf16.msra.mxu0 %v8255
      %8394 = vmatprep.subr.bf16.mxu0 %v8258
      %8395 = vmatpush1.bf16.msra.mxu0 %v8257
      %8396 = vmatprep.subr.bf16.mxu0 %v8260
      %8397 = vmatpush1.bf16.msra.mxu0 %v8259
      %8398 = vmatprep.subr.bf16.mxu0 %v8262
      %8399 = vmatpush1.bf16.msra.mxu0 %v8261
      %8400 = vmatprep.subr.bf16.mxu0 %v8264
      %8401 = vmatpush1.bf16.msra.mxu0 %v8263
      %8402 = vmatprep.mubr.bf16.mxu0 %v7935
      %8403 = vmatmul.mubr.bf16.gmra.mrb[0].mxu0 %v7934
      %v8404 = vpop.f32.mrb[0].mxu0
      %v8405 = vadd.f32 %v8364, %v8404
      %v8406 = vpop.f32.mrb[0].mxu0
      %v8407 = vadd.f32 %v8366, %v8406
      %v8408 = vpop.f32.mrb[0].mxu0
      %v8409 = vpop.f32.mrb[0].mxu0
      %8410 = vdwg.mxu0
      %v8411 = vadd.f32 %v7294, %v8405
      %v8412 = vadd.f32 %v7295, %v8407
      %s8413 = scalar_lea.vmem %s9, 48
      %v8414 = vld [vmem:[%s8413] sm:$0x3f]
      %v8415 = vld [vmem:[%s8413 + $0x8] sm:$0x3f]
      %v8416 = vadd.f32 %v8411, %v8412
      %8417 = vadd.xlane.f32.xlu0 %v8416
      %v8418 = vpop.xlane.xlu0 %8417
      %v8419 = vmul.f32 %v8418, %v636
      %v8420 = vsub.f32 %v8411, %v8419
      %v8421 = vsub.f32 %v8412, %v8419
      %v8422 = vmul.f32 %v8420, %v8420
      %v8423 = vmul.f32 %v8421, %v8421
      %v8424 = vadd.f32 %v8422, %v8423
      %8425 = vadd.xlane.f32.xlu0 %v8424
      %v8426 = vpop.xlane.xlu0 %8425
      %v8427 = vmul.f32 %v8426, %v636
      %v8428 = vadd.f32 %v8427, 1e-05
      %v8429 = vrsqrt.pop %v8428
      %v8430 = vmul.f32 %v8420, %v8429
      %v8431 = vmul.f32 %v8421, %v8429
      %v8432 = vlaneseq
      %v8433 = vshrl.u32 %v8432, 7
      %v8434 = vsub.s32 0, %v8433
      %v8435 = vrot.slane %v8414, %v8434
      %v8436 = vlaneseq
      %v8437 = vshrl.u32 %v8436, 7
      %v8438 = vsub.s32 0, %v8437
      %v8439 = vrot.slane %v8415, %v8438
      %v8440 = vmul.f32 %v8430, %v8435
      %v8441 = vmul.f32 %v8431, %v8439
      %v8442 = vlaneseq
      %v8443 = vshrl.u32 %v8442, 7
      %v8444 = vsub.s32 1, %v8443
      %v8445 = vrot.slane %v8414, %v8444
      %v8446 = vlaneseq
      %v8447 = vshrl.u32 %v8446, 7
      %v8448 = vsub.s32 1, %v8447
      %v8449 = vrot.slane %v8415, %v8448
      %v8450 = vadd.f32 %v8440, %v8445
      %v8451 = vadd.f32 %v8441, %v8449
      %v8452 = vpack.c.bf16 %v8450, %v8450
      %v8453 = vpack.c.bf16 %v8451, %v8451
      %s8454 = scalar_lea.vmem %s3, 2304
      %v8455 = vld [vmem:[%s8454] sm:$0xff]
      %v8456 = vld [vmem:[%s8454 + $0x8] sm:$0xff]
      %v8457 = vld [vmem:[%s8454 + $0x10] sm:$0xff]
      %v8458 = vld [vmem:[%s8454 + $0x18] sm:$0xff]
      %v8459 = vld [vmem:[%s8454 + $0x20] sm:$0xff]
      %v8460 = vld [vmem:[%s8454 + $0x28] sm:$0xff]
      %v8461 = vld [vmem:[%s8454 + $0x30] sm:$0xff]
      %v8462 = vld [vmem:[%s8454 + $0x38] sm:$0xff]
      %v8463 = vld [vmem:[%s8454 + $0x40] sm:$0xff]
      %v8464 = vld [vmem:[%s8454 + $0x48] sm:$0xff]
      %v8465 = vld [vmem:[%s8454 + $0x50] sm:$0xff]
      %v8466 = vld [vmem:[%s8454 + $0x58] sm:$0xff]
      %v8467 = vld [vmem:[%s8454 + $0x60] sm:$0xff]
      %v8468 = vld [vmem:[%s8454 + $0x68] sm:$0xff]
      %v8469 = vld [vmem:[%s8454 + $0x70] sm:$0xff]
      %v8470 = vld [vmem:[%s8454 + $0x78] sm:$0xff]
      %v8471 = vld [vmem:[%s8454 + $0x80] sm:$0xff]
      %v8472 = vld [vmem:[%s8454 + $0x88] sm:$0xff]
      %v8473 = vld [vmem:[%s8454 + $0x90] sm:$0xff]
      %v8474 = vld [vmem:[%s8454 + $0x98] sm:$0xff]
      %v8475 = vld [vmem:[%s8454 + $0xa0] sm:$0xff]
      %v8476 = vld [vmem:[%s8454 + $0xa8] sm:$0xff]
      %v8477 = vld [vmem:[%s8454 + $0xb0] sm:$0xff]
      %v8478 = vld [vmem:[%s8454 + $0xb8] sm:$0xff]
      %v8479 = vld [vmem:[%s8454 + $0xc0] sm:$0xff]
      %v8480 = vld [vmem:[%s8454 + $0xc8] sm:$0xff]
      %v8481 = vld [vmem:[%s8454 + $0xd0] sm:$0xff]
      %v8482 = vld [vmem:[%s8454 + $0xd8] sm:$0xff]
      %v8483 = vld [vmem:[%s8454 + $0xe0] sm:$0xff]
      %v8484 = vld [vmem:[%s8454 + $0xe8] sm:$0xff]
      %v8485 = vld [vmem:[%s8454 + $0xf0] sm:$0xff]
      %v8486 = vld [vmem:[%s8454 + $0xf8] sm:$0xff]
      %v8487 = vld [vmem:[%s8454 + $0x100] sm:$0xff]
      %v8488 = vld [vmem:[%s8454 + $0x108] sm:$0xff]
      %v8489 = vld [vmem:[%s8454 + $0x110] sm:$0xff]
      %v8490 = vld [vmem:[%s8454 + $0x118] sm:$0xff]
      %v8491 = vld [vmem:[%s8454 + $0x120] sm:$0xff]
      %v8492 = vld [vmem:[%s8454 + $0x128] sm:$0xff]
      %v8493 = vld [vmem:[%s8454 + $0x130] sm:$0xff]
      %v8494 = vld [vmem:[%s8454 + $0x138] sm:$0xff]
      %v8495 = vld [vmem:[%s8454 + $0x140] sm:$0xff]
      %v8496 = vld [vmem:[%s8454 + $0x148] sm:$0xff]
      %v8497 = vld [vmem:[%s8454 + $0x150] sm:$0xff]
      %v8498 = vld [vmem:[%s8454 + $0x158] sm:$0xff]
      %v8499 = vld [vmem:[%s8454 + $0x160] sm:$0xff]
      %v8500 = vld [vmem:[%s8454 + $0x168] sm:$0xff]
      %v8501 = vld [vmem:[%s8454 + $0x170] sm:$0xff]
      %v8502 = vld [vmem:[%s8454 + $0x178] sm:$0xff]
      %v8503 = vld [vmem:[%s8454 + $0x180] sm:$0xff]
      %v8504 = vld [vmem:[%s8454 + $0x188] sm:$0xff]
      %v8505 = vld [vmem:[%s8454 + $0x190] sm:$0xff]
      %v8506 = vld [vmem:[%s8454 + $0x198] sm:$0xff]
      %v8507 = vld [vmem:[%s8454 + $0x1a0] sm:$0xff]
      %v8508 = vld [vmem:[%s8454 + $0x1a8] sm:$0xff]
      %v8509 = vld [vmem:[%s8454 + $0x1b0] sm:$0xff]
      %v8510 = vld [vmem:[%s8454 + $0x1b8] sm:$0xff]
      %v8511 = vld [vmem:[%s8454 + $0x1c0] sm:$0xff]
      %v8512 = vld [vmem:[%s8454 + $0x1c8] sm:$0xff]
      %v8513 = vld [vmem:[%s8454 + $0x1d0] sm:$0xff]
      %v8514 = vld [vmem:[%s8454 + $0x1d8] sm:$0xff]
      %v8515 = vld [vmem:[%s8454 + $0x1e0] sm:$0xff]
      %v8516 = vld [vmem:[%s8454 + $0x1e8] sm:$0xff]
      %v8517 = vld [vmem:[%s8454 + $0x1f0] sm:$0xff]
      %v8518 = vld [vmem:[%s8454 + $0x1f8] sm:$0xff]
      %v8519 = vld [vmem:[%s8454 + $0x200] sm:$0xff]
      %v8520 = vld [vmem:[%s8454 + $0x208] sm:$0xff]
      %v8521 = vld [vmem:[%s8454 + $0x210] sm:$0xff]
      %v8522 = vld [vmem:[%s8454 + $0x218] sm:$0xff]
      %v8523 = vld [vmem:[%s8454 + $0x220] sm:$0xff]
      %v8524 = vld [vmem:[%s8454 + $0x228] sm:$0xff]
      %v8525 = vld [vmem:[%s8454 + $0x230] sm:$0xff]
      %v8526 = vld [vmem:[%s8454 + $0x238] sm:$0xff]
      %v8527 = vld [vmem:[%s8454 + $0x240] sm:$0xff]
      %v8528 = vld [vmem:[%s8454 + $0x248] sm:$0xff]
      %v8529 = vld [vmem:[%s8454 + $0x250] sm:$0xff]
      %v8530 = vld [vmem:[%s8454 + $0x258] sm:$0xff]
      %v8531 = vld [vmem:[%s8454 + $0x260] sm:$0xff]
      %v8532 = vld [vmem:[%s8454 + $0x268] sm:$0xff]
      %v8533 = vld [vmem:[%s8454 + $0x270] sm:$0xff]
      %v8534 = vld [vmem:[%s8454 + $0x278] sm:$0xff]
      %v8535 = vld [vmem:[%s8454 + $0x280] sm:$0xff]
      %v8536 = vld [vmem:[%s8454 + $0x288] sm:$0xff]
      %v8537 = vld [vmem:[%s8454 + $0x290] sm:$0xff]
      %v8538 = vld [vmem:[%s8454 + $0x298] sm:$0xff]
      %v8539 = vld [vmem:[%s8454 + $0x2a0] sm:$0xff]
      %v8540 = vld [vmem:[%s8454 + $0x2a8] sm:$0xff]
      %v8541 = vld [vmem:[%s8454 + $0x2b0] sm:$0xff]
      %v8542 = vld [vmem:[%s8454 + $0x2b8] sm:$0xff]
      %v8543 = vld [vmem:[%s8454 + $0x2c0] sm:$0xff]
      %v8544 = vld [vmem:[%s8454 + $0x2c8] sm:$0xff]
      %v8545 = vld [vmem:[%s8454 + $0x2d0] sm:$0xff]
      %v8546 = vld [vmem:[%s8454 + $0x2d8] sm:$0xff]
      %v8547 = vld [vmem:[%s8454 + $0x2e0] sm:$0xff]
      %v8548 = vld [vmem:[%s8454 + $0x2e8] sm:$0xff]
      %v8549 = vld [vmem:[%s8454 + $0x2f0] sm:$0xff]
      %v8550 = vld [vmem:[%s8454 + $0x2f8] sm:$0xff]
      %s8551 = scalar_lea.vmem %s7, 18
      %v8552 = vld [vmem:[%s8551] sm:$0x3f]
      %v8554 = vlaneseq
      %v8555 = vshrl.u32 %v8554, 7
      %v8556 = vsub.s32 0, %v8555
      %v8557 = vrot.slane %v8552, %v8556
      %v8558 = vlaneseq
      %v8559 = vshrl.u32 %v8558, 7
      %v8560 = vsub.s32 1, %v8559
      %v8561 = vrot.slane %v8552, %v8560
      %v8562 = vlaneseq
      %v8563 = vshrl.u32 %v8562, 7
      %v8564 = vsub.s32 2, %v8563
      %v8565 = vrot.slane %v8552, %v8564
      %v8566 = vlaneseq
      %v8567 = vshrl.u32 %v8566, 7
      %v8568 = vsub.s32 3, %v8567
      %v8569 = vrot.slane %v8552, %v8568
      %v8570 = vlaneseq
      %v8571 = vshrl.u32 %v8570, 7
      %v8572 = vsub.s32 4, %v8571
      %v8573 = vrot.slane %v8552, %v8572
      %v8574 = vlaneseq
      %v8575 = vshrl.u32 %v8574, 7
      %v8576 = vsub.s32 5, %v8575
      %v8577 = vrot.slane %v8552, %v8576
      %v8680 = vunpack.c.l.b16 %v8455
      %v8681 = vunpack.c.h.b16 %v8455
      %v8682 = vunpack.c.l.b16 %v8456
      %v8683 = vunpack.c.h.b16 %v8456
      %v8684 = vunpack.c.l.b16 %v8457
      %v8685 = vunpack.c.h.b16 %v8457
      %v8686 = vunpack.c.l.b16 %v8458
      %v8687 = vunpack.c.h.b16 %v8458
      %v8688 = vunpack.c.l.b16 %v8459
      %v8689 = vunpack.c.h.b16 %v8459
      %v8690 = vunpack.c.l.b16 %v8460
      %v8691 = vunpack.c.h.b16 %v8460
      %v8692 = vunpack.c.l.b16 %v8461
      %v8693 = vunpack.c.h.b16 %v8461
      %v8694 = vunpack.c.l.b16 %v8462
      %v8695 = vunpack.c.h.b16 %v8462
      %v8696 = vunpack.c.l.b16 %v8463
      %v8697 = vunpack.c.h.b16 %v8463
      %v8698 = vunpack.c.l.b16 %v8464
      %v8699 = vunpack.c.h.b16 %v8464
      %v8700 = vunpack.c.l.b16 %v8465
      %v8701 = vunpack.c.h.b16 %v8465
      %v8702 = vunpack.c.l.b16 %v8466
      %v8703 = vunpack.c.h.b16 %v8466
      %v8704 = vunpack.c.l.b16 %v8467
      %v8705 = vunpack.c.h.b16 %v8467
      %v8706 = vunpack.c.l.b16 %v8468
      %v8707 = vunpack.c.h.b16 %v8468
      %v8708 = vunpack.c.l.b16 %v8469
      %v8709 = vunpack.c.h.b16 %v8469
      %v8710 = vunpack.c.l.b16 %v8470
      %v8711 = vunpack.c.h.b16 %v8470
      %v8712 = vunpack.c.l.b16 %v8471
      %v8713 = vunpack.c.h.b16 %v8471
      %v8714 = vunpack.c.l.b16 %v8472
      %v8715 = vunpack.c.h.b16 %v8472
      %v8716 = vunpack.c.l.b16 %v8473
      %v8717 = vunpack.c.h.b16 %v8473
      %v8718 = vunpack.c.l.b16 %v8474
      %v8719 = vunpack.c.h.b16 %v8474
      %v8720 = vunpack.c.l.b16 %v8475
      %v8721 = vunpack.c.h.b16 %v8475
      %v8722 = vunpack.c.l.b16 %v8476
      %v8723 = vunpack.c.h.b16 %v8476
      %v8724 = vunpack.c.l.b16 %v8477
      %v8725 = vunpack.c.h.b16 %v8477
      %v8726 = vunpack.c.l.b16 %v8478
      %v8727 = vunpack.c.h.b16 %v8478
      %v8728 = vunpack.c.l.b16 %v8479
      %v8729 = vunpack.c.h.b16 %v8479
      %v8730 = vunpack.c.l.b16 %v8480
      %v8731 = vunpack.c.h.b16 %v8480
      %v8732 = vunpack.c.l.b16 %v8481
      %v8733 = vunpack.c.h.b16 %v8481
      %v8734 = vunpack.c.l.b16 %v8482
      %v8735 = vunpack.c.h.b16 %v8482
      %v8736 = vunpack.c.l.b16 %v8483
      %v8737 = vunpack.c.h.b16 %v8483
      %v8738 = vunpack.c.l.b16 %v8484
      %v8739 = vunpack.c.h.b16 %v8484
      %v8740 = vunpack.c.l.b16 %v8485
      %v8741 = vunpack.c.h.b16 %v8485
      %v8742 = vunpack.c.l.b16 %v8486
      %v8743 = vunpack.c.h.b16 %v8486
      %v8744 = vunpack.c.l.b16 %v8487
      %v8745 = vunpack.c.h.b16 %v8487
      %v8746 = vunpack.c.l.b16 %v8488
      %v8747 = vunpack.c.h.b16 %v8488
      %v8748 = vunpack.c.l.b16 %v8489
      %v8749 = vunpack.c.h.b16 %v8489
      %v8750 = vunpack.c.l.b16 %v8490
      %v8751 = vunpack.c.h.b16 %v8490
      %v8752 = vunpack.c.l.b16 %v8491
      %v8753 = vunpack.c.h.b16 %v8491
      %v8754 = vunpack.c.l.b16 %v8492
      %v8755 = vunpack.c.h.b16 %v8492
      %v8756 = vunpack.c.l.b16 %v8493
      %v8757 = vunpack.c.h.b16 %v8493
      %v8758 = vunpack.c.l.b16 %v8494
      %v8759 = vunpack.c.h.b16 %v8494
      %v8760 = vunpack.c.l.b16 %v8495
      %v8761 = vunpack.c.h.b16 %v8495
      %v8762 = vunpack.c.l.b16 %v8496
      %v8763 = vunpack.c.h.b16 %v8496
      %v8764 = vunpack.c.l.b16 %v8497
      %v8765 = vunpack.c.h.b16 %v8497
      %v8766 = vunpack.c.l.b16 %v8498
      %v8767 = vunpack.c.h.b16 %v8498
      %v8768 = vunpack.c.l.b16 %v8499
      %v8769 = vunpack.c.h.b16 %v8499
      %v8770 = vunpack.c.l.b16 %v8500
      %v8771 = vunpack.c.h.b16 %v8500
      %v8772 = vunpack.c.l.b16 %v8501
      %v8773 = vunpack.c.h.b16 %v8501
      %v8774 = vunpack.c.l.b16 %v8502
      %v8775 = vunpack.c.h.b16 %v8502
      %v8776 = vunpack.c.l.b16 %v8503
      %v8777 = vunpack.c.h.b16 %v8503
      %v8778 = vunpack.c.l.b16 %v8504
      %v8779 = vunpack.c.h.b16 %v8504
      %v8780 = vunpack.c.l.b16 %v8505
      %v8781 = vunpack.c.h.b16 %v8505
      %v8782 = vunpack.c.l.b16 %v8506
      %v8783 = vunpack.c.h.b16 %v8506
      %v8784 = vunpack.c.l.b16 %v8507
      %v8785 = vunpack.c.h.b16 %v8507
      %v8786 = vunpack.c.l.b16 %v8508
      %v8787 = vunpack.c.h.b16 %v8508
      %v8788 = vunpack.c.l.b16 %v8509
      %v8789 = vunpack.c.h.b16 %v8509
      %v8790 = vunpack.c.l.b16 %v8510
      %v8791 = vunpack.c.h.b16 %v8510
      %v8792 = vunpack.c.l.b16 %v8511
      %v8793 = vunpack.c.h.b16 %v8511
      %v8794 = vunpack.c.l.b16 %v8512
      %v8795 = vunpack.c.h.b16 %v8512
      %v8796 = vunpack.c.l.b16 %v8513
      %v8797 = vunpack.c.h.b16 %v8513
      %v8798 = vunpack.c.l.b16 %v8514
      %v8799 = vunpack.c.h.b16 %v8514
      %v8800 = vunpack.c.l.b16 %v8515
      %v8801 = vunpack.c.h.b16 %v8515
      %v8802 = vunpack.c.l.b16 %v8516
      %v8803 = vunpack.c.h.b16 %v8516
      %v8804 = vunpack.c.l.b16 %v8517
      %v8805 = vunpack.c.h.b16 %v8517
      %v8806 = vunpack.c.l.b16 %v8518
      %v8807 = vunpack.c.h.b16 %v8518
      %v8808 = vunpack.c.l.b16 %v8519
      %v8809 = vunpack.c.h.b16 %v8519
      %v8810 = vunpack.c.l.b16 %v8520
      %v8811 = vunpack.c.h.b16 %v8520
      %v8812 = vunpack.c.l.b16 %v8521
      %v8813 = vunpack.c.h.b16 %v8521
      %v8814 = vunpack.c.l.b16 %v8522
      %v8815 = vunpack.c.h.b16 %v8522
      %v8816 = vunpack.c.l.b16 %v8523
      %v8817 = vunpack.c.h.b16 %v8523
      %v8818 = vunpack.c.l.b16 %v8524
      %v8819 = vunpack.c.h.b16 %v8524
      %v8820 = vunpack.c.l.b16 %v8525
      %v8821 = vunpack.c.h.b16 %v8525
      %v8822 = vunpack.c.l.b16 %v8526
      %v8823 = vunpack.c.h.b16 %v8526
      %v8824 = vunpack.c.l.b16 %v8527
      %v8825 = vunpack.c.h.b16 %v8527
      %v8826 = vunpack.c.l.b16 %v8528
      %v8827 = vunpack.c.h.b16 %v8528
      %v8828 = vunpack.c.l.b16 %v8529
      %v8829 = vunpack.c.h.b16 %v8529
      %v8830 = vunpack.c.l.b16 %v8530
      %v8831 = vunpack.c.h.b16 %v8530
      %v8832 = vunpack.c.l.b16 %v8531
      %v8833 = vunpack.c.h.b16 %v8531
      %v8834 = vunpack.c.l.b16 %v8532
      %v8835 = vunpack.c.h.b16 %v8532
      %v8836 = vunpack.c.l.b16 %v8533
      %v8837 = vunpack.c.h.b16 %v8533
      %v8838 = vunpack.c.l.b16 %v8534
      %v8839 = vunpack.c.h.b16 %v8534
      %v8840 = vunpack.c.l.b16 %v8535
      %v8841 = vunpack.c.h.b16 %v8535
      %v8842 = vunpack.c.l.b16 %v8536
      %v8843 = vunpack.c.h.b16 %v8536
      %v8844 = vunpack.c.l.b16 %v8537
      %v8845 = vunpack.c.h.b16 %v8537
      %v8846 = vunpack.c.l.b16 %v8538
      %v8847 = vunpack.c.h.b16 %v8538
      %v8848 = vunpack.c.l.b16 %v8539
      %v8849 = vunpack.c.h.b16 %v8539
      %v8850 = vunpack.c.l.b16 %v8540
      %v8851 = vunpack.c.h.b16 %v8540
      %v8852 = vunpack.c.l.b16 %v8541
      %v8853 = vunpack.c.h.b16 %v8541
      %v8854 = vunpack.c.l.b16 %v8542
      %v8855 = vunpack.c.h.b16 %v8542
      %v8856 = vunpack.c.l.b16 %v8543
      %v8857 = vunpack.c.h.b16 %v8543
      %v8858 = vunpack.c.l.b16 %v8544
      %v8859 = vunpack.c.h.b16 %v8544
      %v8860 = vunpack.c.l.b16 %v8545
      %v8861 = vunpack.c.h.b16 %v8545
      %v8862 = vunpack.c.l.b16 %v8546
      %v8863 = vunpack.c.h.b16 %v8546
      %v8864 = vunpack.c.l.b16 %v8547
      %v8865 = vunpack.c.h.b16 %v8547
      %v8866 = vunpack.c.l.b16 %v8548
      %v8867 = vunpack.c.h.b16 %v8548
      %v8868 = vunpack.c.l.b16 %v8549
      %v8869 = vunpack.c.h.b16 %v8549
      %v8870 = vunpack.c.l.b16 %v8550
      %v8871 = vunpack.c.h.b16 %v8550
      %v8872 = vpack.c.b16 %v8686, %v8680
      %v8873 = vpack.c.b16 %v8687, %v8681
      %v8874 = vpack.c.b16 %v8688, %v8682
      %v8875 = vpack.c.b16 %v8689, %v8683
      %v8876 = vpack.c.b16 %v8690, %v8684
      %v8877 = vpack.c.b16 %v8691, %v8685
      %v8878 = vpack.c.b16 %v8698, %v8692
      %v8879 = vpack.c.b16 %v8699, %v8693
      %v8880 = vpack.c.b16 %v8700, %v8694
      %v8881 = vpack.c.b16 %v8701, %v8695
      %v8882 = vpack.c.b16 %v8702, %v8696
      %v8883 = vpack.c.b16 %v8703, %v8697
      %v8884 = vpack.c.b16 %v8710, %v8704
      %v8885 = vpack.c.b16 %v8711, %v8705
      %v8886 = vpack.c.b16 %v8712, %v8706
      %v8887 = vpack.c.b16 %v8713, %v8707
      %v8888 = vpack.c.b16 %v8714, %v8708
      %v8889 = vpack.c.b16 %v8715, %v8709
      %v8890 = vpack.c.b16 %v8722, %v8716
      %v8891 = vpack.c.b16 %v8723, %v8717
      %v8892 = vpack.c.b16 %v8724, %v8718
      %v8893 = vpack.c.b16 %v8725, %v8719
      %v8894 = vpack.c.b16 %v8726, %v8720
      %v8895 = vpack.c.b16 %v8727, %v8721
      %v8896 = vpack.c.b16 %v8734, %v8728
      %v8897 = vpack.c.b16 %v8735, %v8729
      %v8898 = vpack.c.b16 %v8736, %v8730
      %v8899 = vpack.c.b16 %v8737, %v8731
      %v8900 = vpack.c.b16 %v8738, %v8732
      %v8901 = vpack.c.b16 %v8739, %v8733
      %v8902 = vpack.c.b16 %v8746, %v8740
      %v8903 = vpack.c.b16 %v8747, %v8741
      %v8904 = vpack.c.b16 %v8748, %v8742
      %v8905 = vpack.c.b16 %v8749, %v8743
      %v8906 = vpack.c.b16 %v8750, %v8744
      %v8907 = vpack.c.b16 %v8751, %v8745
      %v8908 = vpack.c.b16 %v8758, %v8752
      %v8909 = vpack.c.b16 %v8759, %v8753
      %v8910 = vpack.c.b16 %v8760, %v8754
      %v8911 = vpack.c.b16 %v8761, %v8755
      %v8912 = vpack.c.b16 %v8762, %v8756
      %v8913 = vpack.c.b16 %v8763, %v8757
      %v8914 = vpack.c.b16 %v8770, %v8764
      %v8915 = vpack.c.b16 %v8771, %v8765
      %v8916 = vpack.c.b16 %v8772, %v8766
      %v8917 = vpack.c.b16 %v8773, %v8767
      %v8918 = vpack.c.b16 %v8774, %v8768
      %v8919 = vpack.c.b16 %v8775, %v8769
      %v8920 = vpack.c.b16 %v8782, %v8776
      %v8921 = vpack.c.b16 %v8783, %v8777
      %v8922 = vpack.c.b16 %v8784, %v8778
      %v8923 = vpack.c.b16 %v8785, %v8779
      %v8924 = vpack.c.b16 %v8786, %v8780
      %v8925 = vpack.c.b16 %v8787, %v8781
      %v8926 = vpack.c.b16 %v8794, %v8788
      %v8927 = vpack.c.b16 %v8795, %v8789
      %v8928 = vpack.c.b16 %v8796, %v8790
      %v8929 = vpack.c.b16 %v8797, %v8791
      %v8930 = vpack.c.b16 %v8798, %v8792
      %v8931 = vpack.c.b16 %v8799, %v8793
      %v8932 = vpack.c.b16 %v8806, %v8800
      %v8933 = vpack.c.b16 %v8807, %v8801
      %v8934 = vpack.c.b16 %v8808, %v8802
      %v8935 = vpack.c.b16 %v8809, %v8803
      %v8936 = vpack.c.b16 %v8810, %v8804
      %v8937 = vpack.c.b16 %v8811, %v8805
      %v8938 = vpack.c.b16 %v8818, %v8812
      %v8939 = vpack.c.b16 %v8819, %v8813
      %v8940 = vpack.c.b16 %v8820, %v8814
      %v8941 = vpack.c.b16 %v8821, %v8815
      %v8942 = vpack.c.b16 %v8822, %v8816
      %v8943 = vpack.c.b16 %v8823, %v8817
      %v8944 = vpack.c.b16 %v8830, %v8824
      %v8945 = vpack.c.b16 %v8831, %v8825
      %v8946 = vpack.c.b16 %v8832, %v8826
      %v8947 = vpack.c.b16 %v8833, %v8827
      %v8948 = vpack.c.b16 %v8834, %v8828
      %v8949 = vpack.c.b16 %v8835, %v8829
      %v8950 = vpack.c.b16 %v8842, %v8836
      %v8951 = vpack.c.b16 %v8843, %v8837
      %v8952 = vpack.c.b16 %v8844, %v8838
      %v8953 = vpack.c.b16 %v8845, %v8839
      %v8954 = vpack.c.b16 %v8846, %v8840
      %v8955 = vpack.c.b16 %v8847, %v8841
      %v8956 = vpack.c.b16 %v8854, %v8848
      %v8957 = vpack.c.b16 %v8855, %v8849
      %v8958 = vpack.c.b16 %v8856, %v8850
      %v8959 = vpack.c.b16 %v8857, %v8851
      %v8960 = vpack.c.b16 %v8858, %v8852
      %v8961 = vpack.c.b16 %v8859, %v8853
      %v8962 = vpack.c.b16 %v8866, %v8860
      %v8963 = vpack.c.b16 %v8867, %v8861
      %v8964 = vpack.c.b16 %v8868, %v8862
      %v8965 = vpack.c.b16 %v8869, %v8863
      %v8966 = vpack.c.b16 %v8870, %v8864
      %v8967 = vpack.c.b16 %v8871, %v8865
      %9064 = vmatprep.subr.bf16.mxu0 %v8873
      %9065 = vmatpush1.bf16.msra.mxu0 %v8872
      %9066 = vmatprep.subr.bf16.mxu0 %v8879
      %9067 = vmatpush1.bf16.msra.mxu0 %v8878
      %9068 = vmatprep.subr.bf16.mxu0 %v8885
      %9069 = vmatpush1.bf16.msra.mxu0 %v8884
      %9070 = vmatprep.subr.bf16.mxu0 %v8891
      %9071 = vmatpush1.bf16.msra.mxu0 %v8890
      %9072 = vmatprep.subr.bf16.mxu0 %v8897
      %9073 = vmatpush1.bf16.msra.mxu0 %v8896
      %9074 = vmatprep.subr.bf16.mxu0 %v8903
      %9075 = vmatpush1.bf16.msra.mxu0 %v8902
      %9076 = vmatprep.subr.bf16.mxu0 %v8909
      %9077 = vmatpush1.bf16.msra.mxu0 %v8908
      %9078 = vmatprep.subr.bf16.mxu0 %v8915
      %9079 = vmatpush1.bf16.msra.mxu0 %v8914
      %9080 = vmatprep.subr.bf16.mxu0 %v8921
      %9081 = vmatpush1.bf16.msra.mxu0 %v8920
      %9082 = vmatprep.subr.bf16.mxu0 %v8927
      %9083 = vmatpush1.bf16.msra.mxu0 %v8926
      %9084 = vmatprep.subr.bf16.mxu0 %v8933
      %9085 = vmatpush1.bf16.msra.mxu0 %v8932
      %9086 = vmatprep.subr.bf16.mxu0 %v8939
      %9087 = vmatpush1.bf16.msra.mxu0 %v8938
      %9088 = vmatprep.subr.bf16.mxu0 %v8945
      %9089 = vmatpush1.bf16.msra.mxu0 %v8944
      %9090 = vmatprep.subr.bf16.mxu0 %v8951
      %9091 = vmatpush1.bf16.msra.mxu0 %v8950
      %9092 = vmatprep.subr.bf16.mxu0 %v8957
      %9093 = vmatpush1.bf16.msra.mxu0 %v8956
      %9094 = vmatprep.subr.bf16.mxu0 %v8963
      %9095 = vmatpush1.bf16.msra.mxu0 %v8962
      %9096 = vmatprep.mubr.bf16.mxu0 %v8453
      %9097 = vmatmul.mubr.bf16.gmra.mrb[0].mxu0 %v8452
      %v9098 = vpop.f32.mrb[0].mxu0
      %v9099 = vadd.f32 %v8557, %v9098
      %v9100 = vpop.f32.mrb[0].mxu0
      %v9101 = vadd.f32 %v8561, %v9100
      %v9102 = vpop.f32.mrb[0].mxu0
      %v9103 = vpop.f32.mrb[0].mxu0
      %9104 = vdwg.mxu0
      %9105 = vmatprep.subr.bf16.mxu0 %v8875
      %9106 = vmatpush1.bf16.msra.mxu0 %v8874
      %9107 = vmatprep.subr.bf16.mxu0 %v8881
      %9108 = vmatpush1.bf16.msra.mxu0 %v8880
      %9109 = vmatprep.subr.bf16.mxu0 %v8887
      %9110 = vmatpush1.bf16.msra.mxu0 %v8886
      %9111 = vmatprep.subr.bf16.mxu0 %v8893
      %9112 = vmatpush1.bf16.msra.mxu0 %v8892
      %9113 = vmatprep.subr.bf16.mxu0 %v8899
      %9114 = vmatpush1.bf16.msra.mxu0 %v8898
      %9115 = vmatprep.subr.bf16.mxu0 %v8905
      %9116 = vmatpush1.bf16.msra.mxu0 %v8904
      %9117 = vmatprep.subr.bf16.mxu0 %v8911
      %9118 = vmatpush1.bf16.msra.mxu0 %v8910
      %9119 = vmatprep.subr.bf16.mxu0 %v8917
      %9120 = vmatpush1.bf16.msra.mxu0 %v8916
      %9121 = vmatprep.subr.bf16.mxu0 %v8923
      %9122 = vmatpush1.bf16.msra.mxu0 %v8922
      %9123 = vmatprep.subr.bf16.mxu0 %v8929
      %9124 = vmatpush1.bf16.msra.mxu0 %v8928
      %9125 = vmatprep.subr.bf16.mxu0 %v8935
      %9126 = vmatpush1.bf16.msra.mxu0 %v8934
      %9127 = vmatprep.subr.bf16.mxu0 %v8941
      %9128 = vmatpush1.bf16.msra.mxu0 %v8940
      %9129 = vmatprep.subr.bf16.mxu0 %v8947
      %9130 = vmatpush1.bf16.msra.mxu0 %v8946
      %9131 = vmatprep.subr.bf16.mxu0 %v8953
      %9132 = vmatpush1.bf16.msra.mxu0 %v8952
      %9133 = vmatprep.subr.bf16.mxu0 %v8959
      %9134 = vmatpush1.bf16.msra.mxu0 %v8958
      %9135 = vmatprep.subr.bf16.mxu0 %v8965
      %9136 = vmatpush1.bf16.msra.mxu0 %v8964
      %9137 = vmatprep.mubr.bf16.mxu0 %v8453
      %9138 = vmatmul.mubr.bf16.gmra.mrb[0].mxu0 %v8452
      %v9139 = vpop.f32.mrb[0].mxu0
      %v9140 = vadd.f32 %v8565, %v9139
      %v9141 = vpop.f32.mrb[0].mxu0
      %v9142 = vadd.f32 %v8569, %v9141
      %v9143 = vpop.f32.mrb[0].mxu0
      %v9144 = vpop.f32.mrb[0].mxu0
      %9145 = vdwg.mxu0
      %9146 = vmatprep.subr.bf16.mxu0 %v8877
      %9147 = vmatpush1.bf16.msra.mxu0 %v8876
      %9148 = vmatprep.subr.bf16.mxu0 %v8883
      %9149 = vmatpush1.bf16.msra.mxu0 %v8882
      %9150 = vmatprep.subr.bf16.mxu0 %v8889
      %9151 = vmatpush1.bf16.msra.mxu0 %v8888
      %9152 = vmatprep.subr.bf16.mxu0 %v8895
      %9153 = vmatpush1.bf16.msra.mxu0 %v8894
      %9154 = vmatprep.subr.bf16.mxu0 %v8901
      %9155 = vmatpush1.bf16.msra.mxu0 %v8900
      %9156 = vmatprep.subr.bf16.mxu0 %v8907
      %9157 = vmatpush1.bf16.msra.mxu0 %v8906
      %9158 = vmatprep.subr.bf16.mxu0 %v8913
      %9159 = vmatpush1.bf16.msra.mxu0 %v8912
      %9160 = vmatprep.subr.bf16.mxu0 %v8919
      %9161 = vmatpush1.bf16.msra.mxu0 %v8918
      %9162 = vmatprep.subr.bf16.mxu0 %v8925
      %9163 = vmatpush1.bf16.msra.mxu0 %v8924
      %9164 = vmatprep.subr.bf16.mxu0 %v8931
      %9165 = vmatpush1.bf16.msra.mxu0 %v8930
      %9166 = vmatprep.subr.bf16.mxu0 %v8937
      %9167 = vmatpush1.bf16.msra.mxu0 %v8936
      %9168 = vmatprep.subr.bf16.mxu0 %v8943
      %9169 = vmatpush1.bf16.msra.mxu0 %v8942
      %9170 = vmatprep.subr.bf16.mxu0 %v8949
      %9171 = vmatpush1.bf16.msra.mxu0 %v8948
      %9172 = vmatprep.subr.bf16.mxu0 %v8955
      %9173 = vmatpush1.bf16.msra.mxu0 %v8954
      %9174 = vmatprep.subr.bf16.mxu0 %v8961
      %9175 = vmatpush1.bf16.msra.mxu0 %v8960
      %9176 = vmatprep.subr.bf16.mxu0 %v8967
      %9177 = vmatpush1.bf16.msra.mxu0 %v8966
      %9178 = vmatprep.mubr.bf16.mxu0 %v8453
      %9179 = vmatmul.mubr.bf16.gmra.mrb[0].mxu0 %v8452
      %v9180 = vpop.f32.mrb[0].mxu0
      %v9181 = vadd.f32 %v8573, %v9180
      %v9182 = vpop.f32.mrb[0].mxu0
      %v9183 = vadd.f32 %v8577, %v9182
      %v9184 = vpop.f32.mrb[0].mxu0
      %v9185 = vpop.f32.mrb[0].mxu0
      %9186 = vdwg.mxu0
      %v9187 = vpack.c.bf16 %v9099, %v9099
      %v9188 = vpack.c.bf16 %v9101, %v9101
      %v9189 = vpack.c.bf16 %v9140, %v9140
      %v9190 = vpack.c.bf16 %v9142, %v9142
      %v9191 = vpack.c.bf16 %v9181, %v9181
      %v9192 = vpack.c.bf16 %v9183, %v9183
      %v9194 = vsel %vm1409, %v9187, 0
      %v9197 = vsel %vm1409, %v9189, 0
      %9199 = vmatprep.subr.bf16.mxu0 0
      %9200 = vmatpush1.bf16.xpose.msra.mxu0 %v9197
      %9201 = vmatprep.subr.bf16.mxu0 0
      %9202 = vmatpush1.bf16.xpose.msra.mxu0 0
      %9203 = vmatprep.subr.bf16.mxu0 0
      %9204 = vmatpush1.bf16.xpose.msra.mxu0 0
      %9205 = vmatprep.subr.bf16.mxu0 0
      %9206 = vmatpush1.bf16.xpose.msra.mxu0 0
      %9207 = vmatprep.subr.bf16.mxu0 0
      %9208 = vmatpush1.bf16.xpose.msra.mxu0 0
      %9209 = vmatprep.subr.bf16.mxu0 0
      %9210 = vmatpush1.bf16.xpose.msra.mxu0 0
      %9211 = vmatprep.subr.bf16.mxu0 0
      %9212 = vmatpush1.bf16.xpose.msra.mxu0 0
      %9213 = vmatprep.subr.bf16.mxu0 0
      %9214 = vmatpush1.bf16.xpose.msra.mxu0 0
      %9215 = vmatprep.subr.bf16.mxu0 0
      %9216 = vmatpush1.bf16.xpose.msra.mxu0 0
      %9217 = vmatprep.subr.bf16.mxu0 0
      %9218 = vmatpush1.bf16.xpose.msra.mxu0 0
      %9219 = vmatprep.subr.bf16.mxu0 0
      %9220 = vmatpush1.bf16.xpose.msra.mxu0 0
      %9221 = vmatprep.subr.bf16.mxu0 0
      %9222 = vmatpush1.bf16.xpose.msra.mxu0 0
      %9223 = vmatprep.subr.bf16.mxu0 0
      %9224 = vmatpush1.bf16.xpose.msra.mxu0 0
      %9225 = vmatprep.subr.bf16.mxu0 0
      %9226 = vmatpush1.bf16.xpose.msra.mxu0 0
      %9227 = vmatprep.subr.bf16.mxu0 0
      %9228 = vmatpush1.bf16.xpose.msra.mxu0 0
      %9229 = vmatprep.subr.bf16.mxu0 0
      %9230 = vmatpush1.bf16.xpose.msra.mxu0 0
      %9231 = vmatprep.mubr.bf16.mxu0 0
      %9232 = vmatmul.mubr.bf16.gmra.mrb[0].mxu0 %v9194
      %v9233 = vpop.f32.mrb[0].mxu0
      %v9234 = vadd.f32 0.0, %v9233
      %v9235 = vpop.f32.mrb[0].mxu0
      %v9236 = vpop.f32.mrb[0].mxu0
      %v9237 = vpop.f32.mrb[0].mxu0
      %9238 = vdwg.mxu0
      %v9239 = vmul.f32 %v9234, 0.125
      %v9240 = vadd.f32 %v9239, %v630
      %v9241 = vsel %vm1458, %v9240, -inf
      %9242 = vmax.xlane.f32.xlu0 %v9241
      %v9243 = vpop.xlane.xlu0 %9242
      %v9244 = vsub.f32 %v9240, %v9243
      %v9245 = vmul.f32 %v9244, 1.442695
      %v9246 = vpow.pop %v9245
      %v9247 = vsel %vm1458, %v9246, 0.0
      %9248 = vadd.xlane.f32.xlu0 %v9247
      %v9249 = vpop.xlane.xlu0 %9248
      %v9250 = vrcp.pop %v9249
      %v9251 = vmul.f32 %v9246, %v9250
      %v9252 = vpack.c.bf16 %v9251, %v9251
      %v9254 = vsel %vm1458, %v9252, 0
      %v9257 = vsel %vm1474, %v9191, 0
      %9259 = vmatprep.subr.bf16.mxu0 0
      %9260 = vmatpush1.bf16.msra.mxu0 %v9257
      %9261 = vmatprep.subr.bf16.mxu0 0
      %9262 = vmatpush1.bf16.msra.mxu0 0
      %9263 = vmatprep.subr.bf16.mxu0 0
      %9264 = vmatpush1.bf16.msra.mxu0 0
      %9265 = vmatprep.subr.bf16.mxu0 0
      %9266 = vmatpush1.bf16.msra.mxu0 0
      %9267 = vmatprep.subr.bf16.mxu0 0
      %9268 = vmatpush1.bf16.msra.mxu0 0
      %9269 = vmatprep.subr.bf16.mxu0 0
      %9270 = vmatpush1.bf16.msra.mxu0 0
      %9271 = vmatprep.subr.bf16.mxu0 0
      %9272 = vmatpush1.bf16.msra.mxu0 0
      %9273 = vmatprep.subr.bf16.mxu0 0
      %9274 = vmatpush1.bf16.msra.mxu0 0
      %9275 = vmatprep.subr.bf16.mxu0 0
      %9276 = vmatpush1.bf16.msra.mxu0 0
      %9277 = vmatprep.subr.bf16.mxu0 0
      %9278 = vmatpush1.bf16.msra.mxu0 0
      %9279 = vmatprep.subr.bf16.mxu0 0
      %9280 = vmatpush1.bf16.msra.mxu0 0
      %9281 = vmatprep.subr.bf16.mxu0 0
      %9282 = vmatpush1.bf16.msra.mxu0 0
      %9283 = vmatprep.subr.bf16.mxu0 0
      %9284 = vmatpush1.bf16.msra.mxu0 0
      %9285 = vmatprep.subr.bf16.mxu0 0
      %9286 = vmatpush1.bf16.msra.mxu0 0
      %9287 = vmatprep.subr.bf16.mxu0 0
      %9288 = vmatpush1.bf16.msra.mxu0 0
      %9289 = vmatprep.subr.bf16.mxu0 0
      %9290 = vmatpush1.bf16.msra.mxu0 0
      %9291 = vmatprep.mubr.bf16.mxu0 0
      %9292 = vmatmul.mubr.bf16.gmra.mrb[0].mxu0 %v9254
      %v9293 = vpop.f32.mrb[0].mxu0
      %v9294 = vadd.f32 0.0, %v9293
      %v9295 = vpop.f32.mrb[0].mxu0
      %v9296 = vpop.f32.mrb[0].mxu0
      %v9297 = vpop.f32.mrb[0].mxu0
      %9298 = vdwg.mxu0
      %9300 = vrot.lane.b32.xlu0 %v9187, 64
      %v9301 = vpop.permute.xlu0 %9300
      %9303 = vrot.lane.b32.xlu0 %v9189, 64
      %v9304 = vpop.permute.xlu0 %9303
      %v9306 = vsel %vm1409, %v9301, 0
      %v9309 = vsel %vm1409, %v9304, 0
      %9311 = vmatprep.subr.bf16.mxu0 0
      %9312 = vmatpush1.bf16.xpose.msra.mxu0 %v9309
      %9313 = vmatprep.subr.bf16.mxu0 0
      %9314 = vmatpush1.bf16.xpose.msra.mxu0 0
      %9315 = vmatprep.subr.bf16.mxu0 0
      %9316 = vmatpush1.bf16.xpose.msra.mxu0 0
      %9317 = vmatprep.subr.bf16.mxu0 0
      %9318 = vmatpush1.bf16.xpose.msra.mxu0 0
      %9319 = vmatprep.subr.bf16.mxu0 0
      %9320 = vmatpush1.bf16.xpose.msra.mxu0 0
      %9321 = vmatprep.subr.bf16.mxu0 0
      %9322 = vmatpush1.bf16.xpose.msra.mxu0 0
      %9323 = vmatprep.subr.bf16.mxu0 0
      %9324 = vmatpush1.bf16.xpose.msra.mxu0 0
      %9325 = vmatprep.subr.bf16.mxu0 0
      %9326 = vmatpush1.bf16.xpose.msra.mxu0 0
      %9327 = vmatprep.subr.bf16.mxu0 0
      %9328 = vmatpush1.bf16.xpose.msra.mxu0 0
      %9329 = vmatprep.subr.bf16.mxu0 0
      %9330 = vmatpush1.bf16.xpose.msra.mxu0 0
      %9331 = vmatprep.subr.bf16.mxu0 0
      %9332 = vmatpush1.bf16.xpose.msra.mxu0 0
      %9333 = vmatprep.subr.bf16.mxu0 0
      %9334 = vmatpush1.bf16.xpose.msra.mxu0 0
      %9335 = vmatprep.subr.bf16.mxu0 0
      %9336 = vmatpush1.bf16.xpose.msra.mxu0 0
      %9337 = vmatprep.subr.bf16.mxu0 0
      %9338 = vmatpush1.bf16.xpose.msra.mxu0 0
      %9339 = vmatprep.subr.bf16.mxu0 0
      %9340 = vmatpush1.bf16.xpose.msra.mxu0 0
      %9341 = vmatprep.subr.bf16.mxu0 0
      %9342 = vmatpush1.bf16.xpose.msra.mxu0 0
      %9343 = vmatprep.mubr.bf16.mxu0 0
      %9344 = vmatmul.mubr.bf16.gmra.mrb[0].mxu0 %v9306
      %v9345 = vpop.f32.mrb[0].mxu0
      %v9346 = vadd.f32 0.0, %v9345
      %v9347 = vpop.f32.mrb[0].mxu0
      %v9348 = vpop.f32.mrb[0].mxu0
      %v9349 = vpop.f32.mrb[0].mxu0
      %9350 = vdwg.mxu0
      %v9351 = vmul.f32 %v9346, 0.125
      %v9352 = vadd.f32 %v9351, %v630
      %v9353 = vsel %vm1458, %v9352, -inf
      %9354 = vmax.xlane.f32.xlu0 %v9353
      %v9355 = vpop.xlane.xlu0 %9354
      %v9356 = vsub.f32 %v9352, %v9355
      %v9357 = vmul.f32 %v9356, 1.442695
      %v9358 = vpow.pop %v9357
      %v9359 = vsel %vm1458, %v9358, 0.0
      %9360 = vadd.xlane.f32.xlu0 %v9359
      %v9361 = vpop.xlane.xlu0 %9360
      %v9362 = vrcp.pop %v9361
      %v9363 = vmul.f32 %v9358, %v9362
      %v9364 = vpack.c.bf16 %v9363, %v9363
      %9366 = vrot.lane.b32.xlu0 %v9191, 64
      %v9367 = vpop.permute.xlu0 %9366
      %v9369 = vsel %vm1458, %v9364, 0
      %v9372 = vsel %vm1474, %v9367, 0
      %9374 = vmatprep.subr.bf16.mxu0 0
      %9375 = vmatpush1.bf16.msra.mxu0 %v9372
      %9376 = vmatprep.subr.bf16.mxu0 0
      %9377 = vmatpush1.bf16.msra.mxu0 0
      %9378 = vmatprep.subr.bf16.mxu0 0
      %9379 = vmatpush1.bf16.msra.mxu0 0
      %9380 = vmatprep.subr.bf16.mxu0 0
      %9381 = vmatpush1.bf16.msra.mxu0 0
      %9382 = vmatprep.subr.bf16.mxu0 0
      %9383 = vmatpush1.bf16.msra.mxu0 0
      %9384 = vmatprep.subr.bf16.mxu0 0
      %9385 = vmatpush1.bf16.msra.mxu0 0
      %9386 = vmatprep.subr.bf16.mxu0 0
      %9387 = vmatpush1.bf16.msra.mxu0 0
      %9388 = vmatprep.subr.bf16.mxu0 0
      %9389 = vmatpush1.bf16.msra.mxu0 0
      %9390 = vmatprep.subr.bf16.mxu0 0
      %9391 = vmatpush1.bf16.msra.mxu0 0
      %9392 = vmatprep.subr.bf16.mxu0 0
      %9393 = vmatpush1.bf16.msra.mxu0 0
      %9394 = vmatprep.subr.bf16.mxu0 0
      %9395 = vmatpush1.bf16.msra.mxu0 0
      %9396 = vmatprep.subr.bf16.mxu0 0
      %9397 = vmatpush1.bf16.msra.mxu0 0
      %9398 = vmatprep.subr.bf16.mxu0 0
      %9399 = vmatpush1.bf16.msra.mxu0 0
      %9400 = vmatprep.subr.bf16.mxu0 0
      %9401 = vmatpush1.bf16.msra.mxu0 0
      %9402 = vmatprep.subr.bf16.mxu0 0
      %9403 = vmatpush1.bf16.msra.mxu0 0
      %9404 = vmatprep.subr.bf16.mxu0 0
      %9405 = vmatpush1.bf16.msra.mxu0 0
      %9406 = vmatprep.mubr.bf16.mxu0 0
      %9407 = vmatmul.mubr.bf16.gmra.mrb[0].mxu0 %v9369
      %v9408 = vpop.f32.mrb[0].mxu0
      %v9409 = vadd.f32 0.0, %v9408
      %v9410 = vpop.f32.mrb[0].mxu0
      %v9411 = vpop.f32.mrb[0].mxu0
      %v9412 = vpop.f32.mrb[0].mxu0
      %9413 = vdwg.mxu0
      %v9415 = vsel %vm1409, %v9188, 0
      %v9418 = vsel %vm1409, %v9190, 0
      %9420 = vmatprep.subr.bf16.mxu0 0
      %9421 = vmatpush1.bf16.xpose.msra.mxu0 %v9418
      %9422 = vmatprep.subr.bf16.mxu0 0
      %9423 = vmatpush1.bf16.xpose.msra.mxu0 0
      %9424 = vmatprep.subr.bf16.mxu0 0
      %9425 = vmatpush1.bf16.xpose.msra.mxu0 0
      %9426 = vmatprep.subr.bf16.mxu0 0
      %9427 = vmatpush1.bf16.xpose.msra.mxu0 0
      %9428 = vmatprep.subr.bf16.mxu0 0
      %9429 = vmatpush1.bf16.xpose.msra.mxu0 0
      %9430 = vmatprep.subr.bf16.mxu0 0
      %9431 = vmatpush1.bf16.xpose.msra.mxu0 0
      %9432 = vmatprep.subr.bf16.mxu0 0
      %9433 = vmatpush1.bf16.xpose.msra.mxu0 0
      %9434 = vmatprep.subr.bf16.mxu0 0
      %9435 = vmatpush1.bf16.xpose.msra.mxu0 0
      %9436 = vmatprep.subr.bf16.mxu0 0
      %9437 = vmatpush1.bf16.xpose.msra.mxu0 0
      %9438 = vmatprep.subr.bf16.mxu0 0
      %9439 = vmatpush1.bf16.xpose.msra.mxu0 0
      %9440 = vmatprep.subr.bf16.mxu0 0
      %9441 = vmatpush1.bf16.xpose.msra.mxu0 0
      %9442 = vmatprep.subr.bf16.mxu0 0
      %9443 = vmatpush1.bf16.xpose.msra.mxu0 0
      %9444 = vmatprep.subr.bf16.mxu0 0
      %9445 = vmatpush1.bf16.xpose.msra.mxu0 0
      %9446 = vmatprep.subr.bf16.mxu0 0
      %9447 = vmatpush1.bf16.xpose.msra.mxu0 0
      %9448 = vmatprep.subr.bf16.mxu0 0
      %9449 = vmatpush1.bf16.xpose.msra.mxu0 0
      %9450 = vmatprep.subr.bf16.mxu0 0
      %9451 = vmatpush1.bf16.xpose.msra.mxu0 0
      %9452 = vmatprep.mubr.bf16.mxu0 0
      %9453 = vmatmul.mubr.bf16.gmra.mrb[0].mxu0 %v9415
      %v9454 = vpop.f32.mrb[0].mxu0
      %v9455 = vadd.f32 0.0, %v9454
      %v9456 = vpop.f32.mrb[0].mxu0
      %v9457 = vpop.f32.mrb[0].mxu0
      %v9458 = vpop.f32.mrb[0].mxu0
      %9459 = vdwg.mxu0
      %v9460 = vmul.f32 %v9455, 0.125
      %v9461 = vadd.f32 %v9460, %v630
      %v9462 = vsel %vm1458, %v9461, -inf
      %9463 = vmax.xlane.f32.xlu0 %v9462
      %v9464 = vpop.xlane.xlu0 %9463
      %v9465 = vsub.f32 %v9461, %v9464
      %v9466 = vmul.f32 %v9465, 1.442695
      %v9467 = vpow.pop %v9466
      %v9468 = vsel %vm1458, %v9467, 0.0
      %9469 = vadd.xlane.f32.xlu0 %v9468
      %v9470 = vpop.xlane.xlu0 %9469
      %v9471 = vrcp.pop %v9470
      %v9472 = vmul.f32 %v9467, %v9471
      %v9473 = vpack.c.bf16 %v9472, %v9472
      %v9475 = vsel %vm1458, %v9473, 0
      %v9478 = vsel %vm1474, %v9192, 0
      %9480 = vmatprep.subr.bf16.mxu0 0
      %9481 = vmatpush1.bf16.msra.mxu0 %v9478
      %9482 = vmatprep.subr.bf16.mxu0 0
      %9483 = vmatpush1.bf16.msra.mxu0 0
      %9484 = vmatprep.subr.bf16.mxu0 0
      %9485 = vmatpush1.bf16.msra.mxu0 0
      %9486 = vmatprep.subr.bf16.mxu0 0
      %9487 = vmatpush1.bf16.msra.mxu0 0
      %9488 = vmatprep.subr.bf16.mxu0 0
      %9489 = vmatpush1.bf16.msra.mxu0 0
      %9490 = vmatprep.subr.bf16.mxu0 0
      %9491 = vmatpush1.bf16.msra.mxu0 0
      %9492 = vmatprep.subr.bf16.mxu0 0
      %9493 = vmatpush1.bf16.msra.mxu0 0
      %9494 = vmatprep.subr.bf16.mxu0 0
      %9495 = vmatpush1.bf16.msra.mxu0 0
      %9496 = vmatprep.subr.bf16.mxu0 0
      %9497 = vmatpush1.bf16.msra.mxu0 0
      %9498 = vmatprep.subr.bf16.mxu0 0
      %9499 = vmatpush1.bf16.msra.mxu0 0
      %9500 = vmatprep.subr.bf16.mxu0 0
      %9501 = vmatpush1.bf16.msra.mxu0 0
      %9502 = vmatprep.subr.bf16.mxu0 0
      %9503 = vmatpush1.bf16.msra.mxu0 0
      %9504 = vmatprep.subr.bf16.mxu0 0
      %9505 = vmatpush1.bf16.msra.mxu0 0
      %9506 = vmatprep.subr.bf16.mxu0 0
      %9507 = vmatpush1.bf16.msra.mxu0 0
      %9508 = vmatprep.subr.bf16.mxu0 0
      %9509 = vmatpush1.bf16.msra.mxu0 0
      %9510 = vmatprep.subr.bf16.mxu0 0
      %9511 = vmatpush1.bf16.msra.mxu0 0
      %9512 = vmatprep.mubr.bf16.mxu0 0
      %9513 = vmatmul.mubr.bf16.gmra.mrb[0].mxu0 %v9475
      %v9514 = vpop.f32.mrb[0].mxu0
      %v9515 = vadd.f32 0.0, %v9514
      %v9516 = vpop.f32.mrb[0].mxu0
      %v9517 = vpop.f32.mrb[0].mxu0
      %v9518 = vpop.f32.mrb[0].mxu0
      %9519 = vdwg.mxu0
      %9521 = vrot.lane.b32.xlu0 %v9188, 64
      %v9522 = vpop.permute.xlu0 %9521
      %9524 = vrot.lane.b32.xlu0 %v9190, 64
      %v9525 = vpop.permute.xlu0 %9524
      %v9527 = vsel %vm1409, %v9522, 0
      %v9530 = vsel %vm1409, %v9525, 0
      %9532 = vmatprep.subr.bf16.mxu0 0
      %9533 = vmatpush1.bf16.xpose.msra.mxu0 %v9530
      %9534 = vmatprep.subr.bf16.mxu0 0
      %9535 = vmatpush1.bf16.xpose.msra.mxu0 0
      %9536 = vmatprep.subr.bf16.mxu0 0
      %9537 = vmatpush1.bf16.xpose.msra.mxu0 0
      %9538 = vmatprep.subr.bf16.mxu0 0
      %9539 = vmatpush1.bf16.xpose.msra.mxu0 0
      %9540 = vmatprep.subr.bf16.mxu0 0
      %9541 = vmatpush1.bf16.xpose.msra.mxu0 0
      %9542 = vmatprep.subr.bf16.mxu0 0
      %9543 = vmatpush1.bf16.xpose.msra.mxu0 0
      %9544 = vmatprep.subr.bf16.mxu0 0
      %9545 = vmatpush1.bf16.xpose.msra.mxu0 0
      %9546 = vmatprep.subr.bf16.mxu0 0
      %9547 = vmatpush1.bf16.xpose.msra.mxu0 0
      %9548 = vmatprep.subr.bf16.mxu0 0
      %9549 = vmatpush1.bf16.xpose.msra.mxu0 0
      %9550 = vmatprep.subr.bf16.mxu0 0
      %9551 = vmatpush1.bf16.xpose.msra.mxu0 0
      %9552 = vmatprep.subr.bf16.mxu0 0
      %9553 = vmatpush1.bf16.xpose.msra.mxu0 0
      %9554 = vmatprep.subr.bf16.mxu0 0
      %9555 = vmatpush1.bf16.xpose.msra.mxu0 0
      %9556 = vmatprep.subr.bf16.mxu0 0
      %9557 = vmatpush1.bf16.xpose.msra.mxu0 0
      %9558 = vmatprep.subr.bf16.mxu0 0
      %9559 = vmatpush1.bf16.xpose.msra.mxu0 0
      %9560 = vmatprep.subr.bf16.mxu0 0
      %9561 = vmatpush1.bf16.xpose.msra.mxu0 0
      %9562 = vmatprep.subr.bf16.mxu0 0
      %9563 = vmatpush1.bf16.xpose.msra.mxu0 0
      %9564 = vmatprep.mubr.bf16.mxu0 0
      %9565 = vmatmul.mubr.bf16.gmra.mrb[0].mxu0 %v9527
      %v9566 = vpop.f32.mrb[0].mxu0
      %v9567 = vadd.f32 0.0, %v9566
      %v9568 = vpop.f32.mrb[0].mxu0
      %v9569 = vpop.f32.mrb[0].mxu0
      %v9570 = vpop.f32.mrb[0].mxu0
      %9571 = vdwg.mxu0
      %v9572 = vmul.f32 %v9567, 0.125
      %v9573 = vadd.f32 %v9572, %v630
      %v9574 = vsel %vm1458, %v9573, -inf
      %9575 = vmax.xlane.f32.xlu0 %v9574
      %v9576 = vpop.xlane.xlu0 %9575
      %v9577 = vsub.f32 %v9573, %v9576
      %v9578 = vmul.f32 %v9577, 1.442695
      %v9579 = vpow.pop %v9578
      %v9580 = vsel %vm1458, %v9579, 0.0
      %9581 = vadd.xlane.f32.xlu0 %v9580
      %v9582 = vpop.xlane.xlu0 %9581
      %v9583 = vrcp.pop %v9582
      %v9584 = vmul.f32 %v9579, %v9583
      %v9585 = vpack.c.bf16 %v9584, %v9584
      %9587 = vrot.lane.b32.xlu0 %v9192, 64
      %v9588 = vpop.permute.xlu0 %9587
      %v9590 = vsel %vm1458, %v9585, 0
      %v9593 = vsel %vm1474, %v9588, 0
      %9595 = vmatprep.subr.bf16.mxu0 0
      %9596 = vmatpush1.bf16.msra.mxu0 %v9593
      %9597 = vmatprep.subr.bf16.mxu0 0
      %9598 = vmatpush1.bf16.msra.mxu0 0
      %9599 = vmatprep.subr.bf16.mxu0 0
      %9600 = vmatpush1.bf16.msra.mxu0 0
      %9601 = vmatprep.subr.bf16.mxu0 0
      %9602 = vmatpush1.bf16.msra.mxu0 0
      %9603 = vmatprep.subr.bf16.mxu0 0
      %9604 = vmatpush1.bf16.msra.mxu0 0
      %9605 = vmatprep.subr.bf16.mxu0 0
      %9606 = vmatpush1.bf16.msra.mxu0 0
      %9607 = vmatprep.subr.bf16.mxu0 0
      %9608 = vmatpush1.bf16.msra.mxu0 0
      %9609 = vmatprep.subr.bf16.mxu0 0
      %9610 = vmatpush1.bf16.msra.mxu0 0
      %9611 = vmatprep.subr.bf16.mxu0 0
      %9612 = vmatpush1.bf16.msra.mxu0 0
      %9613 = vmatprep.subr.bf16.mxu0 0
      %9614 = vmatpush1.bf16.msra.mxu0 0
      %9615 = vmatprep.subr.bf16.mxu0 0
      %9616 = vmatpush1.bf16.msra.mxu0 0
      %9617 = vmatprep.subr.bf16.mxu0 0
      %9618 = vmatpush1.bf16.msra.mxu0 0
      %9619 = vmatprep.subr.bf16.mxu0 0
      %9620 = vmatpush1.bf16.msra.mxu0 0
      %9621 = vmatprep.subr.bf16.mxu0 0
      %9622 = vmatpush1.bf16.msra.mxu0 0
      %9623 = vmatprep.subr.bf16.mxu0 0
      %9624 = vmatpush1.bf16.msra.mxu0 0
      %9625 = vmatprep.subr.bf16.mxu0 0
      %9626 = vmatpush1.bf16.msra.mxu0 0
      %9627 = vmatprep.mubr.bf16.mxu0 0
      %9628 = vmatmul.mubr.bf16.gmra.mrb[0].mxu0 %v9590
      %v9629 = vpop.f32.mrb[0].mxu0
      %v9630 = vadd.f32 0.0, %v9629
      %v9631 = vpop.f32.mrb[0].mxu0
      %v9632 = vpop.f32.mrb[0].mxu0
      %v9633 = vpop.f32.mrb[0].mxu0
      %9634 = vdwg.mxu0
      %9636 = vrot.lane.b32.xlu0 %v9409, 64
      %v9637 = vpop.permute.xlu0 %9636
      %9640 = vrot.lane.b32.xlu0 %v9630, 64
      %v9641 = vpop.permute.xlu0 %9640
      %v9643 = vsel %vm1409, %v9294, %v9637
      %v9644 = vsel %vm1409, %v9515, %v9641
      %v9645 = vpack.c.bf16 %v9643, %v9643
      %v9646 = vpack.c.bf16 %v9644, %v9644
      %s9647 = scalar_lea.vmem %s4, 768
      %v9648 = vld [vmem:[%s9647] sm:$0xff]
      %v9649 = vld [vmem:[%s9647 + $0x8] sm:$0xff]
      %v9650 = vld [vmem:[%s9647 + $0x10] sm:$0xff]
      %v9651 = vld [vmem:[%s9647 + $0x18] sm:$0xff]
      %v9652 = vld [vmem:[%s9647 + $0x20] sm:$0xff]
      %v9653 = vld [vmem:[%s9647 + $0x28] sm:$0xff]
      %v9654 = vld [vmem:[%s9647 + $0x30] sm:$0xff]
      %v9655 = vld [vmem:[%s9647 + $0x38] sm:$0xff]
      %v9656 = vld [vmem:[%s9647 + $0x40] sm:$0xff]
      %v9657 = vld [vmem:[%s9647 + $0x48] sm:$0xff]
      %v9658 = vld [vmem:[%s9647 + $0x50] sm:$0xff]
      %v9659 = vld [vmem:[%s9647 + $0x58] sm:$0xff]
      %v9660 = vld [vmem:[%s9647 + $0x60] sm:$0xff]
      %v9661 = vld [vmem:[%s9647 + $0x68] sm:$0xff]
      %v9662 = vld [vmem:[%s9647 + $0x70] sm:$0xff]
      %v9663 = vld [vmem:[%s9647 + $0x78] sm:$0xff]
      %v9664 = vld [vmem:[%s9647 + $0x80] sm:$0xff]
      %v9665 = vld [vmem:[%s9647 + $0x88] sm:$0xff]
      %v9666 = vld [vmem:[%s9647 + $0x90] sm:$0xff]
      %v9667 = vld [vmem:[%s9647 + $0x98] sm:$0xff]
      %v9668 = vld [vmem:[%s9647 + $0xa0] sm:$0xff]
      %v9669 = vld [vmem:[%s9647 + $0xa8] sm:$0xff]
      %v9670 = vld [vmem:[%s9647 + $0xb0] sm:$0xff]
      %v9671 = vld [vmem:[%s9647 + $0xb8] sm:$0xff]
      %v9672 = vld [vmem:[%s9647 + $0xc0] sm:$0xff]
      %v9673 = vld [vmem:[%s9647 + $0xc8] sm:$0xff]
      %v9674 = vld [vmem:[%s9647 + $0xd0] sm:$0xff]
      %v9675 = vld [vmem:[%s9647 + $0xd8] sm:$0xff]
      %v9676 = vld [vmem:[%s9647 + $0xe0] sm:$0xff]
      %v9677 = vld [vmem:[%s9647 + $0xe8] sm:$0xff]
      %v9678 = vld [vmem:[%s9647 + $0xf0] sm:$0xff]
      %v9679 = vld [vmem:[%s9647 + $0xf8] sm:$0xff]
      %v9680 = vlaneseq
      %v9681 = vshrl.u32 %v9680, 7
      %v9682 = vsub.s32 4, %v9681
      %v9683 = vrot.slane %v8414, %v9682
      %v9684 = vlaneseq
      %v9685 = vshrl.u32 %v9684, 7
      %v9686 = vsub.s32 4, %v9685
      %v9687 = vrot.slane %v8415, %v9686
      %v9720 = vunpack.c.l.b16 %v9648
      %v9721 = vunpack.c.h.b16 %v9648
      %v9722 = vunpack.c.l.b16 %v9649
      %v9723 = vunpack.c.h.b16 %v9649
      %v9724 = vunpack.c.l.b16 %v9650
      %v9725 = vunpack.c.h.b16 %v9650
      %v9726 = vunpack.c.l.b16 %v9651
      %v9727 = vunpack.c.h.b16 %v9651
      %v9728 = vunpack.c.l.b16 %v9652
      %v9729 = vunpack.c.h.b16 %v9652
      %v9730 = vunpack.c.l.b16 %v9653
      %v9731 = vunpack.c.h.b16 %v9653
      %v9732 = vunpack.c.l.b16 %v9654
      %v9733 = vunpack.c.h.b16 %v9654
      %v9734 = vunpack.c.l.b16 %v9655
      %v9735 = vunpack.c.h.b16 %v9655
      %v9736 = vunpack.c.l.b16 %v9656
      %v9737 = vunpack.c.h.b16 %v9656
      %v9738 = vunpack.c.l.b16 %v9657
      %v9739 = vunpack.c.h.b16 %v9657
      %v9740 = vunpack.c.l.b16 %v9658
      %v9741 = vunpack.c.h.b16 %v9658
      %v9742 = vunpack.c.l.b16 %v9659
      %v9743 = vunpack.c.h.b16 %v9659
      %v9744 = vunpack.c.l.b16 %v9660
      %v9745 = vunpack.c.h.b16 %v9660
      %v9746 = vunpack.c.l.b16 %v9661
      %v9747 = vunpack.c.h.b16 %v9661
      %v9748 = vunpack.c.l.b16 %v9662
      %v9749 = vunpack.c.h.b16 %v9662
      %v9750 = vunpack.c.l.b16 %v9663
      %v9751 = vunpack.c.h.b16 %v9663
      %v9752 = vunpack.c.l.b16 %v9664
      %v9753 = vunpack.c.h.b16 %v9664
      %v9754 = vunpack.c.l.b16 %v9665
      %v9755 = vunpack.c.h.b16 %v9665
      %v9756 = vunpack.c.l.b16 %v9666
      %v9757 = vunpack.c.h.b16 %v9666
      %v9758 = vunpack.c.l.b16 %v9667
      %v9759 = vunpack.c.h.b16 %v9667
      %v9760 = vunpack.c.l.b16 %v9668
      %v9761 = vunpack.c.h.b16 %v9668
      %v9762 = vunpack.c.l.b16 %v9669
      %v9763 = vunpack.c.h.b16 %v9669
      %v9764 = vunpack.c.l.b16 %v9670
      %v9765 = vunpack.c.h.b16 %v9670
      %v9766 = vunpack.c.l.b16 %v9671
      %v9767 = vunpack.c.h.b16 %v9671
      %v9768 = vunpack.c.l.b16 %v9672
      %v9769 = vunpack.c.h.b16 %v9672
      %v9770 = vunpack.c.l.b16 %v9673
      %v9771 = vunpack.c.h.b16 %v9673
      %v9772 = vunpack.c.l.b16 %v9674
      %v9773 = vunpack.c.h.b16 %v9674
      %v9774 = vunpack.c.l.b16 %v9675
      %v9775 = vunpack.c.h.b16 %v9675
      %v9776 = vunpack.c.l.b16 %v9676
      %v9777 = vunpack.c.h.b16 %v9676
      %v9778 = vunpack.c.l.b16 %v9677
      %v9779 = vunpack.c.h.b16 %v9677
      %v9780 = vunpack.c.l.b16 %v9678
      %v9781 = vunpack.c.h.b16 %v9678
      %v9782 = vunpack.c.l.b16 %v9679
      %v9783 = vunpack.c.h.b16 %v9679
      %v9784 = vpack.c.b16 %v9722, %v9720
      %v9785 = vpack.c.b16 %v9723, %v9721
      %v9786 = vpack.c.b16 %v9726, %v9724
      %v9787 = vpack.c.b16 %v9727, %v9725
      %v9788 = vpack.c.b16 %v9730, %v9728
      %v9789 = vpack.c.b16 %v9731, %v9729
      %v9790 = vpack.c.b16 %v9734, %v9732
      %v9791 = vpack.c.b16 %v9735, %v9733
      %v9792 = vpack.c.b16 %v9738, %v9736
      %v9793 = vpack.c.b16 %v9739, %v9737
      %v9794 = vpack.c.b16 %v9742, %v9740
      %v9795 = vpack.c.b16 %v9743, %v9741
      %v9796 = vpack.c.b16 %v9746, %v9744
      %v9797 = vpack.c.b16 %v9747, %v9745
      %v9798 = vpack.c.b16 %v9750, %v9748
      %v9799 = vpack.c.b16 %v9751, %v9749
      %v9800 = vpack.c.b16 %v9754, %v9752
      %v9801 = vpack.c.b16 %v9755, %v9753
      %v9802 = vpack.c.b16 %v9758, %v9756
      %v9803 = vpack.c.b16 %v9759, %v9757
      %v9804 = vpack.c.b16 %v9762, %v9760
      %v9805 = vpack.c.b16 %v9763, %v9761
      %v9806 = vpack.c.b16 %v9766, %v9764
      %v9807 = vpack.c.b16 %v9767, %v9765
      %v9808 = vpack.c.b16 %v9770, %v9768
      %v9809 = vpack.c.b16 %v9771, %v9769
      %v9810 = vpack.c.b16 %v9774, %v9772
      %v9811 = vpack.c.b16 %v9775, %v9773
      %v9812 = vpack.c.b16 %v9778, %v9776
      %v9813 = vpack.c.b16 %v9779, %v9777
      %v9814 = vpack.c.b16 %v9782, %v9780
      %v9815 = vpack.c.b16 %v9783, %v9781
      %9848 = vmatprep.subr.bf16.mxu0 %v9785
      %9849 = vmatpush1.bf16.msra.mxu0 %v9784
      %9850 = vmatprep.subr.bf16.mxu0 %v9787
      %9851 = vmatpush1.bf16.msra.mxu0 %v9786
      %9852 = vmatprep.subr.bf16.mxu0 %v9789
      %9853 = vmatpush1.bf16.msra.mxu0 %v9788
      %9854 = vmatprep.subr.bf16.mxu0 %v9791
      %9855 = vmatpush1.bf16.msra.mxu0 %v9790
      %9856 = vmatprep.subr.bf16.mxu0 %v9793
      %9857 = vmatpush1.bf16.msra.mxu0 %v9792
      %9858 = vmatprep.subr.bf16.mxu0 %v9795
      %9859 = vmatpush1.bf16.msra.mxu0 %v9794
      %9860 = vmatprep.subr.bf16.mxu0 %v9797
      %9861 = vmatpush1.bf16.msra.mxu0 %v9796
      %9862 = vmatprep.subr.bf16.mxu0 %v9799
      %9863 = vmatpush1.bf16.msra.mxu0 %v9798
      %9864 = vmatprep.subr.bf16.mxu0 %v9801
      %9865 = vmatpush1.bf16.msra.mxu0 %v9800
      %9866 = vmatprep.subr.bf16.mxu0 %v9803
      %9867 = vmatpush1.bf16.msra.mxu0 %v9802
      %9868 = vmatprep.subr.bf16.mxu0 %v9805
      %9869 = vmatpush1.bf16.msra.mxu0 %v9804
      %9870 = vmatprep.subr.bf16.mxu0 %v9807
      %9871 = vmatpush1.bf16.msra.mxu0 %v9806
      %9872 = vmatprep.subr.bf16.mxu0 %v9809
      %9873 = vmatpush1.bf16.msra.mxu0 %v9808
      %9874 = vmatprep.subr.bf16.mxu0 %v9811
      %9875 = vmatpush1.bf16.msra.mxu0 %v9810
      %9876 = vmatprep.subr.bf16.mxu0 %v9813
      %9877 = vmatpush1.bf16.msra.mxu0 %v9812
      %9878 = vmatprep.subr.bf16.mxu0 %v9815
      %9879 = vmatpush1.bf16.msra.mxu0 %v9814
      %9880 = vmatprep.mubr.bf16.mxu0 %v9646
      %9881 = vmatmul.mubr.bf16.gmra.mrb[0].mxu0 %v9645
      %v9882 = vpop.f32.mrb[0].mxu0
      %v9883 = vadd.f32 %v9683, %v9882
      %v9884 = vpop.f32.mrb[0].mxu0
      %v9885 = vadd.f32 %v9687, %v9884
      %v9886 = vpop.f32.mrb[0].mxu0
      %v9887 = vpop.f32.mrb[0].mxu0
      %9888 = vdwg.mxu0
      %v9889 = vadd.f32 %v8411, %v9883
      %v9890 = vadd.f32 %v8412, %v9885
      %v9891 = vadd.f32 %v9889, %v9890
      %9892 = vadd.xlane.f32.xlu0 %v9891
      %v9893 = vpop.xlane.xlu0 %9892
      %v9894 = vmul.f32 %v9893, %v636
      %v9895 = vsub.f32 %v9889, %v9894
      %v9896 = vsub.f32 %v9890, %v9894
      %v9897 = vmul.f32 %v9895, %v9895
      %v9898 = vmul.f32 %v9896, %v9896
      %v9899 = vadd.f32 %v9897, %v9898
      %9900 = vadd.xlane.f32.xlu0 %v9899
      %v9901 = vpop.xlane.xlu0 %9900
      %v9902 = vmul.f32 %v9901, %v636
      %v9903 = vadd.f32 %v9902, 1e-05
      %v9904 = vrsqrt.pop %v9903
      %v9905 = vmul.f32 %v9895, %v9904
      %v9906 = vmul.f32 %v9896, %v9904
      %v9907 = vlaneseq
      %v9908 = vshrl.u32 %v9907, 7
      %v9909 = vsub.s32 2, %v9908
      %v9910 = vrot.slane %v8414, %v9909
      %v9911 = vlaneseq
      %v9912 = vshrl.u32 %v9911, 7
      %v9913 = vsub.s32 2, %v9912
      %v9914 = vrot.slane %v8415, %v9913
      %v9915 = vmul.f32 %v9905, %v9910
      %v9916 = vmul.f32 %v9906, %v9914
      %v9917 = vlaneseq
      %v9918 = vshrl.u32 %v9917, 7
      %v9919 = vsub.s32 3, %v9918
      %v9920 = vrot.slane %v8414, %v9919
      %v9921 = vlaneseq
      %v9922 = vshrl.u32 %v9921, 7
      %v9923 = vsub.s32 3, %v9922
      %v9924 = vrot.slane %v8415, %v9923
      %v9925 = vadd.f32 %v9915, %v9920
      %v9926 = vadd.f32 %v9916, %v9924
      %v9927 = vpack.c.bf16 %v9925, %v9925
      %v9928 = vpack.c.bf16 %v9926, %v9926
      %s9929 = scalar_lea.vmem %s5, 1536
      %v9930 = vld [vmem:[%s9929] sm:$0xff]
      %v9931 = vld [vmem:[%s9929 + $0x8] sm:$0xff]
      %v9932 = vld [vmem:[%s9929 + $0x10] sm:$0xff]
      %v9933 = vld [vmem:[%s9929 + $0x18] sm:$0xff]
      %v9934 = vld [vmem:[%s9929 + $0x20] sm:$0xff]
      %v9935 = vld [vmem:[%s9929 + $0x28] sm:$0xff]
      %v9936 = vld [vmem:[%s9929 + $0x30] sm:$0xff]
      %v9937 = vld [vmem:[%s9929 + $0x38] sm:$0xff]
      %v9938 = vld [vmem:[%s9929 + $0x40] sm:$0xff]
      %v9939 = vld [vmem:[%s9929 + $0x48] sm:$0xff]
      %v9940 = vld [vmem:[%s9929 + $0x50] sm:$0xff]
      %v9941 = vld [vmem:[%s9929 + $0x58] sm:$0xff]
      %v9942 = vld [vmem:[%s9929 + $0x60] sm:$0xff]
      %v9943 = vld [vmem:[%s9929 + $0x68] sm:$0xff]
      %v9944 = vld [vmem:[%s9929 + $0x70] sm:$0xff]
      %v9945 = vld [vmem:[%s9929 + $0x78] sm:$0xff]
      %v9946 = vld [vmem:[%s9929 + $0x80] sm:$0xff]
      %v9947 = vld [vmem:[%s9929 + $0x88] sm:$0xff]
      %v9948 = vld [vmem:[%s9929 + $0x90] sm:$0xff]
      %v9949 = vld [vmem:[%s9929 + $0x98] sm:$0xff]
      %v9950 = vld [vmem:[%s9929 + $0xa0] sm:$0xff]
      %v9951 = vld [vmem:[%s9929 + $0xa8] sm:$0xff]
      %v9952 = vld [vmem:[%s9929 + $0xb0] sm:$0xff]
      %v9953 = vld [vmem:[%s9929 + $0xb8] sm:$0xff]
      %v9954 = vld [vmem:[%s9929 + $0xc0] sm:$0xff]
      %v9955 = vld [vmem:[%s9929 + $0xc8] sm:$0xff]
      %v9956 = vld [vmem:[%s9929 + $0xd0] sm:$0xff]
      %v9957 = vld [vmem:[%s9929 + $0xd8] sm:$0xff]
      %v9958 = vld [vmem:[%s9929 + $0xe0] sm:$0xff]
      %v9959 = vld [vmem:[%s9929 + $0xe8] sm:$0xff]
      %v9960 = vld [vmem:[%s9929 + $0xf0] sm:$0xff]
      %v9961 = vld [vmem:[%s9929 + $0xf8] sm:$0xff]
      %v9962 = vld [vmem:[%s9929 + $0x100] sm:$0xff]
      %v9963 = vld [vmem:[%s9929 + $0x108] sm:$0xff]
      %v9964 = vld [vmem:[%s9929 + $0x110] sm:$0xff]
      %v9965 = vld [vmem:[%s9929 + $0x118] sm:$0xff]
      %v9966 = vld [vmem:[%s9929 + $0x120] sm:$0xff]
      %v9967 = vld [vmem:[%s9929 + $0x128] sm:$0xff]
      %v9968 = vld [vmem:[%s9929 + $0x130] sm:$0xff]
      %v9969 = vld [vmem:[%s9929 + $0x138] sm:$0xff]
      %v9970 = vld [vmem:[%s9929 + $0x140] sm:$0xff]
      %v9971 = vld [vmem:[%s9929 + $0x148] sm:$0xff]
      %v9972 = vld [vmem:[%s9929 + $0x150] sm:$0xff]
      %v9973 = vld [vmem:[%s9929 + $0x158] sm:$0xff]
      %v9974 = vld [vmem:[%s9929 + $0x160] sm:$0xff]
      %v9975 = vld [vmem:[%s9929 + $0x168] sm:$0xff]
      %v9976 = vld [vmem:[%s9929 + $0x170] sm:$0xff]
      %v9977 = vld [vmem:[%s9929 + $0x178] sm:$0xff]
      %v9978 = vld [vmem:[%s9929 + $0x180] sm:$0xff]
      %v9979 = vld [vmem:[%s9929 + $0x188] sm:$0xff]
      %v9980 = vld [vmem:[%s9929 + $0x190] sm:$0xff]
      %v9981 = vld [vmem:[%s9929 + $0x198] sm:$0xff]
      %v9982 = vld [vmem:[%s9929 + $0x1a0] sm:$0xff]
      %v9983 = vld [vmem:[%s9929 + $0x1a8] sm:$0xff]
      %v9984 = vld [vmem:[%s9929 + $0x1b0] sm:$0xff]
      %v9985 = vld [vmem:[%s9929 + $0x1b8] sm:$0xff]
      %v9986 = vld [vmem:[%s9929 + $0x1c0] sm:$0xff]
      %v9987 = vld [vmem:[%s9929 + $0x1c8] sm:$0xff]
      %v9988 = vld [vmem:[%s9929 + $0x1d0] sm:$0xff]
      %v9989 = vld [vmem:[%s9929 + $0x1d8] sm:$0xff]
      %v9990 = vld [vmem:[%s9929 + $0x1e0] sm:$0xff]
      %v9991 = vld [vmem:[%s9929 + $0x1e8] sm:$0xff]
      %v9992 = vld [vmem:[%s9929 + $0x1f0] sm:$0xff]
      %v9993 = vld [vmem:[%s9929 + $0x1f8] sm:$0xff]
      %s9994 = scalar_lea.vmem %s8, 12
      %v9995 = vld [vmem:[%s9994] sm:$0xf]
      %v9997 = vlaneseq
      %v9998 = vshrl.u32 %v9997, 7
      %v9999 = vsub.s32 0, %v9998
      %v10000 = vrot.slane %v9995, %v9999
      %v10001 = vlaneseq
      %v10002 = vshrl.u32 %v10001, 7
      %v10003 = vsub.s32 1, %v10002
      %v10004 = vrot.slane %v9995, %v10003
      %v10005 = vlaneseq
      %v10006 = vshrl.u32 %v10005, 7
      %v10007 = vsub.s32 2, %v10006
      %v10008 = vrot.slane %v9995, %v10007
      %v10009 = vlaneseq
      %v10010 = vshrl.u32 %v10009, 7
      %v10011 = vsub.s32 3, %v10010
      %v10012 = vrot.slane %v9995, %v10011
      %v10081 = vunpack.c.l.b16 %v9930
      %v10082 = vunpack.c.h.b16 %v9930
      %v10083 = vunpack.c.l.b16 %v9931
      %v10084 = vunpack.c.h.b16 %v9931
      %v10085 = vunpack.c.l.b16 %v9932
      %v10086 = vunpack.c.h.b16 %v9932
      %v10087 = vunpack.c.l.b16 %v9933
      %v10088 = vunpack.c.h.b16 %v9933
      %v10089 = vunpack.c.l.b16 %v9934
      %v10090 = vunpack.c.h.b16 %v9934
      %v10091 = vunpack.c.l.b16 %v9935
      %v10092 = vunpack.c.h.b16 %v9935
      %v10093 = vunpack.c.l.b16 %v9936
      %v10094 = vunpack.c.h.b16 %v9936
      %v10095 = vunpack.c.l.b16 %v9937
      %v10096 = vunpack.c.h.b16 %v9937
      %v10097 = vunpack.c.l.b16 %v9938
      %v10098 = vunpack.c.h.b16 %v9938
      %v10099 = vunpack.c.l.b16 %v9939
      %v10100 = vunpack.c.h.b16 %v9939
      %v10101 = vunpack.c.l.b16 %v9940
      %v10102 = vunpack.c.h.b16 %v9940
      %v10103 = vunpack.c.l.b16 %v9941
      %v10104 = vunpack.c.h.b16 %v9941
      %v10105 = vunpack.c.l.b16 %v9942
      %v10106 = vunpack.c.h.b16 %v9942
      %v10107 = vunpack.c.l.b16 %v9943
      %v10108 = vunpack.c.h.b16 %v9943
      %v10109 = vunpack.c.l.b16 %v9944
      %v10110 = vunpack.c.h.b16 %v9944
      %v10111 = vunpack.c.l.b16 %v9945
      %v10112 = vunpack.c.h.b16 %v9945
      %v10113 = vunpack.c.l.b16 %v9946
      %v10114 = vunpack.c.h.b16 %v9946
      %v10115 = vunpack.c.l.b16 %v9947
      %v10116 = vunpack.c.h.b16 %v9947
      %v10117 = vunpack.c.l.b16 %v9948
      %v10118 = vunpack.c.h.b16 %v9948
      %v10119 = vunpack.c.l.b16 %v9949
      %v10120 = vunpack.c.h.b16 %v9949
      %v10121 = vunpack.c.l.b16 %v9950
      %v10122 = vunpack.c.h.b16 %v9950
      %v10123 = vunpack.c.l.b16 %v9951
      %v10124 = vunpack.c.h.b16 %v9951
      %v10125 = vunpack.c.l.b16 %v9952
      %v10126 = vunpack.c.h.b16 %v9952
      %v10127 = vunpack.c.l.b16 %v9953
      %v10128 = vunpack.c.h.b16 %v9953
      %v10129 = vunpack.c.l.b16 %v9954
      %v10130 = vunpack.c.h.b16 %v9954
      %v10131 = vunpack.c.l.b16 %v9955
      %v10132 = vunpack.c.h.b16 %v9955
      %v10133 = vunpack.c.l.b16 %v9956
      %v10134 = vunpack.c.h.b16 %v9956
      %v10135 = vunpack.c.l.b16 %v9957
      %v10136 = vunpack.c.h.b16 %v9957
      %v10137 = vunpack.c.l.b16 %v9958
      %v10138 = vunpack.c.h.b16 %v9958
      %v10139 = vunpack.c.l.b16 %v9959
      %v10140 = vunpack.c.h.b16 %v9959
      %v10141 = vunpack.c.l.b16 %v9960
      %v10142 = vunpack.c.h.b16 %v9960
      %v10143 = vunpack.c.l.b16 %v9961
      %v10144 = vunpack.c.h.b16 %v9961
      %v10145 = vunpack.c.l.b16 %v9962
      %v10146 = vunpack.c.h.b16 %v9962
      %v10147 = vunpack.c.l.b16 %v9963
      %v10148 = vunpack.c.h.b16 %v9963
      %v10149 = vunpack.c.l.b16 %v9964
      %v10150 = vunpack.c.h.b16 %v9964
      %v10151 = vunpack.c.l.b16 %v9965
      %v10152 = vunpack.c.h.b16 %v9965
      %v10153 = vunpack.c.l.b16 %v9966
      %v10154 = vunpack.c.h.b16 %v9966
      %v10155 = vunpack.c.l.b16 %v9967
      %v10156 = vunpack.c.h.b16 %v9967
      %v10157 = vunpack.c.l.b16 %v9968
      %v10158 = vunpack.c.h.b16 %v9968
      %v10159 = vunpack.c.l.b16 %v9969
      %v10160 = vunpack.c.h.b16 %v9969
      %v10161 = vunpack.c.l.b16 %v9970
      %v10162 = vunpack.c.h.b16 %v9970
      %v10163 = vunpack.c.l.b16 %v9971
      %v10164 = vunpack.c.h.b16 %v9971
      %v10165 = vunpack.c.l.b16 %v9972
      %v10166 = vunpack.c.h.b16 %v9972
      %v10167 = vunpack.c.l.b16 %v9973
      %v10168 = vunpack.c.h.b16 %v9973
      %v10169 = vunpack.c.l.b16 %v9974
      %v10170 = vunpack.c.h.b16 %v9974
      %v10171 = vunpack.c.l.b16 %v9975
      %v10172 = vunpack.c.h.b16 %v9975
      %v10173 = vunpack.c.l.b16 %v9976
      %v10174 = vunpack.c.h.b16 %v9976
      %v10175 = vunpack.c.l.b16 %v9977
      %v10176 = vunpack.c.h.b16 %v9977
      %v10177 = vunpack.c.l.b16 %v9978
      %v10178 = vunpack.c.h.b16 %v9978
      %v10179 = vunpack.c.l.b16 %v9979
      %v10180 = vunpack.c.h.b16 %v9979
      %v10181 = vunpack.c.l.b16 %v9980
      %v10182 = vunpack.c.h.b16 %v9980
      %v10183 = vunpack.c.l.b16 %v9981
      %v10184 = vunpack.c.h.b16 %v9981
      %v10185 = vunpack.c.l.b16 %v9982
      %v10186 = vunpack.c.h.b16 %v9982
      %v10187 = vunpack.c.l.b16 %v9983
      %v10188 = vunpack.c.h.b16 %v9983
      %v10189 = vunpack.c.l.b16 %v9984
      %v10190 = vunpack.c.h.b16 %v9984
      %v10191 = vunpack.c.l.b16 %v9985
      %v10192 = vunpack.c.h.b16 %v9985
      %v10193 = vunpack.c.l.b16 %v9986
      %v10194 = vunpack.c.h.b16 %v9986
      %v10195 = vunpack.c.l.b16 %v9987
      %v10196 = vunpack.c.h.b16 %v9987
      %v10197 = vunpack.c.l.b16 %v9988
      %v10198 = vunpack.c.h.b16 %v9988
      %v10199 = vunpack.c.l.b16 %v9989
      %v10200 = vunpack.c.h.b16 %v9989
      %v10201 = vunpack.c.l.b16 %v9990
      %v10202 = vunpack.c.h.b16 %v9990
      %v10203 = vunpack.c.l.b16 %v9991
      %v10204 = vunpack.c.h.b16 %v9991
      %v10205 = vunpack.c.l.b16 %v9992
      %v10206 = vunpack.c.h.b16 %v9992
      %v10207 = vunpack.c.l.b16 %v9993
      %v10208 = vunpack.c.h.b16 %v9993
      %v10209 = vpack.c.b16 %v10085, %v10081
      %v10210 = vpack.c.b16 %v10086, %v10082
      %v10211 = vpack.c.b16 %v10087, %v10083
      %v10212 = vpack.c.b16 %v10088, %v10084
      %v10213 = vpack.c.b16 %v10093, %v10089
      %v10214 = vpack.c.b16 %v10094, %v10090
      %v10215 = vpack.c.b16 %v10095, %v10091
      %v10216 = vpack.c.b16 %v10096, %v10092
      %v10217 = vpack.c.b16 %v10101, %v10097
      %v10218 = vpack.c.b16 %v10102, %v10098
      %v10219 = vpack.c.b16 %v10103, %v10099
      %v10220 = vpack.c.b16 %v10104, %v10100
      %v10221 = vpack.c.b16 %v10109, %v10105
      %v10222 = vpack.c.b16 %v10110, %v10106
      %v10223 = vpack.c.b16 %v10111, %v10107
      %v10224 = vpack.c.b16 %v10112, %v10108
      %v10225 = vpack.c.b16 %v10117, %v10113
      %v10226 = vpack.c.b16 %v10118, %v10114
      %v10227 = vpack.c.b16 %v10119, %v10115
      %v10228 = vpack.c.b16 %v10120, %v10116
      %v10229 = vpack.c.b16 %v10125, %v10121
      %v10230 = vpack.c.b16 %v10126, %v10122
      %v10231 = vpack.c.b16 %v10127, %v10123
      %v10232 = vpack.c.b16 %v10128, %v10124
      %v10233 = vpack.c.b16 %v10133, %v10129
      %v10234 = vpack.c.b16 %v10134, %v10130
      %v10235 = vpack.c.b16 %v10135, %v10131
      %v10236 = vpack.c.b16 %v10136, %v10132
      %v10237 = vpack.c.b16 %v10141, %v10137
      %v10238 = vpack.c.b16 %v10142, %v10138
      %v10239 = vpack.c.b16 %v10143, %v10139
      %v10240 = vpack.c.b16 %v10144, %v10140
      %v10241 = vpack.c.b16 %v10149, %v10145
      %v10242 = vpack.c.b16 %v10150, %v10146
      %v10243 = vpack.c.b16 %v10151, %v10147
      %v10244 = vpack.c.b16 %v10152, %v10148
      %v10245 = vpack.c.b16 %v10157, %v10153
      %v10246 = vpack.c.b16 %v10158, %v10154
      %v10247 = vpack.c.b16 %v10159, %v10155
      %v10248 = vpack.c.b16 %v10160, %v10156
      %v10249 = vpack.c.b16 %v10165, %v10161
      %v10250 = vpack.c.b16 %v10166, %v10162
      %v10251 = vpack.c.b16 %v10167, %v10163
      %v10252 = vpack.c.b16 %v10168, %v10164
      %v10253 = vpack.c.b16 %v10173, %v10169
      %v10254 = vpack.c.b16 %v10174, %v10170
      %v10255 = vpack.c.b16 %v10175, %v10171
      %v10256 = vpack.c.b16 %v10176, %v10172
      %v10257 = vpack.c.b16 %v10181, %v10177
      %v10258 = vpack.c.b16 %v10182, %v10178
      %v10259 = vpack.c.b16 %v10183, %v10179
      %v10260 = vpack.c.b16 %v10184, %v10180
      %v10261 = vpack.c.b16 %v10189, %v10185
      %v10262 = vpack.c.b16 %v10190, %v10186
      %v10263 = vpack.c.b16 %v10191, %v10187
      %v10264 = vpack.c.b16 %v10192, %v10188
      %v10265 = vpack.c.b16 %v10197, %v10193
      %v10266 = vpack.c.b16 %v10198, %v10194
      %v10267 = vpack.c.b16 %v10199, %v10195
      %v10268 = vpack.c.b16 %v10200, %v10196
      %v10269 = vpack.c.b16 %v10205, %v10201
      %v10270 = vpack.c.b16 %v10206, %v10202
      %v10271 = vpack.c.b16 %v10207, %v10203
      %v10272 = vpack.c.b16 %v10208, %v10204
      %10337 = vmatprep.subr.bf16.mxu0 %v10210
      %10338 = vmatpush1.bf16.msra.mxu0 %v10209
      %10339 = vmatprep.subr.bf16.mxu0 %v10214
      %10340 = vmatpush1.bf16.msra.mxu0 %v10213
      %10341 = vmatprep.subr.bf16.mxu0 %v10218
      %10342 = vmatpush1.bf16.msra.mxu0 %v10217
      %10343 = vmatprep.subr.bf16.mxu0 %v10222
      %10344 = vmatpush1.bf16.msra.mxu0 %v10221
      %10345 = vmatprep.subr.bf16.mxu0 %v10226
      %10346 = vmatpush1.bf16.msra.mxu0 %v10225
      %10347 = vmatprep.subr.bf16.mxu0 %v10230
      %10348 = vmatpush1.bf16.msra.mxu0 %v10229
      %10349 = vmatprep.subr.bf16.mxu0 %v10234
      %10350 = vmatpush1.bf16.msra.mxu0 %v10233
      %10351 = vmatprep.subr.bf16.mxu0 %v10238
      %10352 = vmatpush1.bf16.msra.mxu0 %v10237
      %10353 = vmatprep.subr.bf16.mxu0 %v10242
      %10354 = vmatpush1.bf16.msra.mxu0 %v10241
      %10355 = vmatprep.subr.bf16.mxu0 %v10246
      %10356 = vmatpush1.bf16.msra.mxu0 %v10245
      %10357 = vmatprep.subr.bf16.mxu0 %v10250
      %10358 = vmatpush1.bf16.msra.mxu0 %v10249
      %10359 = vmatprep.subr.bf16.mxu0 %v10254
      %10360 = vmatpush1.bf16.msra.mxu0 %v10253
      %10361 = vmatprep.subr.bf16.mxu0 %v10258
      %10362 = vmatpush1.bf16.msra.mxu0 %v10257
      %10363 = vmatprep.subr.bf16.mxu0 %v10262
      %10364 = vmatpush1.bf16.msra.mxu0 %v10261
      %10365 = vmatprep.subr.bf16.mxu0 %v10266
      %10366 = vmatpush1.bf16.msra.mxu0 %v10265
      %10367 = vmatprep.subr.bf16.mxu0 %v10270
      %10368 = vmatpush1.bf16.msra.mxu0 %v10269
      %10369 = vmatprep.mubr.bf16.mxu0 %v9928
      %10370 = vmatmul.mubr.bf16.gmra.mrb[0].mxu0 %v9927
      %v10371 = vpop.f32.mrb[0].mxu0
      %v10372 = vadd.f32 %v10000, %v10371
      %v10373 = vpop.f32.mrb[0].mxu0
      %v10374 = vadd.f32 %v10004, %v10373
      %v10375 = vpop.f32.mrb[0].mxu0
      %v10376 = vpop.f32.mrb[0].mxu0
      %10377 = vdwg.mxu0
      %10378 = vmatprep.subr.bf16.mxu0 %v10212
      %10379 = vmatpush1.bf16.msra.mxu0 %v10211
      %10380 = vmatprep.subr.bf16.mxu0 %v10216
      %10381 = vmatpush1.bf16.msra.mxu0 %v10215
      %10382 = vmatprep.subr.bf16.mxu0 %v10220
      %10383 = vmatpush1.bf16.msra.mxu0 %v10219
      %10384 = vmatprep.subr.bf16.mxu0 %v10224
      %10385 = vmatpush1.bf16.msra.mxu0 %v10223
      %10386 = vmatprep.subr.bf16.mxu0 %v10228
      %10387 = vmatpush1.bf16.msra.mxu0 %v10227
      %10388 = vmatprep.subr.bf16.mxu0 %v10232
      %10389 = vmatpush1.bf16.msra.mxu0 %v10231
      %10390 = vmatprep.subr.bf16.mxu0 %v10236
      %10391 = vmatpush1.bf16.msra.mxu0 %v10235
      %10392 = vmatprep.subr.bf16.mxu0 %v10240
      %10393 = vmatpush1.bf16.msra.mxu0 %v10239
      %10394 = vmatprep.subr.bf16.mxu0 %v10244
      %10395 = vmatpush1.bf16.msra.mxu0 %v10243
      %10396 = vmatprep.subr.bf16.mxu0 %v10248
      %10397 = vmatpush1.bf16.msra.mxu0 %v10247
      %10398 = vmatprep.subr.bf16.mxu0 %v10252
      %10399 = vmatpush1.bf16.msra.mxu0 %v10251
      %10400 = vmatprep.subr.bf16.mxu0 %v10256
      %10401 = vmatpush1.bf16.msra.mxu0 %v10255
      %10402 = vmatprep.subr.bf16.mxu0 %v10260
      %10403 = vmatpush1.bf16.msra.mxu0 %v10259
      %10404 = vmatprep.subr.bf16.mxu0 %v10264
      %10405 = vmatpush1.bf16.msra.mxu0 %v10263
      %10406 = vmatprep.subr.bf16.mxu0 %v10268
      %10407 = vmatpush1.bf16.msra.mxu0 %v10267
      %10408 = vmatprep.subr.bf16.mxu0 %v10272
      %10409 = vmatpush1.bf16.msra.mxu0 %v10271
      %10410 = vmatprep.mubr.bf16.mxu0 %v9928
      %10411 = vmatmul.mubr.bf16.gmra.mrb[0].mxu0 %v9927
      %v10412 = vpop.f32.mrb[0].mxu0
      %v10413 = vadd.f32 %v10008, %v10412
      %v10414 = vpop.f32.mrb[0].mxu0
      %v10415 = vadd.f32 %v10012, %v10414
      %v10416 = vpop.f32.mrb[0].mxu0
      %v10417 = vpop.f32.mrb[0].mxu0
      %10418 = vdwg.mxu0
      %v10419 = vmul.f32 %v10372, 0.5
      %v10420 = vmul.f32 %v10374, 0.5
      %v10421 = vmul.f32 %v10413, 0.5
      %v10422 = vmul.f32 %v10415, 0.5
      %v10423 = vmul.f32 %v10372, 0.70710677
      %v10424 = vmul.f32 %v10374, 0.70710677
      %v10425 = vmul.f32 %v10413, 0.70710677
      %v10426 = vmul.f32 %v10415, 0.70710677
      %v10427 = vand.u32 2147483647, %v10423
      %v10428 = vand.u32 2147483647, %v10424
      %v10429 = vand.u32 2147483647, %v10425
      %v10430 = vand.u32 2147483647, %v10426
      %v10431 = vmul.f32 %v10427, 0.3275911
      %v10432 = vmul.f32 %v10428, 0.3275911
      %v10433 = vmul.f32 %v10429, 0.3275911
      %v10434 = vmul.f32 %v10430, 0.3275911
      %v10435 = vadd.f32 %v10431, 1.0
      %v10436 = vadd.f32 %v10432, 1.0
      %v10437 = vadd.f32 %v10433, 1.0
      %v10438 = vadd.f32 %v10434, 1.0
      %v10439 = vrcp.pop %v10435
      %v10440 = vmul.f32 1.0, %v10439
      %v10441 = vrcp.pop %v10436
      %v10442 = vmul.f32 1.0, %v10441
      %v10443 = vrcp.pop %v10437
      %v10444 = vmul.f32 1.0, %v10443
      %v10445 = vrcp.pop %v10438
      %v10446 = vmul.f32 1.0, %v10445
      %v10447 = vmul.f32 %v10440, 1.0614054
      %v10448 = vmul.f32 %v10442, 1.0614054
      %v10449 = vmul.f32 %v10444, 1.0614054
      %v10450 = vmul.f32 %v10446, 1.0614054
      %v10451 = vadd.f32 %v10447, -1.4531521
      %v10452 = vadd.f32 %v10448, -1.4531521
      %v10453 = vadd.f32 %v10449, -1.4531521
      %v10454 = vadd.f32 %v10450, -1.4531521
      %v10455 = vmul.f32 %v10451, %v10440
      %v10456 = vmul.f32 %v10452, %v10442
      %v10457 = vmul.f32 %v10453, %v10444
      %v10458 = vmul.f32 %v10454, %v10446
      %v10459 = vadd.f32 %v10455, 1.4214138
      %v10460 = vadd.f32 %v10456, 1.4214138
      %v10461 = vadd.f32 %v10457, 1.4214138
      %v10462 = vadd.f32 %v10458, 1.4214138
      %v10463 = vmul.f32 %v10459, %v10440
      %v10464 = vmul.f32 %v10460, %v10442
      %v10465 = vmul.f32 %v10461, %v10444
      %v10466 = vmul.f32 %v10462, %v10446
      %v10467 = vadd.f32 %v10463, -0.28449672
      %v10468 = vadd.f32 %v10464, -0.28449672
      %v10469 = vadd.f32 %v10465, -0.28449672
      %v10470 = vadd.f32 %v10466, -0.28449672
      %v10471 = vmul.f32 %v10467, %v10440
      %v10472 = vmul.f32 %v10468, %v10442
      %v10473 = vmul.f32 %v10469, %v10444
      %v10474 = vmul.f32 %v10470, %v10446
      %v10475 = vadd.f32 %v10471, 0.2548296
      %v10476 = vadd.f32 %v10472, 0.2548296
      %v10477 = vadd.f32 %v10473, 0.2548296
      %v10478 = vadd.f32 %v10474, 0.2548296
      %v10479 = vmul.f32 %v10475, %v10440
      %v10480 = vmul.f32 %v10476, %v10442
      %v10481 = vmul.f32 %v10477, %v10444
      %v10482 = vmul.f32 %v10478, %v10446
      %v10483 = vsub.f32 0.0, %v10427
      %v10484 = vsub.f32 0.0, %v10428
      %v10485 = vsub.f32 0.0, %v10429
      %v10486 = vsub.f32 0.0, %v10430
      %v10487 = vmul.f32 %v10483, %v10427
      %v10488 = vmul.f32 %v10484, %v10428
      %v10489 = vmul.f32 %v10485, %v10429
      %v10490 = vmul.f32 %v10486, %v10430
      %v10491 = vmul.f32 %v10487, 1.442695
      %v10492 = vpow.pop %v10491
      %v10493 = vmul.f32 %v10488, 1.442695
      %v10494 = vpow.pop %v10493
      %v10495 = vmul.f32 %v10489, 1.442695
      %v10496 = vpow.pop %v10495
      %v10497 = vmul.f32 %v10490, 1.442695
      %v10498 = vpow.pop %v10497
      %v10499 = vmul.f32 %v10479, %v10492
      %v10500 = vmul.f32 %v10480, %v10494
      %v10501 = vmul.f32 %v10481, %v10496
      %v10502 = vmul.f32 %v10482, %v10498
      %v10503 = vsub.f32 1.0, %v10499
      %v10504 = vsub.f32 1.0, %v10500
      %v10505 = vsub.f32 1.0, %v10501
      %v10506 = vsub.f32 1.0, %v10502
      %vm10507 = vcmp.ge.f32.partialorder %v10423, 0.0
      %vm10508 = vcmp.ge.f32.partialorder %v10424, 0.0
      %vm10509 = vcmp.ge.f32.partialorder %v10425, 0.0
      %vm10510 = vcmp.ge.f32.partialorder %v10426, 0.0
      %v10511 = vsub.f32 0.0, %v10503
      %v10512 = vsub.f32 0.0, %v10504
      %v10513 = vsub.f32 0.0, %v10505
      %v10514 = vsub.f32 0.0, %v10506
      %v10515 = vsel %vm10507, %v10503, %v10511
      %v10516 = vsel %vm10508, %v10504, %v10512
      %v10517 = vsel %vm10509, %v10505, %v10513
      %v10518 = vsel %vm10510, %v10506, %v10514
      %v10519 = vadd.f32 %v10515, 1.0
      %v10520 = vadd.f32 %v10516, 1.0
      %v10521 = vadd.f32 %v10517, 1.0
      %v10522 = vadd.f32 %v10518, 1.0
      %v10523 = vmul.f32 %v10419, %v10519
      %v10524 = vmul.f32 %v10420, %v10520
      %v10525 = vmul.f32 %v10421, %v10521
      %v10526 = vmul.f32 %v10422, %v10522
      %v10527 = vpack.c.bf16 %v10523, %v10523
      %v10528 = vpack.c.bf16 %v10524, %v10524
      %v10529 = vpack.c.bf16 %v10525, %v10525
      %v10530 = vpack.c.bf16 %v10526, %v10526
      %s10531 = scalar_lea.vmem %s6, 1536
      %v10532 = vld [vmem:[%s10531] sm:$0xff]
      %v10533 = vld [vmem:[%s10531 + $0x8] sm:$0xff]
      %v10534 = vld [vmem:[%s10531 + $0x10] sm:$0xff]
      %v10535 = vld [vmem:[%s10531 + $0x18] sm:$0xff]
      %v10536 = vld [vmem:[%s10531 + $0x20] sm:$0xff]
      %v10537 = vld [vmem:[%s10531 + $0x28] sm:$0xff]
      %v10538 = vld [vmem:[%s10531 + $0x30] sm:$0xff]
      %v10539 = vld [vmem:[%s10531 + $0x38] sm:$0xff]
      %v10540 = vld [vmem:[%s10531 + $0x40] sm:$0xff]
      %v10541 = vld [vmem:[%s10531 + $0x48] sm:$0xff]
      %v10542 = vld [vmem:[%s10531 + $0x50] sm:$0xff]
      %v10543 = vld [vmem:[%s10531 + $0x58] sm:$0xff]
      %v10544 = vld [vmem:[%s10531 + $0x60] sm:$0xff]
      %v10545 = vld [vmem:[%s10531 + $0x68] sm:$0xff]
      %v10546 = vld [vmem:[%s10531 + $0x70] sm:$0xff]
      %v10547 = vld [vmem:[%s10531 + $0x78] sm:$0xff]
      %v10548 = vld [vmem:[%s10531 + $0x80] sm:$0xff]
      %v10549 = vld [vmem:[%s10531 + $0x88] sm:$0xff]
      %v10550 = vld [vmem:[%s10531 + $0x90] sm:$0xff]
      %v10551 = vld [vmem:[%s10531 + $0x98] sm:$0xff]
      %v10552 = vld [vmem:[%s10531 + $0xa0] sm:$0xff]
      %v10553 = vld [vmem:[%s10531 + $0xa8] sm:$0xff]
      %v10554 = vld [vmem:[%s10531 + $0xb0] sm:$0xff]
      %v10555 = vld [vmem:[%s10531 + $0xb8] sm:$0xff]
      %v10556 = vld [vmem:[%s10531 + $0xc0] sm:$0xff]
      %v10557 = vld [vmem:[%s10531 + $0xc8] sm:$0xff]
      %v10558 = vld [vmem:[%s10531 + $0xd0] sm:$0xff]
      %v10559 = vld [vmem:[%s10531 + $0xd8] sm:$0xff]
      %v10560 = vld [vmem:[%s10531 + $0xe0] sm:$0xff]
      %v10561 = vld [vmem:[%s10531 + $0xe8] sm:$0xff]
      %v10562 = vld [vmem:[%s10531 + $0xf0] sm:$0xff]
      %v10563 = vld [vmem:[%s10531 + $0xf8] sm:$0xff]
      %v10564 = vld [vmem:[%s10531 + $0x100] sm:$0xff]
      %v10565 = vld [vmem:[%s10531 + $0x108] sm:$0xff]
      %v10566 = vld [vmem:[%s10531 + $0x110] sm:$0xff]
      %v10567 = vld [vmem:[%s10531 + $0x118] sm:$0xff]
      %v10568 = vld [vmem:[%s10531 + $0x120] sm:$0xff]
      %v10569 = vld [vmem:[%s10531 + $0x128] sm:$0xff]
      %v10570 = vld [vmem:[%s10531 + $0x130] sm:$0xff]
      %v10571 = vld [vmem:[%s10531 + $0x138] sm:$0xff]
      %v10572 = vld [vmem:[%s10531 + $0x140] sm:$0xff]
      %v10573 = vld [vmem:[%s10531 + $0x148] sm:$0xff]
      %v10574 = vld [vmem:[%s10531 + $0x150] sm:$0xff]
      %v10575 = vld [vmem:[%s10531 + $0x158] sm:$0xff]
      %v10576 = vld [vmem:[%s10531 + $0x160] sm:$0xff]
      %v10577 = vld [vmem:[%s10531 + $0x168] sm:$0xff]
      %v10578 = vld [vmem:[%s10531 + $0x170] sm:$0xff]
      %v10579 = vld [vmem:[%s10531 + $0x178] sm:$0xff]
      %v10580 = vld [vmem:[%s10531 + $0x180] sm:$0xff]
      %v10581 = vld [vmem:[%s10531 + $0x188] sm:$0xff]
      %v10582 = vld [vmem:[%s10531 + $0x190] sm:$0xff]
      %v10583 = vld [vmem:[%s10531 + $0x198] sm:$0xff]
      %v10584 = vld [vmem:[%s10531 + $0x1a0] sm:$0xff]
      %v10585 = vld [vmem:[%s10531 + $0x1a8] sm:$0xff]
      %v10586 = vld [vmem:[%s10531 + $0x1b0] sm:$0xff]
      %v10587 = vld [vmem:[%s10531 + $0x1b8] sm:$0xff]
      %v10588 = vld [vmem:[%s10531 + $0x1c0] sm:$0xff]
      %v10589 = vld [vmem:[%s10531 + $0x1c8] sm:$0xff]
      %v10590 = vld [vmem:[%s10531 + $0x1d0] sm:$0xff]
      %v10591 = vld [vmem:[%s10531 + $0x1d8] sm:$0xff]
      %v10592 = vld [vmem:[%s10531 + $0x1e0] sm:$0xff]
      %v10593 = vld [vmem:[%s10531 + $0x1e8] sm:$0xff]
      %v10594 = vld [vmem:[%s10531 + $0x1f0] sm:$0xff]
      %v10595 = vld [vmem:[%s10531 + $0x1f8] sm:$0xff]
      %v10596 = vlaneseq
      %v10597 = vshrl.u32 %v10596, 7
      %v10598 = vsub.s32 5, %v10597
      %v10599 = vrot.slane %v8414, %v10598
      %v10600 = vlaneseq
      %v10601 = vshrl.u32 %v10600, 7
      %v10602 = vsub.s32 5, %v10601
      %v10603 = vrot.slane %v8415, %v10602
      %v10668 = vunpack.c.l.b16 %v10532
      %v10669 = vunpack.c.h.b16 %v10532
      %v10670 = vunpack.c.l.b16 %v10533
      %v10671 = vunpack.c.h.b16 %v10533
      %v10672 = vunpack.c.l.b16 %v10534
      %v10673 = vunpack.c.h.b16 %v10534
      %v10674 = vunpack.c.l.b16 %v10535
      %v10675 = vunpack.c.h.b16 %v10535
      %v10676 = vunpack.c.l.b16 %v10536
      %v10677 = vunpack.c.h.b16 %v10536
      %v10678 = vunpack.c.l.b16 %v10537
      %v10679 = vunpack.c.h.b16 %v10537
      %v10680 = vunpack.c.l.b16 %v10538
      %v10681 = vunpack.c.h.b16 %v10538
      %v10682 = vunpack.c.l.b16 %v10539
      %v10683 = vunpack.c.h.b16 %v10539
      %v10684 = vunpack.c.l.b16 %v10540
      %v10685 = vunpack.c.h.b16 %v10540
      %v10686 = vunpack.c.l.b16 %v10541
      %v10687 = vunpack.c.h.b16 %v10541
      %v10688 = vunpack.c.l.b16 %v10542
      %v10689 = vunpack.c.h.b16 %v10542
      %v10690 = vunpack.c.l.b16 %v10543
      %v10691 = vunpack.c.h.b16 %v10543
      %v10692 = vunpack.c.l.b16 %v10544
      %v10693 = vunpack.c.h.b16 %v10544
      %v10694 = vunpack.c.l.b16 %v10545
      %v10695 = vunpack.c.h.b16 %v10545
      %v10696 = vunpack.c.l.b16 %v10546
      %v10697 = vunpack.c.h.b16 %v10546
      %v10698 = vunpack.c.l.b16 %v10547
      %v10699 = vunpack.c.h.b16 %v10547
      %v10700 = vunpack.c.l.b16 %v10548
      %v10701 = vunpack.c.h.b16 %v10548
      %v10702 = vunpack.c.l.b16 %v10549
      %v10703 = vunpack.c.h.b16 %v10549
      %v10704 = vunpack.c.l.b16 %v10550
      %v10705 = vunpack.c.h.b16 %v10550
      %v10706 = vunpack.c.l.b16 %v10551
      %v10707 = vunpack.c.h.b16 %v10551
      %v10708 = vunpack.c.l.b16 %v10552
      %v10709 = vunpack.c.h.b16 %v10552
      %v10710 = vunpack.c.l.b16 %v10553
      %v10711 = vunpack.c.h.b16 %v10553
      %v10712 = vunpack.c.l.b16 %v10554
      %v10713 = vunpack.c.h.b16 %v10554
      %v10714 = vunpack.c.l.b16 %v10555
      %v10715 = vunpack.c.h.b16 %v10555
      %v10716 = vunpack.c.l.b16 %v10556
      %v10717 = vunpack.c.h.b16 %v10556
      %v10718 = vunpack.c.l.b16 %v10557
      %v10719 = vunpack.c.h.b16 %v10557
      %v10720 = vunpack.c.l.b16 %v10558
      %v10721 = vunpack.c.h.b16 %v10558
      %v10722 = vunpack.c.l.b16 %v10559
      %v10723 = vunpack.c.h.b16 %v10559
      %v10724 = vunpack.c.l.b16 %v10560
      %v10725 = vunpack.c.h.b16 %v10560
      %v10726 = vunpack.c.l.b16 %v10561
      %v10727 = vunpack.c.h.b16 %v10561
      %v10728 = vunpack.c.l.b16 %v10562
      %v10729 = vunpack.c.h.b16 %v10562
      %v10730 = vunpack.c.l.b16 %v10563
      %v10731 = vunpack.c.h.b16 %v10563
      %v10732 = vunpack.c.l.b16 %v10564
      %v10733 = vunpack.c.h.b16 %v10564
      %v10734 = vunpack.c.l.b16 %v10565
      %v10735 = vunpack.c.h.b16 %v10565
      %v10736 = vunpack.c.l.b16 %v10566
      %v10737 = vunpack.c.h.b16 %v10566
      %v10738 = vunpack.c.l.b16 %v10567
      %v10739 = vunpack.c.h.b16 %v10567
      %v10740 = vunpack.c.l.b16 %v10568
      %v10741 = vunpack.c.h.b16 %v10568
      %v10742 = vunpack.c.l.b16 %v10569
      %v10743 = vunpack.c.h.b16 %v10569
      %v10744 = vunpack.c.l.b16 %v10570
      %v10745 = vunpack.c.h.b16 %v10570
      %v10746 = vunpack.c.l.b16 %v10571
      %v10747 = vunpack.c.h.b16 %v10571
      %v10748 = vunpack.c.l.b16 %v10572
      %v10749 = vunpack.c.h.b16 %v10572
      %v10750 = vunpack.c.l.b16 %v10573
      %v10751 = vunpack.c.h.b16 %v10573
      %v10752 = vunpack.c.l.b16 %v10574
      %v10753 = vunpack.c.h.b16 %v10574
      %v10754 = vunpack.c.l.b16 %v10575
      %v10755 = vunpack.c.h.b16 %v10575
      %v10756 = vunpack.c.l.b16 %v10576
      %v10757 = vunpack.c.h.b16 %v10576
      %v10758 = vunpack.c.l.b16 %v10577
      %v10759 = vunpack.c.h.b16 %v10577
      %v10760 = vunpack.c.l.b16 %v10578
      %v10761 = vunpack.c.h.b16 %v10578
      %v10762 = vunpack.c.l.b16 %v10579
      %v10763 = vunpack.c.h.b16 %v10579
      %v10764 = vunpack.c.l.b16 %v10580
      %v10765 = vunpack.c.h.b16 %v10580
      %v10766 = vunpack.c.l.b16 %v10581
      %v10767 = vunpack.c.h.b16 %v10581
      %v10768 = vunpack.c.l.b16 %v10582
      %v10769 = vunpack.c.h.b16 %v10582
      %v10770 = vunpack.c.l.b16 %v10583
      %v10771 = vunpack.c.h.b16 %v10583
      %v10772 = vunpack.c.l.b16 %v10584
      %v10773 = vunpack.c.h.b16 %v10584
      %v10774 = vunpack.c.l.b16 %v10585
      %v10775 = vunpack.c.h.b16 %v10585
      %v10776 = vunpack.c.l.b16 %v10586
      %v10777 = vunpack.c.h.b16 %v10586
      %v10778 = vunpack.c.l.b16 %v10587
      %v10779 = vunpack.c.h.b16 %v10587
      %v10780 = vunpack.c.l.b16 %v10588
      %v10781 = vunpack.c.h.b16 %v10588
      %v10782 = vunpack.c.l.b16 %v10589
      %v10783 = vunpack.c.h.b16 %v10589
      %v10784 = vunpack.c.l.b16 %v10590
      %v10785 = vunpack.c.h.b16 %v10590
      %v10786 = vunpack.c.l.b16 %v10591
      %v10787 = vunpack.c.h.b16 %v10591
      %v10788 = vunpack.c.l.b16 %v10592
      %v10789 = vunpack.c.h.b16 %v10592
      %v10790 = vunpack.c.l.b16 %v10593
      %v10791 = vunpack.c.h.b16 %v10593
      %v10792 = vunpack.c.l.b16 %v10594
      %v10793 = vunpack.c.h.b16 %v10594
      %v10794 = vunpack.c.l.b16 %v10595
      %v10795 = vunpack.c.h.b16 %v10595
      %v10796 = vpack.c.b16 %v10670, %v10668
      %v10797 = vpack.c.b16 %v10671, %v10669
      %v10798 = vpack.c.b16 %v10674, %v10672
      %v10799 = vpack.c.b16 %v10675, %v10673
      %v10800 = vpack.c.b16 %v10678, %v10676
      %v10801 = vpack.c.b16 %v10679, %v10677
      %v10802 = vpack.c.b16 %v10682, %v10680
      %v10803 = vpack.c.b16 %v10683, %v10681
      %v10804 = vpack.c.b16 %v10686, %v10684
      %v10805 = vpack.c.b16 %v10687, %v10685
      %v10806 = vpack.c.b16 %v10690, %v10688
      %v10807 = vpack.c.b16 %v10691, %v10689
      %v10808 = vpack.c.b16 %v10694, %v10692
      %v10809 = vpack.c.b16 %v10695, %v10693
      %v10810 = vpack.c.b16 %v10698, %v10696
      %v10811 = vpack.c.b16 %v10699, %v10697
      %v10812 = vpack.c.b16 %v10702, %v10700
      %v10813 = vpack.c.b16 %v10703, %v10701
      %v10814 = vpack.c.b16 %v10706, %v10704
      %v10815 = vpack.c.b16 %v10707, %v10705
      %v10816 = vpack.c.b16 %v10710, %v10708
      %v10817 = vpack.c.b16 %v10711, %v10709
      %v10818 = vpack.c.b16 %v10714, %v10712
      %v10819 = vpack.c.b16 %v10715, %v10713
      %v10820 = vpack.c.b16 %v10718, %v10716
      %v10821 = vpack.c.b16 %v10719, %v10717
      %v10822 = vpack.c.b16 %v10722, %v10720
      %v10823 = vpack.c.b16 %v10723, %v10721
      %v10824 = vpack.c.b16 %v10726, %v10724
      %v10825 = vpack.c.b16 %v10727, %v10725
      %v10826 = vpack.c.b16 %v10730, %v10728
      %v10827 = vpack.c.b16 %v10731, %v10729
      %v10828 = vpack.c.b16 %v10734, %v10732
      %v10829 = vpack.c.b16 %v10735, %v10733
      %v10830 = vpack.c.b16 %v10738, %v10736
      %v10831 = vpack.c.b16 %v10739, %v10737
      %v10832 = vpack.c.b16 %v10742, %v10740
      %v10833 = vpack.c.b16 %v10743, %v10741
      %v10834 = vpack.c.b16 %v10746, %v10744
      %v10835 = vpack.c.b16 %v10747, %v10745
      %v10836 = vpack.c.b16 %v10750, %v10748
      %v10837 = vpack.c.b16 %v10751, %v10749
      %v10838 = vpack.c.b16 %v10754, %v10752
      %v10839 = vpack.c.b16 %v10755, %v10753
      %v10840 = vpack.c.b16 %v10758, %v10756
      %v10841 = vpack.c.b16 %v10759, %v10757
      %v10842 = vpack.c.b16 %v10762, %v10760
      %v10843 = vpack.c.b16 %v10763, %v10761
      %v10844 = vpack.c.b16 %v10766, %v10764
      %v10845 = vpack.c.b16 %v10767, %v10765
      %v10846 = vpack.c.b16 %v10770, %v10768
      %v10847 = vpack.c.b16 %v10771, %v10769
      %v10848 = vpack.c.b16 %v10774, %v10772
      %v10849 = vpack.c.b16 %v10775, %v10773
      %v10850 = vpack.c.b16 %v10778, %v10776
      %v10851 = vpack.c.b16 %v10779, %v10777
      %v10852 = vpack.c.b16 %v10782, %v10780
      %v10853 = vpack.c.b16 %v10783, %v10781
      %v10854 = vpack.c.b16 %v10786, %v10784
      %v10855 = vpack.c.b16 %v10787, %v10785
      %v10856 = vpack.c.b16 %v10790, %v10788
      %v10857 = vpack.c.b16 %v10791, %v10789
      %v10858 = vpack.c.b16 %v10794, %v10792
      %v10859 = vpack.c.b16 %v10795, %v10793
      %10924 = vmatprep.subr.bf16.mxu0 %v10797
      %10925 = vmatpush1.bf16.msra.mxu0 %v10796
      %10926 = vmatprep.subr.bf16.mxu0 %v10799
      %10927 = vmatpush1.bf16.msra.mxu0 %v10798
      %10928 = vmatprep.subr.bf16.mxu0 %v10801
      %10929 = vmatpush1.bf16.msra.mxu0 %v10800
      %10930 = vmatprep.subr.bf16.mxu0 %v10803
      %10931 = vmatpush1.bf16.msra.mxu0 %v10802
      %10932 = vmatprep.subr.bf16.mxu0 %v10805
      %10933 = vmatpush1.bf16.msra.mxu0 %v10804
      %10934 = vmatprep.subr.bf16.mxu0 %v10807
      %10935 = vmatpush1.bf16.msra.mxu0 %v10806
      %10936 = vmatprep.subr.bf16.mxu0 %v10809
      %10937 = vmatpush1.bf16.msra.mxu0 %v10808
      %10938 = vmatprep.subr.bf16.mxu0 %v10811
      %10939 = vmatpush1.bf16.msra.mxu0 %v10810
      %10940 = vmatprep.subr.bf16.mxu0 %v10813
      %10941 = vmatpush1.bf16.msra.mxu0 %v10812
      %10942 = vmatprep.subr.bf16.mxu0 %v10815
      %10943 = vmatpush1.bf16.msra.mxu0 %v10814
      %10944 = vmatprep.subr.bf16.mxu0 %v10817
      %10945 = vmatpush1.bf16.msra.mxu0 %v10816
      %10946 = vmatprep.subr.bf16.mxu0 %v10819
      %10947 = vmatpush1.bf16.msra.mxu0 %v10818
      %10948 = vmatprep.subr.bf16.mxu0 %v10821
      %10949 = vmatpush1.bf16.msra.mxu0 %v10820
      %10950 = vmatprep.subr.bf16.mxu0 %v10823
      %10951 = vmatpush1.bf16.msra.mxu0 %v10822
      %10952 = vmatprep.subr.bf16.mxu0 %v10825
      %10953 = vmatpush1.bf16.msra.mxu0 %v10824
      %10954 = vmatprep.subr.bf16.mxu0 %v10827
      %10955 = vmatpush1.bf16.msra.mxu0 %v10826
      %10956 = vmatprep.mubr.bf16.mxu0 %v10528
      %10957 = vmatmul.mubr.bf16.gmra.mrb[0].mxu0 %v10527
      %v10958 = vpop.f32.mrb[0].mxu0
      %v10959 = vadd.f32 %v10599, %v10958
      %v10960 = vpop.f32.mrb[0].mxu0
      %v10961 = vadd.f32 %v10603, %v10960
      %v10962 = vpop.f32.mrb[0].mxu0
      %v10963 = vpop.f32.mrb[0].mxu0
      %10964 = vdwg.mxu0
      %10965 = vmatprep.subr.bf16.mxu0 %v10829
      %10966 = vmatpush1.bf16.msra.mxu0 %v10828
      %10967 = vmatprep.subr.bf16.mxu0 %v10831
      %10968 = vmatpush1.bf16.msra.mxu0 %v10830
      %10969 = vmatprep.subr.bf16.mxu0 %v10833
      %10970 = vmatpush1.bf16.msra.mxu0 %v10832
      %10971 = vmatprep.subr.bf16.mxu0 %v10835
      %10972 = vmatpush1.bf16.msra.mxu0 %v10834
      %10973 = vmatprep.subr.bf16.mxu0 %v10837
      %10974 = vmatpush1.bf16.msra.mxu0 %v10836
      %10975 = vmatprep.subr.bf16.mxu0 %v10839
      %10976 = vmatpush1.bf16.msra.mxu0 %v10838
      %10977 = vmatprep.subr.bf16.mxu0 %v10841
      %10978 = vmatpush1.bf16.msra.mxu0 %v10840
      %10979 = vmatprep.subr.bf16.mxu0 %v10843
      %10980 = vmatpush1.bf16.msra.mxu0 %v10842
      %10981 = vmatprep.subr.bf16.mxu0 %v10845
      %10982 = vmatpush1.bf16.msra.mxu0 %v10844
      %10983 = vmatprep.subr.bf16.mxu0 %v10847
      %10984 = vmatpush1.bf16.msra.mxu0 %v10846
      %10985 = vmatprep.subr.bf16.mxu0 %v10849
      %10986 = vmatpush1.bf16.msra.mxu0 %v10848
      %10987 = vmatprep.subr.bf16.mxu0 %v10851
      %10988 = vmatpush1.bf16.msra.mxu0 %v10850
      %10989 = vmatprep.subr.bf16.mxu0 %v10853
      %10990 = vmatpush1.bf16.msra.mxu0 %v10852
      %10991 = vmatprep.subr.bf16.mxu0 %v10855
      %10992 = vmatpush1.bf16.msra.mxu0 %v10854
      %10993 = vmatprep.subr.bf16.mxu0 %v10857
      %10994 = vmatpush1.bf16.msra.mxu0 %v10856
      %10995 = vmatprep.subr.bf16.mxu0 %v10859
      %10996 = vmatpush1.bf16.msra.mxu0 %v10858
      %10997 = vmatprep.mubr.bf16.mxu0 %v10530
      %10998 = vmatmul.mubr.bf16.gmra.mrb[0].mxu0 %v10529
      %v10999 = vpop.f32.mrb[0].mxu0
      %v11000 = vadd.f32 %v10959, %v10999
      %v11001 = vpop.f32.mrb[0].mxu0
      %v11002 = vadd.f32 %v10961, %v11001
      %v11003 = vpop.f32.mrb[0].mxu0
      %v11004 = vpop.f32.mrb[0].mxu0
      %11005 = vdwg.mxu0
      %v11006 = vadd.f32 %v9889, %v11000
      %v11007 = vadd.f32 %v9890, %v11002
      %v11008 = vld [vmem:[%s10] ss:$2 sm:$0x3]
      %s11009 = scalar_lea.vmem %s10, 1
      %v11010 = vld [vmem:[%s11009] ss:$2 sm:$0x3]
      %vm11011 = vcmask 1040384
      %v11012 = vsel %vm11011, %v11006, 0.0
      %v11013 = vsel %vm11011, %v11007, 0.0
      %v11014 = vadd.f32 %v11012, %v11013
      %11015 = vadd.xlane.f32.xlu0 %v11014
      %v11016 = vpop.xlane.xlu0 %11015
      %v11017 = vmul.f32 %v11016, %v636
      %v11018 = vsub.f32 %v11006, %v11017
      %v11019 = vsub.f32 %v11007, %v11017
      %v11020 = vmul.f32 %v11018, %v11018
      %v11021 = vmul.f32 %v11019, %v11019
      %v11022 = vsel %vm11011, %v11020, 0.0
      %v11023 = vsel %vm11011, %v11021, 0.0
      %v11024 = vadd.f32 %v11022, %v11023
      %11025 = vadd.xlane.f32.xlu0 %v11024
      %v11026 = vpop.xlane.xlu0 %11025
      %v11027 = vmul.f32 %v11026, %v636
      %v11028 = vadd.f32 %v11027, 1e-05
      %v11029 = vrsqrt.pop %v11028
      %v11030 = vmul.f32 %v11018, %v11029
      %v11031 = vmul.f32 %v11019, %v11029
      %v11033 = vlaneseq
      %v11034 = vshrl.u32 %v11033, 7
      %v11035 = vsub.s32 0, %v11034
      %v11036 = vrot.slane %v11008, %v11035
      %v11037 = vlaneseq
      %v11038 = vshrl.u32 %v11037, 7
      %v11039 = vsub.s32 1, %v11038
      %v11040 = vrot.slane %v11008, %v11039
      %v11043 = vmul.f32 %v11030, %v11036
      %v11044 = vmul.f32 %v11031, %v11040
      %v11046 = vlaneseq
      %v11047 = vshrl.u32 %v11046, 7
      %v11048 = vsub.s32 0, %v11047
      %v11049 = vrot.slane %v11010, %v11048
      %v11050 = vlaneseq
      %v11051 = vshrl.u32 %v11050, 7
      %v11052 = vsub.s32 1, %v11051
      %v11053 = vrot.slane %v11010, %v11052
      %v11056 = vadd.f32 %v11043, %v11049
      %v11057 = vadd.f32 %v11044, %v11053
      %v11060 = vcombine.low %v11056, %v11057
      %v11062 = vunpack.c.l.s4 1966171168
      %v11063 = vunpack.c.0.s8 %v11062
      %v11064 = vlaneseq
      %v11065 = vshrl.u32 %v11064, 7
      %v11066 = vsub.s32 %v11063, %v11065
      %v11067 = vrot.slane %v11060, %v11066
      %v11069 = vunpack.c.l.s4 1966171168
      %v11070 = vunpack.c.0.s8 %v11069
      %v11071 = vlaneseq
      %v11072 = vshrl.u32 %v11071, 7
      %v11073 = vsub.s32 %v11070, %v11072
      %v11074 = vrot.slane %v11067, %v11073
      %v11076 = vlaneseq
      %vm11077 = vcmp.ge.s32.totalorder %v11076, 0
      %vm11078 = vcmp.lt.s32.totalorder %v11076, 256
      %vm11079 = vmand %vm11077, %vm11078
      %11080 = vst.msk [vmem:[%s384] sm:$0x3] %vm11079, %v11074
      %p11081 = scmp.lt.s32.totalorder %s22, 1
      %s11082 = scalar_select %p11081, %s22, 1
      %s11083 = smul.addr %s11082, 2
      %s11084 = scalar_lea.vmem %s11, %s11083
      // Predicated region
      $region65: #{dro_forward.1} parent=63 // pred_check
        %p11085 = pneg %p276
      $region66: #{dro_forward.1} parent=63 // pred_check_branch
        %11087 = sbr.rel (%p11085) target = $region68
      $region67: #{dro_forward.1} parent=63 // pred_region
        _
      $region68: #{dro_forward.1} parent=63 // pred_fallthru
        _
    $region64: #{dro_forward.1} parent=5 // pred_fallthru
      _
    %p11088 = scmp.le.s32.totalorder 2, %s17
    // Predicated region
    $region69: #{dro_forward.1} parent=5 // pred_check
      %p11089 = pneg %p11088
    $region70: #{dro_forward.1} parent=5 // pred_check_branch
      %11091 = sbr.rel (%p11089) target = $region72
    $region71: #{dro_forward.1} parent=5 // pred_region
      %s11092 = ssub.s32 %s17, 2
      // Predicated region
      $region73: #{dro_forward.1} parent=71 // pred_check
        %p11093 = pneg %p282
      $region74: #{dro_forward.1} parent=71 // pred_check_branch
        %11095 = sbr.rel (%p11093) target = $region76
      $region75: #{dro_forward.1} parent=71 // pred_region
        %p11096 = scmp.lt.s32.totalorder %s23, 1
        %s11097 = scalar_select %p11096, %s23, 1
        %s11098 = smul.addr %s11097, 2
        %s11099 = scalar_lea.vmem %s11, %s11098
      $region76: #{dro_forward.1} parent=71 // pred_fallthru
        _
    $region72: #{dro_forward.1} parent=5 // pred_fallthru
      _
  $region6: #{dro_forward.1} parent=0 // loop_footer
    %s21 = sadd.s32 1, %s17
  $region7: #{dro_forward.1} parent=0 // loop_footer_branch
    %16 = sbr.rel target = $region3
  $region8: #{dro_forward.1} parent=0 // loop_exit
    _

</llo_original>
